<compile_context>
chip_gen: v7x
topology: tpu7x:2x2x1
jax: 0.10.0
libtpu: 0.0.40
codegen_flags: <defaults>
</compile_context>

<pallas_src>
import numpy as np
import jax
import jax.numpy as jnp
from jax.experimental import pallas as pl
from jax.experimental.pallas import tpu as pltpu

HYP = {'dropout': 0.05, 'f_fc1': 512, 'f_fc2': 1024, 'g_layers': [511, 512],
       'lstm_hidden': 256, 'lstm_word_emb': 300, 'question_injection_position': 1,
       'rl_in_size': 14, 'rl_out_size': 1, 'state_description': True}


# --------------------------- fused forward kernel ---------------------------
def _rn_kernel(q_ref, x_ref,
               wih_ref, whh_ref, bl_ref,
               w1_ref, b1_ref, w2x_ref, w2q_ref, b2_ref,
               wf1_ref, bf1_ref, wf2_ref, bf2_ref, wf3_ref, bf3_ref,
               out_ref, xg_ref, qst_ref):
    T = q_ref.shape[0]
    H = whh_ref.shape[0]
    G1P = b1_ref.shape[1]

    # ---------------- LSTM (this batch row), gate order i, f, g, o ----------------
    q = q_ref[...]                                                       # (T, E) f32
    # Hoist the input projection out of the recurrence: one (T,E)@(E,4H) matmul.
    xproj = jnp.dot(q.astype(jnp.bfloat16), wih_ref[...],
                    preferred_element_type=jnp.float32) + bl_ref[...]    # (T, 4H)
    whh = whh_ref[...]                                                   # (H, 4H) bf16

    h = jnp.zeros((1, H), jnp.float32)
    c = jnp.zeros((1, H), jnp.float32)
    for t in range(T):                                                   # fully unrolled
        gates = xproj[t:t + 1, :] + jnp.dot(h.astype(jnp.bfloat16), whh,
                                            preferred_element_type=jnp.float32)
        i_g = jax.nn.sigmoid(gates[:, 0:H])
        f_g = jax.nn.sigmoid(gates[:, H:2 * H])
        g_g = jnp.tanh(gates[:, 2 * H:3 * H])
        o_g = jax.nn.sigmoid(gates[:, 3 * H:4 * H])
        c = f_g * c + i_g * g_g
        h = o_g * jnp.tanh(c)
    qst = h                                                              # (1, H)

    # ---------------- g-network (all D*D pairs for this batch row) ----------------
    x = x_ref[...]                                                       # (D, K) f32
    D = x.shape[0]
    # Fused layer-1: x @ [w1a_pad | w1b_pad]  -> one small matmul instead of two.
    proj = jnp.dot(x, w1_ref[...], preferred_element_type=jnp.float32)   # (D, 2*G1P)
    a = proj[:, :G1P]                                                    # indexed by j
    bp = proj[:, G1P:]                                                   # indexed by i
    # pair (i, j) feature = concat(x[j], x[i])  (torch cat([x_i, x_j], 3))
    h1 = jnp.maximum(a[None, :, :] + bp[:, None, :] + b1_ref[...][None, :, :], 0.0)
    h1 = h1.reshape(D * D, G1P)                                          # (D*D, 512)

    # Question injection at g layer 1: fold q@W2q + b2 into a single bias row.
    qbias = jnp.dot(qst.astype(jnp.bfloat16), w2q_ref[...],
                    preferred_element_type=jnp.float32) + b2_ref[...]    # (1, G2)
    h2 = jnp.maximum(jnp.dot(h1.astype(jnp.bfloat16), w2x_ref[...],
                             preferred_element_type=jnp.float32) + qbias, 0.0)
    xg = jnp.sum(h2, axis=0, keepdims=True)                              # (1, G2)

    # ---------------- f-network + log_softmax ----------------
    hf = jnp.maximum(jnp.dot(xg.astype(jnp.bfloat16), wf1_ref[...],
                             preferred_element_type=jnp.float32) + bf1_ref[...], 0.0)
    hf = jnp.maximum(jnp.dot(hf.astype(jnp.bfloat16), wf2_ref[...],
                             preferred_element_type=jnp.float32) + bf2_ref[...], 0.0)
    # TODO(synk): nn.Dropout(p=0.05) is identity at inference time; modeled as a no-op.
    logits = jnp.dot(hf, wf3_ref[...], preferred_element_type=jnp.float32) + bf3_ref[...]
    m = jnp.max(logits, axis=1, keepdims=True)
    lse = jnp.log(jnp.sum(jnp.exp(logits - m), axis=1, keepdims=True)) + m
    out_ref[...] = logits - lse                                          # log_softmax, dim 1
    xg_ref[...] = xg
    qst_ref[...] = qst


def rn_forward(kp, x, qst_tokens, hyp, *, return_aux=False):
    B, D, K = x.shape
    T, _, E = qst_tokens.shape
    H = hyp['lstm_hidden']
    G1P = kp['b1'].shape[1]
    G2 = kp['b2'].shape[1]
    F1 = kp['bf1'].shape[1]
    F2 = kp['bf2'].shape[1]
    O = kp['bf3'].shape[1]

    q_bte = jnp.transpose(qst_tokens, (1, 0, 2))                         # (B, T, E)

    def wspec(r, c):
        return pl.BlockSpec((r, c), lambda b: (0, 0))

    out, xg, qst = pl.pallas_call(
        _rn_kernel,
        out_shape=(jax.ShapeDtypeStruct((B, 1, O), jnp.float32),
                   jax.ShapeDtypeStruct((B, 1, G2), jnp.float32),
                   jax.ShapeDtypeStruct((B, 1, H), jnp.float32)),
        grid=(B,),
        in_specs=[
            pl.BlockSpec((None, T, E), lambda b: (b, 0, 0)),             # question tokens (per batch row)
            pl.BlockSpec((None, D, K), lambda b: (b, 0, 0)),             # state description (per batch row)
            wspec(E, 4 * H), wspec(H, 4 * H), wspec(1, 4 * H),           # LSTM
            wspec(K, 2 * G1P), wspec(1, G1P),                            # g layer 0 (fused, padded)
            wspec(G1P, G2), wspec(H, G2), wspec(1, G2),                  # g layer 1 (question injection)
            wspec(G2, F1), wspec(1, F1), wspec(F1, F2), wspec(1, F2),    # f fc1/fc2
            wspec(F2, O), wspec(1, O),                                   # f fc3
        ],
        out_specs=(pl.BlockSpec((None, 1, O), lambda b: (b, 0, 0)),
                   pl.BlockSpec((None, 1, G2), lambda b: (b, 0, 0)),
                   pl.BlockSpec((None, 1, H), lambda b: (b, 0, 0))),
        compiler_params=pltpu.CompilerParams(
            dimension_semantics=("parallel",),
            vmem_limit_bytes=32 * 1024 * 1024),
    )(q_bte, x,
      kp['w_ih'], kp['w_hh'], kp['b_lstm'],
      kp['w1'], kp['b1'], kp['w2x'], kp['w2q'], kp['b2'],
      kp['wf1'], kp['bf1'], kp['wf2'], kp['bf2'], kp['wf3'], kp['bf3'])

    out = out.reshape(B, O)
    if return_aux:
        return out, xg.reshape(B, G2), qst.reshape(B, H)
    return out


# ------------------------------ parameters ----------------------------------
def init_params(key, hyp):
    """f32, unpadded, PyTorch-equivalent parameters (Linear weights stored (in, out))."""
    ks = jax.random.split(key, 15)
    E, H = hyp['lstm_word_emb'], hyp['lstm_hidden']
    K = hyp['rl_in_size'] // 2
    G1, G2 = hyp['g_layers']
    F1, F2 = hyp['f_fc1'], hyp['f_fc2']
    O = hyp['rl_out_size']
    s = 0.1
    n = lambda k, shape: jax.random.normal(k, shape, jnp.float32) * s
    return {
        'w_ih': n(ks[0], (E, 4 * H)), 'w_hh': n(ks[1], (H, 4 * H)), 'b_lstm': n(ks[2], (1, 4 * H)),
        'w1a': n(ks[3], (K, G1)), 'w1b': n(ks[4], (K, G1)), 'b1': n(ks[5], (1, G1)),
        'w2x': n(ks[6], (G1, G2)), 'w2q': n(ks[7], (H, G2)), 'b2': n(ks[8], (1, G2)),
        'wf1': n(ks[9], (G2, F1)), 'bf1': n(ks[10], (1, F1)),
        'wf2': n(ks[11], (F1, F2)), 'bf2': n(ks[12], (1, F2)),
        'wf3': n(ks[13], (F2, O)), 'bf3': n(ks[14], (1, O)),
    }


def pack_params(p, hyp):
    """Kernel-ready params: G1 zero-padded 511->512 (exact), big weights cast to bf16."""
    G1 = hyp['g_layers'][0]
    G1P = ((G1 + 127) // 128) * 128
    padc = lambda w: jnp.pad(w, ((0, 0), (0, G1P - w.shape[1])))
    bf16 = lambda w: w.astype(jnp.bfloat16)
    w1 = jnp.concatenate([padc(p['w1a']), padc(p['w1b'])], axis=1)       # (K, 2*G1P)
    w2x = jnp.pad(p['w2x'], ((0, G1P - G1), (0, 0)))                     # zero rows -> exact
    return {
        'w_ih': bf16(p['w_ih']), 'w_hh': bf16(p['w_hh']), 'b_lstm': p['b_lstm'],
        'w1': w1, 'b1': padc(p['b1']),
        'w2x': bf16(w2x), 'w2q': bf16(p['w2q']), 'b2': p['b2'],
        'wf1': bf16(p['wf1']), 'bf1': p['bf1'],
        'wf2': bf16(p['wf2']), 'bf2': p['bf2'],
        'wf3': p['wf3'], 'bf3': p['bf3'],
    }


# ---------------------------- pure-JAX reference ----------------------------
def rn_reference(kp, x, qst_tokens, hyp):
    """Reference using the same (dequantized, padded) weights as the kernel."""
    H = hyp['lstm_hidden']
    up = lambda a: a.astype(jnp.float32)
    wih, whh, bl = up(kp['w_ih']), up(kp['w_hh']), kp['b_lstm']
    T, B, _ = qst_tokens.shape

    def step(carry, xt):
        h, c = carry
        gates = xt @ wih + h @ whh + bl
        i = jax.nn.sigmoid(gates[:, :H]); f = jax.nn.sigmoid(gates[:, H:2 * H])
        g = jnp.tanh(gates[:, 2 * H:3 * H]); o = jax.nn.sigmoid(gates[:, 3 * H:])
        c = f * c + i * g
        h = o * jnp.tanh(c)
        return (h, c), None

    (qst, _), _ = jax.lax.scan(step, (jnp.zeros((B, H)), jnp.zeros((B, H))), qst_tokens)

    w1 = up(kp['w1']); G1P = w1.shape[1] // 2
    w1a, w1b = w1[:, :G1P], w1[:, G1P:]
    Bx, D, _ = x.shape
    a = x @ w1a                                                          # (B, D, G1P), indexed by j
    bp = x @ w1b                                                         # indexed by i
    h1 = jax.nn.relu(a[:, None, :, :] + bp[:, :, None, :] + kp['b1'][0])  # (B, D, D, G1P)
    qproj = qst @ up(kp['w2q']) + kp['b2']                               # (B, G2)
    h2 = jax.nn.relu(h1.reshape(Bx, D * D, G1P) @ up(kp['w2x']) + qproj[:, None, :])
    xg = h2.sum(axis=1)                                                  # (B, G2)
    hf = jax.nn.relu(xg @ up(kp['wf1']) + kp['bf1'])
    hf = jax.nn.relu(hf @ up(kp['wf2']) + kp['bf2'])
    logits = hf @ kp['wf3'] + kp['bf3']
    return jax.nn.log_softmax(logits, axis=1), xg, qst


if __name__ == "__main__":
    key = jax.random.PRNGKey(0)
    k_par, kx, kq = jax.random.split(key, 3)
    raw_params = init_params(k_par, HYP)
    params = pack_params(raw_params, HYP)

    B, D = 2, 8
    K = HYP['rl_in_size'] // 2          # 7 features per object (pairs give rl_in_size=14)
    T, E = 8, HYP['lstm_word_emb']
    x = jax.random.normal(kx, (B, D, K), jnp.float32)
    qst_tokens = jax.random.normal(kq, (T, B, E), jnp.float32)

    # TODO(synk): the original forward passes the raw nn.LSTM output tuple into the relational
    # layer (would crash in torch); we use the final hidden state h_T as the question vector.
    out, xg_k, qst_k = rn_forward(params, x, qst_tokens, HYP, return_aux=True)
    out = jax.block_until_ready(out)

    ref_out, ref_xg, ref_q = rn_reference(params, x, qst_tokens, HYP)

    assert out.shape == (B, HYP['rl_out_size'])
    assert np.all(np.isfinite(np.asarray(out)))
    np.testing.assert_allclose(np.asarray(qst_k), np.asarray(ref_q), rtol=5e-2, atol=5e-2)
    np.testing.assert_allclose(np.asarray(xg_k), np.asarray(ref_xg), rtol=3e-2, atol=2e-1)
    np.testing.assert_allclose(np.asarray(out), np.asarray(ref_out), rtol=5e-2, atol=5e-2)
    print("KERNEL_OK")
</pallas_src>

<mosaic_0001>
module attributes {stable_mosaic.version = 11 : i64} {
  func.func @_rn_kernel(%arg0: i32, %arg1: memref<1x8x300xf32, #tpu.memory_space<vmem>>, %arg2: memref<1x8x7xf32, #tpu.memory_space<vmem>>, %arg3: memref<300x1024xbf16, #tpu.memory_space<vmem>>, %arg4: memref<256x1024xbf16, #tpu.memory_space<vmem>>, %arg5: memref<1x1024xf32, #tpu.memory_space<vmem>>, %arg6: memref<7x1024xf32, #tpu.memory_space<vmem>>, %arg7: memref<1x512xf32, #tpu.memory_space<vmem>>, %arg8: memref<512x512xbf16, #tpu.memory_space<vmem>>, %arg9: memref<256x512xbf16, #tpu.memory_space<vmem>>, %arg10: memref<1x512xf32, #tpu.memory_space<vmem>>, %arg11: memref<512x512xbf16, #tpu.memory_space<vmem>>, %arg12: memref<1x512xf32, #tpu.memory_space<vmem>>, %arg13: memref<512x1024xbf16, #tpu.memory_space<vmem>>, %arg14: memref<1x1024xf32, #tpu.memory_space<vmem>>, %arg15: memref<1024x1xf32, #tpu.memory_space<vmem>>, %arg16: memref<1x1xf32, #tpu.memory_space<vmem>>, %arg17: memref<1x1x1xf32, #tpu.memory_space<vmem>>, %arg18: memref<1x1x512xf32, #tpu.memory_space<vmem>>, %arg19: memref<1x1x256xf32, #tpu.memory_space<vmem>>) attributes {dimension_semantics = [#tpu.dimension_semantics<parallel>], iteration_bounds = array<i64: 2>, scalar_prefetch = 0 : i64, scratch_operands = 0 : i64, tpu.core_type = #tpu.core_type<tc>, window_params = [{transform_indices = @transform_0, window_bounds = array<i64: 1, 8, 300>}, {transform_indices = @transform_1, window_bounds = array<i64: 1, 8, 7>}, {pipeline_mode = #tpu.pipeline_mode<synchronous>, transform_indices = @transform_2, window_bounds = array<i64: 300, 1024>}, {pipeline_mode = #tpu.pipeline_mode<synchronous>, transform_indices = @transform_3, window_bounds = array<i64: 256, 1024>}, {pipeline_mode = #tpu.pipeline_mode<synchronous>, transform_indices = @transform_4, window_bounds = array<i64: 1, 1024>}, {pipeline_mode = #tpu.pipeline_mode<synchronous>, transform_indices = @transform_5, window_bounds = array<i64: 7, 1024>}, {pipeline_mode = #tpu.pipeline_mode<synchronous>, transform_indices = @transform_6, window_bounds = array<i64: 1, 512>}, {pipeline_mode = #tpu.pipeline_mode<synchronous>, transform_indices = @transform_7, window_bounds = array<i64: 512, 512>}, {pipeline_mode = #tpu.pipeline_mode<synchronous>, transform_indices = @transform_8, window_bounds = array<i64: 256, 512>}, {pipeline_mode = #tpu.pipeline_mode<synchronous>, transform_indices = @transform_9, window_bounds = array<i64: 1, 512>}, {pipeline_mode = #tpu.pipeline_mode<synchronous>, transform_indices = @transform_10, window_bounds = array<i64: 512, 512>}, {pipeline_mode = #tpu.pipeline_mode<synchronous>, transform_indices = @transform_11, window_bounds = array<i64: 1, 512>}, {pipeline_mode = #tpu.pipeline_mode<synchronous>, transform_indices = @transform_12, window_bounds = array<i64: 512, 1024>}, {pipeline_mode = #tpu.pipeline_mode<synchronous>, transform_indices = @transform_13, window_bounds = array<i64: 1, 1024>}, {pipeline_mode = #tpu.pipeline_mode<synchronous>, transform_indices = @transform_14, window_bounds = array<i64: 1024, 1>}, {pipeline_mode = #tpu.pipeline_mode<synchronous>, transform_indices = @transform_15, window_bounds = array<i64: 1, 1>}, {transform_indices = @transform_16, window_bounds = array<i64: 1, 1, 1>}, {transform_indices = @transform_17, window_bounds = array<i64: 1, 1, 512>}, {transform_indices = @transform_18, window_bounds = array<i64: 1, 1, 256>}]} {
    %c0 = arith.constant 0 : index
    %c0_0 = arith.constant 0 : index
    %c0_1 = arith.constant 0 : index
    %0 = vector.load %arg1[%c0, %c0_0, %c0_1] : memref<1x8x300xf32, #tpu.memory_space<vmem>>, vector<1x8x300xf32>
    %1 = vector.shape_cast %0 : vector<1x8x300xf32> to vector<8x300xf32>
    %2 = arith.truncf %1 : vector<8x300xf32> to vector<8x300xbf16>
    %c0_2 = arith.constant 0 : index
    %c0_3 = arith.constant 0 : index
    %3 = vector.load %arg3[%c0_2, %c0_3] : memref<300x1024xbf16, #tpu.memory_space<vmem>>, vector<300x1024xbf16>
    %cst = arith.constant dense<0.000000e+00> : vector<8x1024xf32>
    %4 = tpu.matmul %2, %3, %cst {dimension_numbers = #tpu.dot_dimension_numbers<[1], [0], [0], [1], [0, 0, 1, 1], [], []>} : vector<8x300xbf16>, vector<300x1024xbf16>, vector<8x1024xf32> -> vector<8x1024xf32>
    %c0_4 = arith.constant 0 : index
    %c0_5 = arith.constant 0 : index
    %5 = vector.load %arg5[%c0_4, %c0_5] : memref<1x1024xf32, #tpu.memory_space<vmem>>, vector<1x1024xf32>
    %6 = vector.broadcast %5 : vector<1x1024xf32> to vector<8x1024xf32>
    %7 = arith.addf %4, %6 : vector<8x1024xf32>
    %c0_6 = arith.constant 0 : index
    %c0_7 = arith.constant 0 : index
    %8 = vector.load %arg4[%c0_6, %c0_7] : memref<256x1024xbf16, #tpu.memory_space<vmem>>, vector<256x1024xbf16>
    %cst_8 = arith.constant 0.000000e+00 : f32
    %9 = vector.broadcast %cst_8 : f32 to vector<1x256xf32>
    %cst_9 = arith.constant 0.000000e+00 : f32
    %10 = vector.broadcast %cst_9 : f32 to vector<1x256xf32>
    %11 = vector.extract_strided_slice %7 {offsets = [0, 0], sizes = [1, 1024], strides = [1, 1]} : vector<8x1024xf32> to vector<1x1024xf32>
    %12 = arith.truncf %9 : vector<1x256xf32> to vector<1x256xbf16>
    %cst_10 = arith.constant dense<0.000000e+00> : vector<1x1024xf32>
    %13 = tpu.matmul %12, %8, %cst_10 {dimension_numbers = #tpu.dot_dimension_numbers<[1], [0], [0], [1], [0, 0, 1, 1], [], []>} : vector<1x256xbf16>, vector<256x1024xbf16>, vector<1x1024xf32> -> vector<1x1024xf32>
    %14 = arith.addf %11, %13 : vector<1x1024xf32>
    %15 = vector.extract_strided_slice %14 {offsets = [0, 0], sizes = [1, 256], strides = [1, 1]} : vector<1x1024xf32> to vector<1x256xf32>
    %16 = arith.negf %15 : vector<1x256xf32>
    %17 = math.exp %16 : vector<1x256xf32>
    %cst_11 = arith.constant 1.000000e+00 : f32
    %18 = vector.broadcast %cst_11 : f32 to vector<1x256xf32>
    %19 = arith.addf %18, %17 : vector<1x256xf32>
    %20 = arith.divf %18, %19 : vector<1x256xf32>
    %21 = vector.extract_strided_slice %14 {offsets = [0, 256], sizes = [1, 256], strides = [1, 1]} : vector<1x1024xf32> to vector<1x256xf32>
    %22 = arith.negf %21 : vector<1x256xf32>
    %23 = math.exp %22 : vector<1x256xf32>
    %cst_12 = arith.constant 1.000000e+00 : f32
    %24 = vector.broadcast %cst_12 : f32 to vector<1x256xf32>
    %25 = arith.addf %24, %23 : vector<1x256xf32>
    %26 = arith.divf %24, %25 : vector<1x256xf32>
    %27 = vector.extract_strided_slice %14 {offsets = [0, 512], sizes = [1, 256], strides = [1, 1]} : vector<1x1024xf32> to vector<1x256xf32>
    %28 = math.tanh %27 : vector<1x256xf32>
    %29 = vector.extract_strided_slice %14 {offsets = [0, 768], sizes = [1, 256], strides = [1, 1]} : vector<1x1024xf32> to vector<1x256xf32>
    %30 = arith.negf %29 : vector<1x256xf32>
    %31 = math.exp %30 : vector<1x256xf32>
    %cst_13 = arith.constant 1.000000e+00 : f32
    %32 = vector.broadcast %cst_13 : f32 to vector<1x256xf32>
    %33 = arith.addf %32, %31 : vector<1x256xf32>
    %34 = arith.divf %32, %33 : vector<1x256xf32>
    %35 = arith.mulf %26, %10 : vector<1x256xf32>
    %36 = arith.mulf %20, %28 : vector<1x256xf32>
    %37 = arith.addf %35, %36 : vector<1x256xf32>
    %38 = math.tanh %37 : vector<1x256xf32>
    %39 = arith.mulf %34, %38 : vector<1x256xf32>
    %40 = vector.extract_strided_slice %7 {offsets = [1, 0], sizes = [1, 1024], strides = [1, 1]} : vector<8x1024xf32> to vector<1x1024xf32>
    %41 = arith.truncf %39 : vector<1x256xf32> to vector<1x256xbf16>
    %cst_14 = arith.constant dense<0.000000e+00> : vector<1x1024xf32>
    %42 = tpu.matmul %41, %8, %cst_14 {dimension_numbers = #tpu.dot_dimension_numbers<[1], [0], [0], [1], [0, 0, 1, 1], [], []>} : vector<1x256xbf16>, vector<256x1024xbf16>, vector<1x1024xf32> -> vector<1x1024xf32>
    %43 = arith.addf %40, %42 : vector<1x1024xf32>
    %44 = vector.extract_strided_slice %43 {offsets = [0, 0], sizes = [1, 256], strides = [1, 1]} : vector<1x1024xf32> to vector<1x256xf32>
    %45 = arith.negf %44 : vector<1x256xf32>
    %46 = math.exp %45 : vector<1x256xf32>
    %cst_15 = arith.constant 1.000000e+00 : f32
    %47 = vector.broadcast %cst_15 : f32 to vector<1x256xf32>
    %48 = arith.addf %47, %46 : vector<1x256xf32>
    %49 = arith.divf %47, %48 : vector<1x256xf32>
    %50 = vector.extract_strided_slice %43 {offsets = [0, 256], sizes = [1, 256], strides = [1, 1]} : vector<1x1024xf32> to vector<1x256xf32>
    %51 = arith.negf %50 : vector<1x256xf32>
    %52 = math.exp %51 : vector<1x256xf32>
    %cst_16 = arith.constant 1.000000e+00 : f32
    %53 = vector.broadcast %cst_16 : f32 to vector<1x256xf32>
    %54 = arith.addf %53, %52 : vector<1x256xf32>
    %55 = arith.divf %53, %54 : vector<1x256xf32>
    %56 = vector.extract_strided_slice %43 {offsets = [0, 512], sizes = [1, 256], strides = [1, 1]} : vector<1x1024xf32> to vector<1x256xf32>
    %57 = math.tanh %56 : vector<1x256xf32>
    %58 = vector.extract_strided_slice %43 {offsets = [0, 768], sizes = [1, 256], strides = [1, 1]} : vector<1x1024xf32> to vector<1x256xf32>
    %59 = arith.negf %58 : vector<1x256xf32>
    %60 = math.exp %59 : vector<1x256xf32>
    %cst_17 = arith.constant 1.000000e+00 : f32
    %61 = vector.broadcast %cst_17 : f32 to vector<1x256xf32>
    %62 = arith.addf %61, %60 : vector<1x256xf32>
    %63 = arith.divf %61, %62 : vector<1x256xf32>
    %64 = arith.mulf %55, %37 : vector<1x256xf32>
    %65 = arith.mulf %49, %57 : vector<1x256xf32>
    %66 = arith.addf %64, %65 : vector<1x256xf32>
    %67 = math.tanh %66 : vector<1x256xf32>
    %68 = arith.mulf %63, %67 : vector<1x256xf32>
    %69 = vector.extract_strided_slice %7 {offsets = [2, 0], sizes = [1, 1024], strides = [1, 1]} : vector<8x1024xf32> to vector<1x1024xf32>
    %70 = arith.truncf %68 : vector<1x256xf32> to vector<1x256xbf16>
    %cst_18 = arith.constant dense<0.000000e+00> : vector<1x1024xf32>
    %71 = tpu.matmul %70, %8, %cst_18 {dimension_numbers = #tpu.dot_dimension_numbers<[1], [0], [0], [1], [0, 0, 1, 1], [], []>} : vector<1x256xbf16>, vector<256x1024xbf16>, vector<1x1024xf32> -> vector<1x1024xf32>
    %72 = arith.addf %69, %71 : vector<1x1024xf32>
    %73 = vector.extract_strided_slice %72 {offsets = [0, 0], sizes = [1, 256], strides = [1, 1]} : vector<1x1024xf32> to vector<1x256xf32>
    %74 = arith.negf %73 : vector<1x256xf32>
    %75 = math.exp %74 : vector<1x256xf32>
    %cst_19 = arith.constant 1.000000e+00 : f32
    %76 = vector.broadcast %cst_19 : f32 to vector<1x256xf32>
    %77 = arith.addf %76, %75 : vector<1x256xf32>
    %78 = arith.divf %76, %77 : vector<1x256xf32>
    %79 = vector.extract_strided_slice %72 {offsets = [0, 256], sizes = [1, 256], strides = [1, 1]} : vector<1x1024xf32> to vector<1x256xf32>
    %80 = arith.negf %79 : vector<1x256xf32>
    %81 = math.exp %80 : vector<1x256xf32>
    %cst_20 = arith.constant 1.000000e+00 : f32
    %82 = vector.broadcast %cst_20 : f32 to vector<1x256xf32>
    %83 = arith.addf %82, %81 : vector<1x256xf32>
    %84 = arith.divf %82, %83 : vector<1x256xf32>
    %85 = vector.extract_strided_slice %72 {offsets = [0, 512], sizes = [1, 256], strides = [1, 1]} : vector<1x1024xf32> to vector<1x256xf32>
    %86 = math.tanh %85 : vector<1x256xf32>
    %87 = vector.extract_strided_slice %72 {offsets = [0, 768], sizes = [1, 256], strides = [1, 1]} : vector<1x1024xf32> to vector<1x256xf32>
    %88 = arith.negf %87 : vector<1x256xf32>
    %89 = math.exp %88 : vector<1x256xf32>
    %cst_21 = arith.constant 1.000000e+00 : f32
    %90 = vector.broadcast %cst_21 : f32 to vector<1x256xf32>
    %91 = arith.addf %90, %89 : vector<1x256xf32>
    %92 = arith.divf %90, %91 : vector<1x256xf32>
    %93 = arith.mulf %84, %66 : vector<1x256xf32>
    %94 = arith.mulf %78, %86 : vector<1x256xf32>
    %95 = arith.addf %93, %94 : vector<1x256xf32>
    %96 = math.tanh %95 : vector<1x256xf32>
    %97 = arith.mulf %92, %96 : vector<1x256xf32>
    %98 = vector.extract_strided_slice %7 {offsets = [3, 0], sizes = [1, 1024], strides = [1, 1]} : vector<8x1024xf32> to vector<1x1024xf32>
    %99 = arith.truncf %97 : vector<1x256xf32> to vector<1x256xbf16>
    %cst_22 = arith.constant dense<0.000000e+00> : vector<1x1024xf32>
    %100 = tpu.matmul %99, %8, %cst_22 {dimension_numbers = #tpu.dot_dimension_numbers<[1], [0], [0], [1], [0, 0, 1, 1], [], []>} : vector<1x256xbf16>, vector<256x1024xbf16>, vector<1x1024xf32> -> vector<1x1024xf32>
    %101 = arith.addf %98, %100 : vector<1x1024xf32>
    %102 = vector.extract_strided_slice %101 {offsets = [0, 0], sizes = [1, 256], strides = [1, 1]} : vector<1x1024xf32> to vector<1x256xf32>
    %103 = arith.negf %102 : vector<1x256xf32>
    %104 = math.exp %103 : vector<1x256xf32>
    %cst_23 = arith.constant 1.000000e+00 : f32
    %105 = vector.broadcast %cst_23 : f32 to vector<1x256xf32>
    %106 = arith.addf %105, %104 : vector<1x256xf32>
    %107 = arith.divf %105, %106 : vector<1x256xf32>
    %108 = vector.extract_strided_slice %101 {offsets = [0, 256], sizes = [1, 256], strides = [1, 1]} : vector<1x1024xf32> to vector<1x256xf32>
    %109 = arith.negf %108 : vector<1x256xf32>
    %110 = math.exp %109 : vector<1x256xf32>
    %cst_24 = arith.constant 1.000000e+00 : f32
    %111 = vector.broadcast %cst_24 : f32 to vector<1x256xf32>
    %112 = arith.addf %111, %110 : vector<1x256xf32>
    %113 = arith.divf %111, %112 : vector<1x256xf32>
    %114 = vector.extract_strided_slice %101 {offsets = [0, 512], sizes = [1, 256], strides = [1, 1]} : vector<1x1024xf32> to vector<1x256xf32>
    %115 = math.tanh %114 : vector<1x256xf32>
    %116 = vector.extract_strided_slice %101 {offsets = [0, 768], sizes = [1, 256], strides = [1, 1]} : vector<1x1024xf32> to vector<1x256xf32>
    %117 = arith.negf %116 : vector<1x256xf32>
    %118 = math.exp %117 : vector<1x256xf32>
    %cst_25 = arith.constant 1.000000e+00 : f32
    %119 = vector.broadcast %cst_25 : f32 to vector<1x256xf32>
    %120 = arith.addf %119, %118 : vector<1x256xf32>
    %121 = arith.divf %119, %120 : vector<1x256xf32>
    %122 = arith.mulf %113, %95 : vector<1x256xf32>
    %123 = arith.mulf %107, %115 : vector<1x256xf32>
    %124 = arith.addf %122, %123 : vector<1x256xf32>
    %125 = math.tanh %124 : vector<1x256xf32>
    %126 = arith.mulf %121, %125 : vector<1x256xf32>
    %127 = vector.extract_strided_slice %7 {offsets = [4, 0], sizes = [1, 1024], strides = [1, 1]} : vector<8x1024xf32> to vector<1x1024xf32>
    %128 = arith.truncf %126 : vector<1x256xf32> to vector<1x256xbf16>
    %cst_26 = arith.constant dense<0.000000e+00> : vector<1x1024xf32>
    %129 = tpu.matmul %128, %8, %cst_26 {dimension_numbers = #tpu.dot_dimension_numbers<[1], [0], [0], [1], [0, 0, 1, 1], [], []>} : vector<1x256xbf16>, vector<256x1024xbf16>, vector<1x1024xf32> -> vector<1x1024xf32>
    %130 = arith.addf %127, %129 : vector<1x1024xf32>
    %131 = vector.extract_strided_slice %130 {offsets = [0, 0], sizes = [1, 256], strides = [1, 1]} : vector<1x1024xf32> to vector<1x256xf32>
    %132 = arith.negf %131 : vector<1x256xf32>
    %133 = math.exp %132 : vector<1x256xf32>
    %cst_27 = arith.constant 1.000000e+00 : f32
    %134 = vector.broadcast %cst_27 : f32 to vector<1x256xf32>
    %135 = arith.addf %134, %133 : vector<1x256xf32>
    %136 = arith.divf %134, %135 : vector<1x256xf32>
    %137 = vector.extract_strided_slice %130 {offsets = [0, 256], sizes = [1, 256], strides = [1, 1]} : vector<1x1024xf32> to vector<1x256xf32>
    %138 = arith.negf %137 : vector<1x256xf32>
    %139 = math.exp %138 : vector<1x256xf32>
    %cst_28 = arith.constant 1.000000e+00 : f32
    %140 = vector.broadcast %cst_28 : f32 to vector<1x256xf32>
    %141 = arith.addf %140, %139 : vector<1x256xf32>
    %142 = arith.divf %140, %141 : vector<1x256xf32>
    %143 = vector.extract_strided_slice %130 {offsets = [0, 512], sizes = [1, 256], strides = [1, 1]} : vector<1x1024xf32> to vector<1x256xf32>
    %144 = math.tanh %143 : vector<1x256xf32>
    %145 = vector.extract_strided_slice %130 {offsets = [0, 768], sizes = [1, 256], strides = [1, 1]} : vector<1x1024xf32> to vector<1x256xf32>
    %146 = arith.negf %145 : vector<1x256xf32>
    %147 = math.exp %146 : vector<1x256xf32>
    %cst_29 = arith.constant 1.000000e+00 : f32
    %148 = vector.broadcast %cst_29 : f32 to vector<1x256xf32>
    %149 = arith.addf %148, %147 : vector<1x256xf32>
    %150 = arith.divf %148, %149 : vector<1x256xf32>
    %151 = arith.mulf %142, %124 : vector<1x256xf32>
    %152 = arith.mulf %136, %144 : vector<1x256xf32>
    %153 = arith.addf %151, %152 : vector<1x256xf32>
    %154 = math.tanh %153 : vector<1x256xf32>
    %155 = arith.mulf %150, %154 : vector<1x256xf32>
    %156 = vector.extract_strided_slice %7 {offsets = [5, 0], sizes = [1, 1024], strides = [1, 1]} : vector<8x1024xf32> to vector<1x1024xf32>
    %157 = arith.truncf %155 : vector<1x256xf32> to vector<1x256xbf16>
    %cst_30 = arith.constant dense<0.000000e+00> : vector<1x1024xf32>
    %158 = tpu.matmul %157, %8, %cst_30 {dimension_numbers = #tpu.dot_dimension_numbers<[1], [0], [0], [1], [0, 0, 1, 1], [], []>} : vector<1x256xbf16>, vector<256x1024xbf16>, vector<1x1024xf32> -> vector<1x1024xf32>
    %159 = arith.addf %156, %158 : vector<1x1024xf32>
    %160 = vector.extract_strided_slice %159 {offsets = [0, 0], sizes = [1, 256], strides = [1, 1]} : vector<1x1024xf32> to vector<1x256xf32>
    %161 = arith.negf %160 : vector<1x256xf32>
    %162 = math.exp %161 : vector<1x256xf32>
    %cst_31 = arith.constant 1.000000e+00 : f32
    %163 = vector.broadcast %cst_31 : f32 to vector<1x256xf32>
    %164 = arith.addf %163, %162 : vector<1x256xf32>
    %165 = arith.divf %163, %164 : vector<1x256xf32>
    %166 = vector.extract_strided_slice %159 {offsets = [0, 256], sizes = [1, 256], strides = [1, 1]} : vector<1x1024xf32> to vector<1x256xf32>
    %167 = arith.negf %166 : vector<1x256xf32>
    %168 = math.exp %167 : vector<1x256xf32>
    %cst_32 = arith.constant 1.000000e+00 : f32
    %169 = vector.broadcast %cst_32 : f32 to vector<1x256xf32>
    %170 = arith.addf %169, %168 : vector<1x256xf32>
    %171 = arith.divf %169, %170 : vector<1x256xf32>
    %172 = vector.extract_strided_slice %159 {offsets = [0, 512], sizes = [1, 256], strides = [1, 1]} : vector<1x1024xf32> to vector<1x256xf32>
    %173 = math.tanh %172 : vector<1x256xf32>
    %174 = vector.extract_strided_slice %159 {offsets = [0, 768], sizes = [1, 256], strides = [1, 1]} : vector<1x1024xf32> to vector<1x256xf32>
    %175 = arith.negf %174 : vector<1x256xf32>
    %176 = math.exp %175 : vector<1x256xf32>
    %cst_33 = arith.constant 1.000000e+00 : f32
    %177 = vector.broadcast %cst_33 : f32 to vector<1x256xf32>
    %178 = arith.addf %177, %176 : vector<1x256xf32>
    %179 = arith.divf %177, %178 : vector<1x256xf32>
    %180 = arith.mulf %171, %153 : vector<1x256xf32>
    %181 = arith.mulf %165, %173 : vector<1x256xf32>
    %182 = arith.addf %180, %181 : vector<1x256xf32>
    %183 = math.tanh %182 : vector<1x256xf32>
    %184 = arith.mulf %179, %183 : vector<1x256xf32>
    %185 = vector.extract_strided_slice %7 {offsets = [6, 0], sizes = [1, 1024], strides = [1, 1]} : vector<8x1024xf32> to vector<1x1024xf32>
    %186 = arith.truncf %184 : vector<1x256xf32> to vector<1x256xbf16>
    %cst_34 = arith.constant dense<0.000000e+00> : vector<1x1024xf32>
    %187 = tpu.matmul %186, %8, %cst_34 {dimension_numbers = #tpu.dot_dimension_numbers<[1], [0], [0], [1], [0, 0, 1, 1], [], []>} : vector<1x256xbf16>, vector<256x1024xbf16>, vector<1x1024xf32> -> vector<1x1024xf32>
    %188 = arith.addf %185, %187 : vector<1x1024xf32>
    %189 = vector.extract_strided_slice %188 {offsets = [0, 0], sizes = [1, 256], strides = [1, 1]} : vector<1x1024xf32> to vector<1x256xf32>
    %190 = arith.negf %189 : vector<1x256xf32>
    %191 = math.exp %190 : vector<1x256xf32>
    %cst_35 = arith.constant 1.000000e+00 : f32
    %192 = vector.broadcast %cst_35 : f32 to vector<1x256xf32>
    %193 = arith.addf %192, %191 : vector<1x256xf32>
    %194 = arith.divf %192, %193 : vector<1x256xf32>
    %195 = vector.extract_strided_slice %188 {offsets = [0, 256], sizes = [1, 256], strides = [1, 1]} : vector<1x1024xf32> to vector<1x256xf32>
    %196 = arith.negf %195 : vector<1x256xf32>
    %197 = math.exp %196 : vector<1x256xf32>
    %cst_36 = arith.constant 1.000000e+00 : f32
    %198 = vector.broadcast %cst_36 : f32 to vector<1x256xf32>
    %199 = arith.addf %198, %197 : vector<1x256xf32>
    %200 = arith.divf %198, %199 : vector<1x256xf32>
    %201 = vector.extract_strided_slice %188 {offsets = [0, 512], sizes = [1, 256], strides = [1, 1]} : vector<1x1024xf32> to vector<1x256xf32>
    %202 = math.tanh %201 : vector<1x256xf32>
    %203 = vector.extract_strided_slice %188 {offsets = [0, 768], sizes = [1, 256], strides = [1, 1]} : vector<1x1024xf32> to vector<1x256xf32>
    %204 = arith.negf %203 : vector<1x256xf32>
    %205 = math.exp %204 : vector<1x256xf32>
    %cst_37 = arith.constant 1.000000e+00 : f32
    %206 = vector.broadcast %cst_37 : f32 to vector<1x256xf32>
    %207 = arith.addf %206, %205 : vector<1x256xf32>
    %208 = arith.divf %206, %207 : vector<1x256xf32>
    %209 = arith.mulf %200, %182 : vector<1x256xf32>
    %210 = arith.mulf %194, %202 : vector<1x256xf32>
    %211 = arith.addf %209, %210 : vector<1x256xf32>
    %212 = math.tanh %211 : vector<1x256xf32>
    %213 = arith.mulf %208, %212 : vector<1x256xf32>
    %214 = vector.extract_strided_slice %7 {offsets = [7, 0], sizes = [1, 1024], strides = [1, 1]} : vector<8x1024xf32> to vector<1x1024xf32>
    %215 = arith.truncf %213 : vector<1x256xf32> to vector<1x256xbf16>
    %cst_38 = arith.constant dense<0.000000e+00> : vector<1x1024xf32>
    %216 = tpu.matmul %215, %8, %cst_38 {dimension_numbers = #tpu.dot_dimension_numbers<[1], [0], [0], [1], [0, 0, 1, 1], [], []>} : vector<1x256xbf16>, vector<256x1024xbf16>, vector<1x1024xf32> -> vector<1x1024xf32>
    %217 = arith.addf %214, %216 : vector<1x1024xf32>
    %218 = vector.extract_strided_slice %217 {offsets = [0, 0], sizes = [1, 256], strides = [1, 1]} : vector<1x1024xf32> to vector<1x256xf32>
    %219 = arith.negf %218 : vector<1x256xf32>
    %220 = math.exp %219 : vector<1x256xf32>
    %cst_39 = arith.constant 1.000000e+00 : f32
    %221 = vector.broadcast %cst_39 : f32 to vector<1x256xf32>
    %222 = arith.addf %221, %220 : vector<1x256xf32>
    %223 = arith.divf %221, %222 : vector<1x256xf32>
    %224 = vector.extract_strided_slice %217 {offsets = [0, 256], sizes = [1, 256], strides = [1, 1]} : vector<1x1024xf32> to vector<1x256xf32>
    %225 = arith.negf %224 : vector<1x256xf32>
    %226 = math.exp %225 : vector<1x256xf32>
    %cst_40 = arith.constant 1.000000e+00 : f32
    %227 = vector.broadcast %cst_40 : f32 to vector<1x256xf32>
    %228 = arith.addf %227, %226 : vector<1x256xf32>
    %229 = arith.divf %227, %228 : vector<1x256xf32>
    %230 = vector.extract_strided_slice %217 {offsets = [0, 512], sizes = [1, 256], strides = [1, 1]} : vector<1x1024xf32> to vector<1x256xf32>
    %231 = math.tanh %230 : vector<1x256xf32>
    %232 = vector.extract_strided_slice %217 {offsets = [0, 768], sizes = [1, 256], strides = [1, 1]} : vector<1x1024xf32> to vector<1x256xf32>
    %233 = arith.negf %232 : vector<1x256xf32>
    %234 = math.exp %233 : vector<1x256xf32>
    %cst_41 = arith.constant 1.000000e+00 : f32
    %235 = vector.broadcast %cst_41 : f32 to vector<1x256xf32>
    %236 = arith.addf %235, %234 : vector<1x256xf32>
    %237 = arith.divf %235, %236 : vector<1x256xf32>
    %238 = arith.mulf %229, %211 : vector<1x256xf32>
    %239 = arith.mulf %223, %231 : vector<1x256xf32>
    %240 = arith.addf %238, %239 : vector<1x256xf32>
    %241 = math.tanh %240 : vector<1x256xf32>
    %242 = arith.mulf %237, %241 : vector<1x256xf32>
    %c0_42 = arith.constant 0 : index
    %c0_43 = arith.constant 0 : index
    %c0_44 = arith.constant 0 : index
    %243 = vector.load %arg2[%c0_42, %c0_43, %c0_44] : memref<1x8x7xf32, #tpu.memory_space<vmem>>, vector<1x8x7xf32>
    %244 = vector.shape_cast %243 : vector<1x8x7xf32> to vector<8x7xf32>
    %c0_45 = arith.constant 0 : index
    %c0_46 = arith.constant 0 : index
    %245 = vector.load %arg6[%c0_45, %c0_46] : memref<7x1024xf32, #tpu.memory_space<vmem>>, vector<7x1024xf32>
    %cst_47 = arith.constant dense<0.000000e+00> : vector<8x1024xf32>
    %246 = tpu.matmul %244, %245, %cst_47 {dimension_numbers = #tpu.dot_dimension_numbers<[1], [0], [0], [1], [0, 0, 1, 1], [], []>} : vector<8x7xf32>, vector<7x1024xf32>, vector<8x1024xf32> -> vector<8x1024xf32>
    %247 = vector.extract_strided_slice %246 {offsets = [0, 0], sizes = [8, 512], strides = [1, 1]} : vector<8x1024xf32> to vector<8x512xf32>
    %248 = vector.extract_strided_slice %246 {offsets = [0, 512], sizes = [8, 512], strides = [1, 1]} : vector<8x1024xf32> to vector<8x512xf32>
    %249 = vector.shape_cast %247 : vector<8x512xf32> to vector<1x8x512xf32>
    %250 = vector.shape_cast %248 : vector<8x512xf32> to vector<8x1x512xf32>
    %251 = vector.broadcast %249 : vector<1x8x512xf32> to vector<8x8x512xf32>
    %252 = vector.broadcast %250 : vector<8x1x512xf32> to vector<8x8x512xf32>
    %253 = arith.addf %251, %252 : vector<8x8x512xf32>
    %c0_48 = arith.constant 0 : index
    %c0_49 = arith.constant 0 : index
    %254 = vector.load %arg7[%c0_48, %c0_49] : memref<1x512xf32, #tpu.memory_space<vmem>>, vector<1x512xf32>
    %255 = vector.shape_cast %254 : vector<1x512xf32> to vector<1x1x512xf32>
    %256 = vector.broadcast %255 : vector<1x1x512xf32> to vector<8x8x512xf32>
    %257 = arith.addf %253, %256 : vector<8x8x512xf32>
    %cst_50 = arith.constant 0.000000e+00 : f32
    %258 = vector.broadcast %cst_50 : f32 to vector<8x8x512xf32>
    %259 = arith.maximumf %257, %258 : vector<8x8x512xf32>
    %260 = vector.shape_cast %259 : vector<8x8x512xf32> to vector<64x512xf32>
    %261 = arith.truncf %242 : vector<1x256xf32> to vector<1x256xbf16>
    %c0_51 = arith.constant 0 : index
    %c0_52 = arith.constant 0 : index
    %262 = vector.load %arg9[%c0_51, %c0_52] : memref<256x512xbf16, #tpu.memory_space<vmem>>, vector<256x512xbf16>
    %cst_53 = arith.constant dense<0.000000e+00> : vector<1x512xf32>
    %263 = tpu.matmul %261, %262, %cst_53 {dimension_numbers = #tpu.dot_dimension_numbers<[1], [0], [0], [1], [0, 0, 1, 1], [], []>} : vector<1x256xbf16>, vector<256x512xbf16>, vector<1x512xf32> -> vector<1x512xf32>
    %c0_54 = arith.constant 0 : index
    %c0_55 = arith.constant 0 : index
    %264 = vector.load %arg10[%c0_54, %c0_55] : memref<1x512xf32, #tpu.memory_space<vmem>>, vector<1x512xf32>
    %265 = arith.addf %263, %264 : vector<1x512xf32>
    %266 = arith.truncf %260 : vector<64x512xf32> to vector<64x512xbf16>
    %c0_56 = arith.constant 0 : index
    %c0_57 = arith.constant 0 : index
    %267 = vector.load %arg8[%c0_56, %c0_57] : memref<512x512xbf16, #tpu.memory_space<vmem>>, vector<512x512xbf16>
    %cst_58 = arith.constant dense<0.000000e+00> : vector<64x512xf32>
    %268 = tpu.matmul %266, %267, %cst_58 {dimension_numbers = #tpu.dot_dimension_numbers<[1], [0], [0], [1], [0, 0, 1, 1], [], []>} : vector<64x512xbf16>, vector<512x512xbf16>, vector<64x512xf32> -> vector<64x512xf32>
    %269 = vector.broadcast %265 : vector<1x512xf32> to vector<64x512xf32>
    %270 = arith.addf %268, %269 : vector<64x512xf32>
    %cst_59 = arith.constant 0.000000e+00 : f32
    %271 = vector.broadcast %cst_59 : f32 to vector<64x512xf32>
    %272 = arith.maximumf %270, %271 : vector<64x512xf32>
    %cst_60 = arith.constant dense<0.000000e+00> : vector<512xf32>
    %273 = vector.multi_reduction <add>, %272, %cst_60 [0] : vector<64x512xf32> to vector<512xf32>
    %274 = vector.shape_cast %273 : vector<512xf32> to vector<1x512xf32>
    %275 = arith.truncf %274 : vector<1x512xf32> to vector<1x512xbf16>
    %c0_61 = arith.constant 0 : index
    %c0_62 = arith.constant 0 : index
    %276 = vector.load %arg11[%c0_61, %c0_62] : memref<512x512xbf16, #tpu.memory_space<vmem>>, vector<512x512xbf16>
    %cst_63 = arith.constant dense<0.000000e+00> : vector<1x512xf32>
    %277 = tpu.matmul %275, %276, %cst_63 {dimension_numbers = #tpu.dot_dimension_numbers<[1], [0], [0], [1], [0, 0, 1, 1], [], []>} : vector<1x512xbf16>, vector<512x512xbf16>, vector<1x512xf32> -> vector<1x512xf32>
    %c0_64 = arith.constant 0 : index
    %c0_65 = arith.constant 0 : index
    %278 = vector.load %arg12[%c0_64, %c0_65] : memref<1x512xf32, #tpu.memory_space<vmem>>, vector<1x512xf32>
    %279 = arith.addf %277, %278 : vector<1x512xf32>
    %cst_66 = arith.constant 0.000000e+00 : f32
    %280 = vector.broadcast %cst_66 : f32 to vector<1x512xf32>
    %281 = arith.maximumf %279, %280 : vector<1x512xf32>
    %282 = arith.truncf %281 : vector<1x512xf32> to vector<1x512xbf16>
    %c0_67 = arith.constant 0 : index
    %c0_68 = arith.constant 0 : index
    %283 = vector.load %arg13[%c0_67, %c0_68] : memref<512x1024xbf16, #tpu.memory_space<vmem>>, vector<512x1024xbf16>
    %cst_69 = arith.constant dense<0.000000e+00> : vector<1x1024xf32>
    %284 = tpu.matmul %282, %283, %cst_69 {dimension_numbers = #tpu.dot_dimension_numbers<[1], [0], [0], [1], [0, 0, 1, 1], [], []>} : vector<1x512xbf16>, vector<512x1024xbf16>, vector<1x1024xf32> -> vector<1x1024xf32>
    %c0_70 = arith.constant 0 : index
    %c0_71 = arith.constant 0 : index
    %285 = vector.load %arg14[%c0_70, %c0_71] : memref<1x1024xf32, #tpu.memory_space<vmem>>, vector<1x1024xf32>
    %286 = arith.addf %284, %285 : vector<1x1024xf32>
    %cst_72 = arith.constant 0.000000e+00 : f32
    %287 = vector.broadcast %cst_72 : f32 to vector<1x1024xf32>
    %288 = arith.maximumf %286, %287 : vector<1x1024xf32>
    %c0_73 = arith.constant 0 : index
    %c0_74 = arith.constant 0 : index
    %289 = vector.load %arg15[%c0_73, %c0_74] : memref<1024x1xf32, #tpu.memory_space<vmem>>, vector<1024x1xf32>
    %cst_75 = arith.constant dense<0.000000e+00> : vector<1x1xf32>
    %290 = tpu.matmul %288, %289, %cst_75 {dimension_numbers = #tpu.dot_dimension_numbers<[1], [0], [0], [1], [0, 0, 1, 1], [], []>} : vector<1x1024xf32>, vector<1024x1xf32>, vector<1x1xf32> -> vector<1x1xf32>
    %c0_76 = arith.constant 0 : index
    %c0_77 = arith.constant 0 : index
    %291 = vector.load %arg16[%c0_76, %c0_77] : memref<1x1xf32, #tpu.memory_space<vmem>>, vector<1x1xf32>
    %292 = arith.addf %290, %291 : vector<1x1xf32>
    %cst_78 = arith.constant dense<0xFF800000> : vector<1xf32>
    %293 = vector.multi_reduction <maximumf>, %292, %cst_78 [1] : vector<1x1xf32> to vector<1xf32>
    %294 = vector.shape_cast %293 : vector<1xf32> to vector<1x1xf32>
    %295 = arith.subf %292, %294 : vector<1x1xf32>
    %296 = math.exp %295 : vector<1x1xf32>
    %cst_79 = arith.constant dense<0.000000e+00> : vector<1xf32>
    %297 = vector.multi_reduction <add>, %296, %cst_79 [1] : vector<1x1xf32> to vector<1xf32>
    %298 = vector.shape_cast %297 : vector<1xf32> to vector<1x1xf32>
    %299 = math.log %298 : vector<1x1xf32>
    %300 = arith.addf %299, %294 : vector<1x1xf32>
    %301 = arith.subf %292, %300 : vector<1x1xf32>
    %c0_80 = arith.constant 0 : index
    %c0_81 = arith.constant 0 : index
    %c0_82 = arith.constant 0 : index
    %302 = vector.load %arg17[%c0_80, %c0_81, %c0_82] : memref<1x1x1xf32, #tpu.memory_space<vmem>>, vector<1x1x1xf32>
    %303 = vector.shape_cast %302 : vector<1x1x1xf32> to vector<1x1xf32>
    %304 = vector.shape_cast %301 : vector<1x1xf32> to vector<1x1x1xf32>
    tpu.vector_store %arg17[%c0_80, %c0_81, %c0_82], %304 {strides = array<i32>} : memref<1x1x1xf32, #tpu.memory_space<vmem>>, vector<1x1x1xf32>,
    %c0_83 = arith.constant 0 : index
    %c0_84 = arith.constant 0 : index
    %c0_85 = arith.constant 0 : index
    %305 = vector.load %arg18[%c0_83, %c0_84, %c0_85] : memref<1x1x512xf32, #tpu.memory_space<vmem>>, vector<1x1x512xf32>
    %306 = vector.shape_cast %305 : vector<1x1x512xf32> to vector<1x512xf32>
    %307 = vector.shape_cast %274 : vector<1x512xf32> to vector<1x1x512xf32>
    tpu.vector_store %arg18[%c0_83, %c0_84, %c0_85], %307 {strides = array<i32>} : memref<1x1x512xf32, #tpu.memory_space<vmem>>, vector<1x1x512xf32>,
    %c0_86 = arith.constant 0 : index
    %c0_87 = arith.constant 0 : index
    %c0_88 = arith.constant 0 : index
    %308 = vector.load %arg19[%c0_86, %c0_87, %c0_88] : memref<1x1x256xf32, #tpu.memory_space<vmem>>, vector<1x1x256xf32>
    %309 = vector.shape_cast %308 : vector<1x1x256xf32> to vector<1x256xf32>
    %310 = vector.shape_cast %242 : vector<1x256xf32> to vector<1x1x256xf32>
    tpu.vector_store %arg19[%c0_86, %c0_87, %c0_88], %310 {strides = array<i32>} : memref<1x1x256xf32, #tpu.memory_space<vmem>>, vector<1x1x256xf32>,
    return
  }
  func.func @transform_0(%arg0: i32) -> (i32, i32, i32) {
    %c0_i32 = arith.constant 0 : i32
    %c0_i32_0 = arith.constant 0 : i32
    %c0_i32_1 = arith.constant 0 : i32
    return %arg0, %c0_i32, %c0_i32_0 : i32, i32, i32
  }
  func.func @transform_1(%arg0: i32) -> (i32, i32, i32) {
    %c0_i32 = arith.constant 0 : i32
    %c0_i32_0 = arith.constant 0 : i32
    %c0_i32_1 = arith.constant 0 : i32
    return %arg0, %c0_i32, %c0_i32_0 : i32, i32, i32
  }
  func.func @transform_2(%arg0: i32) -> (i32, i32) {
    %c0_i32 = arith.constant 0 : i32
    %c0_i32_0 = arith.constant 0 : i32
    %c0_i32_1 = arith.constant 0 : i32
    return %c0_i32, %c0_i32_0 : i32, i32
  }
  func.func @transform_3(%arg0: i32) -> (i32, i32) {
    %c0_i32 = arith.constant 0 : i32
    %c0_i32_0 = arith.constant 0 : i32
    %c0_i32_1 = arith.constant 0 : i32
    return %c0_i32, %c0_i32_0 : i32, i32
  }
  func.func @transform_4(%arg0: i32) -> (i32, i32) {
    %c0_i32 = arith.constant 0 : i32
    %c0_i32_0 = arith.constant 0 : i32
    %c0_i32_1 = arith.constant 0 : i32
    return %c0_i32, %c0_i32_0 : i32, i32
  }
  func.func @transform_5(%arg0: i32) -> (i32, i32) {
    %c0_i32 = arith.constant 0 : i32
    %c0_i32_0 = arith.constant 0 : i32
    %c0_i32_1 = arith.constant 0 : i32
    return %c0_i32, %c0_i32_0 : i32, i32
  }
  func.func @transform_6(%arg0: i32) -> (i32, i32) {
    %c0_i32 = arith.constant 0 : i32
    %c0_i32_0 = arith.constant 0 : i32
    %c0_i32_1 = arith.constant 0 : i32
    return %c0_i32, %c0_i32_0 : i32, i32
  }
  func.func @transform_7(%arg0: i32) -> (i32, i32) {
    %c0_i32 = arith.constant 0 : i32
    %c0_i32_0 = arith.constant 0 : i32
    %c0_i32_1 = arith.constant 0 : i32
    return %c0_i32, %c0_i32_0 : i32, i32
  }
  func.func @transform_8(%arg0: i32) -> (i32, i32) {
    %c0_i32 = arith.constant 0 : i32
    %c0_i32_0 = arith.constant 0 : i32
    %c0_i32_1 = arith.constant 0 : i32
    return %c0_i32, %c0_i32_0 : i32, i32
  }
  func.func @transform_9(%arg0: i32) -> (i32, i32) {
    %c0_i32 = arith.constant 0 : i32
    %c0_i32_0 = arith.constant 0 : i32
    %c0_i32_1 = arith.constant 0 : i32
    return %c0_i32, %c0_i32_0 : i32, i32
  }
  func.func @transform_10(%arg0: i32) -> (i32, i32) {
    %c0_i32 = arith.constant 0 : i32
    %c0_i32_0 = arith.constant 0 : i32
    %c0_i32_1 = arith.constant 0 : i32
    return %c0_i32, %c0_i32_0 : i32, i32
  }
  func.func @transform_11(%arg0: i32) -> (i32, i32) {
    %c0_i32 = arith.constant 0 : i32
    %c0_i32_0 = arith.constant 0 : i32
    %c0_i32_1 = arith.constant 0 : i32
    return %c0_i32, %c0_i32_0 : i32, i32
  }
  func.func @transform_12(%arg0: i32) -> (i32, i32) {
    %c0_i32 = arith.constant 0 : i32
    %c0_i32_0 = arith.constant 0 : i32
    %c0_i32_1 = arith.constant 0 : i32
    return %c0_i32, %c0_i32_0 : i32, i32
  }
  func.func @transform_13(%arg0: i32) -> (i32, i32) {
    %c0_i32 = arith.constant 0 : i32
    %c0_i32_0 = arith.constant 0 : i32
    %c0_i32_1 = arith.constant 0 : i32
    return %c0_i32, %c0_i32_0 : i32, i32
  }
  func.func @transform_14(%arg0: i32) -> (i32, i32) {
    %c0_i32 = arith.constant 0 : i32
    %c0_i32_0 = arith.constant 0 : i32
    %c0_i32_1 = arith.constant 0 : i32
    return %c0_i32, %c0_i32_0 : i32, i32
  }
  func.func @transform_15(%arg0: i32) -> (i32, i32) {
    %c0_i32 = arith.constant 0 : i32
    %c0_i32_0 = arith.constant 0 : i32
    %c0_i32_1 = arith.constant 0 : i32
    return %c0_i32, %c0_i32_0 : i32, i32
  }
  func.func @transform_16(%arg0: i32) -> (i32, i32, i32) {
    %c0_i32 = arith.constant 0 : i32
    %c0_i32_0 = arith.constant 0 : i32
    %c0_i32_1 = arith.constant 0 : i32
    return %arg0, %c0_i32, %c0_i32_0 : i32, i32, i32
  }
  func.func @transform_17(%arg0: i32) -> (i32, i32, i32) {
    %c0_i32 = arith.constant 0 : i32
    %c0_i32_0 = arith.constant 0 : i32
    %c0_i32_1 = arith.constant 0 : i32
    return %arg0, %c0_i32, %c0_i32_0 : i32, i32, i32
  }
  func.func @transform_18(%arg0: i32) -> (i32, i32, i32) {
    %c0_i32 = arith.constant 0 : i32
    %c0_i32_0 = arith.constant 0 : i32
    %c0_i32_1 = arith.constant 0 : i32
    return %arg0, %c0_i32, %c0_i32_0 : i32, i32, i32
  }
}

</mosaic_0001>

<llo_original>
// kernel: tpu_custom_call.1
$region0: #{tpu_custom_call.1}
  #allocation0 [shape = 'u32[]', space=smem, size = 0x4, offset = 0x4, fixed_abs, tag = 'smem constant byte address 0x4 - core index']
  #allocation1 [shape = 'u32[144,128]{1,0:T(1,128)}', space=vmem, size = 0x12000, scoped, tag = 'internal scratch']
  #allocation2 [shape = 'f32[1,1]{1,0:T(1,128)S(1)}', space=vmem, size = 0x200, scoped, tag = 'scoped memory for tpu_custom_call.1']
  %s0 = inlined_call_operand.vmem [shape: f32[2,8,300], index: 0, kind: input, shape index: {}]
  %s1 = inlined_call_operand.vmem [shape: f32[2,8,7], index: 1, kind: input, shape index: {}]
  %s2 = inlined_call_operand.hbm [shape: bf16[300,1024], index: 2, kind: input, shape index: {}]
  %s3 = inlined_call_operand.vmem [shape: bf16[256,1024], index: 3, kind: input, shape index: {}]
  %s4 = inlined_call_operand.hbm [shape: f32[1,1024], index: 4, kind: input, shape index: {}]
  %s5 = inlined_call_operand.hbm [shape: f32[7,1024], index: 5, kind: input, shape index: {}]
  %s6 = inlined_call_operand.vmem [shape: f32[1,512], index: 6, kind: input, shape index: {}]
  %s7 = inlined_call_operand.hbm [shape: bf16[512,512], index: 7, kind: input, shape index: {}]
  %s8 = inlined_call_operand.hbm [shape: bf16[256,512], index: 8, kind: input, shape index: {}]
  %s9 = inlined_call_operand.vmem [shape: f32[1,512], index: 9, kind: input, shape index: {}]
  %s10 = inlined_call_operand.hbm [shape: bf16[512,512], index: 10, kind: input, shape index: {}]
  %s11 = inlined_call_operand.vmem [shape: f32[1,512], index: 11, kind: input, shape index: {}]
  %s12 = inlined_call_operand.hbm [shape: bf16[512,1024], index: 12, kind: input, shape index: {}]
  %s13 = inlined_call_operand.vmem [shape: f32[1,1024], index: 13, kind: input, shape index: {}]
  %s14 = inlined_call_operand.vmem [shape: f32[1024,1], index: 14, kind: input, shape index: {}]
  %s15 = inlined_call_operand.<no memory space> [shape: f32[1,1], index: 15, kind: input, shape index: {}]
  %s16 = inlined_call_operand.vmem [shape: f32[2,1,1], index: 16, kind: output, shape index: {0}]
  %s17 = inlined_call_operand.hbm [shape: f32[2,1,512], index: 17, kind: output, shape index: {1}]
  %s18 = inlined_call_operand.hbm [shape: f32[2,1,256], index: 18, kind: output, shape index: {2}]
  %19 = xla_tuple %s16, %s17, %s18
  %s20 = sld [smem:[#allocation0]]
  $region141: #{tpu_custom_call.1} parent=0
    _
  %s22 = ssub.s32 1, %s20
  %s23 = scalar_select 0, %s22, %s20
  %v24 = vstv %s15
  %25 = vst [vmem:[#allocation2] sm:$0x1] %v24
  $region1: #{tpu_custom_call.1} parent=0
    #allocation3 [shape = 'u8[622592]{0}', space=vmem, size = 0x98000, scoped, tag = 'input window, operand 2, single buffered']
    #allocation4 [shape = 's32[2]{0}', space=sflag, size = 0x8, scoped, tag = 'scoped memory for tpu_custom_call.1']
    #allocation5 [shape = 's32[2]{0}', space=sflag, size = 0x8, scoped, tag = 'scoped memory for tpu_custom_call.1']
    #allocation6 [shape = 'u8[4096]{0}', space=vmem, size = 0x1000, scoped, tag = 'input window, operand 4, single buffered']
    #allocation7 [shape = 's32[1]{0}', space=sflag, size = 0x4, scoped, tag = 'scoped memory for tpu_custom_call.1']
    #allocation8 [shape = 'u8[32768]{0}', space=vmem, size = 0x8000, scoped, tag = 'input window, operand 5, single buffered']
    #allocation9 [shape = 'u8[524288]{0}', space=vmem, size = 0x80000, scoped, tag = 'input window, operand 7, single buffered']
    #allocation10 [shape = 's32[1]{0}', space=sflag, size = 0x4, scoped, tag = 'scoped memory for tpu_custom_call.1']
    #allocation11 [shape = 'u8[262144]{0}', space=vmem, size = 0x40000, scoped, tag = 'input window, operand 8, single buffered']
    #allocation12 [shape = 'u8[524288]{0}', space=vmem, size = 0x80000, scoped, tag = 'input window, operand 10, single buffered']
    #allocation13 [shape = 's32[1]{0}', space=sflag, size = 0x4, scoped, tag = 'scoped memory for tpu_custom_call.1']
    #allocation14 [shape = 'u8[1048576]{0}', space=vmem, size = 0x100000, scoped, tag = 'input window, operand 12, single buffered']
    #allocation15 [shape = 'u8[4096]{0}', space=vmem, size = 0x1000, scoped, tag = 'output window, operand 1']
    #allocation16 [shape = 'u8[2048]{0}', space=vmem, size = 0x800, scoped, tag = 'output window, operand 2']
    #allocation17 [shape = 's32[2]{0}', space=sflag, size = 0x8, scoped, tag = 'scoped memory for tpu_custom_call.1']
    %26 = vsyncpa [#allocation4], 0
    %27 = vsyncpa [#allocation7], 0
    %28 = vsyncpa [#allocation10], 0
    %29 = vsyncpa [#allocation13], 0
    %30 = vsyncpa [#allocation5], 0
    %s31 = scalar_lea.sflag [#allocation5], 1
    %32 = vsyncpa %s31, 0
    %33 = vsyncpa [#allocation17], 0
    %s34 = scalar_lea.sflag [#allocation17], 1
    %35 = vsyncpa %s34, 0
    loop: start=0, step=1, limit=4
    $region2: #{tpu_custom_call.1} parent=1 // loop_pre_header
      _
    $region3: #{tpu_custom_call.1} parent=1 // loop_header
      %s37 = sphi 0, %s41
      %p38 = scmp.ge.s32.totalorder %s37, 4
      %s47 = sphi 0, %s49
      %s50 = sphi 0, %s47
      %s51 = sphi 0, %s50
      %s67 = sphi 0, %s51
      %s73 = sphi 0, %s75
      %s76 = sphi 0, %s73
      %s77 = sphi 0, %s76
      %s93 = sphi 0, %s77
      %s97 = sphi 0, %s97
      %s99 = sphi 0, %s97
      %s100 = sphi 0, %s99
      %s114 = sphi 0, %s100
      %s118 = sphi 0, %s118
      %s120 = sphi 0, %s118
      %s121 = sphi 0, %s120
      %s135 = sphi 0, %s121
      %s139 = sphi 0, %s139
      %s141 = sphi 0, %s139
      %s142 = sphi 0, %s141
      %s156 = sphi 0, %s142
      %s160 = sphi 0, %s160
      %s162 = sphi 0, %s160
      %s163 = sphi 0, %s162
      %s177 = sphi 0, %s163
      %s181 = sphi 0, %s181
      %s183 = sphi 0, %s181
      %s184 = sphi 0, %s183
      %s198 = sphi 0, %s184
      %s202 = sphi 0, %s202
      %s204 = sphi 0, %s202
      %s205 = sphi 0, %s204
      %s219 = sphi 0, %s205
      %s223 = sphi 0, %s223
      %s225 = sphi 0, %s223
      %s226 = sphi 0, %s225
      %s240 = sphi 0, %s226
      %s244 = sphi 0, %s244
      %s246 = sphi 0, %s244
      %s247 = sphi 0, %s246
      %s261 = sphi 0, %s247
      %s265 = sphi 0, %s265
      %s267 = sphi 0, %s265
      %s268 = sphi 0, %s267
      %s282 = sphi 0, %s268
      %s286 = sphi 0, %s286
      %s288 = sphi 0, %s286
      %s289 = sphi 0, %s288
      %s303 = sphi 0, %s289
      %s307 = sphi 0, %s307
      %s309 = sphi 0, %s307
      %s310 = sphi 0, %s309
      %s324 = sphi 0, %s310
      %s328 = sphi 0, %s328
      %s330 = sphi 0, %s328
      %s331 = sphi 0, %s330
      %s345 = sphi 0, %s331
      %s349 = sphi 0, %s349
      %s351 = sphi 0, %s349
      %s352 = sphi 0, %s351
      %s366 = sphi 0, %s352
      %s370 = sphi 0, %s370
      %s372 = sphi 0, %s370
      %s373 = sphi 0, %s372
      %s387 = sphi 0, %s373
      %s393 = sphi 0, %s395
      %s396 = sphi 0, %s393
      %s397 = sphi 0, %s396
      %s413 = sphi 0, %s397
      %s419 = sphi 0, %s421
      %s422 = sphi 0, %s419
      %s423 = sphi 0, %s422
      %s439 = sphi 0, %s423
      %s445 = sphi 0, %s447
      %s448 = sphi 0, %s445
      %s449 = sphi 0, %s448
      %s465 = sphi 0, %s449
    $region4: #{tpu_custom_call.1} parent=1 // loop_header_branch
      %40 = sbr.rel (%p38) target = $region8
    $region5: #{tpu_custom_call.1} parent=1 // loop_body
      %s42 = ssub.s32 %s37, 1
      %s43 = ssub.s32 %s37, 2
      %s44 = sadd.s32 %s37, 1
      %s45 = ssub.s32 %s37, %s44
      %p46 = scmp.eq.s32.totalorder %s45, 0
      %s48 = sadd.s32 %s47, 1
      %s49 = scalar_select %p46, %s47, %s48
      %p52 = pneg %p46
      %p53 = scmp.eq.s32.totalorder %s37, 1
      %p54 = por %p52, %p53
      %p55 = scmp.ne.s32.totalorder %s47, %s50
      %p56 = scmp.eq.s32.totalorder %s37, 0
      %p57 = por %p55, %p56
      %p58 = scmp.ne.s32.totalorder %s47, %s50
      %p59 = scmp.eq.s32.totalorder %s42, 1
      %p60 = por %p58, %p59
      %p61 = scmp.ne.s32.totalorder %s50, %s51
      %p62 = scmp.eq.s32.totalorder %s42, 0
      %p63 = por %p61, %p62
      %p64 = scmp.ne.s32.totalorder %s50, %s51
      %p65 = scmp.eq.s32.totalorder %s43, 1
      %p66 = por %p64, %p65
      %p68 = scmp.ne.s32.totalorder %s51, %s67
      %p69 = scmp.eq.s32.totalorder %s43, 0
      %p70 = por %p68, %p69
      %s71 = ssub.s32 %s37, %s44
      %p72 = scmp.eq.s32.totalorder %s71, 0
      %s74 = sadd.s32 %s73, 1
      %s75 = scalar_select %p72, %s73, %s74
      %p78 = pneg %p72
      %p79 = scmp.eq.s32.totalorder %s37, 1
      %p80 = por %p78, %p79
      %p81 = scmp.ne.s32.totalorder %s73, %s76
      %p82 = scmp.eq.s32.totalorder %s37, 0
      %p83 = por %p81, %p82
      %p84 = scmp.ne.s32.totalorder %s73, %s76
      %p85 = scmp.eq.s32.totalorder %s42, 1
      %p86 = por %p84, %p85
      %p87 = scmp.ne.s32.totalorder %s76, %s77
      %p88 = scmp.eq.s32.totalorder %s42, 0
      %p89 = por %p87, %p88
      %p90 = scmp.ne.s32.totalorder %s76, %s77
      %p91 = scmp.eq.s32.totalorder %s43, 1
      %p92 = por %p90, %p91
      %p94 = scmp.ne.s32.totalorder %s77, %s93
      %p95 = scmp.eq.s32.totalorder %s43, 0
      %p96 = por %p94, %p95
      %s98 = sadd.s32 %s97, 1
      %p101 = scmp.eq.s32.totalorder %s37, 1
      %p102 = scmp.ne.s32.totalorder %s97, %s99
      %p103 = scmp.eq.s32.totalorder %s37, 0
      %p104 = por %p102, %p103
      %p105 = scmp.ne.s32.totalorder %s97, %s99
      %p106 = scmp.eq.s32.totalorder %s42, 1
      %p107 = por %p105, %p106
      %p108 = scmp.ne.s32.totalorder %s99, %s100
      %p109 = scmp.eq.s32.totalorder %s42, 0
      %p110 = por %p108, %p109
      %p111 = scmp.ne.s32.totalorder %s99, %s100
      %p112 = scmp.eq.s32.totalorder %s43, 1
      %p113 = por %p111, %p112
      %p115 = scmp.ne.s32.totalorder %s100, %s114
      %p116 = scmp.eq.s32.totalorder %s43, 0
      %p117 = por %p115, %p116
      %s119 = sadd.s32 %s118, 1
      %p122 = scmp.eq.s32.totalorder %s37, 1
      %p123 = scmp.ne.s32.totalorder %s118, %s120
      %p124 = scmp.eq.s32.totalorder %s37, 0
      %p125 = por %p123, %p124
      %p126 = scmp.ne.s32.totalorder %s118, %s120
      %p127 = scmp.eq.s32.totalorder %s42, 1
      %p128 = por %p126, %p127
      %p129 = scmp.ne.s32.totalorder %s120, %s121
      %p130 = scmp.eq.s32.totalorder %s42, 0
      %p131 = por %p129, %p130
      %p132 = scmp.ne.s32.totalorder %s120, %s121
      %p133 = scmp.eq.s32.totalorder %s43, 1
      %p134 = por %p132, %p133
      %p136 = scmp.ne.s32.totalorder %s121, %s135
      %p137 = scmp.eq.s32.totalorder %s43, 0
      %p138 = por %p136, %p137
      %s140 = sadd.s32 %s139, 1
      %p143 = scmp.eq.s32.totalorder %s37, 1
      %p144 = scmp.ne.s32.totalorder %s139, %s141
      %p145 = scmp.eq.s32.totalorder %s37, 0
      %p146 = por %p144, %p145
      %p147 = scmp.ne.s32.totalorder %s139, %s141
      %p148 = scmp.eq.s32.totalorder %s42, 1
      %p149 = por %p147, %p148
      %p150 = scmp.ne.s32.totalorder %s141, %s142
      %p151 = scmp.eq.s32.totalorder %s42, 0
      %p152 = por %p150, %p151
      %p153 = scmp.ne.s32.totalorder %s141, %s142
      %p154 = scmp.eq.s32.totalorder %s43, 1
      %p155 = por %p153, %p154
      %p157 = scmp.ne.s32.totalorder %s142, %s156
      %p158 = scmp.eq.s32.totalorder %s43, 0
      %p159 = por %p157, %p158
      %s161 = sadd.s32 %s160, 1
      %p164 = scmp.eq.s32.totalorder %s37, 1
      %p165 = scmp.ne.s32.totalorder %s160, %s162
      %p166 = scmp.eq.s32.totalorder %s37, 0
      %p167 = por %p165, %p166
      %p168 = scmp.ne.s32.totalorder %s160, %s162
      %p169 = scmp.eq.s32.totalorder %s42, 1
      %p170 = por %p168, %p169
      %p171 = scmp.ne.s32.totalorder %s162, %s163
      %p172 = scmp.eq.s32.totalorder %s42, 0
      %p173 = por %p171, %p172
      %p174 = scmp.ne.s32.totalorder %s162, %s163
      %p175 = scmp.eq.s32.totalorder %s43, 1
      %p176 = por %p174, %p175
      %p178 = scmp.ne.s32.totalorder %s163, %s177
      %p179 = scmp.eq.s32.totalorder %s43, 0
      %p180 = por %p178, %p179
      %s182 = sadd.s32 %s181, 1
      %p185 = scmp.eq.s32.totalorder %s37, 1
      %p186 = scmp.ne.s32.totalorder %s181, %s183
      %p187 = scmp.eq.s32.totalorder %s37, 0
      %p188 = por %p186, %p187
      %p189 = scmp.ne.s32.totalorder %s181, %s183
      %p190 = scmp.eq.s32.totalorder %s42, 1
      %p191 = por %p189, %p190
      %p192 = scmp.ne.s32.totalorder %s183, %s184
      %p193 = scmp.eq.s32.totalorder %s42, 0
      %p194 = por %p192, %p193
      %p195 = scmp.ne.s32.totalorder %s183, %s184
      %p196 = scmp.eq.s32.totalorder %s43, 1
      %p197 = por %p195, %p196
      %p199 = scmp.ne.s32.totalorder %s184, %s198
      %p200 = scmp.eq.s32.totalorder %s43, 0
      %p201 = por %p199, %p200
      %s203 = sadd.s32 %s202, 1
      %p206 = scmp.eq.s32.totalorder %s37, 1
      %p207 = scmp.ne.s32.totalorder %s202, %s204
      %p208 = scmp.eq.s32.totalorder %s37, 0
      %p209 = por %p207, %p208
      %p210 = scmp.ne.s32.totalorder %s202, %s204
      %p211 = scmp.eq.s32.totalorder %s42, 1
      %p212 = por %p210, %p211
      %p213 = scmp.ne.s32.totalorder %s204, %s205
      %p214 = scmp.eq.s32.totalorder %s42, 0
      %p215 = por %p213, %p214
      %p216 = scmp.ne.s32.totalorder %s204, %s205
      %p217 = scmp.eq.s32.totalorder %s43, 1
      %p218 = por %p216, %p217
      %p220 = scmp.ne.s32.totalorder %s205, %s219
      %p221 = scmp.eq.s32.totalorder %s43, 0
      %p222 = por %p220, %p221
      %s224 = sadd.s32 %s223, 1
      %p227 = scmp.eq.s32.totalorder %s37, 1
      %p228 = scmp.ne.s32.totalorder %s223, %s225
      %p229 = scmp.eq.s32.totalorder %s37, 0
      %p230 = por %p228, %p229
      %p231 = scmp.ne.s32.totalorder %s223, %s225
      %p232 = scmp.eq.s32.totalorder %s42, 1
      %p233 = por %p231, %p232
      %p234 = scmp.ne.s32.totalorder %s225, %s226
      %p235 = scmp.eq.s32.totalorder %s42, 0
      %p236 = por %p234, %p235
      %p237 = scmp.ne.s32.totalorder %s225, %s226
      %p238 = scmp.eq.s32.totalorder %s43, 1
      %p239 = por %p237, %p238
      %p241 = scmp.ne.s32.totalorder %s226, %s240
      %p242 = scmp.eq.s32.totalorder %s43, 0
      %p243 = por %p241, %p242
      %s245 = sadd.s32 %s244, 1
      %p248 = scmp.eq.s32.totalorder %s37, 1
      %p249 = scmp.ne.s32.totalorder %s244, %s246
      %p250 = scmp.eq.s32.totalorder %s37, 0
      %p251 = por %p249, %p250
      %p252 = scmp.ne.s32.totalorder %s244, %s246
      %p253 = scmp.eq.s32.totalorder %s42, 1
      %p254 = por %p252, %p253
      %p255 = scmp.ne.s32.totalorder %s246, %s247
      %p256 = scmp.eq.s32.totalorder %s42, 0
      %p257 = por %p255, %p256
      %p258 = scmp.ne.s32.totalorder %s246, %s247
      %p259 = scmp.eq.s32.totalorder %s43, 1
      %p260 = por %p258, %p259
      %p262 = scmp.ne.s32.totalorder %s247, %s261
      %p263 = scmp.eq.s32.totalorder %s43, 0
      %p264 = por %p262, %p263
      %s266 = sadd.s32 %s265, 1
      %p269 = scmp.eq.s32.totalorder %s37, 1
      %p270 = scmp.ne.s32.totalorder %s265, %s267
      %p271 = scmp.eq.s32.totalorder %s37, 0
      %p272 = por %p270, %p271
      %p273 = scmp.ne.s32.totalorder %s265, %s267
      %p274 = scmp.eq.s32.totalorder %s42, 1
      %p275 = por %p273, %p274
      %p276 = scmp.ne.s32.totalorder %s267, %s268
      %p277 = scmp.eq.s32.totalorder %s42, 0
      %p278 = por %p276, %p277
      %p279 = scmp.ne.s32.totalorder %s267, %s268
      %p280 = scmp.eq.s32.totalorder %s43, 1
      %p281 = por %p279, %p280
      %p283 = scmp.ne.s32.totalorder %s268, %s282
      %p284 = scmp.eq.s32.totalorder %s43, 0
      %p285 = por %p283, %p284
      %s287 = sadd.s32 %s286, 1
      %p290 = scmp.eq.s32.totalorder %s37, 1
      %p291 = scmp.ne.s32.totalorder %s286, %s288
      %p292 = scmp.eq.s32.totalorder %s37, 0
      %p293 = por %p291, %p292
      %p294 = scmp.ne.s32.totalorder %s286, %s288
      %p295 = scmp.eq.s32.totalorder %s42, 1
      %p296 = por %p294, %p295
      %p297 = scmp.ne.s32.totalorder %s288, %s289
      %p298 = scmp.eq.s32.totalorder %s42, 0
      %p299 = por %p297, %p298
      %p300 = scmp.ne.s32.totalorder %s288, %s289
      %p301 = scmp.eq.s32.totalorder %s43, 1
      %p302 = por %p300, %p301
      %p304 = scmp.ne.s32.totalorder %s289, %s303
      %p305 = scmp.eq.s32.totalorder %s43, 0
      %p306 = por %p304, %p305
      %s308 = sadd.s32 %s307, 1
      %p311 = scmp.eq.s32.totalorder %s37, 1
      %p312 = scmp.ne.s32.totalorder %s307, %s309
      %p313 = scmp.eq.s32.totalorder %s37, 0
      %p314 = por %p312, %p313
      %p315 = scmp.ne.s32.totalorder %s307, %s309
      %p316 = scmp.eq.s32.totalorder %s42, 1
      %p317 = por %p315, %p316
      %p318 = scmp.ne.s32.totalorder %s309, %s310
      %p319 = scmp.eq.s32.totalorder %s42, 0
      %p320 = por %p318, %p319
      %p321 = scmp.ne.s32.totalorder %s309, %s310
      %p322 = scmp.eq.s32.totalorder %s43, 1
      %p323 = por %p321, %p322
      %p325 = scmp.ne.s32.totalorder %s310, %s324
      %p326 = scmp.eq.s32.totalorder %s43, 0
      %p327 = por %p325, %p326
      %s329 = sadd.s32 %s328, 1
      %p332 = scmp.eq.s32.totalorder %s37, 1
      %p333 = scmp.ne.s32.totalorder %s328, %s330
      %p334 = scmp.eq.s32.totalorder %s37, 0
      %p335 = por %p333, %p334
      %p336 = scmp.ne.s32.totalorder %s328, %s330
      %p337 = scmp.eq.s32.totalorder %s42, 1
      %p338 = por %p336, %p337
      %p339 = scmp.ne.s32.totalorder %s330, %s331
      %p340 = scmp.eq.s32.totalorder %s42, 0
      %p341 = por %p339, %p340
      %p342 = scmp.ne.s32.totalorder %s330, %s331
      %p343 = scmp.eq.s32.totalorder %s43, 1
      %p344 = por %p342, %p343
      %p346 = scmp.ne.s32.totalorder %s331, %s345
      %p347 = scmp.eq.s32.totalorder %s43, 0
      %p348 = por %p346, %p347
      %s350 = sadd.s32 %s349, 1
      %p353 = scmp.eq.s32.totalorder %s37, 1
      %p354 = scmp.ne.s32.totalorder %s349, %s351
      %p355 = scmp.eq.s32.totalorder %s37, 0
      %p356 = por %p354, %p355
      %p357 = scmp.ne.s32.totalorder %s349, %s351
      %p358 = scmp.eq.s32.totalorder %s42, 1
      %p359 = por %p357, %p358
      %p360 = scmp.ne.s32.totalorder %s351, %s352
      %p361 = scmp.eq.s32.totalorder %s42, 0
      %p362 = por %p360, %p361
      %p363 = scmp.ne.s32.totalorder %s351, %s352
      %p364 = scmp.eq.s32.totalorder %s43, 1
      %p365 = por %p363, %p364
      %p367 = scmp.ne.s32.totalorder %s352, %s366
      %p368 = scmp.eq.s32.totalorder %s43, 0
      %p369 = por %p367, %p368
      %s371 = sadd.s32 %s370, 1
      %p374 = scmp.eq.s32.totalorder %s37, 1
      %p375 = scmp.ne.s32.totalorder %s370, %s372
      %p376 = scmp.eq.s32.totalorder %s37, 0
      %p377 = por %p375, %p376
      %p378 = scmp.ne.s32.totalorder %s370, %s372
      %p379 = scmp.eq.s32.totalorder %s42, 1
      %p380 = por %p378, %p379
      %p381 = scmp.ne.s32.totalorder %s372, %s373
      %p382 = scmp.eq.s32.totalorder %s42, 0
      %p383 = por %p381, %p382
      %p384 = scmp.ne.s32.totalorder %s372, %s373
      %p385 = scmp.eq.s32.totalorder %s43, 1
      %p386 = por %p384, %p385
      %p388 = scmp.ne.s32.totalorder %s373, %s387
      %p389 = scmp.eq.s32.totalorder %s43, 0
      %p390 = por %p388, %p389
      %s391 = ssub.s32 %s37, %s44
      %p392 = scmp.eq.s32.totalorder %s391, 0
      %s394 = sadd.s32 %s393, 1
      %s395 = scalar_select %p392, %s393, %s394
      %p398 = pneg %p392
      %p399 = scmp.eq.s32.totalorder %s37, 1
      %p400 = por %p398, %p399
      %p401 = scmp.ne.s32.totalorder %s393, %s396
      %p402 = scmp.eq.s32.totalorder %s37, 0
      %p403 = por %p401, %p402
      %p404 = scmp.ne.s32.totalorder %s393, %s396
      %p405 = scmp.eq.s32.totalorder %s42, 1
      %p406 = por %p404, %p405
      %p407 = scmp.ne.s32.totalorder %s396, %s397
      %p408 = scmp.eq.s32.totalorder %s42, 0
      %p409 = por %p407, %p408
      %p410 = scmp.ne.s32.totalorder %s396, %s397
      %p411 = scmp.eq.s32.totalorder %s43, 1
      %p412 = por %p410, %p411
      %p414 = scmp.ne.s32.totalorder %s397, %s413
      %p415 = scmp.eq.s32.totalorder %s43, 0
      %p416 = por %p414, %p415
      %s417 = ssub.s32 %s37, %s44
      %p418 = scmp.eq.s32.totalorder %s417, 0
      %s420 = sadd.s32 %s419, 1
      %s421 = scalar_select %p418, %s419, %s420
      %p424 = pneg %p418
      %p425 = scmp.eq.s32.totalorder %s37, 1
      %p426 = por %p424, %p425
      %p427 = scmp.ne.s32.totalorder %s419, %s422
      %p428 = scmp.eq.s32.totalorder %s37, 0
      %p429 = por %p427, %p428
      %p430 = scmp.ne.s32.totalorder %s419, %s422
      %p431 = scmp.eq.s32.totalorder %s42, 1
      %p432 = por %p430, %p431
      %p433 = scmp.ne.s32.totalorder %s422, %s423
      %p434 = scmp.eq.s32.totalorder %s42, 0
      %p435 = por %p433, %p434
      %p436 = scmp.ne.s32.totalorder %s422, %s423
      %p437 = scmp.eq.s32.totalorder %s43, 1
      %p438 = por %p436, %p437
      %p440 = scmp.ne.s32.totalorder %s423, %s439
      %p441 = scmp.eq.s32.totalorder %s43, 0
      %p442 = por %p440, %p441
      %s443 = ssub.s32 %s37, %s44
      %p444 = scmp.eq.s32.totalorder %s443, 0
      %s446 = sadd.s32 %s445, 1
      %s447 = scalar_select %p444, %s445, %s446
      %p450 = pneg %p444
      %p451 = scmp.eq.s32.totalorder %s37, 1
      %p452 = por %p450, %p451
      %p453 = scmp.ne.s32.totalorder %s445, %s448
      %p454 = scmp.eq.s32.totalorder %s37, 0
      %p455 = por %p453, %p454
      %p456 = scmp.ne.s32.totalorder %s445, %s448
      %p457 = scmp.eq.s32.totalorder %s42, 1
      %p458 = por %p456, %p457
      %p459 = scmp.ne.s32.totalorder %s448, %s449
      %p460 = scmp.eq.s32.totalorder %s42, 0
      %p461 = por %p459, %p460
      %p462 = scmp.ne.s32.totalorder %s448, %s449
      %p463 = scmp.eq.s32.totalorder %s43, 1
      %p464 = por %p462, %p463
      %p466 = scmp.ne.s32.totalorder %s449, %s465
      %p467 = scmp.eq.s32.totalorder %s43, 0
      %p468 = por %p466, %p467
      %p469 = scmp.le.s32.totalorder 1, %s37
      %p470 = scmp.lt.s32.totalorder %s37, 3
      %p471 = pnand %p469, %p470
      %p472 = pneg %p471
      // Predicated region
      $region9: #{tpu_custom_call.1} parent=5 // pred_check
        _
      $region10: #{tpu_custom_call.1} parent=5 // pred_check_branch
        %474 = sbr.rel (%p471) target = $region12
      $region11: #{tpu_custom_call.1} parent=5 // pred_region
        %s475 = ssub.s32 %s37, 1
        // Predicated region
        $region13: #{tpu_custom_call.1} parent=11 // pred_check
          %p476 = pneg %p110
        $region14: #{tpu_custom_call.1} parent=11 // pred_check_branch
          %478 = sbr.rel (%p476) target = $region16
        $region15: #{tpu_custom_call.1} parent=11 // pred_region
          %s480 = ssub.s32 19456, 19456
          %481 = vsyncadd [#allocation4], %s480
          %s482 = sshll.u32 [#allocation3], 4
          %s483 = int_to_ptr.vmem [resolvable:$true] %s482
          %488 = dma.hbm_to_vmem [thread:$0]  %s2, 19456, %s483, [#allocation4], 512, 512, 32
        $region16: #{tpu_custom_call.1} parent=11 // pred_fallthru
          _
        // Predicated region
        $region17: #{tpu_custom_call.1} parent=11 // pred_check
          %p489 = pneg %p131
        $region18: #{tpu_custom_call.1} parent=11 // pred_check_branch
          %491 = sbr.rel (%p489) target = $region20
        $region19: #{tpu_custom_call.1} parent=11 // pred_region
          _
        $region20: #{tpu_custom_call.1} parent=11 // pred_fallthru
          _
        // Predicated region
        $region21: #{tpu_custom_call.1} parent=11 // pred_check
          %p492 = pneg %p152
        $region22: #{tpu_custom_call.1} parent=11 // pred_check_branch
          %494 = sbr.rel (%p492) target = $region24
        $region23: #{tpu_custom_call.1} parent=11 // pred_region
          %s496 = ssub.s32 128, 128
          %497 = vsyncadd [#allocation7], %s496
          %s499 = sshll.u32 [#allocation6], 4
          %s500 = int_to_ptr.vmem [resolvable:$true] %s499
          %502 = dma.hbm_to_vmem [thread:$0]  %s4, 128, %s500, [#allocation7]
        $region24: #{tpu_custom_call.1} parent=11 // pred_fallthru
          _
        // Predicated region
        $region25: #{tpu_custom_call.1} parent=11 // pred_check
          %p503 = pneg %p173
        $region26: #{tpu_custom_call.1} parent=11 // pred_check_branch
          %505 = sbr.rel (%p503) target = $region28
        $region27: #{tpu_custom_call.1} parent=11 // pred_region
          %s507 = ssub.s32 1024, 1024
          %508 = vsyncadd [#allocation7], %s507
          %s510 = sshll.u32 [#allocation8], 4
          %s511 = int_to_ptr.vmem [resolvable:$true] %s510
          %513 = dma.hbm_to_vmem [thread:$0]  %s5, 1024, %s511, [#allocation7]
        $region28: #{tpu_custom_call.1} parent=11 // pred_fallthru
          _
        // Predicated region
        $region29: #{tpu_custom_call.1} parent=11 // pred_check
          %p514 = pneg %p194
        $region30: #{tpu_custom_call.1} parent=11 // pred_check_branch
          %516 = sbr.rel (%p514) target = $region32
        $region31: #{tpu_custom_call.1} parent=11 // pred_region
          _
        $region32: #{tpu_custom_call.1} parent=11 // pred_fallthru
          _
        // Predicated region
        $region33: #{tpu_custom_call.1} parent=11 // pred_check
          %p517 = pneg %p215
        $region34: #{tpu_custom_call.1} parent=11 // pred_check_branch
          %519 = sbr.rel (%p517) target = $region36
        $region35: #{tpu_custom_call.1} parent=11 // pred_region
          %s521 = ssub.s32 16384, 16384
          %522 = vsyncadd [#allocation10], %s521
          %s523 = sshll.u32 [#allocation9], 4
          %s524 = int_to_ptr.vmem [resolvable:$true] %s523
          %529 = dma.hbm_to_vmem [thread:$0]  %s7, 16384, %s524, [#allocation10], 256, 256, 16
        $region36: #{tpu_custom_call.1} parent=11 // pred_fallthru
          _
        // Predicated region
        $region37: #{tpu_custom_call.1} parent=11 // pred_check
          %p530 = pneg %p236
        $region38: #{tpu_custom_call.1} parent=11 // pred_check_branch
          %532 = sbr.rel (%p530) target = $region40
        $region39: #{tpu_custom_call.1} parent=11 // pred_region
          %s534 = ssub.s32 8192, 8192
          %535 = vsyncadd [#allocation10], %s534
          %s536 = sshll.u32 [#allocation11], 4
          %s537 = int_to_ptr.vmem [resolvable:$true] %s536
          %542 = dma.hbm_to_vmem [thread:$0]  %s8, 8192, %s537, [#allocation10], 256, 256, 16
        $region40: #{tpu_custom_call.1} parent=11 // pred_fallthru
          _
        // Predicated region
        $region41: #{tpu_custom_call.1} parent=11 // pred_check
          %p543 = pneg %p257
        $region42: #{tpu_custom_call.1} parent=11 // pred_check_branch
          %545 = sbr.rel (%p543) target = $region44
        $region43: #{tpu_custom_call.1} parent=11 // pred_region
          _
        $region44: #{tpu_custom_call.1} parent=11 // pred_fallthru
          _
        // Predicated region
        $region45: #{tpu_custom_call.1} parent=11 // pred_check
          %p546 = pneg %p278
        $region46: #{tpu_custom_call.1} parent=11 // pred_check_branch
          %548 = sbr.rel (%p546) target = $region48
        $region47: #{tpu_custom_call.1} parent=11 // pred_region
          %s550 = ssub.s32 16384, 16384
          %551 = vsyncadd [#allocation13], %s550
          %s552 = sshll.u32 [#allocation12], 4
          %s553 = int_to_ptr.vmem [resolvable:$true] %s552
          %558 = dma.hbm_to_vmem [thread:$0]  %s10, 16384, %s553, [#allocation13], 256, 256, 16
        $region48: #{tpu_custom_call.1} parent=11 // pred_fallthru
          _
        // Predicated region
        $region49: #{tpu_custom_call.1} parent=11 // pred_check
          %p559 = pneg %p299
        $region50: #{tpu_custom_call.1} parent=11 // pred_check_branch
          %561 = sbr.rel (%p559) target = $region52
        $region51: #{tpu_custom_call.1} parent=11 // pred_region
          _
        $region52: #{tpu_custom_call.1} parent=11 // pred_fallthru
          _
        // Predicated region
        $region53: #{tpu_custom_call.1} parent=11 // pred_check
          %p562 = pneg %p320
        $region54: #{tpu_custom_call.1} parent=11 // pred_check_branch
          %564 = sbr.rel (%p562) target = $region56
        $region55: #{tpu_custom_call.1} parent=11 // pred_region
          %s566 = ssub.s32 32768, 32768
          %567 = vsyncadd [#allocation13], %s566
          %s568 = sshll.u32 [#allocation14], 4
          %s569 = int_to_ptr.vmem [resolvable:$true] %s568
          %574 = dma.hbm_to_vmem [thread:$0]  %s12, 32768, %s569, [#allocation13], 512, 512, 32
        $region56: #{tpu_custom_call.1} parent=11 // pred_fallthru
          _
        // Predicated region
        $region57: #{tpu_custom_call.1} parent=11 // pred_check
          %p575 = pneg %p341
        $region58: #{tpu_custom_call.1} parent=11 // pred_check_branch
          %577 = sbr.rel (%p575) target = $region60
        $region59: #{tpu_custom_call.1} parent=11 // pred_region
          _
        $region60: #{tpu_custom_call.1} parent=11 // pred_fallthru
          _
        // Predicated region
        $region61: #{tpu_custom_call.1} parent=11 // pred_check
          %p578 = pneg %p362
        $region62: #{tpu_custom_call.1} parent=11 // pred_check_branch
          %580 = sbr.rel (%p578) target = $region64
        $region63: #{tpu_custom_call.1} parent=11 // pred_region
          _
        $region64: #{tpu_custom_call.1} parent=11 // pred_fallthru
          _
        // Predicated region
        $region65: #{tpu_custom_call.1} parent=11 // pred_check
          %p581 = pneg %p383
        $region66: #{tpu_custom_call.1} parent=11 // pred_check_branch
          %583 = sbr.rel (%p581) target = $region68
        $region67: #{tpu_custom_call.1} parent=11 // pred_region
          _
        $region68: #{tpu_custom_call.1} parent=11 // pred_fallthru
          _
      $region12: #{tpu_custom_call.1} parent=5 // pred_fallthru
        _
      %p584 = scmp.lt.s32.totalorder %s37, 2
      // Predicated region
      $region69: #{tpu_custom_call.1} parent=5 // pred_check
        %p585 = pneg %p584
      $region70: #{tpu_custom_call.1} parent=5 // pred_check_branch
        %587 = sbr.rel (%p585) target = $region72
      $region71: #{tpu_custom_call.1} parent=5 // pred_region
        // Predicated region
        $region73: #{tpu_custom_call.1} parent=71 // pred_check
          %p588 = pneg %p57
        $region74: #{tpu_custom_call.1} parent=71 // pred_check_branch
          %590 = sbr.rel (%p588) target = $region76
        $region75: #{tpu_custom_call.1} parent=71 // pred_region
          %p591 = scmp.lt.s32.totalorder %s37, 1
          %s592 = scalar_select %p591, %s37, 1
          %s593 = smul.addr %s592, 3
          %s594 = smul.addr %s593, 8
          %s595 = scalar_lea.vmem %s0, %s594
        $region76: #{tpu_custom_call.1} parent=71 // pred_fallthru
          _
        // Predicated region
        $region77: #{tpu_custom_call.1} parent=71 // pred_check
          %p596 = pneg %p83
        $region78: #{tpu_custom_call.1} parent=71 // pred_check_branch
          %598 = sbr.rel (%p596) target = $region80
        $region79: #{tpu_custom_call.1} parent=71 // pred_region
          %p599 = scmp.lt.s32.totalorder %s37, 1
          %s600 = scalar_select %p599, %s37, 1
          %s601 = smul.addr %s600, 8
          %s602 = scalar_lea.vmem %s1, %s601
        $region80: #{tpu_custom_call.1} parent=71 // pred_fallthru
          _
      $region72: #{tpu_custom_call.1} parent=5 // pred_fallthru
        _
      %p603 = scmp.le.s32.totalorder 1, %s37
      %p604 = scmp.lt.s32.totalorder %s37, 3
      %p605 = pnand %p603, %p604
      %p606 = pneg %p605
      // Predicated region
      $region81: #{tpu_custom_call.1} parent=5 // pred_check
        _
      $region82: #{tpu_custom_call.1} parent=5 // pred_check_branch
        %608 = sbr.rel (%p605) target = $region84
      $region83: #{tpu_custom_call.1} parent=5 // pred_region
        %s609 = ssub.s32 %s37, 1
        // Predicated region
        $region85: #{tpu_custom_call.1} parent=83 // pred_check
          %p610 = pneg %p110
        $region86: #{tpu_custom_call.1} parent=83 // pred_check_branch
          %612 = sbr.rel (%p610) target = $region88
        $region87: #{tpu_custom_call.1} parent=83 // pred_region
          %613 = dma.done [#allocation4], 19456
        $region88: #{tpu_custom_call.1} parent=83 // pred_fallthru
          _
        // Predicated region
        $region89: #{tpu_custom_call.1} parent=83 // pred_check
          %p614 = pneg %p152
        $region90: #{tpu_custom_call.1} parent=83 // pred_check_branch
          %616 = sbr.rel (%p614) target = $region92
        $region91: #{tpu_custom_call.1} parent=83 // pred_region
          %617 = dma.done [#allocation7], 128
        $region92: #{tpu_custom_call.1} parent=83 // pred_fallthru
          _
        // Predicated region
        $region93: #{tpu_custom_call.1} parent=83 // pred_check
          %p618 = pneg %p173
        $region94: #{tpu_custom_call.1} parent=83 // pred_check_branch
          %620 = sbr.rel (%p618) target = $region96
        $region95: #{tpu_custom_call.1} parent=83 // pred_region
          %621 = dma.done [#allocation7], 1024
        $region96: #{tpu_custom_call.1} parent=83 // pred_fallthru
          _
        // Predicated region
        $region97: #{tpu_custom_call.1} parent=83 // pred_check
          %p622 = pneg %p215
        $region98: #{tpu_custom_call.1} parent=83 // pred_check_branch
          %624 = sbr.rel (%p622) target = $region100
        $region99: #{tpu_custom_call.1} parent=83 // pred_region
          %625 = dma.done [#allocation10], 16384
        $region100: #{tpu_custom_call.1} parent=83 // pred_fallthru
          _
        // Predicated region
        $region101: #{tpu_custom_call.1} parent=83 // pred_check
          %p626 = pneg %p236
        $region102: #{tpu_custom_call.1} parent=83 // pred_check_branch
          %628 = sbr.rel (%p626) target = $region104
        $region103: #{tpu_custom_call.1} parent=83 // pred_region
          %629 = dma.done [#allocation10], 8192
        $region104: #{tpu_custom_call.1} parent=83 // pred_fallthru
          _
        // Predicated region
        $region105: #{tpu_custom_call.1} parent=83 // pred_check
          %p630 = pneg %p278
        $region106: #{tpu_custom_call.1} parent=83 // pred_check_branch
          %632 = sbr.rel (%p630) target = $region108
        $region107: #{tpu_custom_call.1} parent=83 // pred_region
          %633 = dma.done [#allocation13], 16384
        $region108: #{tpu_custom_call.1} parent=83 // pred_fallthru
          _
        // Predicated region
        $region109: #{tpu_custom_call.1} parent=83 // pred_check
          %p634 = pneg %p320
        $region110: #{tpu_custom_call.1} parent=83 // pred_check_branch
          %636 = sbr.rel (%p634) target = $region112
        $region111: #{tpu_custom_call.1} parent=83 // pred_region
          %637 = dma.done [#allocation13], 32768
        $region112: #{tpu_custom_call.1} parent=83 // pred_fallthru
          _
        %p638 = scmp.lt.s32.totalorder %s42, 1
        %s639 = scalar_select %p638, %s42, 1
        %s640 = smul.addr %s639, 3
        %s641 = smul.addr %s640, 8
        %s642 = scalar_lea.vmem %s0, %s641
        %p643 = pneg %p63
        %p644 = pneg %p60
        %p645 = scmp.lt.s32.totalorder %s42, 1
        %s646 = scalar_select %p645, %s42, 1
        %s647 = smul.addr %s646, 8
        %s648 = scalar_lea.vmem %s1, %s647
        %p649 = pneg %p89
        %p650 = pneg %p86
        %p651 = pneg %p110
        %p652 = pneg %p107
        %p653 = pneg %p131
        %p654 = pneg %p128
        %p655 = pneg %p152
        %p656 = pneg %p149
        %p657 = pneg %p173
        %p658 = pneg %p170
        %p659 = pneg %p194
        %p660 = pneg %p191
        %p661 = pneg %p215
        %p662 = pneg %p212
        %p663 = pneg %p236
        %p664 = pneg %p233
        %p665 = pneg %p257
        %p666 = pneg %p254
        %p667 = pneg %p278
        %p668 = pneg %p275
        %p669 = pneg %p299
        %p670 = pneg %p296
        %p671 = pneg %p320
        %p672 = pneg %p317
        %p673 = pneg %p341
        %p674 = pneg %p338
        %p675 = pneg %p362
        %p676 = pneg %p359
        %p677 = pneg %p383
        %p678 = pneg %p380
        %p679 = pneg %p409
        %p680 = pneg %p406
        %p681 = scmp.lt.s32.totalorder %s42, 1
        %s682 = scalar_select %p681, %s42, 1
        %s683 = scalar_lea.vmem %s16, %s682
        %p684 = pneg %p435
        %p685 = pneg %p432
        %s686 = sand.u32 %s422, 1
        %s687 = scalar_lea.sflag [#allocation5], %s686
        %s688 = sand.u32 %s422, 1
        %s689 = smul.addr %s688, 4
        %s690 = scalar_lea.vmem [#allocation15], %s689
        %p691 = pneg %p461
        %p692 = pneg %p458
        %s693 = sand.u32 %s448, 1
        %s694 = scalar_lea.sflag [#allocation17], %s693
        %s695 = sand.u32 %s448, 1
        %s696 = smul.addr %s695, 2
        %s697 = scalar_lea.vmem [#allocation16], %s696
        %p698 = scmp.lt.s32.totalorder %s42, 1
        %s699 = scalar_select %p698, %s42, 1
        %s700 = smul.addr %s699, 3
        %s701 = smul.addr %s700, 8
        %s702 = scalar_lea.vmem %s0, %s701
        %p703 = scmp.lt.s32.totalorder %s42, 1
        %s704 = scalar_select %p703, %s42, 1
        %s705 = smul.addr %s704, 8
        %s706 = scalar_lea.vmem %s1, %s705
        %p707 = scmp.lt.s32.totalorder %s42, 1
        %s708 = scalar_select %p707, %s42, 1
        %s709 = scalar_lea.vmem %s16, %s708
        %v711 = vld [vmem:[%s702] sm:$0xff]
        %v712 = vld [vmem:[%s702 + $0x8] sm:$0xff]
        %v713 = vld [vmem:[%s702 + $0x10] sm:$0xff]
        %v714 = vpack.c.bf16 %v711, %v711
        %v715 = vpack.c.bf16 %v712, %v712
        %v716 = vpack.c.bf16 %v713, %v713
        %v717 = vld [vmem:[#allocation3] sm:$0xff]
        %v718 = vld [vmem:[#allocation3 + $0x8] sm:$0xff]
        %v719 = vld [vmem:[#allocation3 + $0x10] sm:$0xff]
        %v720 = vld [vmem:[#allocation3 + $0x18] sm:$0xff]
        %v721 = vld [vmem:[#allocation3 + $0x20] sm:$0xff]
        %v722 = vld [vmem:[#allocation3 + $0x28] sm:$0xff]
        %v723 = vld [vmem:[#allocation3 + $0x30] sm:$0xff]
        %v724 = vld [vmem:[#allocation3 + $0x38] sm:$0xff]
        %v725 = vld [vmem:[#allocation3 + $0x40] sm:$0xff]
        %v726 = vld [vmem:[#allocation3 + $0x48] sm:$0xff]
        %v727 = vld [vmem:[#allocation3 + $0x50] sm:$0xff]
        %v728 = vld [vmem:[#allocation3 + $0x58] sm:$0xff]
        %v729 = vld [vmem:[#allocation3 + $0x60] sm:$0xff]
        %v730 = vld [vmem:[#allocation3 + $0x68] sm:$0xff]
        %v731 = vld [vmem:[#allocation3 + $0x70] sm:$0xff]
        %v732 = vld [vmem:[#allocation3 + $0x78] sm:$0xff]
        %v733 = vld [vmem:[#allocation3 + $0x80] sm:$0xff]
        %v734 = vld [vmem:[#allocation3 + $0x88] sm:$0xff]
        %v735 = vld [vmem:[#allocation3 + $0x90] sm:$0xff]
        %v736 = vld [vmem:[#allocation3 + $0x98] sm:$0xff]
        %v737 = vld [vmem:[#allocation3 + $0xa0] sm:$0xff]
        %v738 = vld [vmem:[#allocation3 + $0xa8] sm:$0xff]
        %v739 = vld [vmem:[#allocation3 + $0xb0] sm:$0xff]
        %v740 = vld [vmem:[#allocation3 + $0xb8] sm:$0xff]
        %v741 = vld [vmem:[#allocation3 + $0xc0] sm:$0xff]
        %v742 = vld [vmem:[#allocation3 + $0xc8] sm:$0xff]
        %v743 = vld [vmem:[#allocation3 + $0xd0] sm:$0xff]
        %v744 = vld [vmem:[#allocation3 + $0xd8] sm:$0xff]
        %v745 = vld [vmem:[#allocation3 + $0xe0] sm:$0xff]
        %v746 = vld [vmem:[#allocation3 + $0xe8] sm:$0xff]
        %v747 = vld [vmem:[#allocation3 + $0xf0] sm:$0xff]
        %v748 = vld [vmem:[#allocation3 + $0xf8] sm:$0xff]
        %v749 = vld [vmem:[#allocation3 + $0x100] sm:$0xff]
        %v750 = vld [vmem:[#allocation3 + $0x108] sm:$0xff]
        %v751 = vld [vmem:[#allocation3 + $0x110] sm:$0xff]
        %v752 = vld [vmem:[#allocation3 + $0x118] sm:$0xff]
        %v753 = vld [vmem:[#allocation3 + $0x120] sm:$0xff]
        %v754 = vld [vmem:[#allocation3 + $0x128] sm:$0xff]
        %v755 = vld [vmem:[#allocation3 + $0x130] sm:$0xff]
        %v756 = vld [vmem:[#allocation3 + $0x138] sm:$0xff]
        %v757 = vld [vmem:[#allocation3 + $0x140] sm:$0xff]
        %v758 = vld [vmem:[#allocation3 + $0x148] sm:$0xff]
        %v759 = vld [vmem:[#allocation3 + $0x150] sm:$0xff]
        %v760 = vld [vmem:[#allocation3 + $0x158] sm:$0xff]
        %v761 = vld [vmem:[#allocation3 + $0x160] sm:$0xff]
        %v762 = vld [vmem:[#allocation3 + $0x168] sm:$0xff]
        %v763 = vld [vmem:[#allocation3 + $0x170] sm:$0xff]
        %v764 = vld [vmem:[#allocation3 + $0x178] sm:$0xff]
        %v765 = vld [vmem:[#allocation3 + $0x180] sm:$0xff]
        %v766 = vld [vmem:[#allocation3 + $0x188] sm:$0xff]
        %v767 = vld [vmem:[#allocation3 + $0x190] sm:$0xff]
        %v768 = vld [vmem:[#allocation3 + $0x198] sm:$0xff]
        %v769 = vld [vmem:[#allocation3 + $0x1a0] sm:$0xff]
        %v770 = vld [vmem:[#allocation3 + $0x1a8] sm:$0xff]
        %v771 = vld [vmem:[#allocation3 + $0x1b0] sm:$0xff]
        %v772 = vld [vmem:[#allocation3 + $0x1b8] sm:$0xff]
        %v773 = vld [vmem:[#allocation3 + $0x1c0] sm:$0xff]
        %v774 = vld [vmem:[#allocation3 + $0x1c8] sm:$0xff]
        %v775 = vld [vmem:[#allocation3 + $0x1d0] sm:$0xff]
        %v776 = vld [vmem:[#allocation3 + $0x1d8] sm:$0xff]
        %v777 = vld [vmem:[#allocation3 + $0x1e0] sm:$0xff]
        %v778 = vld [vmem:[#allocation3 + $0x1e8] sm:$0xff]
        %v779 = vld [vmem:[#allocation3 + $0x1f0] sm:$0xff]
        %v780 = vld [vmem:[#allocation3 + $0x1f8] sm:$0xff]
        %v781 = vld [vmem:[#allocation3 + $0x200] sm:$0xff]
        %v782 = vld [vmem:[#allocation3 + $0x208] sm:$0xff]
        %v783 = vld [vmem:[#allocation3 + $0x210] sm:$0xff]
        %v784 = vld [vmem:[#allocation3 + $0x218] sm:$0xff]
        %v785 = vld [vmem:[#allocation3 + $0x220] sm:$0xff]
        %v786 = vld [vmem:[#allocation3 + $0x228] sm:$0xff]
        %v787 = vld [vmem:[#allocation3 + $0x230] sm:$0xff]
        %v788 = vld [vmem:[#allocation3 + $0x238] sm:$0xff]
        %v789 = vld [vmem:[#allocation3 + $0x240] sm:$0xff]
        %v790 = vld [vmem:[#allocation3 + $0x248] sm:$0xff]
        %v791 = vld [vmem:[#allocation3 + $0x250] sm:$0xff]
        %v792 = vld [vmem:[#allocation3 + $0x258] sm:$0xff]
        %v793 = vld [vmem:[#allocation3 + $0x260] sm:$0xff]
        %v794 = vld [vmem:[#allocation3 + $0x268] sm:$0xff]
        %v795 = vld [vmem:[#allocation3 + $0x270] sm:$0xff]
        %v796 = vld [vmem:[#allocation3 + $0x278] sm:$0xff]
        %v797 = vld [vmem:[#allocation3 + $0x280] sm:$0xff]
        %v798 = vld [vmem:[#allocation3 + $0x288] sm:$0xff]
        %v799 = vld [vmem:[#allocation3 + $0x290] sm:$0xff]
        %v800 = vld [vmem:[#allocation3 + $0x298] sm:$0xff]
        %v801 = vld [vmem:[#allocation3 + $0x2a0] sm:$0xff]
        %v802 = vld [vmem:[#allocation3 + $0x2a8] sm:$0xff]
        %v803 = vld [vmem:[#allocation3 + $0x2b0] sm:$0xff]
        %v804 = vld [vmem:[#allocation3 + $0x2b8] sm:$0xff]
        %v805 = vld [vmem:[#allocation3 + $0x2c0] sm:$0xff]
        %v806 = vld [vmem:[#allocation3 + $0x2c8] sm:$0xff]
        %v807 = vld [vmem:[#allocation3 + $0x2d0] sm:$0xff]
        %v808 = vld [vmem:[#allocation3 + $0x2d8] sm:$0xff]
        %v809 = vld [vmem:[#allocation3 + $0x2e0] sm:$0xff]
        %v810 = vld [vmem:[#allocation3 + $0x2e8] sm:$0xff]
        %v811 = vld [vmem:[#allocation3 + $0x2f0] sm:$0xff]
        %v812 = vld [vmem:[#allocation3 + $0x2f8] sm:$0xff]
        %v813 = vld [vmem:[#allocation3 + $0x300] sm:$0xff]
        %v814 = vld [vmem:[#allocation3 + $0x308] sm:$0xff]
        %v815 = vld [vmem:[#allocation3 + $0x310] sm:$0xff]
        %v816 = vld [vmem:[#allocation3 + $0x318] sm:$0xff]
        %v817 = vld [vmem:[#allocation3 + $0x320] sm:$0xff]
        %v818 = vld [vmem:[#allocation3 + $0x328] sm:$0xff]
        %v819 = vld [vmem:[#allocation3 + $0x330] sm:$0xff]
        %v820 = vld [vmem:[#allocation3 + $0x338] sm:$0xff]
        %v821 = vld [vmem:[#allocation3 + $0x340] sm:$0xff]
        %v822 = vld [vmem:[#allocation3 + $0x348] sm:$0xff]
        %v823 = vld [vmem:[#allocation3 + $0x350] sm:$0xff]
        %v824 = vld [vmem:[#allocation3 + $0x358] sm:$0xff]
        %v825 = vld [vmem:[#allocation3 + $0x360] sm:$0xff]
        %v826 = vld [vmem:[#allocation3 + $0x368] sm:$0xff]
        %v827 = vld [vmem:[#allocation3 + $0x370] sm:$0xff]
        %v828 = vld [vmem:[#allocation3 + $0x378] sm:$0xff]
        %v829 = vld [vmem:[#allocation3 + $0x380] sm:$0xff]
        %v830 = vld [vmem:[#allocation3 + $0x388] sm:$0xff]
        %v831 = vld [vmem:[#allocation3 + $0x390] sm:$0xff]
        %v832 = vld [vmem:[#allocation3 + $0x398] sm:$0xff]
        %v833 = vld [vmem:[#allocation3 + $0x3a0] sm:$0xff]
        %v834 = vld [vmem:[#allocation3 + $0x3a8] sm:$0xff]
        %v835 = vld [vmem:[#allocation3 + $0x3b0] sm:$0xff]
        %v836 = vld [vmem:[#allocation3 + $0x3b8] sm:$0xff]
        %v837 = vld [vmem:[#allocation3 + $0x3c0] sm:$0xff]
        %v838 = vld [vmem:[#allocation3 + $0x3c8] sm:$0xff]
        %v839 = vld [vmem:[#allocation3 + $0x3d0] sm:$0xff]
        %v840 = vld [vmem:[#allocation3 + $0x3d8] sm:$0xff]
        %v841 = vld [vmem:[#allocation3 + $0x3e0] sm:$0xff]
        %v842 = vld [vmem:[#allocation3 + $0x3e8] sm:$0xff]
        %v843 = vld [vmem:[#allocation3 + $0x3f0] sm:$0xff]
        %v844 = vld [vmem:[#allocation3 + $0x3f8] sm:$0xff]
        %v845 = vld [vmem:[#allocation3 + $0x400] sm:$0xff]
        %v846 = vld [vmem:[#allocation3 + $0x408] sm:$0xff]
        %v847 = vld [vmem:[#allocation3 + $0x410] sm:$0xff]
        %v848 = vld [vmem:[#allocation3 + $0x418] sm:$0xff]
        %v849 = vld [vmem:[#allocation3 + $0x420] sm:$0xff]
        %v850 = vld [vmem:[#allocation3 + $0x428] sm:$0xff]
        %v851 = vld [vmem:[#allocation3 + $0x430] sm:$0xff]
        %v852 = vld [vmem:[#allocation3 + $0x438] sm:$0xff]
        %v853 = vld [vmem:[#allocation3 + $0x440] sm:$0xff]
        %v854 = vld [vmem:[#allocation3 + $0x448] sm:$0xff]
        %v855 = vld [vmem:[#allocation3 + $0x450] sm:$0xff]
        %v856 = vld [vmem:[#allocation3 + $0x458] sm:$0xff]
        %v857 = vld [vmem:[#allocation3 + $0x460] sm:$0xff]
        %v858 = vld [vmem:[#allocation3 + $0x468] sm:$0xff]
        %v859 = vld [vmem:[#allocation3 + $0x470] sm:$0xff]
        %v860 = vld [vmem:[#allocation3 + $0x478] sm:$0xff]
        %v861 = vld [vmem:[#allocation3 + $0x480] sm:$0xff]
        %v862 = vld [vmem:[#allocation3 + $0x488] sm:$0xff]
        %v863 = vld [vmem:[#allocation3 + $0x490] sm:$0xff]
        %v864 = vld [vmem:[#allocation3 + $0x498] sm:$0xff]
        %v865 = vld [vmem:[#allocation3 + $0x4a0] sm:$0x33]
        %v866 = vld [vmem:[#allocation3 + $0x4a8] sm:$0x33]
        %v867 = vld [vmem:[#allocation3 + $0x4b0] sm:$0x33]
        %v868 = vld [vmem:[#allocation3 + $0x4b8] sm:$0x33]
        %v869 = vld [vmem:[#allocation6] sm:$0xff]
        %v871 = vlaneseq
        %v872 = vshrl.u32 %v871, 7
        %v873 = vsub.s32 0, %v872
        %v874 = vrot.slane %v869, %v873
        %v875 = vlaneseq
        %v876 = vshrl.u32 %v875, 7
        %v877 = vsub.s32 1, %v876
        %v878 = vrot.slane %v869, %v877
        %v879 = vlaneseq
        %v880 = vshrl.u32 %v879, 7
        %v881 = vsub.s32 2, %v880
        %v882 = vrot.slane %v869, %v881
        %v883 = vlaneseq
        %v884 = vshrl.u32 %v883, 7
        %v885 = vsub.s32 3, %v884
        %v886 = vrot.slane %v869, %v885
        %v887 = vlaneseq
        %v888 = vshrl.u32 %v887, 7
        %v889 = vsub.s32 4, %v888
        %v890 = vrot.slane %v869, %v889
        %v891 = vlaneseq
        %v892 = vshrl.u32 %v891, 7
        %v893 = vsub.s32 5, %v892
        %v894 = vrot.slane %v869, %v893
        %v895 = vlaneseq
        %v896 = vshrl.u32 %v895, 7
        %v897 = vsub.s32 6, %v896
        %v898 = vrot.slane %v869, %v897
        %v899 = vlaneseq
        %v900 = vshrl.u32 %v899, 7
        %v901 = vsub.s32 7, %v900
        %v902 = vrot.slane %v869, %v901
        %v1063 = vunpack.c.l.b16 %v717
        %v1064 = vunpack.c.h.b16 %v717
        %v1065 = vunpack.c.l.b16 %v718
        %v1066 = vunpack.c.h.b16 %v718
        %v1067 = vunpack.c.l.b16 %v719
        %v1068 = vunpack.c.h.b16 %v719
        %v1069 = vunpack.c.l.b16 %v720
        %v1070 = vunpack.c.h.b16 %v720
        %v1071 = vunpack.c.l.b16 %v721
        %v1072 = vunpack.c.h.b16 %v721
        %v1073 = vunpack.c.l.b16 %v722
        %v1074 = vunpack.c.h.b16 %v722
        %v1075 = vunpack.c.l.b16 %v723
        %v1076 = vunpack.c.h.b16 %v723
        %v1077 = vunpack.c.l.b16 %v724
        %v1078 = vunpack.c.h.b16 %v724
        %v1079 = vunpack.c.l.b16 %v725
        %v1080 = vunpack.c.h.b16 %v725
        %v1081 = vunpack.c.l.b16 %v726
        %v1082 = vunpack.c.h.b16 %v726
        %v1083 = vunpack.c.l.b16 %v727
        %v1084 = vunpack.c.h.b16 %v727
        %v1085 = vunpack.c.l.b16 %v728
        %v1086 = vunpack.c.h.b16 %v728
        %v1087 = vunpack.c.l.b16 %v729
        %v1088 = vunpack.c.h.b16 %v729
        %v1089 = vunpack.c.l.b16 %v730
        %v1090 = vunpack.c.h.b16 %v730
        %v1091 = vunpack.c.l.b16 %v731
        %v1092 = vunpack.c.h.b16 %v731
        %v1093 = vunpack.c.l.b16 %v732
        %v1094 = vunpack.c.h.b16 %v732
        %v1095 = vunpack.c.l.b16 %v733
        %v1096 = vunpack.c.h.b16 %v733
        %v1097 = vunpack.c.l.b16 %v734
        %v1098 = vunpack.c.h.b16 %v734
        %v1099 = vunpack.c.l.b16 %v735
        %v1100 = vunpack.c.h.b16 %v735
        %v1101 = vunpack.c.l.b16 %v736
        %v1102 = vunpack.c.h.b16 %v736
        %v1103 = vunpack.c.l.b16 %v737
        %v1104 = vunpack.c.h.b16 %v737
        %v1105 = vunpack.c.l.b16 %v738
        %v1106 = vunpack.c.h.b16 %v738
        %v1107 = vunpack.c.l.b16 %v739
        %v1108 = vunpack.c.h.b16 %v739
        %v1109 = vunpack.c.l.b16 %v740
        %v1110 = vunpack.c.h.b16 %v740
        %v1111 = vunpack.c.l.b16 %v741
        %v1112 = vunpack.c.h.b16 %v741
        %v1113 = vunpack.c.l.b16 %v742
        %v1114 = vunpack.c.h.b16 %v742
        %v1115 = vunpack.c.l.b16 %v743
        %v1116 = vunpack.c.h.b16 %v743
        %v1117 = vunpack.c.l.b16 %v744
        %v1118 = vunpack.c.h.b16 %v744
        %v1119 = vunpack.c.l.b16 %v745
        %v1120 = vunpack.c.h.b16 %v745
        %v1121 = vunpack.c.l.b16 %v746
        %v1122 = vunpack.c.h.b16 %v746
        %v1123 = vunpack.c.l.b16 %v747
        %v1124 = vunpack.c.h.b16 %v747
        %v1125 = vunpack.c.l.b16 %v748
        %v1126 = vunpack.c.h.b16 %v748
        %v1127 = vunpack.c.l.b16 %v749
        %v1128 = vunpack.c.h.b16 %v749
        %v1129 = vunpack.c.l.b16 %v750
        %v1130 = vunpack.c.h.b16 %v750
        %v1131 = vunpack.c.l.b16 %v751
        %v1132 = vunpack.c.h.b16 %v751
        %v1133 = vunpack.c.l.b16 %v752
        %v1134 = vunpack.c.h.b16 %v752
        %v1135 = vunpack.c.l.b16 %v753
        %v1136 = vunpack.c.h.b16 %v753
        %v1137 = vunpack.c.l.b16 %v754
        %v1138 = vunpack.c.h.b16 %v754
        %v1139 = vunpack.c.l.b16 %v755
        %v1140 = vunpack.c.h.b16 %v755
        %v1141 = vunpack.c.l.b16 %v756
        %v1142 = vunpack.c.h.b16 %v756
        %v1143 = vunpack.c.l.b16 %v757
        %v1144 = vunpack.c.h.b16 %v757
        %v1145 = vunpack.c.l.b16 %v758
        %v1146 = vunpack.c.h.b16 %v758
        %v1147 = vunpack.c.l.b16 %v759
        %v1148 = vunpack.c.h.b16 %v759
        %v1149 = vunpack.c.l.b16 %v760
        %v1150 = vunpack.c.h.b16 %v760
        %v1151 = vunpack.c.l.b16 %v761
        %v1152 = vunpack.c.h.b16 %v761
        %v1153 = vunpack.c.l.b16 %v762
        %v1154 = vunpack.c.h.b16 %v762
        %v1155 = vunpack.c.l.b16 %v763
        %v1156 = vunpack.c.h.b16 %v763
        %v1157 = vunpack.c.l.b16 %v764
        %v1158 = vunpack.c.h.b16 %v764
        %v1159 = vunpack.c.l.b16 %v765
        %v1160 = vunpack.c.h.b16 %v765
        %v1161 = vunpack.c.l.b16 %v766
        %v1162 = vunpack.c.h.b16 %v766
        %v1163 = vunpack.c.l.b16 %v767
        %v1164 = vunpack.c.h.b16 %v767
        %v1165 = vunpack.c.l.b16 %v768
        %v1166 = vunpack.c.h.b16 %v768
        %v1167 = vunpack.c.l.b16 %v769
        %v1168 = vunpack.c.h.b16 %v769
        %v1169 = vunpack.c.l.b16 %v770
        %v1170 = vunpack.c.h.b16 %v770
        %v1171 = vunpack.c.l.b16 %v771
        %v1172 = vunpack.c.h.b16 %v771
        %v1173 = vunpack.c.l.b16 %v772
        %v1174 = vunpack.c.h.b16 %v772
        %v1175 = vunpack.c.l.b16 %v773
        %v1176 = vunpack.c.h.b16 %v773
        %v1177 = vunpack.c.l.b16 %v774
        %v1178 = vunpack.c.h.b16 %v774
        %v1179 = vunpack.c.l.b16 %v775
        %v1180 = vunpack.c.h.b16 %v775
        %v1181 = vunpack.c.l.b16 %v776
        %v1182 = vunpack.c.h.b16 %v776
        %v1183 = vunpack.c.l.b16 %v777
        %v1184 = vunpack.c.h.b16 %v777
        %v1185 = vunpack.c.l.b16 %v778
        %v1186 = vunpack.c.h.b16 %v778
        %v1187 = vunpack.c.l.b16 %v779
        %v1188 = vunpack.c.h.b16 %v779
        %v1189 = vunpack.c.l.b16 %v780
        %v1190 = vunpack.c.h.b16 %v780
        %v1191 = vunpack.c.l.b16 %v781
        %v1192 = vunpack.c.h.b16 %v781
        %v1193 = vunpack.c.l.b16 %v782
        %v1194 = vunpack.c.h.b16 %v782
        %v1195 = vunpack.c.l.b16 %v783
        %v1196 = vunpack.c.h.b16 %v783
        %v1197 = vunpack.c.l.b16 %v784
        %v1198 = vunpack.c.h.b16 %v784
        %v1199 = vunpack.c.l.b16 %v785
        %v1200 = vunpack.c.h.b16 %v785
        %v1201 = vunpack.c.l.b16 %v786
        %v1202 = vunpack.c.h.b16 %v786
        %v1203 = vunpack.c.l.b16 %v787
        %v1204 = vunpack.c.h.b16 %v787
        %v1205 = vunpack.c.l.b16 %v788
        %v1206 = vunpack.c.h.b16 %v788
        %v1207 = vunpack.c.l.b16 %v789
        %v1208 = vunpack.c.h.b16 %v789
        %v1209 = vunpack.c.l.b16 %v790
        %v1210 = vunpack.c.h.b16 %v790
        %v1211 = vunpack.c.l.b16 %v791
        %v1212 = vunpack.c.h.b16 %v791
        %v1213 = vunpack.c.l.b16 %v792
        %v1214 = vunpack.c.h.b16 %v792
        %v1215 = vunpack.c.l.b16 %v793
        %v1216 = vunpack.c.h.b16 %v793
        %v1217 = vunpack.c.l.b16 %v794
        %v1218 = vunpack.c.h.b16 %v794
        %v1219 = vunpack.c.l.b16 %v795
        %v1220 = vunpack.c.h.b16 %v795
        %v1221 = vunpack.c.l.b16 %v796
        %v1222 = vunpack.c.h.b16 %v796
        %v1223 = vunpack.c.l.b16 %v797
        %v1224 = vunpack.c.h.b16 %v797
        %v1225 = vunpack.c.l.b16 %v798
        %v1226 = vunpack.c.h.b16 %v798
        %v1227 = vunpack.c.l.b16 %v799
        %v1228 = vunpack.c.h.b16 %v799
        %v1229 = vunpack.c.l.b16 %v800
        %v1230 = vunpack.c.h.b16 %v800
        %v1231 = vunpack.c.l.b16 %v801
        %v1232 = vunpack.c.h.b16 %v801
        %v1233 = vunpack.c.l.b16 %v802
        %v1234 = vunpack.c.h.b16 %v802
        %v1235 = vunpack.c.l.b16 %v803
        %v1236 = vunpack.c.h.b16 %v803
        %v1237 = vunpack.c.l.b16 %v804
        %v1238 = vunpack.c.h.b16 %v804
        %v1239 = vunpack.c.l.b16 %v805
        %v1240 = vunpack.c.h.b16 %v805
        %v1241 = vunpack.c.l.b16 %v806
        %v1242 = vunpack.c.h.b16 %v806
        %v1243 = vunpack.c.l.b16 %v807
        %v1244 = vunpack.c.h.b16 %v807
        %v1245 = vunpack.c.l.b16 %v808
        %v1246 = vunpack.c.h.b16 %v808
        %v1247 = vunpack.c.l.b16 %v809
        %v1248 = vunpack.c.h.b16 %v809
        %v1249 = vunpack.c.l.b16 %v810
        %v1250 = vunpack.c.h.b16 %v810
        %v1251 = vunpack.c.l.b16 %v811
        %v1252 = vunpack.c.h.b16 %v811
        %v1253 = vunpack.c.l.b16 %v812
        %v1254 = vunpack.c.h.b16 %v812
        %v1255 = vunpack.c.l.b16 %v813
        %v1256 = vunpack.c.h.b16 %v813
        %v1257 = vunpack.c.l.b16 %v814
        %v1258 = vunpack.c.h.b16 %v814
        %v1259 = vunpack.c.l.b16 %v815
        %v1260 = vunpack.c.h.b16 %v815
        %v1261 = vunpack.c.l.b16 %v816
        %v1262 = vunpack.c.h.b16 %v816
        %v1263 = vunpack.c.l.b16 %v817
        %v1264 = vunpack.c.h.b16 %v817
        %v1265 = vunpack.c.l.b16 %v818
        %v1266 = vunpack.c.h.b16 %v818
        %v1267 = vunpack.c.l.b16 %v819
        %v1268 = vunpack.c.h.b16 %v819
        %v1269 = vunpack.c.l.b16 %v820
        %v1270 = vunpack.c.h.b16 %v820
        %v1271 = vunpack.c.l.b16 %v821
        %v1272 = vunpack.c.h.b16 %v821
        %v1273 = vunpack.c.l.b16 %v822
        %v1274 = vunpack.c.h.b16 %v822
        %v1275 = vunpack.c.l.b16 %v823
        %v1276 = vunpack.c.h.b16 %v823
        %v1277 = vunpack.c.l.b16 %v824
        %v1278 = vunpack.c.h.b16 %v824
        %v1279 = vunpack.c.l.b16 %v825
        %v1280 = vunpack.c.h.b16 %v825
        %v1281 = vunpack.c.l.b16 %v826
        %v1282 = vunpack.c.h.b16 %v826
        %v1283 = vunpack.c.l.b16 %v827
        %v1284 = vunpack.c.h.b16 %v827
        %v1285 = vunpack.c.l.b16 %v828
        %v1286 = vunpack.c.h.b16 %v828
        %v1287 = vunpack.c.l.b16 %v829
        %v1288 = vunpack.c.h.b16 %v829
        %v1289 = vunpack.c.l.b16 %v830
        %v1290 = vunpack.c.h.b16 %v830
        %v1291 = vunpack.c.l.b16 %v831
        %v1292 = vunpack.c.h.b16 %v831
        %v1293 = vunpack.c.l.b16 %v832
        %v1294 = vunpack.c.h.b16 %v832
        %v1295 = vunpack.c.l.b16 %v833
        %v1296 = vunpack.c.h.b16 %v833
        %v1297 = vunpack.c.l.b16 %v834
        %v1298 = vunpack.c.h.b16 %v834
        %v1299 = vunpack.c.l.b16 %v835
        %v1300 = vunpack.c.h.b16 %v835
        %v1301 = vunpack.c.l.b16 %v836
        %v1302 = vunpack.c.h.b16 %v836
        %v1303 = vunpack.c.l.b16 %v837
        %v1304 = vunpack.c.h.b16 %v837
        %v1305 = vunpack.c.l.b16 %v838
        %v1306 = vunpack.c.h.b16 %v838
        %v1307 = vunpack.c.l.b16 %v839
        %v1308 = vunpack.c.h.b16 %v839
        %v1309 = vunpack.c.l.b16 %v840
        %v1310 = vunpack.c.h.b16 %v840
        %v1311 = vunpack.c.l.b16 %v841
        %v1312 = vunpack.c.h.b16 %v841
        %v1313 = vunpack.c.l.b16 %v842
        %v1314 = vunpack.c.h.b16 %v842
        %v1315 = vunpack.c.l.b16 %v843
        %v1316 = vunpack.c.h.b16 %v843
        %v1317 = vunpack.c.l.b16 %v844
        %v1318 = vunpack.c.h.b16 %v844
        %v1319 = vunpack.c.l.b16 %v845
        %v1320 = vunpack.c.h.b16 %v845
        %v1321 = vunpack.c.l.b16 %v846
        %v1322 = vunpack.c.h.b16 %v846
        %v1323 = vunpack.c.l.b16 %v847
        %v1324 = vunpack.c.h.b16 %v847
        %v1325 = vunpack.c.l.b16 %v848
        %v1326 = vunpack.c.h.b16 %v848
        %v1327 = vunpack.c.l.b16 %v849
        %v1328 = vunpack.c.h.b16 %v849
        %v1329 = vunpack.c.l.b16 %v850
        %v1330 = vunpack.c.h.b16 %v850
        %v1331 = vunpack.c.l.b16 %v851
        %v1332 = vunpack.c.h.b16 %v851
        %v1333 = vunpack.c.l.b16 %v852
        %v1334 = vunpack.c.h.b16 %v852
        %v1335 = vunpack.c.l.b16 %v853
        %v1336 = vunpack.c.h.b16 %v853
        %v1337 = vunpack.c.l.b16 %v854
        %v1338 = vunpack.c.h.b16 %v854
        %v1339 = vunpack.c.l.b16 %v855
        %v1340 = vunpack.c.h.b16 %v855
        %v1341 = vunpack.c.l.b16 %v856
        %v1342 = vunpack.c.h.b16 %v856
        %v1343 = vunpack.c.l.b16 %v857
        %v1344 = vunpack.c.h.b16 %v857
        %v1345 = vunpack.c.l.b16 %v858
        %v1346 = vunpack.c.h.b16 %v858
        %v1347 = vunpack.c.l.b16 %v859
        %v1348 = vunpack.c.h.b16 %v859
        %v1349 = vunpack.c.l.b16 %v860
        %v1350 = vunpack.c.h.b16 %v860
        %v1351 = vunpack.c.l.b16 %v861
        %v1352 = vunpack.c.h.b16 %v861
        %v1353 = vunpack.c.l.b16 %v862
        %v1354 = vunpack.c.h.b16 %v862
        %v1355 = vunpack.c.l.b16 %v863
        %v1356 = vunpack.c.h.b16 %v863
        %v1357 = vunpack.c.l.b16 %v864
        %v1358 = vunpack.c.h.b16 %v864
        %v1359 = vunpack.c.l.b16 %v865
        %v1360 = vunpack.c.h.b16 %v865
        %v1361 = vunpack.c.l.b16 %v866
        %v1362 = vunpack.c.h.b16 %v866
        %v1363 = vunpack.c.l.b16 %v867
        %v1364 = vunpack.c.h.b16 %v867
        %v1365 = vunpack.c.l.b16 %v868
        %v1366 = vunpack.c.h.b16 %v868
        %v1367 = vpack.c.b16 %v1071, %v1063
        %v1368 = vpack.c.b16 %v1072, %v1064
        %v1369 = vpack.c.b16 %v1073, %v1065
        %v1370 = vpack.c.b16 %v1074, %v1066
        %v1371 = vpack.c.b16 %v1075, %v1067
        %v1372 = vpack.c.b16 %v1076, %v1068
        %v1373 = vpack.c.b16 %v1077, %v1069
        %v1374 = vpack.c.b16 %v1078, %v1070
        %v1375 = vpack.c.b16 %v1087, %v1079
        %v1376 = vpack.c.b16 %v1088, %v1080
        %v1377 = vpack.c.b16 %v1089, %v1081
        %v1378 = vpack.c.b16 %v1090, %v1082
        %v1379 = vpack.c.b16 %v1091, %v1083
        %v1380 = vpack.c.b16 %v1092, %v1084
        %v1381 = vpack.c.b16 %v1093, %v1085
        %v1382 = vpack.c.b16 %v1094, %v1086
        %v1383 = vpack.c.b16 %v1103, %v1095
        %v1384 = vpack.c.b16 %v1104, %v1096
        %v1385 = vpack.c.b16 %v1105, %v1097
        %v1386 = vpack.c.b16 %v1106, %v1098
        %v1387 = vpack.c.b16 %v1107, %v1099
        %v1388 = vpack.c.b16 %v1108, %v1100
        %v1389 = vpack.c.b16 %v1109, %v1101
        %v1390 = vpack.c.b16 %v1110, %v1102
        %v1391 = vpack.c.b16 %v1119, %v1111
        %v1392 = vpack.c.b16 %v1120, %v1112
        %v1393 = vpack.c.b16 %v1121, %v1113
        %v1394 = vpack.c.b16 %v1122, %v1114
        %v1395 = vpack.c.b16 %v1123, %v1115
        %v1396 = vpack.c.b16 %v1124, %v1116
        %v1397 = vpack.c.b16 %v1125, %v1117
        %v1398 = vpack.c.b16 %v1126, %v1118
        %v1399 = vpack.c.b16 %v1135, %v1127
        %v1400 = vpack.c.b16 %v1136, %v1128
        %v1401 = vpack.c.b16 %v1137, %v1129
        %v1402 = vpack.c.b16 %v1138, %v1130
        %v1403 = vpack.c.b16 %v1139, %v1131
        %v1404 = vpack.c.b16 %v1140, %v1132
        %v1405 = vpack.c.b16 %v1141, %v1133
        %v1406 = vpack.c.b16 %v1142, %v1134
        %v1407 = vpack.c.b16 %v1151, %v1143
        %v1408 = vpack.c.b16 %v1152, %v1144
        %v1409 = vpack.c.b16 %v1153, %v1145
        %v1410 = vpack.c.b16 %v1154, %v1146
        %v1411 = vpack.c.b16 %v1155, %v1147
        %v1412 = vpack.c.b16 %v1156, %v1148
        %v1413 = vpack.c.b16 %v1157, %v1149
        %v1414 = vpack.c.b16 %v1158, %v1150
        %v1415 = vpack.c.b16 %v1167, %v1159
        %v1416 = vpack.c.b16 %v1168, %v1160
        %v1417 = vpack.c.b16 %v1169, %v1161
        %v1418 = vpack.c.b16 %v1170, %v1162
        %v1419 = vpack.c.b16 %v1171, %v1163
        %v1420 = vpack.c.b16 %v1172, %v1164
        %v1421 = vpack.c.b16 %v1173, %v1165
        %v1422 = vpack.c.b16 %v1174, %v1166
        %v1423 = vpack.c.b16 %v1183, %v1175
        %v1424 = vpack.c.b16 %v1184, %v1176
        %v1425 = vpack.c.b16 %v1185, %v1177
        %v1426 = vpack.c.b16 %v1186, %v1178
        %v1427 = vpack.c.b16 %v1187, %v1179
        %v1428 = vpack.c.b16 %v1188, %v1180
        %v1429 = vpack.c.b16 %v1189, %v1181
        %v1430 = vpack.c.b16 %v1190, %v1182
        %v1431 = vpack.c.b16 %v1199, %v1191
        %v1432 = vpack.c.b16 %v1200, %v1192
        %v1433 = vpack.c.b16 %v1201, %v1193
        %v1434 = vpack.c.b16 %v1202, %v1194
        %v1435 = vpack.c.b16 %v1203, %v1195
        %v1436 = vpack.c.b16 %v1204, %v1196
        %v1437 = vpack.c.b16 %v1205, %v1197
        %v1438 = vpack.c.b16 %v1206, %v1198
        %v1439 = vpack.c.b16 %v1215, %v1207
        %v1440 = vpack.c.b16 %v1216, %v1208
        %v1441 = vpack.c.b16 %v1217, %v1209
        %v1442 = vpack.c.b16 %v1218, %v1210
        %v1443 = vpack.c.b16 %v1219, %v1211
        %v1444 = vpack.c.b16 %v1220, %v1212
        %v1445 = vpack.c.b16 %v1221, %v1213
        %v1446 = vpack.c.b16 %v1222, %v1214
        %v1447 = vpack.c.b16 %v1231, %v1223
        %v1448 = vpack.c.b16 %v1232, %v1224
        %v1449 = vpack.c.b16 %v1233, %v1225
        %v1450 = vpack.c.b16 %v1234, %v1226
        %v1451 = vpack.c.b16 %v1235, %v1227
        %v1452 = vpack.c.b16 %v1236, %v1228
        %v1453 = vpack.c.b16 %v1237, %v1229
        %v1454 = vpack.c.b16 %v1238, %v1230
        %v1455 = vpack.c.b16 %v1247, %v1239
        %v1456 = vpack.c.b16 %v1248, %v1240
        %v1457 = vpack.c.b16 %v1249, %v1241
        %v1458 = vpack.c.b16 %v1250, %v1242
        %v1459 = vpack.c.b16 %v1251, %v1243
        %v1460 = vpack.c.b16 %v1252, %v1244
        %v1461 = vpack.c.b16 %v1253, %v1245
        %v1462 = vpack.c.b16 %v1254, %v1246
        %v1463 = vpack.c.b16 %v1263, %v1255
        %v1464 = vpack.c.b16 %v1264, %v1256
        %v1465 = vpack.c.b16 %v1265, %v1257
        %v1466 = vpack.c.b16 %v1266, %v1258
        %v1467 = vpack.c.b16 %v1267, %v1259
        %v1468 = vpack.c.b16 %v1268, %v1260
        %v1469 = vpack.c.b16 %v1269, %v1261
        %v1470 = vpack.c.b16 %v1270, %v1262
        %v1471 = vpack.c.b16 %v1279, %v1271
        %v1472 = vpack.c.b16 %v1280, %v1272
        %v1473 = vpack.c.b16 %v1281, %v1273
        %v1474 = vpack.c.b16 %v1282, %v1274
        %v1475 = vpack.c.b16 %v1283, %v1275
        %v1476 = vpack.c.b16 %v1284, %v1276
        %v1477 = vpack.c.b16 %v1285, %v1277
        %v1478 = vpack.c.b16 %v1286, %v1278
        %v1479 = vpack.c.b16 %v1295, %v1287
        %v1480 = vpack.c.b16 %v1296, %v1288
        %v1481 = vpack.c.b16 %v1297, %v1289
        %v1482 = vpack.c.b16 %v1298, %v1290
        %v1483 = vpack.c.b16 %v1299, %v1291
        %v1484 = vpack.c.b16 %v1300, %v1292
        %v1485 = vpack.c.b16 %v1301, %v1293
        %v1486 = vpack.c.b16 %v1302, %v1294
        %v1487 = vpack.c.b16 %v1311, %v1303
        %v1488 = vpack.c.b16 %v1312, %v1304
        %v1489 = vpack.c.b16 %v1313, %v1305
        %v1490 = vpack.c.b16 %v1314, %v1306
        %v1491 = vpack.c.b16 %v1315, %v1307
        %v1492 = vpack.c.b16 %v1316, %v1308
        %v1493 = vpack.c.b16 %v1317, %v1309
        %v1494 = vpack.c.b16 %v1318, %v1310
        %v1495 = vpack.c.b16 %v1327, %v1319
        %v1496 = vpack.c.b16 %v1328, %v1320
        %v1497 = vpack.c.b16 %v1329, %v1321
        %v1498 = vpack.c.b16 %v1330, %v1322
        %v1499 = vpack.c.b16 %v1331, %v1323
        %v1500 = vpack.c.b16 %v1332, %v1324
        %v1501 = vpack.c.b16 %v1333, %v1325
        %v1502 = vpack.c.b16 %v1334, %v1326
        %v1503 = vpack.c.b16 %v1343, %v1335
        %v1504 = vpack.c.b16 %v1344, %v1336
        %v1505 = vpack.c.b16 %v1345, %v1337
        %v1506 = vpack.c.b16 %v1346, %v1338
        %v1507 = vpack.c.b16 %v1347, %v1339
        %v1508 = vpack.c.b16 %v1348, %v1340
        %v1509 = vpack.c.b16 %v1349, %v1341
        %v1510 = vpack.c.b16 %v1350, %v1342
        %v1511 = vpack.c.b16 %v1359, %v1351
        %v1512 = vpack.c.b16 %v1360, %v1352
        %v1513 = vpack.c.b16 %v1361, %v1353
        %v1514 = vpack.c.b16 %v1362, %v1354
        %v1515 = vpack.c.b16 %v1363, %v1355
        %v1516 = vpack.c.b16 %v1364, %v1356
        %v1517 = vpack.c.b16 %v1365, %v1357
        %v1518 = vpack.c.b16 %v1366, %v1358
        %vm1663 = vcmask 359424
        %v1665 = vsel %vm1663, %v716, 0
        %vm1667 = vcmask 1045504
        %v1669 = vsel %vm1667, %v1511, 0
        %v1672 = vsel %vm1667, %v1512, 0
        %v1675 = vsel %vm1667, %v1513, 0
        %v1678 = vsel %vm1667, %v1514, 0
        %v1681 = vsel %vm1667, %v1515, 0
        %v1684 = vsel %vm1667, %v1516, 0
        %v1687 = vsel %vm1667, %v1517, 0
        %v1690 = vsel %vm1667, %v1518, 0
        %1692 = vmatprep.subr.bf16.mxu0 %v1368
        %1693 = vmatpush1.bf16.msra.mxu0 %v1367
        %1694 = vmatprep.subr.bf16.mxu0 %v1376
        %1695 = vmatpush1.bf16.msra.mxu0 %v1375
        %1696 = vmatprep.subr.bf16.mxu0 %v1384
        %1697 = vmatpush1.bf16.msra.mxu0 %v1383
        %1698 = vmatprep.subr.bf16.mxu0 %v1392
        %1699 = vmatpush1.bf16.msra.mxu0 %v1391
        %1700 = vmatprep.subr.bf16.mxu0 %v1400
        %1701 = vmatpush1.bf16.msra.mxu0 %v1399
        %1702 = vmatprep.subr.bf16.mxu0 %v1408
        %1703 = vmatpush1.bf16.msra.mxu0 %v1407
        %1704 = vmatprep.subr.bf16.mxu0 %v1416
        %1705 = vmatpush1.bf16.msra.mxu0 %v1415
        %1706 = vmatprep.subr.bf16.mxu0 %v1424
        %1707 = vmatpush1.bf16.msra.mxu0 %v1423
        %1708 = vmatprep.subr.bf16.mxu0 %v1432
        %1709 = vmatpush1.bf16.msra.mxu0 %v1431
        %1710 = vmatprep.subr.bf16.mxu0 %v1440
        %1711 = vmatpush1.bf16.msra.mxu0 %v1439
        %1712 = vmatprep.subr.bf16.mxu0 %v1448
        %1713 = vmatpush1.bf16.msra.mxu0 %v1447
        %1714 = vmatprep.subr.bf16.mxu0 %v1456
        %1715 = vmatpush1.bf16.msra.mxu0 %v1455
        %1716 = vmatprep.subr.bf16.mxu0 %v1464
        %1717 = vmatpush1.bf16.msra.mxu0 %v1463
        %1718 = vmatprep.subr.bf16.mxu0 %v1472
        %1719 = vmatpush1.bf16.msra.mxu0 %v1471
        %1720 = vmatprep.subr.bf16.mxu0 %v1480
        %1721 = vmatpush1.bf16.msra.mxu0 %v1479
        %1722 = vmatprep.subr.bf16.mxu0 %v1488
        %1723 = vmatpush1.bf16.msra.mxu0 %v1487
        %1724 = vmatprep.mubr.bf16.mxu0 %v715
        %1725 = vmatmul.mubr.bf16.gmra.mrb[0].mxu0 %v714
        %v1726 = vpop.f32.mrb[0].mxu0
        %v1727 = vadd.f32 %v874, %v1726
        %v1728 = vpop.f32.mrb[0].mxu0
        %v1729 = vadd.f32 %v878, %v1728
        %v1730 = vpop.f32.mrb[0].mxu0
        %v1731 = vpop.f32.mrb[0].mxu0
        %1732 = vdwg.mxu0
        %1733 = vmatprep.subr.bf16.mxu0 %v1496
        %1734 = vmatpush1.bf16.msra.mxu0 %v1495
        %1735 = vmatprep.subr.bf16.mxu0 %v1504
        %1736 = vmatpush1.bf16.msra.mxu0 %v1503
        %1737 = vmatprep.subr.bf16.mxu0 %v1672
        %1738 = vmatpush1.bf16.msra.mxu0 %v1669
        %1739 = vmatprep.subr.bf16.mxu0 0
        %1740 = vmatpush1.bf16.msra.mxu0 0
        %1741 = vmatprep.subr.bf16.mxu0 0
        %1742 = vmatpush1.bf16.msra.mxu0 0
        %1743 = vmatprep.subr.bf16.mxu0 0
        %1744 = vmatpush1.bf16.msra.mxu0 0
        %1745 = vmatprep.subr.bf16.mxu0 0
        %1746 = vmatpush1.bf16.msra.mxu0 0
        %1747 = vmatprep.subr.bf16.mxu0 0
        %1748 = vmatpush1.bf16.msra.mxu0 0
        %1749 = vmatprep.subr.bf16.mxu0 0
        %1750 = vmatpush1.bf16.msra.mxu0 0
        %1751 = vmatprep.subr.bf16.mxu0 0
        %1752 = vmatpush1.bf16.msra.mxu0 0
        %1753 = vmatprep.subr.bf16.mxu0 0
        %1754 = vmatpush1.bf16.msra.mxu0 0
        %1755 = vmatprep.subr.bf16.mxu0 0
        %1756 = vmatpush1.bf16.msra.mxu0 0
        %1757 = vmatprep.subr.bf16.mxu0 0
        %1758 = vmatpush1.bf16.msra.mxu0 0
        %1759 = vmatprep.subr.bf16.mxu0 0
        %1760 = vmatpush1.bf16.msra.mxu0 0
        %1761 = vmatprep.subr.bf16.mxu0 0
        %1762 = vmatpush1.bf16.msra.mxu0 0
        %1763 = vmatprep.subr.bf16.mxu0 0
        %1764 = vmatpush1.bf16.msra.mxu0 0
        %1765 = vmatprep.mubr.bf16.mxu0 0
        %1766 = vmatmul.mubr.bf16.gmra.mrb[0].mxu0 %v1665
        %v1767 = vpop.f32.mrb[0].mxu0
        %v1768 = vadd.f32 %v1727, %v1767
        %v1769 = vpop.f32.mrb[0].mxu0
        %v1770 = vadd.f32 %v1729, %v1769
        %v1771 = vpop.f32.mrb[0].mxu0
        %v1772 = vpop.f32.mrb[0].mxu0
        %1773 = vdwg.mxu0
        %1774 = vmatprep.subr.bf16.mxu0 %v1370
        %1775 = vmatpush1.bf16.msra.mxu0 %v1369
        %1776 = vmatprep.subr.bf16.mxu0 %v1378
        %1777 = vmatpush1.bf16.msra.mxu0 %v1377
        %1778 = vmatprep.subr.bf16.mxu0 %v1386
        %1779 = vmatpush1.bf16.msra.mxu0 %v1385
        %1780 = vmatprep.subr.bf16.mxu0 %v1394
        %1781 = vmatpush1.bf16.msra.mxu0 %v1393
        %1782 = vmatprep.subr.bf16.mxu0 %v1402
        %1783 = vmatpush1.bf16.msra.mxu0 %v1401
        %1784 = vmatprep.subr.bf16.mxu0 %v1410
        %1785 = vmatpush1.bf16.msra.mxu0 %v1409
        %1786 = vmatprep.subr.bf16.mxu0 %v1418
        %1787 = vmatpush1.bf16.msra.mxu0 %v1417
        %1788 = vmatprep.subr.bf16.mxu0 %v1426
        %1789 = vmatpush1.bf16.msra.mxu0 %v1425
        %1790 = vmatprep.subr.bf16.mxu0 %v1434
        %1791 = vmatpush1.bf16.msra.mxu0 %v1433
        %1792 = vmatprep.subr.bf16.mxu0 %v1442
        %1793 = vmatpush1.bf16.msra.mxu0 %v1441
        %1794 = vmatprep.subr.bf16.mxu0 %v1450
        %1795 = vmatpush1.bf16.msra.mxu0 %v1449
        %1796 = vmatprep.subr.bf16.mxu0 %v1458
        %1797 = vmatpush1.bf16.msra.mxu0 %v1457
        %1798 = vmatprep.subr.bf16.mxu0 %v1466
        %1799 = vmatpush1.bf16.msra.mxu0 %v1465
        %1800 = vmatprep.subr.bf16.mxu0 %v1474
        %1801 = vmatpush1.bf16.msra.mxu0 %v1473
        %1802 = vmatprep.subr.bf16.mxu0 %v1482
        %1803 = vmatpush1.bf16.msra.mxu0 %v1481
        %1804 = vmatprep.subr.bf16.mxu0 %v1490
        %1805 = vmatpush1.bf16.msra.mxu0 %v1489
        %1806 = vmatprep.mubr.bf16.mxu0 %v715
        %1807 = vmatmul.mubr.bf16.gmra.mrb[0].mxu0 %v714
        %v1808 = vpop.f32.mrb[0].mxu0
        %v1809 = vadd.f32 %v882, %v1808
        %v1810 = vpop.f32.mrb[0].mxu0
        %v1811 = vadd.f32 %v886, %v1810
        %v1812 = vpop.f32.mrb[0].mxu0
        %v1813 = vpop.f32.mrb[0].mxu0
        %1814 = vdwg.mxu0
        %1815 = vmatprep.subr.bf16.mxu0 %v1498
        %1816 = vmatpush1.bf16.msra.mxu0 %v1497
        %1817 = vmatprep.subr.bf16.mxu0 %v1506
        %1818 = vmatpush1.bf16.msra.mxu0 %v1505
        %1819 = vmatprep.subr.bf16.mxu0 %v1678
        %1820 = vmatpush1.bf16.msra.mxu0 %v1675
        %1821 = vmatprep.subr.bf16.mxu0 0
        %1822 = vmatpush1.bf16.msra.mxu0 0
        %1823 = vmatprep.subr.bf16.mxu0 0
        %1824 = vmatpush1.bf16.msra.mxu0 0
        %1825 = vmatprep.subr.bf16.mxu0 0
        %1826 = vmatpush1.bf16.msra.mxu0 0
        %1827 = vmatprep.subr.bf16.mxu0 0
        %1828 = vmatpush1.bf16.msra.mxu0 0
        %1829 = vmatprep.subr.bf16.mxu0 0
        %1830 = vmatpush1.bf16.msra.mxu0 0
        %1831 = vmatprep.subr.bf16.mxu0 0
        %1832 = vmatpush1.bf16.msra.mxu0 0
        %1833 = vmatprep.subr.bf16.mxu0 0
        %1834 = vmatpush1.bf16.msra.mxu0 0
        %1835 = vmatprep.subr.bf16.mxu0 0
        %1836 = vmatpush1.bf16.msra.mxu0 0
        %1837 = vmatprep.subr.bf16.mxu0 0
        %1838 = vmatpush1.bf16.msra.mxu0 0
        %1839 = vmatprep.subr.bf16.mxu0 0
        %1840 = vmatpush1.bf16.msra.mxu0 0
        %1841 = vmatprep.subr.bf16.mxu0 0
        %1842 = vmatpush1.bf16.msra.mxu0 0
        %1843 = vmatprep.subr.bf16.mxu0 0
        %1844 = vmatpush1.bf16.msra.mxu0 0
        %1845 = vmatprep.subr.bf16.mxu0 0
        %1846 = vmatpush1.bf16.msra.mxu0 0
        %1847 = vmatprep.mubr.bf16.mxu0 0
        %1848 = vmatmul.mubr.bf16.gmra.mrb[0].mxu0 %v1665
        %v1849 = vpop.f32.mrb[0].mxu0
        %v1850 = vadd.f32 %v1809, %v1849
        %v1851 = vpop.f32.mrb[0].mxu0
        %v1852 = vadd.f32 %v1811, %v1851
        %v1853 = vpop.f32.mrb[0].mxu0
        %v1854 = vpop.f32.mrb[0].mxu0
        %1855 = vdwg.mxu0
        %1856 = vmatprep.subr.bf16.mxu0 %v1372
        %1857 = vmatpush1.bf16.msra.mxu0 %v1371
        %1858 = vmatprep.subr.bf16.mxu0 %v1380
        %1859 = vmatpush1.bf16.msra.mxu0 %v1379
        %1860 = vmatprep.subr.bf16.mxu0 %v1388
        %1861 = vmatpush1.bf16.msra.mxu0 %v1387
        %1862 = vmatprep.subr.bf16.mxu0 %v1396
        %1863 = vmatpush1.bf16.msra.mxu0 %v1395
        %1864 = vmatprep.subr.bf16.mxu0 %v1404
        %1865 = vmatpush1.bf16.msra.mxu0 %v1403
        %1866 = vmatprep.subr.bf16.mxu0 %v1412
        %1867 = vmatpush1.bf16.msra.mxu0 %v1411
        %1868 = vmatprep.subr.bf16.mxu0 %v1420
        %1869 = vmatpush1.bf16.msra.mxu0 %v1419
        %1870 = vmatprep.subr.bf16.mxu0 %v1428
        %1871 = vmatpush1.bf16.msra.mxu0 %v1427
        %1872 = vmatprep.subr.bf16.mxu0 %v1436
        %1873 = vmatpush1.bf16.msra.mxu0 %v1435
        %1874 = vmatprep.subr.bf16.mxu0 %v1444
        %1875 = vmatpush1.bf16.msra.mxu0 %v1443
        %1876 = vmatprep.subr.bf16.mxu0 %v1452
        %1877 = vmatpush1.bf16.msra.mxu0 %v1451
        %1878 = vmatprep.subr.bf16.mxu0 %v1460
        %1879 = vmatpush1.bf16.msra.mxu0 %v1459
        %1880 = vmatprep.subr.bf16.mxu0 %v1468
        %1881 = vmatpush1.bf16.msra.mxu0 %v1467
        %1882 = vmatprep.subr.bf16.mxu0 %v1476
        %1883 = vmatpush1.bf16.msra.mxu0 %v1475
        %1884 = vmatprep.subr.bf16.mxu0 %v1484
        %1885 = vmatpush1.bf16.msra.mxu0 %v1483
        %1886 = vmatprep.subr.bf16.mxu0 %v1492
        %1887 = vmatpush1.bf16.msra.mxu0 %v1491
        %1888 = vmatprep.mubr.bf16.mxu0 %v715
        %1889 = vmatmul.mubr.bf16.gmra.mrb[0].mxu0 %v714
        %v1890 = vpop.f32.mrb[0].mxu0
        %v1891 = vadd.f32 %v890, %v1890
        %v1892 = vpop.f32.mrb[0].mxu0
        %v1893 = vadd.f32 %v894, %v1892
        %v1894 = vpop.f32.mrb[0].mxu0
        %v1895 = vpop.f32.mrb[0].mxu0
        %1896 = vdwg.mxu0
        %1897 = vmatprep.subr.bf16.mxu0 %v1500
        %1898 = vmatpush1.bf16.msra.mxu0 %v1499
        %1899 = vmatprep.subr.bf16.mxu0 %v1508
        %1900 = vmatpush1.bf16.msra.mxu0 %v1507
        %1901 = vmatprep.subr.bf16.mxu0 %v1684
        %1902 = vmatpush1.bf16.msra.mxu0 %v1681
        %1903 = vmatprep.subr.bf16.mxu0 0
        %1904 = vmatpush1.bf16.msra.mxu0 0
        %1905 = vmatprep.subr.bf16.mxu0 0
        %1906 = vmatpush1.bf16.msra.mxu0 0
        %1907 = vmatprep.subr.bf16.mxu0 0
        %1908 = vmatpush1.bf16.msra.mxu0 0
        %1909 = vmatprep.subr.bf16.mxu0 0
        %1910 = vmatpush1.bf16.msra.mxu0 0
        %1911 = vmatprep.subr.bf16.mxu0 0
        %1912 = vmatpush1.bf16.msra.mxu0 0
        %1913 = vmatprep.subr.bf16.mxu0 0
        %1914 = vmatpush1.bf16.msra.mxu0 0
        %1915 = vmatprep.subr.bf16.mxu0 0
        %1916 = vmatpush1.bf16.msra.mxu0 0
        %1917 = vmatprep.subr.bf16.mxu0 0
        %1918 = vmatpush1.bf16.msra.mxu0 0
        %1919 = vmatprep.subr.bf16.mxu0 0
        %1920 = vmatpush1.bf16.msra.mxu0 0
        %1921 = vmatprep.subr.bf16.mxu0 0
        %1922 = vmatpush1.bf16.msra.mxu0 0
        %1923 = vmatprep.subr.bf16.mxu0 0
        %1924 = vmatpush1.bf16.msra.mxu0 0
        %1925 = vmatprep.subr.bf16.mxu0 0
        %1926 = vmatpush1.bf16.msra.mxu0 0
        %1927 = vmatprep.subr.bf16.mxu0 0
        %1928 = vmatpush1.bf16.msra.mxu0 0
        %1929 = vmatprep.mubr.bf16.mxu0 0
        %1930 = vmatmul.mubr.bf16.gmra.mrb[0].mxu0 %v1665
        %v1931 = vpop.f32.mrb[0].mxu0
        %v1932 = vadd.f32 %v1891, %v1931
        %v1933 = vpop.f32.mrb[0].mxu0
        %v1934 = vadd.f32 %v1893, %v1933
        %v1935 = vpop.f32.mrb[0].mxu0
        %v1936 = vpop.f32.mrb[0].mxu0
        %1937 = vdwg.mxu0
        %1938 = vmatprep.subr.bf16.mxu0 %v1374
        %1939 = vmatpush1.bf16.msra.mxu0 %v1373
        %1940 = vmatprep.subr.bf16.mxu0 %v1382
        %1941 = vmatpush1.bf16.msra.mxu0 %v1381
        %1942 = vmatprep.subr.bf16.mxu0 %v1390
        %1943 = vmatpush1.bf16.msra.mxu0 %v1389
        %1944 = vmatprep.subr.bf16.mxu0 %v1398
        %1945 = vmatpush1.bf16.msra.mxu0 %v1397
        %1946 = vmatprep.subr.bf16.mxu0 %v1406
        %1947 = vmatpush1.bf16.msra.mxu0 %v1405
        %1948 = vmatprep.subr.bf16.mxu0 %v1414
        %1949 = vmatpush1.bf16.msra.mxu0 %v1413
        %1950 = vmatprep.subr.bf16.mxu0 %v1422
        %1951 = vmatpush1.bf16.msra.mxu0 %v1421
        %1952 = vmatprep.subr.bf16.mxu0 %v1430
        %1953 = vmatpush1.bf16.msra.mxu0 %v1429
        %1954 = vmatprep.subr.bf16.mxu0 %v1438
        %1955 = vmatpush1.bf16.msra.mxu0 %v1437
        %1956 = vmatprep.subr.bf16.mxu0 %v1446
        %1957 = vmatpush1.bf16.msra.mxu0 %v1445
        %1958 = vmatprep.subr.bf16.mxu0 %v1454
        %1959 = vmatpush1.bf16.msra.mxu0 %v1453
        %1960 = vmatprep.subr.bf16.mxu0 %v1462
        %1961 = vmatpush1.bf16.msra.mxu0 %v1461
        %1962 = vmatprep.subr.bf16.mxu0 %v1470
        %1963 = vmatpush1.bf16.msra.mxu0 %v1469
        %1964 = vmatprep.subr.bf16.mxu0 %v1478
        %1965 = vmatpush1.bf16.msra.mxu0 %v1477
        %1966 = vmatprep.subr.bf16.mxu0 %v1486
        %1967 = vmatpush1.bf16.msra.mxu0 %v1485
        %1968 = vmatprep.subr.bf16.mxu0 %v1494
        %1969 = vmatpush1.bf16.msra.mxu0 %v1493
        %1970 = vmatprep.mubr.bf16.mxu0 %v715
        %1971 = vmatmul.mubr.bf16.gmra.mrb[0].mxu0 %v714
        %v1972 = vpop.f32.mrb[0].mxu0
        %v1973 = vadd.f32 %v898, %v1972
        %v1974 = vpop.f32.mrb[0].mxu0
        %v1975 = vadd.f32 %v902, %v1974
        %v1976 = vpop.f32.mrb[0].mxu0
        %v1977 = vpop.f32.mrb[0].mxu0
        %1978 = vdwg.mxu0
        %1979 = vmatprep.subr.bf16.mxu0 %v1502
        %1980 = vmatpush1.bf16.msra.mxu0 %v1501
        %1981 = vmatprep.subr.bf16.mxu0 %v1510
        %1982 = vmatpush1.bf16.msra.mxu0 %v1509
        %1983 = vmatprep.subr.bf16.mxu0 %v1690
        %1984 = vmatpush1.bf16.msra.mxu0 %v1687
        %1985 = vmatprep.subr.bf16.mxu0 0
        %1986 = vmatpush1.bf16.msra.mxu0 0
        %1987 = vmatprep.subr.bf16.mxu0 0
        %1988 = vmatpush1.bf16.msra.mxu0 0
        %1989 = vmatprep.subr.bf16.mxu0 0
        %1990 = vmatpush1.bf16.msra.mxu0 0
        %1991 = vmatprep.subr.bf16.mxu0 0
        %1992 = vmatpush1.bf16.msra.mxu0 0
        %1993 = vmatprep.subr.bf16.mxu0 0
        %1994 = vmatpush1.bf16.msra.mxu0 0
        %1995 = vmatprep.subr.bf16.mxu0 0
        %1996 = vmatpush1.bf16.msra.mxu0 0
        %1997 = vmatprep.subr.bf16.mxu0 0
        %1998 = vmatpush1.bf16.msra.mxu0 0
        %1999 = vmatprep.subr.bf16.mxu0 0
        %2000 = vmatpush1.bf16.msra.mxu0 0
        %2001 = vmatprep.subr.bf16.mxu0 0
        %2002 = vmatpush1.bf16.msra.mxu0 0
        %2003 = vmatprep.subr.bf16.mxu0 0
        %2004 = vmatpush1.bf16.msra.mxu0 0
        %2005 = vmatprep.subr.bf16.mxu0 0
        %2006 = vmatpush1.bf16.msra.mxu0 0
        %2007 = vmatprep.subr.bf16.mxu0 0
        %2008 = vmatpush1.bf16.msra.mxu0 0
        %2009 = vmatprep.subr.bf16.mxu0 0
        %2010 = vmatpush1.bf16.msra.mxu0 0
        %2011 = vmatprep.mubr.bf16.mxu0 0
        %2012 = vmatmul.mubr.bf16.gmra.mrb[0].mxu0 %v1665
        %v2013 = vpop.f32.mrb[0].mxu0
        %v2014 = vadd.f32 %v1973, %v2013
        %v2015 = vpop.f32.mrb[0].mxu0
        %v2016 = vadd.f32 %v1975, %v2015
        %v2017 = vpop.f32.mrb[0].mxu0
        %v2018 = vpop.f32.mrb[0].mxu0
        %2019 = vdwg.mxu0
        %v2020 = vld [vmem:[%s3] sm:$0xff]
        %v2021 = vld [vmem:[%s3 + $0x8] sm:$0xff]
        %v2022 = vld [vmem:[%s3 + $0x10] sm:$0xff]
        %v2023 = vld [vmem:[%s3 + $0x18] sm:$0xff]
        %v2024 = vld [vmem:[%s3 + $0x20] sm:$0xff]
        %v2025 = vld [vmem:[%s3 + $0x28] sm:$0xff]
        %v2026 = vld [vmem:[%s3 + $0x30] sm:$0xff]
        %v2027 = vld [vmem:[%s3 + $0x38] sm:$0xff]
        %v2028 = vld [vmem:[%s3 + $0x40] sm:$0xff]
        %v2029 = vld [vmem:[%s3 + $0x48] sm:$0xff]
        %v2030 = vld [vmem:[%s3 + $0x50] sm:$0xff]
        %v2031 = vld [vmem:[%s3 + $0x58] sm:$0xff]
        %v2032 = vld [vmem:[%s3 + $0x60] sm:$0xff]
        %v2033 = vld [vmem:[%s3 + $0x68] sm:$0xff]
        %v2034 = vld [vmem:[%s3 + $0x70] sm:$0xff]
        %v2035 = vld [vmem:[%s3 + $0x78] sm:$0xff]
        %v2036 = vld [vmem:[%s3 + $0x80] sm:$0xff]
        %v2037 = vld [vmem:[%s3 + $0x88] sm:$0xff]
        %v2038 = vld [vmem:[%s3 + $0x90] sm:$0xff]
        %v2039 = vld [vmem:[%s3 + $0x98] sm:$0xff]
        %v2040 = vld [vmem:[%s3 + $0xa0] sm:$0xff]
        %v2041 = vld [vmem:[%s3 + $0xa8] sm:$0xff]
        %v2042 = vld [vmem:[%s3 + $0xb0] sm:$0xff]
        %v2043 = vld [vmem:[%s3 + $0xb8] sm:$0xff]
        %v2044 = vld [vmem:[%s3 + $0xc0] sm:$0xff]
        %v2045 = vld [vmem:[%s3 + $0xc8] sm:$0xff]
        %v2046 = vld [vmem:[%s3 + $0xd0] sm:$0xff]
        %v2047 = vld [vmem:[%s3 + $0xd8] sm:$0xff]
        %v2048 = vld [vmem:[%s3 + $0xe0] sm:$0xff]
        %v2049 = vld [vmem:[%s3 + $0xe8] sm:$0xff]
        %v2050 = vld [vmem:[%s3 + $0xf0] sm:$0xff]
        %v2051 = vld [vmem:[%s3 + $0xf8] sm:$0xff]
        %v2052 = vld [vmem:[%s3 + $0x100] sm:$0xff]
        %v2053 = vld [vmem:[%s3 + $0x108] sm:$0xff]
        %v2054 = vld [vmem:[%s3 + $0x110] sm:$0xff]
        %v2055 = vld [vmem:[%s3 + $0x118] sm:$0xff]
        %v2056 = vld [vmem:[%s3 + $0x120] sm:$0xff]
        %v2057 = vld [vmem:[%s3 + $0x128] sm:$0xff]
        %v2058 = vld [vmem:[%s3 + $0x130] sm:$0xff]
        %v2059 = vld [vmem:[%s3 + $0x138] sm:$0xff]
        %v2060 = vld [vmem:[%s3 + $0x140] sm:$0xff]
        %v2061 = vld [vmem:[%s3 + $0x148] sm:$0xff]
        %v2062 = vld [vmem:[%s3 + $0x150] sm:$0xff]
        %v2063 = vld [vmem:[%s3 + $0x158] sm:$0xff]
        %v2064 = vld [vmem:[%s3 + $0x160] sm:$0xff]
        %v2065 = vld [vmem:[%s3 + $0x168] sm:$0xff]
        %v2066 = vld [vmem:[%s3 + $0x170] sm:$0xff]
        %v2067 = vld [vmem:[%s3 + $0x178] sm:$0xff]
        %v2068 = vld [vmem:[%s3 + $0x180] sm:$0xff]
        %v2069 = vld [vmem:[%s3 + $0x188] sm:$0xff]
        %v2070 = vld [vmem:[%s3 + $0x190] sm:$0xff]
        %v2071 = vld [vmem:[%s3 + $0x198] sm:$0xff]
        %v2072 = vld [vmem:[%s3 + $0x1a0] sm:$0xff]
        %v2073 = vld [vmem:[%s3 + $0x1a8] sm:$0xff]
        %v2074 = vld [vmem:[%s3 + $0x1b0] sm:$0xff]
        %v2075 = vld [vmem:[%s3 + $0x1b8] sm:$0xff]
        %v2076 = vld [vmem:[%s3 + $0x1c0] sm:$0xff]
        %v2077 = vld [vmem:[%s3 + $0x1c8] sm:$0xff]
        %v2078 = vld [vmem:[%s3 + $0x1d0] sm:$0xff]
        %v2079 = vld [vmem:[%s3 + $0x1d8] sm:$0xff]
        %v2080 = vld [vmem:[%s3 + $0x1e0] sm:$0xff]
        %v2081 = vld [vmem:[%s3 + $0x1e8] sm:$0xff]
        %v2082 = vld [vmem:[%s3 + $0x1f0] sm:$0xff]
        %v2083 = vld [vmem:[%s3 + $0x1f8] sm:$0xff]
        %v2084 = vld [vmem:[%s3 + $0x200] sm:$0xff]
        %v2085 = vld [vmem:[%s3 + $0x208] sm:$0xff]
        %v2086 = vld [vmem:[%s3 + $0x210] sm:$0xff]
        %v2087 = vld [vmem:[%s3 + $0x218] sm:$0xff]
        %v2088 = vld [vmem:[%s3 + $0x220] sm:$0xff]
        %v2089 = vld [vmem:[%s3 + $0x228] sm:$0xff]
        %v2090 = vld [vmem:[%s3 + $0x230] sm:$0xff]
        %v2091 = vld [vmem:[%s3 + $0x238] sm:$0xff]
        %v2092 = vld [vmem:[%s3 + $0x240] sm:$0xff]
        %v2093 = vld [vmem:[%s3 + $0x248] sm:$0xff]
        %v2094 = vld [vmem:[%s3 + $0x250] sm:$0xff]
        %v2095 = vld [vmem:[%s3 + $0x258] sm:$0xff]
        %v2096 = vld [vmem:[%s3 + $0x260] sm:$0xff]
        %v2097 = vld [vmem:[%s3 + $0x268] sm:$0xff]
        %v2098 = vld [vmem:[%s3 + $0x270] sm:$0xff]
        %v2099 = vld [vmem:[%s3 + $0x278] sm:$0xff]
        %v2100 = vld [vmem:[%s3 + $0x280] sm:$0xff]
        %v2101 = vld [vmem:[%s3 + $0x288] sm:$0xff]
        %v2102 = vld [vmem:[%s3 + $0x290] sm:$0xff]
        %v2103 = vld [vmem:[%s3 + $0x298] sm:$0xff]
        %v2104 = vld [vmem:[%s3 + $0x2a0] sm:$0xff]
        %v2105 = vld [vmem:[%s3 + $0x2a8] sm:$0xff]
        %v2106 = vld [vmem:[%s3 + $0x2b0] sm:$0xff]
        %v2107 = vld [vmem:[%s3 + $0x2b8] sm:$0xff]
        %v2108 = vld [vmem:[%s3 + $0x2c0] sm:$0xff]
        %v2109 = vld [vmem:[%s3 + $0x2c8] sm:$0xff]
        %v2110 = vld [vmem:[%s3 + $0x2d0] sm:$0xff]
        %v2111 = vld [vmem:[%s3 + $0x2d8] sm:$0xff]
        %v2112 = vld [vmem:[%s3 + $0x2e0] sm:$0xff]
        %v2113 = vld [vmem:[%s3 + $0x2e8] sm:$0xff]
        %v2114 = vld [vmem:[%s3 + $0x2f0] sm:$0xff]
        %v2115 = vld [vmem:[%s3 + $0x2f8] sm:$0xff]
        %v2116 = vld [vmem:[%s3 + $0x300] sm:$0xff]
        %v2117 = vld [vmem:[%s3 + $0x308] sm:$0xff]
        %v2118 = vld [vmem:[%s3 + $0x310] sm:$0xff]
        %v2119 = vld [vmem:[%s3 + $0x318] sm:$0xff]
        %v2120 = vld [vmem:[%s3 + $0x320] sm:$0xff]
        %v2121 = vld [vmem:[%s3 + $0x328] sm:$0xff]
        %v2122 = vld [vmem:[%s3 + $0x330] sm:$0xff]
        %v2123 = vld [vmem:[%s3 + $0x338] sm:$0xff]
        %v2124 = vld [vmem:[%s3 + $0x340] sm:$0xff]
        %v2125 = vld [vmem:[%s3 + $0x348] sm:$0xff]
        %v2126 = vld [vmem:[%s3 + $0x350] sm:$0xff]
        %v2127 = vld [vmem:[%s3 + $0x358] sm:$0xff]
        %v2128 = vld [vmem:[%s3 + $0x360] sm:$0xff]
        %v2129 = vld [vmem:[%s3 + $0x368] sm:$0xff]
        %v2130 = vld [vmem:[%s3 + $0x370] sm:$0xff]
        %v2131 = vld [vmem:[%s3 + $0x378] sm:$0xff]
        %v2132 = vld [vmem:[%s3 + $0x380] sm:$0xff]
        %v2133 = vld [vmem:[%s3 + $0x388] sm:$0xff]
        %v2134 = vld [vmem:[%s3 + $0x390] sm:$0xff]
        %v2135 = vld [vmem:[%s3 + $0x398] sm:$0xff]
        %v2136 = vld [vmem:[%s3 + $0x3a0] sm:$0xff]
        %v2137 = vld [vmem:[%s3 + $0x3a8] sm:$0xff]
        %v2138 = vld [vmem:[%s3 + $0x3b0] sm:$0xff]
        %v2139 = vld [vmem:[%s3 + $0x3b8] sm:$0xff]
        %v2140 = vld [vmem:[%s3 + $0x3c0] sm:$0xff]
        %v2141 = vld [vmem:[%s3 + $0x3c8] sm:$0xff]
        %v2142 = vld [vmem:[%s3 + $0x3d0] sm:$0xff]
        %v2143 = vld [vmem:[%s3 + $0x3d8] sm:$0xff]
        %v2144 = vld [vmem:[%s3 + $0x3e0] sm:$0xff]
        %v2145 = vld [vmem:[%s3 + $0x3e8] sm:$0xff]
        %v2146 = vld [vmem:[%s3 + $0x3f0] sm:$0xff]
        %v2147 = vld [vmem:[%s3 + $0x3f8] sm:$0xff]
        %v2276 = vunpack.c.l.b16 %v2020
        %v2277 = vunpack.c.h.b16 %v2020
        %v2278 = vunpack.c.l.b16 %v2021
        %v2279 = vunpack.c.h.b16 %v2021
        %v2280 = vunpack.c.l.b16 %v2022
        %v2281 = vunpack.c.h.b16 %v2022
        %v2282 = vunpack.c.l.b16 %v2023
        %v2283 = vunpack.c.h.b16 %v2023
        %v2284 = vunpack.c.l.b16 %v2024
        %v2285 = vunpack.c.h.b16 %v2024
        %v2286 = vunpack.c.l.b16 %v2025
        %v2287 = vunpack.c.h.b16 %v2025
        %v2288 = vunpack.c.l.b16 %v2026
        %v2289 = vunpack.c.h.b16 %v2026
        %v2290 = vunpack.c.l.b16 %v2027
        %v2291 = vunpack.c.h.b16 %v2027
        %v2292 = vunpack.c.l.b16 %v2028
        %v2293 = vunpack.c.h.b16 %v2028
        %v2294 = vunpack.c.l.b16 %v2029
        %v2295 = vunpack.c.h.b16 %v2029
        %v2296 = vunpack.c.l.b16 %v2030
        %v2297 = vunpack.c.h.b16 %v2030
        %v2298 = vunpack.c.l.b16 %v2031
        %v2299 = vunpack.c.h.b16 %v2031
        %v2300 = vunpack.c.l.b16 %v2032
        %v2301 = vunpack.c.h.b16 %v2032
        %v2302 = vunpack.c.l.b16 %v2033
        %v2303 = vunpack.c.h.b16 %v2033
        %v2304 = vunpack.c.l.b16 %v2034
        %v2305 = vunpack.c.h.b16 %v2034
        %v2306 = vunpack.c.l.b16 %v2035
        %v2307 = vunpack.c.h.b16 %v2035
        %v2308 = vunpack.c.l.b16 %v2036
        %v2309 = vunpack.c.h.b16 %v2036
        %v2310 = vunpack.c.l.b16 %v2037
        %v2311 = vunpack.c.h.b16 %v2037
        %v2312 = vunpack.c.l.b16 %v2038
        %v2313 = vunpack.c.h.b16 %v2038
        %v2314 = vunpack.c.l.b16 %v2039
        %v2315 = vunpack.c.h.b16 %v2039
        %v2316 = vunpack.c.l.b16 %v2040
        %v2317 = vunpack.c.h.b16 %v2040
        %v2318 = vunpack.c.l.b16 %v2041
        %v2319 = vunpack.c.h.b16 %v2041
        %v2320 = vunpack.c.l.b16 %v2042
        %v2321 = vunpack.c.h.b16 %v2042
        %v2322 = vunpack.c.l.b16 %v2043
        %v2323 = vunpack.c.h.b16 %v2043
        %v2324 = vunpack.c.l.b16 %v2044
        %v2325 = vunpack.c.h.b16 %v2044
        %v2326 = vunpack.c.l.b16 %v2045
        %v2327 = vunpack.c.h.b16 %v2045
        %v2328 = vunpack.c.l.b16 %v2046
        %v2329 = vunpack.c.h.b16 %v2046
        %v2330 = vunpack.c.l.b16 %v2047
        %v2331 = vunpack.c.h.b16 %v2047
        %v2332 = vunpack.c.l.b16 %v2048
        %v2333 = vunpack.c.h.b16 %v2048
        %v2334 = vunpack.c.l.b16 %v2049
        %v2335 = vunpack.c.h.b16 %v2049
        %v2336 = vunpack.c.l.b16 %v2050
        %v2337 = vunpack.c.h.b16 %v2050
        %v2338 = vunpack.c.l.b16 %v2051
        %v2339 = vunpack.c.h.b16 %v2051
        %v2340 = vunpack.c.l.b16 %v2052
        %v2341 = vunpack.c.h.b16 %v2052
        %v2342 = vunpack.c.l.b16 %v2053
        %v2343 = vunpack.c.h.b16 %v2053
        %v2344 = vunpack.c.l.b16 %v2054
        %v2345 = vunpack.c.h.b16 %v2054
        %v2346 = vunpack.c.l.b16 %v2055
        %v2347 = vunpack.c.h.b16 %v2055
        %v2348 = vunpack.c.l.b16 %v2056
        %v2349 = vunpack.c.h.b16 %v2056
        %v2350 = vunpack.c.l.b16 %v2057
        %v2351 = vunpack.c.h.b16 %v2057
        %v2352 = vunpack.c.l.b16 %v2058
        %v2353 = vunpack.c.h.b16 %v2058
        %v2354 = vunpack.c.l.b16 %v2059
        %v2355 = vunpack.c.h.b16 %v2059
        %v2356 = vunpack.c.l.b16 %v2060
        %v2357 = vunpack.c.h.b16 %v2060
        %v2358 = vunpack.c.l.b16 %v2061
        %v2359 = vunpack.c.h.b16 %v2061
        %v2360 = vunpack.c.l.b16 %v2062
        %v2361 = vunpack.c.h.b16 %v2062
        %v2362 = vunpack.c.l.b16 %v2063
        %v2363 = vunpack.c.h.b16 %v2063
        %v2364 = vunpack.c.l.b16 %v2064
        %v2365 = vunpack.c.h.b16 %v2064
        %v2366 = vunpack.c.l.b16 %v2065
        %v2367 = vunpack.c.h.b16 %v2065
        %v2368 = vunpack.c.l.b16 %v2066
        %v2369 = vunpack.c.h.b16 %v2066
        %v2370 = vunpack.c.l.b16 %v2067
        %v2371 = vunpack.c.h.b16 %v2067
        %v2372 = vunpack.c.l.b16 %v2068
        %v2373 = vunpack.c.h.b16 %v2068
        %v2374 = vunpack.c.l.b16 %v2069
        %v2375 = vunpack.c.h.b16 %v2069
        %v2376 = vunpack.c.l.b16 %v2070
        %v2377 = vunpack.c.h.b16 %v2070
        %v2378 = vunpack.c.l.b16 %v2071
        %v2379 = vunpack.c.h.b16 %v2071
        %v2380 = vunpack.c.l.b16 %v2072
        %v2381 = vunpack.c.h.b16 %v2072
        %v2382 = vunpack.c.l.b16 %v2073
        %v2383 = vunpack.c.h.b16 %v2073
        %v2384 = vunpack.c.l.b16 %v2074
        %v2385 = vunpack.c.h.b16 %v2074
        %v2386 = vunpack.c.l.b16 %v2075
        %v2387 = vunpack.c.h.b16 %v2075
        %v2388 = vunpack.c.l.b16 %v2076
        %v2389 = vunpack.c.h.b16 %v2076
        %v2390 = vunpack.c.l.b16 %v2077
        %v2391 = vunpack.c.h.b16 %v2077
        %v2392 = vunpack.c.l.b16 %v2078
        %v2393 = vunpack.c.h.b16 %v2078
        %v2394 = vunpack.c.l.b16 %v2079
        %v2395 = vunpack.c.h.b16 %v2079
        %v2396 = vunpack.c.l.b16 %v2080
        %v2397 = vunpack.c.h.b16 %v2080
        %v2398 = vunpack.c.l.b16 %v2081
        %v2399 = vunpack.c.h.b16 %v2081
        %v2400 = vunpack.c.l.b16 %v2082
        %v2401 = vunpack.c.h.b16 %v2082
        %v2402 = vunpack.c.l.b16 %v2083
        %v2403 = vunpack.c.h.b16 %v2083
        %v2404 = vunpack.c.l.b16 %v2084
        %v2405 = vunpack.c.h.b16 %v2084
        %v2406 = vunpack.c.l.b16 %v2085
        %v2407 = vunpack.c.h.b16 %v2085
        %v2408 = vunpack.c.l.b16 %v2086
        %v2409 = vunpack.c.h.b16 %v2086
        %v2410 = vunpack.c.l.b16 %v2087
        %v2411 = vunpack.c.h.b16 %v2087
        %v2412 = vunpack.c.l.b16 %v2088
        %v2413 = vunpack.c.h.b16 %v2088
        %v2414 = vunpack.c.l.b16 %v2089
        %v2415 = vunpack.c.h.b16 %v2089
        %v2416 = vunpack.c.l.b16 %v2090
        %v2417 = vunpack.c.h.b16 %v2090
        %v2418 = vunpack.c.l.b16 %v2091
        %v2419 = vunpack.c.h.b16 %v2091
        %v2420 = vunpack.c.l.b16 %v2092
        %v2421 = vunpack.c.h.b16 %v2092
        %v2422 = vunpack.c.l.b16 %v2093
        %v2423 = vunpack.c.h.b16 %v2093
        %v2424 = vunpack.c.l.b16 %v2094
        %v2425 = vunpack.c.h.b16 %v2094
        %v2426 = vunpack.c.l.b16 %v2095
        %v2427 = vunpack.c.h.b16 %v2095
        %v2428 = vunpack.c.l.b16 %v2096
        %v2429 = vunpack.c.h.b16 %v2096
        %v2430 = vunpack.c.l.b16 %v2097
        %v2431 = vunpack.c.h.b16 %v2097
        %v2432 = vunpack.c.l.b16 %v2098
        %v2433 = vunpack.c.h.b16 %v2098
        %v2434 = vunpack.c.l.b16 %v2099
        %v2435 = vunpack.c.h.b16 %v2099
        %v2436 = vunpack.c.l.b16 %v2100
        %v2437 = vunpack.c.h.b16 %v2100
        %v2438 = vunpack.c.l.b16 %v2101
        %v2439 = vunpack.c.h.b16 %v2101
        %v2440 = vunpack.c.l.b16 %v2102
        %v2441 = vunpack.c.h.b16 %v2102
        %v2442 = vunpack.c.l.b16 %v2103
        %v2443 = vunpack.c.h.b16 %v2103
        %v2444 = vunpack.c.l.b16 %v2104
        %v2445 = vunpack.c.h.b16 %v2104
        %v2446 = vunpack.c.l.b16 %v2105
        %v2447 = vunpack.c.h.b16 %v2105
        %v2448 = vunpack.c.l.b16 %v2106
        %v2449 = vunpack.c.h.b16 %v2106
        %v2450 = vunpack.c.l.b16 %v2107
        %v2451 = vunpack.c.h.b16 %v2107
        %v2452 = vunpack.c.l.b16 %v2108
        %v2453 = vunpack.c.h.b16 %v2108
        %v2454 = vunpack.c.l.b16 %v2109
        %v2455 = vunpack.c.h.b16 %v2109
        %v2456 = vunpack.c.l.b16 %v2110
        %v2457 = vunpack.c.h.b16 %v2110
        %v2458 = vunpack.c.l.b16 %v2111
        %v2459 = vunpack.c.h.b16 %v2111
        %v2460 = vunpack.c.l.b16 %v2112
        %v2461 = vunpack.c.h.b16 %v2112
        %v2462 = vunpack.c.l.b16 %v2113
        %v2463 = vunpack.c.h.b16 %v2113
        %v2464 = vunpack.c.l.b16 %v2114
        %v2465 = vunpack.c.h.b16 %v2114
        %v2466 = vunpack.c.l.b16 %v2115
        %v2467 = vunpack.c.h.b16 %v2115
        %v2468 = vunpack.c.l.b16 %v2116
        %v2469 = vunpack.c.h.b16 %v2116
        %v2470 = vunpack.c.l.b16 %v2117
        %v2471 = vunpack.c.h.b16 %v2117
        %v2472 = vunpack.c.l.b16 %v2118
        %v2473 = vunpack.c.h.b16 %v2118
        %v2474 = vunpack.c.l.b16 %v2119
        %v2475 = vunpack.c.h.b16 %v2119
        %v2476 = vunpack.c.l.b16 %v2120
        %v2477 = vunpack.c.h.b16 %v2120
        %v2478 = vunpack.c.l.b16 %v2121
        %v2479 = vunpack.c.h.b16 %v2121
        %v2480 = vunpack.c.l.b16 %v2122
        %v2481 = vunpack.c.h.b16 %v2122
        %v2482 = vunpack.c.l.b16 %v2123
        %v2483 = vunpack.c.h.b16 %v2123
        %v2484 = vunpack.c.l.b16 %v2124
        %v2485 = vunpack.c.h.b16 %v2124
        %v2486 = vunpack.c.l.b16 %v2125
        %v2487 = vunpack.c.h.b16 %v2125
        %v2488 = vunpack.c.l.b16 %v2126
        %v2489 = vunpack.c.h.b16 %v2126
        %v2490 = vunpack.c.l.b16 %v2127
        %v2491 = vunpack.c.h.b16 %v2127
        %v2492 = vunpack.c.l.b16 %v2128
        %v2493 = vunpack.c.h.b16 %v2128
        %v2494 = vunpack.c.l.b16 %v2129
        %v2495 = vunpack.c.h.b16 %v2129
        %v2496 = vunpack.c.l.b16 %v2130
        %v2497 = vunpack.c.h.b16 %v2130
        %v2498 = vunpack.c.l.b16 %v2131
        %v2499 = vunpack.c.h.b16 %v2131
        %v2500 = vunpack.c.l.b16 %v2132
        %v2501 = vunpack.c.h.b16 %v2132
        %v2502 = vunpack.c.l.b16 %v2133
        %v2503 = vunpack.c.h.b16 %v2133
        %v2504 = vunpack.c.l.b16 %v2134
        %v2505 = vunpack.c.h.b16 %v2134
        %v2506 = vunpack.c.l.b16 %v2135
        %v2507 = vunpack.c.h.b16 %v2135
        %v2508 = vunpack.c.l.b16 %v2136
        %v2509 = vunpack.c.h.b16 %v2136
        %v2510 = vunpack.c.l.b16 %v2137
        %v2511 = vunpack.c.h.b16 %v2137
        %v2512 = vunpack.c.l.b16 %v2138
        %v2513 = vunpack.c.h.b16 %v2138
        %v2514 = vunpack.c.l.b16 %v2139
        %v2515 = vunpack.c.h.b16 %v2139
        %v2516 = vunpack.c.l.b16 %v2140
        %v2517 = vunpack.c.h.b16 %v2140
        %v2518 = vunpack.c.l.b16 %v2141
        %v2519 = vunpack.c.h.b16 %v2141
        %v2520 = vunpack.c.l.b16 %v2142
        %v2521 = vunpack.c.h.b16 %v2142
        %v2522 = vunpack.c.l.b16 %v2143
        %v2523 = vunpack.c.h.b16 %v2143
        %v2524 = vunpack.c.l.b16 %v2144
        %v2525 = vunpack.c.h.b16 %v2144
        %v2526 = vunpack.c.l.b16 %v2145
        %v2527 = vunpack.c.h.b16 %v2145
        %v2528 = vunpack.c.l.b16 %v2146
        %v2529 = vunpack.c.h.b16 %v2146
        %v2530 = vunpack.c.l.b16 %v2147
        %v2531 = vunpack.c.h.b16 %v2147
        %v2532 = vpack.c.b16 %v2284, %v2276
        %v2533 = vpack.c.b16 %v2285, %v2277
        %v2534 = vpack.c.b16 %v2286, %v2278
        %v2535 = vpack.c.b16 %v2287, %v2279
        %v2536 = vpack.c.b16 %v2288, %v2280
        %v2537 = vpack.c.b16 %v2289, %v2281
        %v2538 = vpack.c.b16 %v2290, %v2282
        %v2539 = vpack.c.b16 %v2291, %v2283
        %v2540 = vpack.c.b16 %v2300, %v2292
        %v2541 = vpack.c.b16 %v2301, %v2293
        %v2542 = vpack.c.b16 %v2302, %v2294
        %v2543 = vpack.c.b16 %v2303, %v2295
        %v2544 = vpack.c.b16 %v2304, %v2296
        %v2545 = vpack.c.b16 %v2305, %v2297
        %v2546 = vpack.c.b16 %v2306, %v2298
        %v2547 = vpack.c.b16 %v2307, %v2299
        %v2548 = vpack.c.b16 %v2316, %v2308
        %v2549 = vpack.c.b16 %v2317, %v2309
        %v2550 = vpack.c.b16 %v2318, %v2310
        %v2551 = vpack.c.b16 %v2319, %v2311
        %v2552 = vpack.c.b16 %v2320, %v2312
        %v2553 = vpack.c.b16 %v2321, %v2313
        %v2554 = vpack.c.b16 %v2322, %v2314
        %v2555 = vpack.c.b16 %v2323, %v2315
        %v2556 = vpack.c.b16 %v2332, %v2324
        %v2557 = vpack.c.b16 %v2333, %v2325
        %v2558 = vpack.c.b16 %v2334, %v2326
        %v2559 = vpack.c.b16 %v2335, %v2327
        %v2560 = vpack.c.b16 %v2336, %v2328
        %v2561 = vpack.c.b16 %v2337, %v2329
        %v2562 = vpack.c.b16 %v2338, %v2330
        %v2563 = vpack.c.b16 %v2339, %v2331
        %v2564 = vpack.c.b16 %v2348, %v2340
        %v2565 = vpack.c.b16 %v2349, %v2341
        %v2566 = vpack.c.b16 %v2350, %v2342
        %v2567 = vpack.c.b16 %v2351, %v2343
        %v2568 = vpack.c.b16 %v2352, %v2344
        %v2569 = vpack.c.b16 %v2353, %v2345
        %v2570 = vpack.c.b16 %v2354, %v2346
        %v2571 = vpack.c.b16 %v2355, %v2347
        %v2572 = vpack.c.b16 %v2364, %v2356
        %v2573 = vpack.c.b16 %v2365, %v2357
        %v2574 = vpack.c.b16 %v2366, %v2358
        %v2575 = vpack.c.b16 %v2367, %v2359
        %v2576 = vpack.c.b16 %v2368, %v2360
        %v2577 = vpack.c.b16 %v2369, %v2361
        %v2578 = vpack.c.b16 %v2370, %v2362
        %v2579 = vpack.c.b16 %v2371, %v2363
        %v2580 = vpack.c.b16 %v2380, %v2372
        %v2581 = vpack.c.b16 %v2381, %v2373
        %v2582 = vpack.c.b16 %v2382, %v2374
        %v2583 = vpack.c.b16 %v2383, %v2375
        %v2584 = vpack.c.b16 %v2384, %v2376
        %v2585 = vpack.c.b16 %v2385, %v2377
        %v2586 = vpack.c.b16 %v2386, %v2378
        %v2587 = vpack.c.b16 %v2387, %v2379
        %v2588 = vpack.c.b16 %v2396, %v2388
        %v2589 = vpack.c.b16 %v2397, %v2389
        %v2590 = vpack.c.b16 %v2398, %v2390
        %v2591 = vpack.c.b16 %v2399, %v2391
        %v2592 = vpack.c.b16 %v2400, %v2392
        %v2593 = vpack.c.b16 %v2401, %v2393
        %v2594 = vpack.c.b16 %v2402, %v2394
        %v2595 = vpack.c.b16 %v2403, %v2395
        %v2596 = vpack.c.b16 %v2412, %v2404
        %v2597 = vpack.c.b16 %v2413, %v2405
        %v2598 = vpack.c.b16 %v2414, %v2406
        %v2599 = vpack.c.b16 %v2415, %v2407
        %v2600 = vpack.c.b16 %v2416, %v2408
        %v2601 = vpack.c.b16 %v2417, %v2409
        %v2602 = vpack.c.b16 %v2418, %v2410
        %v2603 = vpack.c.b16 %v2419, %v2411
        %v2604 = vpack.c.b16 %v2428, %v2420
        %v2605 = vpack.c.b16 %v2429, %v2421
        %v2606 = vpack.c.b16 %v2430, %v2422
        %v2607 = vpack.c.b16 %v2431, %v2423
        %v2608 = vpack.c.b16 %v2432, %v2424
        %v2609 = vpack.c.b16 %v2433, %v2425
        %v2610 = vpack.c.b16 %v2434, %v2426
        %v2611 = vpack.c.b16 %v2435, %v2427
        %v2612 = vpack.c.b16 %v2444, %v2436
        %v2613 = vpack.c.b16 %v2445, %v2437
        %v2614 = vpack.c.b16 %v2446, %v2438
        %v2615 = vpack.c.b16 %v2447, %v2439
        %v2616 = vpack.c.b16 %v2448, %v2440
        %v2617 = vpack.c.b16 %v2449, %v2441
        %v2618 = vpack.c.b16 %v2450, %v2442
        %v2619 = vpack.c.b16 %v2451, %v2443
        %v2620 = vpack.c.b16 %v2460, %v2452
        %v2621 = vpack.c.b16 %v2461, %v2453
        %v2622 = vpack.c.b16 %v2462, %v2454
        %v2623 = vpack.c.b16 %v2463, %v2455
        %v2624 = vpack.c.b16 %v2464, %v2456
        %v2625 = vpack.c.b16 %v2465, %v2457
        %v2626 = vpack.c.b16 %v2466, %v2458
        %v2627 = vpack.c.b16 %v2467, %v2459
        %v2628 = vpack.c.b16 %v2476, %v2468
        %v2629 = vpack.c.b16 %v2477, %v2469
        %v2630 = vpack.c.b16 %v2478, %v2470
        %v2631 = vpack.c.b16 %v2479, %v2471
        %v2632 = vpack.c.b16 %v2480, %v2472
        %v2633 = vpack.c.b16 %v2481, %v2473
        %v2634 = vpack.c.b16 %v2482, %v2474
        %v2635 = vpack.c.b16 %v2483, %v2475
        %v2636 = vpack.c.b16 %v2492, %v2484
        %v2637 = vpack.c.b16 %v2493, %v2485
        %v2638 = vpack.c.b16 %v2494, %v2486
        %v2639 = vpack.c.b16 %v2495, %v2487
        %v2640 = vpack.c.b16 %v2496, %v2488
        %v2641 = vpack.c.b16 %v2497, %v2489
        %v2642 = vpack.c.b16 %v2498, %v2490
        %v2643 = vpack.c.b16 %v2499, %v2491
        %v2644 = vpack.c.b16 %v2508, %v2500
        %v2645 = vpack.c.b16 %v2509, %v2501
        %v2646 = vpack.c.b16 %v2510, %v2502
        %v2647 = vpack.c.b16 %v2511, %v2503
        %v2648 = vpack.c.b16 %v2512, %v2504
        %v2649 = vpack.c.b16 %v2513, %v2505
        %v2650 = vpack.c.b16 %v2514, %v2506
        %v2651 = vpack.c.b16 %v2515, %v2507
        %v2652 = vpack.c.b16 %v2524, %v2516
        %v2653 = vpack.c.b16 %v2525, %v2517
        %v2654 = vpack.c.b16 %v2526, %v2518
        %v2655 = vpack.c.b16 %v2527, %v2519
        %v2656 = vpack.c.b16 %v2528, %v2520
        %v2657 = vpack.c.b16 %v2529, %v2521
        %v2658 = vpack.c.b16 %v2530, %v2522
        %v2659 = vpack.c.b16 %v2531, %v2523
        %2788 = vmatprep.subr.bf16.mxu0 %v2533
        %2789 = vmatpush1.bf16.msra.mxu0 %v2532
        %2790 = vmatprep.subr.bf16.mxu0 %v2541
        %2791 = vmatpush1.bf16.msra.mxu0 %v2540
        %2792 = vmatprep.subr.bf16.mxu0 %v2549
        %2793 = vmatpush1.bf16.msra.mxu0 %v2548
        %2794 = vmatprep.subr.bf16.mxu0 %v2557
        %2795 = vmatpush1.bf16.msra.mxu0 %v2556
        %2796 = vmatprep.subr.bf16.mxu0 %v2565
        %2797 = vmatpush1.bf16.msra.mxu0 %v2564
        %2798 = vmatprep.subr.bf16.mxu0 %v2573
        %2799 = vmatpush1.bf16.msra.mxu0 %v2572
        %2800 = vmatprep.subr.bf16.mxu0 %v2581
        %2801 = vmatpush1.bf16.msra.mxu0 %v2580
        %2802 = vmatprep.subr.bf16.mxu0 %v2589
        %2803 = vmatpush1.bf16.msra.mxu0 %v2588
        %2804 = vmatprep.subr.bf16.mxu0 %v2597
        %2805 = vmatpush1.bf16.msra.mxu0 %v2596
        %2806 = vmatprep.subr.bf16.mxu0 %v2605
        %2807 = vmatpush1.bf16.msra.mxu0 %v2604
        %2808 = vmatprep.subr.bf16.mxu0 %v2613
        %2809 = vmatpush1.bf16.msra.mxu0 %v2612
        %2810 = vmatprep.subr.bf16.mxu0 %v2621
        %2811 = vmatpush1.bf16.msra.mxu0 %v2620
        %2812 = vmatprep.subr.bf16.mxu0 %v2629
        %2813 = vmatpush1.bf16.msra.mxu0 %v2628
        %2814 = vmatprep.subr.bf16.mxu0 %v2637
        %2815 = vmatpush1.bf16.msra.mxu0 %v2636
        %2816 = vmatprep.subr.bf16.mxu0 %v2645
        %2817 = vmatpush1.bf16.msra.mxu0 %v2644
        %2818 = vmatprep.subr.bf16.mxu0 %v2653
        %2819 = vmatpush1.bf16.msra.mxu0 %v2652
        %2820 = vmatprep.mubr.bf16.mxu0 0
        %2821 = vmatmul.mubr.bf16.gmra.mrb[0].mxu0 0
        %v2822 = vpop.f32.mrb[0].mxu0
        %v2823 = vadd.f32 0.0, %v2822
        %v2824 = vpop.f32.mrb[0].mxu0
        %v2825 = vadd.f32 0.0, %v2824
        %v2826 = vpop.f32.mrb[0].mxu0
        %v2827 = vpop.f32.mrb[0].mxu0
        %2828 = vdwg.mxu0
        %2829 = vmatprep.subr.bf16.mxu0 %v2535
        %2830 = vmatpush1.bf16.msra.mxu0 %v2534
        %2831 = vmatprep.subr.bf16.mxu0 %v2543
        %2832 = vmatpush1.bf16.msra.mxu0 %v2542
        %2833 = vmatprep.subr.bf16.mxu0 %v2551
        %2834 = vmatpush1.bf16.msra.mxu0 %v2550
        %2835 = vmatprep.subr.bf16.mxu0 %v2559
        %2836 = vmatpush1.bf16.msra.mxu0 %v2558
        %2837 = vmatprep.subr.bf16.mxu0 %v2567
        %2838 = vmatpush1.bf16.msra.mxu0 %v2566
        %2839 = vmatprep.subr.bf16.mxu0 %v2575
        %2840 = vmatpush1.bf16.msra.mxu0 %v2574
        %2841 = vmatprep.subr.bf16.mxu0 %v2583
        %2842 = vmatpush1.bf16.msra.mxu0 %v2582
        %2843 = vmatprep.subr.bf16.mxu0 %v2591
        %2844 = vmatpush1.bf16.msra.mxu0 %v2590
        %2845 = vmatprep.subr.bf16.mxu0 %v2599
        %2846 = vmatpush1.bf16.msra.mxu0 %v2598
        %2847 = vmatprep.subr.bf16.mxu0 %v2607
        %2848 = vmatpush1.bf16.msra.mxu0 %v2606
        %2849 = vmatprep.subr.bf16.mxu0 %v2615
        %2850 = vmatpush1.bf16.msra.mxu0 %v2614
        %2851 = vmatprep.subr.bf16.mxu0 %v2623
        %2852 = vmatpush1.bf16.msra.mxu0 %v2622
        %2853 = vmatprep.subr.bf16.mxu0 %v2631
        %2854 = vmatpush1.bf16.msra.mxu0 %v2630
        %2855 = vmatprep.subr.bf16.mxu0 %v2639
        %2856 = vmatpush1.bf16.msra.mxu0 %v2638
        %2857 = vmatprep.subr.bf16.mxu0 %v2647
        %2858 = vmatpush1.bf16.msra.mxu0 %v2646
        %2859 = vmatprep.subr.bf16.mxu0 %v2655
        %2860 = vmatpush1.bf16.msra.mxu0 %v2654
        %2861 = vmatprep.mubr.bf16.mxu0 0
        %2862 = vmatmul.mubr.bf16.gmra.mrb[0].mxu0 0
        %v2863 = vpop.f32.mrb[0].mxu0
        %v2864 = vadd.f32 0.0, %v2863
        %v2865 = vpop.f32.mrb[0].mxu0
        %v2866 = vadd.f32 0.0, %v2865
        %v2867 = vpop.f32.mrb[0].mxu0
        %v2868 = vpop.f32.mrb[0].mxu0
        %2869 = vdwg.mxu0
        %2870 = vmatprep.subr.bf16.mxu0 %v2537
        %2871 = vmatpush1.bf16.msra.mxu0 %v2536
        %2872 = vmatprep.subr.bf16.mxu0 %v2545
        %2873 = vmatpush1.bf16.msra.mxu0 %v2544
        %2874 = vmatprep.subr.bf16.mxu0 %v2553
        %2875 = vmatpush1.bf16.msra.mxu0 %v2552
        %2876 = vmatprep.subr.bf16.mxu0 %v2561
        %2877 = vmatpush1.bf16.msra.mxu0 %v2560
        %2878 = vmatprep.subr.bf16.mxu0 %v2569
        %2879 = vmatpush1.bf16.msra.mxu0 %v2568
        %2880 = vmatprep.subr.bf16.mxu0 %v2577
        %2881 = vmatpush1.bf16.msra.mxu0 %v2576
        %2882 = vmatprep.subr.bf16.mxu0 %v2585
        %2883 = vmatpush1.bf16.msra.mxu0 %v2584
        %2884 = vmatprep.subr.bf16.mxu0 %v2593
        %2885 = vmatpush1.bf16.msra.mxu0 %v2592
        %2886 = vmatprep.subr.bf16.mxu0 %v2601
        %2887 = vmatpush1.bf16.msra.mxu0 %v2600
        %2888 = vmatprep.subr.bf16.mxu0 %v2609
        %2889 = vmatpush1.bf16.msra.mxu0 %v2608
        %2890 = vmatprep.subr.bf16.mxu0 %v2617
        %2891 = vmatpush1.bf16.msra.mxu0 %v2616
        %2892 = vmatprep.subr.bf16.mxu0 %v2625
        %2893 = vmatpush1.bf16.msra.mxu0 %v2624
        %2894 = vmatprep.subr.bf16.mxu0 %v2633
        %2895 = vmatpush1.bf16.msra.mxu0 %v2632
        %2896 = vmatprep.subr.bf16.mxu0 %v2641
        %2897 = vmatpush1.bf16.msra.mxu0 %v2640
        %2898 = vmatprep.subr.bf16.mxu0 %v2649
        %2899 = vmatpush1.bf16.msra.mxu0 %v2648
        %2900 = vmatprep.subr.bf16.mxu0 %v2657
        %2901 = vmatpush1.bf16.msra.mxu0 %v2656
        %2902 = vmatprep.mubr.bf16.mxu0 0
        %2903 = vmatmul.mubr.bf16.gmra.mrb[0].mxu0 0
        %v2904 = vpop.f32.mrb[0].mxu0
        %v2905 = vadd.f32 0.0, %v2904
        %v2906 = vpop.f32.mrb[0].mxu0
        %v2907 = vadd.f32 0.0, %v2906
        %v2908 = vpop.f32.mrb[0].mxu0
        %v2909 = vpop.f32.mrb[0].mxu0
        %2910 = vdwg.mxu0
        %2911 = vmatprep.subr.bf16.mxu0 %v2539
        %2912 = vmatpush1.bf16.msra.mxu0 %v2538
        %2913 = vmatprep.subr.bf16.mxu0 %v2547
        %2914 = vmatpush1.bf16.msra.mxu0 %v2546
        %2915 = vmatprep.subr.bf16.mxu0 %v2555
        %2916 = vmatpush1.bf16.msra.mxu0 %v2554
        %2917 = vmatprep.subr.bf16.mxu0 %v2563
        %2918 = vmatpush1.bf16.msra.mxu0 %v2562
        %2919 = vmatprep.subr.bf16.mxu0 %v2571
        %2920 = vmatpush1.bf16.msra.mxu0 %v2570
        %2921 = vmatprep.subr.bf16.mxu0 %v2579
        %2922 = vmatpush1.bf16.msra.mxu0 %v2578
        %2923 = vmatprep.subr.bf16.mxu0 %v2587
        %2924 = vmatpush1.bf16.msra.mxu0 %v2586
        %2925 = vmatprep.subr.bf16.mxu0 %v2595
        %2926 = vmatpush1.bf16.msra.mxu0 %v2594
        %2927 = vmatprep.subr.bf16.mxu0 %v2603
        %2928 = vmatpush1.bf16.msra.mxu0 %v2602
        %2929 = vmatprep.subr.bf16.mxu0 %v2611
        %2930 = vmatpush1.bf16.msra.mxu0 %v2610
        %2931 = vmatprep.subr.bf16.mxu0 %v2619
        %2932 = vmatpush1.bf16.msra.mxu0 %v2618
        %2933 = vmatprep.subr.bf16.mxu0 %v2627
        %2934 = vmatpush1.bf16.msra.mxu0 %v2626
        %2935 = vmatprep.subr.bf16.mxu0 %v2635
        %2936 = vmatpush1.bf16.msra.mxu0 %v2634
        %2937 = vmatprep.subr.bf16.mxu0 %v2643
        %2938 = vmatpush1.bf16.msra.mxu0 %v2642
        %2939 = vmatprep.subr.bf16.mxu0 %v2651
        %2940 = vmatpush1.bf16.msra.mxu0 %v2650
        %2941 = vmatprep.subr.bf16.mxu0 %v2659
        %2942 = vmatpush1.bf16.msra.mxu0 %v2658
        %2943 = vmatprep.mubr.bf16.mxu0 0
        %2944 = vmatmul.mubr.bf16.gmra.mrb[0].mxu0 0
        %v2945 = vpop.f32.mrb[0].mxu0
        %v2946 = vadd.f32 0.0, %v2945
        %v2947 = vpop.f32.mrb[0].mxu0
        %v2948 = vadd.f32 0.0, %v2947
        %v2949 = vpop.f32.mrb[0].mxu0
        %v2950 = vpop.f32.mrb[0].mxu0
        %2951 = vdwg.mxu0
        %v2952 = vadd.f32 %v1768, %v2823
        %v2953 = vadd.f32 %v1770, %v2825
        %v2954 = vadd.f32 %v1850, %v2864
        %v2955 = vadd.f32 %v1852, %v2866
        %v2956 = vadd.f32 %v1932, %v2905
        %v2957 = vadd.f32 %v1934, %v2907
        %v2958 = vadd.f32 %v2014, %v2946
        %v2959 = vadd.f32 %v2016, %v2948
        %v2960 = vxor.u32 %v2952, 2147483648
        %v2961 = vxor.u32 %v2953, 2147483648
        %v2962 = vmul.f32 %v2960, 1.442695
        %v2963 = vpow.pop %v2962
        %v2964 = vmul.f32 %v2961, 1.442695
        %v2965 = vpow.pop %v2964
        %v2966 = vadd.f32 %v2963, 1.0
        %v2967 = vadd.f32 %v2965, 1.0
        %v2968 = vrcp.pop %v2966
        %v2969 = vmul.f32 1.0, %v2968
        %v2970 = vrcp.pop %v2967
        %v2971 = vmul.f32 1.0, %v2970
        %v2972 = vxor.u32 %v2954, 2147483648
        %v2973 = vxor.u32 %v2955, 2147483648
        %v2974 = vmul.f32 %v2972, 1.442695
        %v2975 = vpow.pop %v2974
        %v2976 = vmul.f32 %v2973, 1.442695
        %v2977 = vpow.pop %v2976
        %v2978 = vadd.f32 %v2975, 1.0
        %v2979 = vadd.f32 %v2977, 1.0
        %v2980 = vrcp.pop %v2978
        %v2981 = vmul.f32 1.0, %v2980
        %v2982 = vrcp.pop %v2979
        %v2983 = vmul.f32 1.0, %v2982
        %v2984 = vtanh.pop %v2956
        %v2985 = vtanh.pop %v2957
        %v2986 = vxor.u32 %v2958, 2147483648
        %v2987 = vxor.u32 %v2959, 2147483648
        %v2988 = vmul.f32 %v2986, 1.442695
        %v2989 = vpow.pop %v2988
        %v2990 = vmul.f32 %v2987, 1.442695
        %v2991 = vpow.pop %v2990
        %v2992 = vadd.f32 %v2989, 1.0
        %v2993 = vadd.f32 %v2991, 1.0
        %v2994 = vrcp.pop %v2992
        %v2995 = vmul.f32 1.0, %v2994
        %v2996 = vrcp.pop %v2993
        %v2997 = vmul.f32 1.0, %v2996
        %v2998 = vmul.f32 %v2981, 0.0
        %v2999 = vmul.f32 %v2983, 0.0
        %v3000 = vmul.f32 %v2969, %v2984
        %v3001 = vmul.f32 %v2971, %v2985
        %v3002 = vadd.f32 %v2998, %v3000
        %v3003 = vadd.f32 %v2999, %v3001
        %v3004 = vtanh.pop %v3002
        %v3005 = vtanh.pop %v3003
        %v3006 = vmul.f32 %v2995, %v3004
        %v3007 = vmul.f32 %v2997, %v3005
        %v3008 = vpack.c.bf16 %v3006, %v3006
        %v3009 = vpack.c.bf16 %v3007, %v3007
        %3010 = vmatprep.subr.bf16.mxu0 %v2533
        %3011 = vmatpush1.bf16.msra.mxu0 %v2532
        %3012 = vmatprep.subr.bf16.mxu0 %v2541
        %3013 = vmatpush1.bf16.msra.mxu0 %v2540
        %3014 = vmatprep.subr.bf16.mxu0 %v2549
        %3015 = vmatpush1.bf16.msra.mxu0 %v2548
        %3016 = vmatprep.subr.bf16.mxu0 %v2557
        %3017 = vmatpush1.bf16.msra.mxu0 %v2556
        %3018 = vmatprep.subr.bf16.mxu0 %v2565
        %3019 = vmatpush1.bf16.msra.mxu0 %v2564
        %3020 = vmatprep.subr.bf16.mxu0 %v2573
        %3021 = vmatpush1.bf16.msra.mxu0 %v2572
        %3022 = vmatprep.subr.bf16.mxu0 %v2581
        %3023 = vmatpush1.bf16.msra.mxu0 %v2580
        %3024 = vmatprep.subr.bf16.mxu0 %v2589
        %3025 = vmatpush1.bf16.msra.mxu0 %v2588
        %3026 = vmatprep.subr.bf16.mxu0 %v2597
        %3027 = vmatpush1.bf16.msra.mxu0 %v2596
        %3028 = vmatprep.subr.bf16.mxu0 %v2605
        %3029 = vmatpush1.bf16.msra.mxu0 %v2604
        %3030 = vmatprep.subr.bf16.mxu0 %v2613
        %3031 = vmatpush1.bf16.msra.mxu0 %v2612
        %3032 = vmatprep.subr.bf16.mxu0 %v2621
        %3033 = vmatpush1.bf16.msra.mxu0 %v2620
        %3034 = vmatprep.subr.bf16.mxu0 %v2629
        %3035 = vmatpush1.bf16.msra.mxu0 %v2628
        %3036 = vmatprep.subr.bf16.mxu0 %v2637
        %3037 = vmatpush1.bf16.msra.mxu0 %v2636
        %3038 = vmatprep.subr.bf16.mxu0 %v2645
        %3039 = vmatpush1.bf16.msra.mxu0 %v2644
        %3040 = vmatprep.subr.bf16.mxu0 %v2653
        %3041 = vmatpush1.bf16.msra.mxu0 %v2652
        %3042 = vmatprep.mubr.bf16.mxu0 %v3009
        %3043 = vmatmul.mubr.bf16.gmra.mrb[0].mxu0 %v3008
        %v3044 = vpop.f32.mrb[0].mxu0
        %v3045 = vadd.f32 0.0, %v3044
        %v3046 = vpop.f32.mrb[0].mxu0
        %v3047 = vadd.f32 0.0, %v3046
        %v3048 = vpop.f32.mrb[0].mxu0
        %v3049 = vpop.f32.mrb[0].mxu0
        %3050 = vdwg.mxu0
        %3051 = vmatprep.subr.bf16.mxu0 %v2535
        %3052 = vmatpush1.bf16.msra.mxu0 %v2534
        %3053 = vmatprep.subr.bf16.mxu0 %v2543
        %3054 = vmatpush1.bf16.msra.mxu0 %v2542
        %3055 = vmatprep.subr.bf16.mxu0 %v2551
        %3056 = vmatpush1.bf16.msra.mxu0 %v2550
        %3057 = vmatprep.subr.bf16.mxu0 %v2559
        %3058 = vmatpush1.bf16.msra.mxu0 %v2558
        %3059 = vmatprep.subr.bf16.mxu0 %v2567
        %3060 = vmatpush1.bf16.msra.mxu0 %v2566
        %3061 = vmatprep.subr.bf16.mxu0 %v2575
        %3062 = vmatpush1.bf16.msra.mxu0 %v2574
        %3063 = vmatprep.subr.bf16.mxu0 %v2583
        %3064 = vmatpush1.bf16.msra.mxu0 %v2582
        %3065 = vmatprep.subr.bf16.mxu0 %v2591
        %3066 = vmatpush1.bf16.msra.mxu0 %v2590
        %3067 = vmatprep.subr.bf16.mxu0 %v2599
        %3068 = vmatpush1.bf16.msra.mxu0 %v2598
        %3069 = vmatprep.subr.bf16.mxu0 %v2607
        %3070 = vmatpush1.bf16.msra.mxu0 %v2606
        %3071 = vmatprep.subr.bf16.mxu0 %v2615
        %3072 = vmatpush1.bf16.msra.mxu0 %v2614
        %3073 = vmatprep.subr.bf16.mxu0 %v2623
        %3074 = vmatpush1.bf16.msra.mxu0 %v2622
        %3075 = vmatprep.subr.bf16.mxu0 %v2631
        %3076 = vmatpush1.bf16.msra.mxu0 %v2630
        %3077 = vmatprep.subr.bf16.mxu0 %v2639
        %3078 = vmatpush1.bf16.msra.mxu0 %v2638
        %3079 = vmatprep.subr.bf16.mxu0 %v2647
        %3080 = vmatpush1.bf16.msra.mxu0 %v2646
        %3081 = vmatprep.subr.bf16.mxu0 %v2655
        %3082 = vmatpush1.bf16.msra.mxu0 %v2654
        %3083 = vmatprep.mubr.bf16.mxu0 %v3009
        %3084 = vmatmul.mubr.bf16.gmra.mrb[0].mxu0 %v3008
        %v3085 = vpop.f32.mrb[0].mxu0
        %v3086 = vadd.f32 0.0, %v3085
        %v3087 = vpop.f32.mrb[0].mxu0
        %v3088 = vadd.f32 0.0, %v3087
        %v3089 = vpop.f32.mrb[0].mxu0
        %v3090 = vpop.f32.mrb[0].mxu0
        %3091 = vdwg.mxu0
        %3092 = vmatprep.subr.bf16.mxu0 %v2537
        %3093 = vmatpush1.bf16.msra.mxu0 %v2536
        %3094 = vmatprep.subr.bf16.mxu0 %v2545
        %3095 = vmatpush1.bf16.msra.mxu0 %v2544
        %3096 = vmatprep.subr.bf16.mxu0 %v2553
        %3097 = vmatpush1.bf16.msra.mxu0 %v2552
        %3098 = vmatprep.subr.bf16.mxu0 %v2561
        %3099 = vmatpush1.bf16.msra.mxu0 %v2560
        %3100 = vmatprep.subr.bf16.mxu0 %v2569
        %3101 = vmatpush1.bf16.msra.mxu0 %v2568
        %3102 = vmatprep.subr.bf16.mxu0 %v2577
        %3103 = vmatpush1.bf16.msra.mxu0 %v2576
        %3104 = vmatprep.subr.bf16.mxu0 %v2585
        %3105 = vmatpush1.bf16.msra.mxu0 %v2584
        %3106 = vmatprep.subr.bf16.mxu0 %v2593
        %3107 = vmatpush1.bf16.msra.mxu0 %v2592
        %3108 = vmatprep.subr.bf16.mxu0 %v2601
        %3109 = vmatpush1.bf16.msra.mxu0 %v2600
        %3110 = vmatprep.subr.bf16.mxu0 %v2609
        %3111 = vmatpush1.bf16.msra.mxu0 %v2608
        %3112 = vmatprep.subr.bf16.mxu0 %v2617
        %3113 = vmatpush1.bf16.msra.mxu0 %v2616
        %3114 = vmatprep.subr.bf16.mxu0 %v2625
        %3115 = vmatpush1.bf16.msra.mxu0 %v2624
        %3116 = vmatprep.subr.bf16.mxu0 %v2633
        %3117 = vmatpush1.bf16.msra.mxu0 %v2632
        %3118 = vmatprep.subr.bf16.mxu0 %v2641
        %3119 = vmatpush1.bf16.msra.mxu0 %v2640
        %3120 = vmatprep.subr.bf16.mxu0 %v2649
        %3121 = vmatpush1.bf16.msra.mxu0 %v2648
        %3122 = vmatprep.subr.bf16.mxu0 %v2657
        %3123 = vmatpush1.bf16.msra.mxu0 %v2656
        %3124 = vmatprep.mubr.bf16.mxu0 %v3009
        %3125 = vmatmul.mubr.bf16.gmra.mrb[0].mxu0 %v3008
        %v3126 = vpop.f32.mrb[0].mxu0
        %v3127 = vadd.f32 0.0, %v3126
        %v3128 = vpop.f32.mrb[0].mxu0
        %v3129 = vadd.f32 0.0, %v3128
        %v3130 = vpop.f32.mrb[0].mxu0
        %v3131 = vpop.f32.mrb[0].mxu0
        %3132 = vdwg.mxu0
        %3133 = vmatprep.subr.bf16.mxu0 %v2539
        %3134 = vmatpush1.bf16.msra.mxu0 %v2538
        %3135 = vmatprep.subr.bf16.mxu0 %v2547
        %3136 = vmatpush1.bf16.msra.mxu0 %v2546
        %3137 = vmatprep.subr.bf16.mxu0 %v2555
        %3138 = vmatpush1.bf16.msra.mxu0 %v2554
        %3139 = vmatprep.subr.bf16.mxu0 %v2563
        %3140 = vmatpush1.bf16.msra.mxu0 %v2562
        %3141 = vmatprep.subr.bf16.mxu0 %v2571
        %3142 = vmatpush1.bf16.msra.mxu0 %v2570
        %3143 = vmatprep.subr.bf16.mxu0 %v2579
        %3144 = vmatpush1.bf16.msra.mxu0 %v2578
        %3145 = vmatprep.subr.bf16.mxu0 %v2587
        %3146 = vmatpush1.bf16.msra.mxu0 %v2586
        %3147 = vmatprep.subr.bf16.mxu0 %v2595
        %3148 = vmatpush1.bf16.msra.mxu0 %v2594
        %3149 = vmatprep.subr.bf16.mxu0 %v2603
        %3150 = vmatpush1.bf16.msra.mxu0 %v2602
        %3151 = vmatprep.subr.bf16.mxu0 %v2611
        %3152 = vmatpush1.bf16.msra.mxu0 %v2610
        %3153 = vmatprep.subr.bf16.mxu0 %v2619
        %3154 = vmatpush1.bf16.msra.mxu0 %v2618
        %3155 = vmatprep.subr.bf16.mxu0 %v2627
        %3156 = vmatpush1.bf16.msra.mxu0 %v2626
        %3157 = vmatprep.subr.bf16.mxu0 %v2635
        %3158 = vmatpush1.bf16.msra.mxu0 %v2634
        %3159 = vmatprep.subr.bf16.mxu0 %v2643
        %3160 = vmatpush1.bf16.msra.mxu0 %v2642
        %3161 = vmatprep.subr.bf16.mxu0 %v2651
        %3162 = vmatpush1.bf16.msra.mxu0 %v2650
        %3163 = vmatprep.subr.bf16.mxu0 %v2659
        %3164 = vmatpush1.bf16.msra.mxu0 %v2658
        %3165 = vmatprep.mubr.bf16.mxu0 %v3009
        %3166 = vmatmul.mubr.bf16.gmra.mrb[0].mxu0 %v3008
        %v3167 = vpop.f32.mrb[0].mxu0
        %v3168 = vadd.f32 0.0, %v3167
        %v3169 = vpop.f32.mrb[0].mxu0
        %v3170 = vadd.f32 0.0, %v3169
        %v3171 = vpop.f32.mrb[0].mxu0
        %v3172 = vpop.f32.mrb[0].mxu0
        %3173 = vdwg.mxu0
        %v3182 = vrot.slane %v3045, 7
        %v3183 = vrot.slane %v3047, 7
        %v3184 = vrot.slane %v3086, 7
        %v3185 = vrot.slane %v3088, 7
        %v3186 = vrot.slane %v3127, 7
        %v3187 = vrot.slane %v3129, 7
        %v3188 = vrot.slane %v3168, 7
        %v3189 = vrot.slane %v3170, 7
        %v3198 = vadd.f32 %v1768, %v3182
        %v3199 = vadd.f32 %v1770, %v3183
        %v3200 = vadd.f32 %v1850, %v3184
        %v3201 = vadd.f32 %v1852, %v3185
        %v3202 = vadd.f32 %v1932, %v3186
        %v3203 = vadd.f32 %v1934, %v3187
        %v3204 = vadd.f32 %v2014, %v3188
        %v3205 = vadd.f32 %v2016, %v3189
        %v3206 = vxor.u32 %v3198, 2147483648
        %v3207 = vxor.u32 %v3199, 2147483648
        %v3208 = vmul.f32 %v3206, 1.442695
        %v3209 = vpow.pop %v3208
        %v3210 = vmul.f32 %v3207, 1.442695
        %v3211 = vpow.pop %v3210
        %v3212 = vadd.f32 %v3209, 1.0
        %v3213 = vadd.f32 %v3211, 1.0
        %v3214 = vrcp.pop %v3212
        %v3215 = vmul.f32 1.0, %v3214
        %v3216 = vrcp.pop %v3213
        %v3217 = vmul.f32 1.0, %v3216
        %v3218 = vxor.u32 %v3200, 2147483648
        %v3219 = vxor.u32 %v3201, 2147483648
        %v3220 = vmul.f32 %v3218, 1.442695
        %v3221 = vpow.pop %v3220
        %v3222 = vmul.f32 %v3219, 1.442695
        %v3223 = vpow.pop %v3222
        %v3224 = vadd.f32 %v3221, 1.0
        %v3225 = vadd.f32 %v3223, 1.0
        %v3226 = vrcp.pop %v3224
        %v3227 = vmul.f32 1.0, %v3226
        %v3228 = vrcp.pop %v3225
        %v3229 = vmul.f32 1.0, %v3228
        %v3230 = vtanh.pop %v3202
        %v3231 = vtanh.pop %v3203
        %v3232 = vxor.u32 %v3204, 2147483648
        %v3233 = vxor.u32 %v3205, 2147483648
        %v3234 = vmul.f32 %v3232, 1.442695
        %v3235 = vpow.pop %v3234
        %v3236 = vmul.f32 %v3233, 1.442695
        %v3237 = vpow.pop %v3236
        %v3238 = vadd.f32 %v3235, 1.0
        %v3239 = vadd.f32 %v3237, 1.0
        %v3240 = vrcp.pop %v3238
        %v3241 = vmul.f32 1.0, %v3240
        %v3242 = vrcp.pop %v3239
        %v3243 = vmul.f32 1.0, %v3242
        %v3246 = vrot.slane %v3002, 7
        %v3247 = vrot.slane %v3003, 7
        %v3250 = vmul.f32 %v3227, %v3246
        %v3251 = vmul.f32 %v3229, %v3247
        %v3252 = vmul.f32 %v3215, %v3230
        %v3253 = vmul.f32 %v3217, %v3231
        %v3254 = vadd.f32 %v3250, %v3252
        %v3255 = vadd.f32 %v3251, %v3253
        %v3256 = vtanh.pop %v3254
        %v3257 = vtanh.pop %v3255
        %v3258 = vmul.f32 %v3241, %v3256
        %v3259 = vmul.f32 %v3243, %v3257
        %v3260 = vpack.c.bf16 %v3258, %v3258
        %v3261 = vpack.c.bf16 %v3259, %v3259
        %v3263 = vshrl.u32 %v3260, 16
        %v3266 = vshrl.u32 %v3261, 16
        %3270 = vmatprep.subr.bf16.mxu0 %v2533
        %3271 = vmatpush1.bf16.msra.mxu0 %v2532
        %3272 = vmatprep.subr.bf16.mxu0 %v2541
        %3273 = vmatpush1.bf16.msra.mxu0 %v2540
        %3274 = vmatprep.subr.bf16.mxu0 %v2549
        %3275 = vmatpush1.bf16.msra.mxu0 %v2548
        %3276 = vmatprep.subr.bf16.mxu0 %v2557
        %3277 = vmatpush1.bf16.msra.mxu0 %v2556
        %3278 = vmatprep.subr.bf16.mxu0 %v2565
        %3279 = vmatpush1.bf16.msra.mxu0 %v2564
        %3280 = vmatprep.subr.bf16.mxu0 %v2573
        %3281 = vmatpush1.bf16.msra.mxu0 %v2572
        %3282 = vmatprep.subr.bf16.mxu0 %v2581
        %3283 = vmatpush1.bf16.msra.mxu0 %v2580
        %3284 = vmatprep.subr.bf16.mxu0 %v2589
        %3285 = vmatpush1.bf16.msra.mxu0 %v2588
        %3286 = vmatprep.subr.bf16.mxu0 %v2597
        %3287 = vmatpush1.bf16.msra.mxu0 %v2596
        %3288 = vmatprep.subr.bf16.mxu0 %v2605
        %3289 = vmatpush1.bf16.msra.mxu0 %v2604
        %3290 = vmatprep.subr.bf16.mxu0 %v2613
        %3291 = vmatpush1.bf16.msra.mxu0 %v2612
        %3292 = vmatprep.subr.bf16.mxu0 %v2621
        %3293 = vmatpush1.bf16.msra.mxu0 %v2620
        %3294 = vmatprep.subr.bf16.mxu0 %v2629
        %3295 = vmatpush1.bf16.msra.mxu0 %v2628
        %3296 = vmatprep.subr.bf16.mxu0 %v2637
        %3297 = vmatpush1.bf16.msra.mxu0 %v2636
        %3298 = vmatprep.subr.bf16.mxu0 %v2645
        %3299 = vmatpush1.bf16.msra.mxu0 %v2644
        %3300 = vmatprep.subr.bf16.mxu0 %v2653
        %3301 = vmatpush1.bf16.msra.mxu0 %v2652
        %3302 = vmatprep.mubr.bf16.mxu0 %v3266
        %3303 = vmatmul.mubr.bf16.gmra.mrb[0].mxu0 %v3263
        %v3304 = vpop.f32.mrb[0].mxu0
        %v3305 = vadd.f32 0.0, %v3304
        %v3306 = vpop.f32.mrb[0].mxu0
        %v3307 = vadd.f32 0.0, %v3306
        %v3308 = vpop.f32.mrb[0].mxu0
        %v3309 = vpop.f32.mrb[0].mxu0
        %3310 = vdwg.mxu0
        %3311 = vmatprep.subr.bf16.mxu0 %v2535
        %3312 = vmatpush1.bf16.msra.mxu0 %v2534
        %3313 = vmatprep.subr.bf16.mxu0 %v2543
        %3314 = vmatpush1.bf16.msra.mxu0 %v2542
        %3315 = vmatprep.subr.bf16.mxu0 %v2551
        %3316 = vmatpush1.bf16.msra.mxu0 %v2550
        %3317 = vmatprep.subr.bf16.mxu0 %v2559
        %3318 = vmatpush1.bf16.msra.mxu0 %v2558
        %3319 = vmatprep.subr.bf16.mxu0 %v2567
        %3320 = vmatpush1.bf16.msra.mxu0 %v2566
        %3321 = vmatprep.subr.bf16.mxu0 %v2575
        %3322 = vmatpush1.bf16.msra.mxu0 %v2574
        %3323 = vmatprep.subr.bf16.mxu0 %v2583
        %3324 = vmatpush1.bf16.msra.mxu0 %v2582
        %3325 = vmatprep.subr.bf16.mxu0 %v2591
        %3326 = vmatpush1.bf16.msra.mxu0 %v2590
        %3327 = vmatprep.subr.bf16.mxu0 %v2599
        %3328 = vmatpush1.bf16.msra.mxu0 %v2598
        %3329 = vmatprep.subr.bf16.mxu0 %v2607
        %3330 = vmatpush1.bf16.msra.mxu0 %v2606
        %3331 = vmatprep.subr.bf16.mxu0 %v2615
        %3332 = vmatpush1.bf16.msra.mxu0 %v2614
        %3333 = vmatprep.subr.bf16.mxu0 %v2623
        %3334 = vmatpush1.bf16.msra.mxu0 %v2622
        %3335 = vmatprep.subr.bf16.mxu0 %v2631
        %3336 = vmatpush1.bf16.msra.mxu0 %v2630
        %3337 = vmatprep.subr.bf16.mxu0 %v2639
        %3338 = vmatpush1.bf16.msra.mxu0 %v2638
        %3339 = vmatprep.subr.bf16.mxu0 %v2647
        %3340 = vmatpush1.bf16.msra.mxu0 %v2646
        %3341 = vmatprep.subr.bf16.mxu0 %v2655
        %3342 = vmatpush1.bf16.msra.mxu0 %v2654
        %3343 = vmatprep.mubr.bf16.mxu0 %v3266
        %3344 = vmatmul.mubr.bf16.gmra.mrb[0].mxu0 %v3263
        %v3345 = vpop.f32.mrb[0].mxu0
        %v3346 = vadd.f32 0.0, %v3345
        %v3347 = vpop.f32.mrb[0].mxu0
        %v3348 = vadd.f32 0.0, %v3347
        %v3349 = vpop.f32.mrb[0].mxu0
        %v3350 = vpop.f32.mrb[0].mxu0
        %3351 = vdwg.mxu0
        %3352 = vmatprep.subr.bf16.mxu0 %v2537
        %3353 = vmatpush1.bf16.msra.mxu0 %v2536
        %3354 = vmatprep.subr.bf16.mxu0 %v2545
        %3355 = vmatpush1.bf16.msra.mxu0 %v2544
        %3356 = vmatprep.subr.bf16.mxu0 %v2553
        %3357 = vmatpush1.bf16.msra.mxu0 %v2552
        %3358 = vmatprep.subr.bf16.mxu0 %v2561
        %3359 = vmatpush1.bf16.msra.mxu0 %v2560
        %3360 = vmatprep.subr.bf16.mxu0 %v2569
        %3361 = vmatpush1.bf16.msra.mxu0 %v2568
        %3362 = vmatprep.subr.bf16.mxu0 %v2577
        %3363 = vmatpush1.bf16.msra.mxu0 %v2576
        %3364 = vmatprep.subr.bf16.mxu0 %v2585
        %3365 = vmatpush1.bf16.msra.mxu0 %v2584
        %3366 = vmatprep.subr.bf16.mxu0 %v2593
        %3367 = vmatpush1.bf16.msra.mxu0 %v2592
        %3368 = vmatprep.subr.bf16.mxu0 %v2601
        %3369 = vmatpush1.bf16.msra.mxu0 %v2600
        %3370 = vmatprep.subr.bf16.mxu0 %v2609
        %3371 = vmatpush1.bf16.msra.mxu0 %v2608
        %3372 = vmatprep.subr.bf16.mxu0 %v2617
        %3373 = vmatpush1.bf16.msra.mxu0 %v2616
        %3374 = vmatprep.subr.bf16.mxu0 %v2625
        %3375 = vmatpush1.bf16.msra.mxu0 %v2624
        %3376 = vmatprep.subr.bf16.mxu0 %v2633
        %3377 = vmatpush1.bf16.msra.mxu0 %v2632
        %3378 = vmatprep.subr.bf16.mxu0 %v2641
        %3379 = vmatpush1.bf16.msra.mxu0 %v2640
        %3380 = vmatprep.subr.bf16.mxu0 %v2649
        %3381 = vmatpush1.bf16.msra.mxu0 %v2648
        %3382 = vmatprep.subr.bf16.mxu0 %v2657
        %3383 = vmatpush1.bf16.msra.mxu0 %v2656
        %3384 = vmatprep.mubr.bf16.mxu0 %v3266
        %3385 = vmatmul.mubr.bf16.gmra.mrb[0].mxu0 %v3263
        %v3386 = vpop.f32.mrb[0].mxu0
        %v3387 = vadd.f32 0.0, %v3386
        %v3388 = vpop.f32.mrb[0].mxu0
        %v3389 = vadd.f32 0.0, %v3388
        %v3390 = vpop.f32.mrb[0].mxu0
        %v3391 = vpop.f32.mrb[0].mxu0
        %3392 = vdwg.mxu0
        %3393 = vmatprep.subr.bf16.mxu0 %v2539
        %3394 = vmatpush1.bf16.msra.mxu0 %v2538
        %3395 = vmatprep.subr.bf16.mxu0 %v2547
        %3396 = vmatpush1.bf16.msra.mxu0 %v2546
        %3397 = vmatprep.subr.bf16.mxu0 %v2555
        %3398 = vmatpush1.bf16.msra.mxu0 %v2554
        %3399 = vmatprep.subr.bf16.mxu0 %v2563
        %3400 = vmatpush1.bf16.msra.mxu0 %v2562
        %3401 = vmatprep.subr.bf16.mxu0 %v2571
        %3402 = vmatpush1.bf16.msra.mxu0 %v2570
        %3403 = vmatprep.subr.bf16.mxu0 %v2579
        %3404 = vmatpush1.bf16.msra.mxu0 %v2578
        %3405 = vmatprep.subr.bf16.mxu0 %v2587
        %3406 = vmatpush1.bf16.msra.mxu0 %v2586
        %3407 = vmatprep.subr.bf16.mxu0 %v2595
        %3408 = vmatpush1.bf16.msra.mxu0 %v2594
        %3409 = vmatprep.subr.bf16.mxu0 %v2603
        %3410 = vmatpush1.bf16.msra.mxu0 %v2602
        %3411 = vmatprep.subr.bf16.mxu0 %v2611
        %3412 = vmatpush1.bf16.msra.mxu0 %v2610
        %3413 = vmatprep.subr.bf16.mxu0 %v2619
        %3414 = vmatpush1.bf16.msra.mxu0 %v2618
        %3415 = vmatprep.subr.bf16.mxu0 %v2627
        %3416 = vmatpush1.bf16.msra.mxu0 %v2626
        %3417 = vmatprep.subr.bf16.mxu0 %v2635
        %3418 = vmatpush1.bf16.msra.mxu0 %v2634
        %3419 = vmatprep.subr.bf16.mxu0 %v2643
        %3420 = vmatpush1.bf16.msra.mxu0 %v2642
        %3421 = vmatprep.subr.bf16.mxu0 %v2651
        %3422 = vmatpush1.bf16.msra.mxu0 %v2650
        %3423 = vmatprep.subr.bf16.mxu0 %v2659
        %3424 = vmatpush1.bf16.msra.mxu0 %v2658
        %3425 = vmatprep.mubr.bf16.mxu0 %v3266
        %3426 = vmatmul.mubr.bf16.gmra.mrb[0].mxu0 %v3263
        %v3427 = vpop.f32.mrb[0].mxu0
        %v3428 = vadd.f32 0.0, %v3427
        %v3429 = vpop.f32.mrb[0].mxu0
        %v3430 = vadd.f32 0.0, %v3429
        %v3431 = vpop.f32.mrb[0].mxu0
        %v3432 = vpop.f32.mrb[0].mxu0
        %3433 = vdwg.mxu0
        %v3442 = vrot.slane %v3305, 6
        %v3443 = vrot.slane %v3307, 6
        %v3444 = vrot.slane %v3346, 6
        %v3445 = vrot.slane %v3348, 6
        %v3446 = vrot.slane %v3387, 6
        %v3447 = vrot.slane %v3389, 6
        %v3448 = vrot.slane %v3428, 6
        %v3449 = vrot.slane %v3430, 6
        %v3458 = vadd.f32 %v1768, %v3442
        %v3459 = vadd.f32 %v1770, %v3443
        %v3460 = vadd.f32 %v1850, %v3444
        %v3461 = vadd.f32 %v1852, %v3445
        %v3462 = vadd.f32 %v1932, %v3446
        %v3463 = vadd.f32 %v1934, %v3447
        %v3464 = vadd.f32 %v2014, %v3448
        %v3465 = vadd.f32 %v2016, %v3449
        %v3466 = vxor.u32 %v3458, 2147483648
        %v3467 = vxor.u32 %v3459, 2147483648
        %v3468 = vmul.f32 %v3466, 1.442695
        %v3469 = vpow.pop %v3468
        %v3470 = vmul.f32 %v3467, 1.442695
        %v3471 = vpow.pop %v3470
        %v3472 = vadd.f32 %v3469, 1.0
        %v3473 = vadd.f32 %v3471, 1.0
        %v3474 = vrcp.pop %v3472
        %v3475 = vmul.f32 1.0, %v3474
        %v3476 = vrcp.pop %v3473
        %v3477 = vmul.f32 1.0, %v3476
        %v3478 = vxor.u32 %v3460, 2147483648
        %v3479 = vxor.u32 %v3461, 2147483648
        %v3480 = vmul.f32 %v3478, 1.442695
        %v3481 = vpow.pop %v3480
        %v3482 = vmul.f32 %v3479, 1.442695
        %v3483 = vpow.pop %v3482
        %v3484 = vadd.f32 %v3481, 1.0
        %v3485 = vadd.f32 %v3483, 1.0
        %v3486 = vrcp.pop %v3484
        %v3487 = vmul.f32 1.0, %v3486
        %v3488 = vrcp.pop %v3485
        %v3489 = vmul.f32 1.0, %v3488
        %v3490 = vtanh.pop %v3462
        %v3491 = vtanh.pop %v3463
        %v3492 = vxor.u32 %v3464, 2147483648
        %v3493 = vxor.u32 %v3465, 2147483648
        %v3494 = vmul.f32 %v3492, 1.442695
        %v3495 = vpow.pop %v3494
        %v3496 = vmul.f32 %v3493, 1.442695
        %v3497 = vpow.pop %v3496
        %v3498 = vadd.f32 %v3495, 1.0
        %v3499 = vadd.f32 %v3497, 1.0
        %v3500 = vrcp.pop %v3498
        %v3501 = vmul.f32 1.0, %v3500
        %v3502 = vrcp.pop %v3499
        %v3503 = vmul.f32 1.0, %v3502
        %v3506 = vrot.slane %v3254, 7
        %v3507 = vrot.slane %v3255, 7
        %v3510 = vmul.f32 %v3487, %v3506
        %v3511 = vmul.f32 %v3489, %v3507
        %v3512 = vmul.f32 %v3475, %v3490
        %v3513 = vmul.f32 %v3477, %v3491
        %v3514 = vadd.f32 %v3510, %v3512
        %v3515 = vadd.f32 %v3511, %v3513
        %v3516 = vtanh.pop %v3514
        %v3517 = vtanh.pop %v3515
        %v3518 = vmul.f32 %v3501, %v3516
        %v3519 = vmul.f32 %v3503, %v3517
        %v3520 = vpack.c.bf16 %v3518, %v3518
        %v3521 = vpack.c.bf16 %v3519, %v3519
        %v3524 = vrot.slane %v3520, 1
        %v3525 = vrot.slane %v3521, 1
        %3528 = vmatprep.subr.bf16.mxu0 %v2533
        %3529 = vmatpush1.bf16.msra.mxu0 %v2532
        %3530 = vmatprep.subr.bf16.mxu0 %v2541
        %3531 = vmatpush1.bf16.msra.mxu0 %v2540
        %3532 = vmatprep.subr.bf16.mxu0 %v2549
        %3533 = vmatpush1.bf16.msra.mxu0 %v2548
        %3534 = vmatprep.subr.bf16.mxu0 %v2557
        %3535 = vmatpush1.bf16.msra.mxu0 %v2556
        %3536 = vmatprep.subr.bf16.mxu0 %v2565
        %3537 = vmatpush1.bf16.msra.mxu0 %v2564
        %3538 = vmatprep.subr.bf16.mxu0 %v2573
        %3539 = vmatpush1.bf16.msra.mxu0 %v2572
        %3540 = vmatprep.subr.bf16.mxu0 %v2581
        %3541 = vmatpush1.bf16.msra.mxu0 %v2580
        %3542 = vmatprep.subr.bf16.mxu0 %v2589
        %3543 = vmatpush1.bf16.msra.mxu0 %v2588
        %3544 = vmatprep.subr.bf16.mxu0 %v2597
        %3545 = vmatpush1.bf16.msra.mxu0 %v2596
        %3546 = vmatprep.subr.bf16.mxu0 %v2605
        %3547 = vmatpush1.bf16.msra.mxu0 %v2604
        %3548 = vmatprep.subr.bf16.mxu0 %v2613
        %3549 = vmatpush1.bf16.msra.mxu0 %v2612
        %3550 = vmatprep.subr.bf16.mxu0 %v2621
        %3551 = vmatpush1.bf16.msra.mxu0 %v2620
        %3552 = vmatprep.subr.bf16.mxu0 %v2629
        %3553 = vmatpush1.bf16.msra.mxu0 %v2628
        %3554 = vmatprep.subr.bf16.mxu0 %v2637
        %3555 = vmatpush1.bf16.msra.mxu0 %v2636
        %3556 = vmatprep.subr.bf16.mxu0 %v2645
        %3557 = vmatpush1.bf16.msra.mxu0 %v2644
        %3558 = vmatprep.subr.bf16.mxu0 %v2653
        %3559 = vmatpush1.bf16.msra.mxu0 %v2652
        %3560 = vmatprep.mubr.bf16.mxu0 %v3525
        %3561 = vmatmul.mubr.bf16.gmra.mrb[0].mxu0 %v3524
        %v3562 = vpop.f32.mrb[0].mxu0
        %v3563 = vadd.f32 0.0, %v3562
        %v3564 = vpop.f32.mrb[0].mxu0
        %v3565 = vadd.f32 0.0, %v3564
        %v3566 = vpop.f32.mrb[0].mxu0
        %v3567 = vpop.f32.mrb[0].mxu0
        %3568 = vdwg.mxu0
        %3569 = vmatprep.subr.bf16.mxu0 %v2535
        %3570 = vmatpush1.bf16.msra.mxu0 %v2534
        %3571 = vmatprep.subr.bf16.mxu0 %v2543
        %3572 = vmatpush1.bf16.msra.mxu0 %v2542
        %3573 = vmatprep.subr.bf16.mxu0 %v2551
        %3574 = vmatpush1.bf16.msra.mxu0 %v2550
        %3575 = vmatprep.subr.bf16.mxu0 %v2559
        %3576 = vmatpush1.bf16.msra.mxu0 %v2558
        %3577 = vmatprep.subr.bf16.mxu0 %v2567
        %3578 = vmatpush1.bf16.msra.mxu0 %v2566
        %3579 = vmatprep.subr.bf16.mxu0 %v2575
        %3580 = vmatpush1.bf16.msra.mxu0 %v2574
        %3581 = vmatprep.subr.bf16.mxu0 %v2583
        %3582 = vmatpush1.bf16.msra.mxu0 %v2582
        %3583 = vmatprep.subr.bf16.mxu0 %v2591
        %3584 = vmatpush1.bf16.msra.mxu0 %v2590
        %3585 = vmatprep.subr.bf16.mxu0 %v2599
        %3586 = vmatpush1.bf16.msra.mxu0 %v2598
        %3587 = vmatprep.subr.bf16.mxu0 %v2607
        %3588 = vmatpush1.bf16.msra.mxu0 %v2606
        %3589 = vmatprep.subr.bf16.mxu0 %v2615
        %3590 = vmatpush1.bf16.msra.mxu0 %v2614
        %3591 = vmatprep.subr.bf16.mxu0 %v2623
        %3592 = vmatpush1.bf16.msra.mxu0 %v2622
        %3593 = vmatprep.subr.bf16.mxu0 %v2631
        %3594 = vmatpush1.bf16.msra.mxu0 %v2630
        %3595 = vmatprep.subr.bf16.mxu0 %v2639
        %3596 = vmatpush1.bf16.msra.mxu0 %v2638
        %3597 = vmatprep.subr.bf16.mxu0 %v2647
        %3598 = vmatpush1.bf16.msra.mxu0 %v2646
        %3599 = vmatprep.subr.bf16.mxu0 %v2655
        %3600 = vmatpush1.bf16.msra.mxu0 %v2654
        %3601 = vmatprep.mubr.bf16.mxu0 %v3525
        %3602 = vmatmul.mubr.bf16.gmra.mrb[0].mxu0 %v3524
        %v3603 = vpop.f32.mrb[0].mxu0
        %v3604 = vadd.f32 0.0, %v3603
        %v3605 = vpop.f32.mrb[0].mxu0
        %v3606 = vadd.f32 0.0, %v3605
        %v3607 = vpop.f32.mrb[0].mxu0
        %v3608 = vpop.f32.mrb[0].mxu0
        %3609 = vdwg.mxu0
        %3610 = vmatprep.subr.bf16.mxu0 %v2537
        %3611 = vmatpush1.bf16.msra.mxu0 %v2536
        %3612 = vmatprep.subr.bf16.mxu0 %v2545
        %3613 = vmatpush1.bf16.msra.mxu0 %v2544
        %3614 = vmatprep.subr.bf16.mxu0 %v2553
        %3615 = vmatpush1.bf16.msra.mxu0 %v2552
        %3616 = vmatprep.subr.bf16.mxu0 %v2561
        %3617 = vmatpush1.bf16.msra.mxu0 %v2560
        %3618 = vmatprep.subr.bf16.mxu0 %v2569
        %3619 = vmatpush1.bf16.msra.mxu0 %v2568
        %3620 = vmatprep.subr.bf16.mxu0 %v2577
        %3621 = vmatpush1.bf16.msra.mxu0 %v2576
        %3622 = vmatprep.subr.bf16.mxu0 %v2585
        %3623 = vmatpush1.bf16.msra.mxu0 %v2584
        %3624 = vmatprep.subr.bf16.mxu0 %v2593
        %3625 = vmatpush1.bf16.msra.mxu0 %v2592
        %3626 = vmatprep.subr.bf16.mxu0 %v2601
        %3627 = vmatpush1.bf16.msra.mxu0 %v2600
        %3628 = vmatprep.subr.bf16.mxu0 %v2609
        %3629 = vmatpush1.bf16.msra.mxu0 %v2608
        %3630 = vmatprep.subr.bf16.mxu0 %v2617
        %3631 = vmatpush1.bf16.msra.mxu0 %v2616
        %3632 = vmatprep.subr.bf16.mxu0 %v2625
        %3633 = vmatpush1.bf16.msra.mxu0 %v2624
        %3634 = vmatprep.subr.bf16.mxu0 %v2633
        %3635 = vmatpush1.bf16.msra.mxu0 %v2632
        %3636 = vmatprep.subr.bf16.mxu0 %v2641
        %3637 = vmatpush1.bf16.msra.mxu0 %v2640
        %3638 = vmatprep.subr.bf16.mxu0 %v2649
        %3639 = vmatpush1.bf16.msra.mxu0 %v2648
        %3640 = vmatprep.subr.bf16.mxu0 %v2657
        %3641 = vmatpush1.bf16.msra.mxu0 %v2656
        %3642 = vmatprep.mubr.bf16.mxu0 %v3525
        %3643 = vmatmul.mubr.bf16.gmra.mrb[0].mxu0 %v3524
        %v3644 = vpop.f32.mrb[0].mxu0
        %v3645 = vadd.f32 0.0, %v3644
        %v3646 = vpop.f32.mrb[0].mxu0
        %v3647 = vadd.f32 0.0, %v3646
        %v3648 = vpop.f32.mrb[0].mxu0
        %v3649 = vpop.f32.mrb[0].mxu0
        %3650 = vdwg.mxu0
        %3651 = vmatprep.subr.bf16.mxu0 %v2539
        %3652 = vmatpush1.bf16.msra.mxu0 %v2538
        %3653 = vmatprep.subr.bf16.mxu0 %v2547
        %3654 = vmatpush1.bf16.msra.mxu0 %v2546
        %3655 = vmatprep.subr.bf16.mxu0 %v2555
        %3656 = vmatpush1.bf16.msra.mxu0 %v2554
        %3657 = vmatprep.subr.bf16.mxu0 %v2563
        %3658 = vmatpush1.bf16.msra.mxu0 %v2562
        %3659 = vmatprep.subr.bf16.mxu0 %v2571
        %3660 = vmatpush1.bf16.msra.mxu0 %v2570
        %3661 = vmatprep.subr.bf16.mxu0 %v2579
        %3662 = vmatpush1.bf16.msra.mxu0 %v2578
        %3663 = vmatprep.subr.bf16.mxu0 %v2587
        %3664 = vmatpush1.bf16.msra.mxu0 %v2586
        %3665 = vmatprep.subr.bf16.mxu0 %v2595
        %3666 = vmatpush1.bf16.msra.mxu0 %v2594
        %3667 = vmatprep.subr.bf16.mxu0 %v2603
        %3668 = vmatpush1.bf16.msra.mxu0 %v2602
        %3669 = vmatprep.subr.bf16.mxu0 %v2611
        %3670 = vmatpush1.bf16.msra.mxu0 %v2610
        %3671 = vmatprep.subr.bf16.mxu0 %v2619
        %3672 = vmatpush1.bf16.msra.mxu0 %v2618
        %3673 = vmatprep.subr.bf16.mxu0 %v2627
        %3674 = vmatpush1.bf16.msra.mxu0 %v2626
        %3675 = vmatprep.subr.bf16.mxu0 %v2635
        %3676 = vmatpush1.bf16.msra.mxu0 %v2634
        %3677 = vmatprep.subr.bf16.mxu0 %v2643
        %3678 = vmatpush1.bf16.msra.mxu0 %v2642
        %3679 = vmatprep.subr.bf16.mxu0 %v2651
        %3680 = vmatpush1.bf16.msra.mxu0 %v2650
        %3681 = vmatprep.subr.bf16.mxu0 %v2659
        %3682 = vmatpush1.bf16.msra.mxu0 %v2658
        %3683 = vmatprep.mubr.bf16.mxu0 %v3525
        %3684 = vmatmul.mubr.bf16.gmra.mrb[0].mxu0 %v3524
        %v3685 = vpop.f32.mrb[0].mxu0
        %v3686 = vadd.f32 0.0, %v3685
        %v3687 = vpop.f32.mrb[0].mxu0
        %v3688 = vadd.f32 0.0, %v3687
        %v3689 = vpop.f32.mrb[0].mxu0
        %v3690 = vpop.f32.mrb[0].mxu0
        %3691 = vdwg.mxu0
        %v3700 = vrot.slane %v3563, 5
        %v3701 = vrot.slane %v3565, 5
        %v3702 = vrot.slane %v3604, 5
        %v3703 = vrot.slane %v3606, 5
        %v3704 = vrot.slane %v3645, 5
        %v3705 = vrot.slane %v3647, 5
        %v3706 = vrot.slane %v3686, 5
        %v3707 = vrot.slane %v3688, 5
        %v3716 = vadd.f32 %v1768, %v3700
        %v3717 = vadd.f32 %v1770, %v3701
        %v3718 = vadd.f32 %v1850, %v3702
        %v3719 = vadd.f32 %v1852, %v3703
        %v3720 = vadd.f32 %v1932, %v3704
        %v3721 = vadd.f32 %v1934, %v3705
        %v3722 = vadd.f32 %v2014, %v3706
        %v3723 = vadd.f32 %v2016, %v3707
        %v3724 = vxor.u32 %v3716, 2147483648
        %v3725 = vxor.u32 %v3717, 2147483648
        %v3726 = vmul.f32 %v3724, 1.442695
        %v3727 = vpow.pop %v3726
        %v3728 = vmul.f32 %v3725, 1.442695
        %v3729 = vpow.pop %v3728
        %v3730 = vadd.f32 %v3727, 1.0
        %v3731 = vadd.f32 %v3729, 1.0
        %v3732 = vrcp.pop %v3730
        %v3733 = vmul.f32 1.0, %v3732
        %v3734 = vrcp.pop %v3731
        %v3735 = vmul.f32 1.0, %v3734
        %v3736 = vxor.u32 %v3718, 2147483648
        %v3737 = vxor.u32 %v3719, 2147483648
        %v3738 = vmul.f32 %v3736, 1.442695
        %v3739 = vpow.pop %v3738
        %v3740 = vmul.f32 %v3737, 1.442695
        %v3741 = vpow.pop %v3740
        %v3742 = vadd.f32 %v3739, 1.0
        %v3743 = vadd.f32 %v3741, 1.0
        %v3744 = vrcp.pop %v3742
        %v3745 = vmul.f32 1.0, %v3744
        %v3746 = vrcp.pop %v3743
        %v3747 = vmul.f32 1.0, %v3746
        %v3748 = vtanh.pop %v3720
        %v3749 = vtanh.pop %v3721
        %v3750 = vxor.u32 %v3722, 2147483648
        %v3751 = vxor.u32 %v3723, 2147483648
        %v3752 = vmul.f32 %v3750, 1.442695
        %v3753 = vpow.pop %v3752
        %v3754 = vmul.f32 %v3751, 1.442695
        %v3755 = vpow.pop %v3754
        %v3756 = vadd.f32 %v3753, 1.0
        %v3757 = vadd.f32 %v3755, 1.0
        %v3758 = vrcp.pop %v3756
        %v3759 = vmul.f32 1.0, %v3758
        %v3760 = vrcp.pop %v3757
        %v3761 = vmul.f32 1.0, %v3760
        %v3764 = vrot.slane %v3514, 7
        %v3765 = vrot.slane %v3515, 7
        %v3768 = vmul.f32 %v3745, %v3764
        %v3769 = vmul.f32 %v3747, %v3765
        %v3770 = vmul.f32 %v3733, %v3748
        %v3771 = vmul.f32 %v3735, %v3749
        %v3772 = vadd.f32 %v3768, %v3770
        %v3773 = vadd.f32 %v3769, %v3771
        %v3774 = vtanh.pop %v3772
        %v3775 = vtanh.pop %v3773
        %v3776 = vmul.f32 %v3759, %v3774
        %v3777 = vmul.f32 %v3761, %v3775
        %v3778 = vpack.c.bf16 %v3776, %v3776
        %v3779 = vpack.c.bf16 %v3777, %v3777
        %v3781 = vshrl.u32 %v3778, 16
        %v3783 = vrot.slane %v3781, 1
        %v3785 = vshrl.u32 %v3779, 16
        %v3787 = vrot.slane %v3785, 1
        %3790 = vmatprep.subr.bf16.mxu0 %v2533
        %3791 = vmatpush1.bf16.msra.mxu0 %v2532
        %3792 = vmatprep.subr.bf16.mxu0 %v2541
        %3793 = vmatpush1.bf16.msra.mxu0 %v2540
        %3794 = vmatprep.subr.bf16.mxu0 %v2549
        %3795 = vmatpush1.bf16.msra.mxu0 %v2548
        %3796 = vmatprep.subr.bf16.mxu0 %v2557
        %3797 = vmatpush1.bf16.msra.mxu0 %v2556
        %3798 = vmatprep.subr.bf16.mxu0 %v2565
        %3799 = vmatpush1.bf16.msra.mxu0 %v2564
        %3800 = vmatprep.subr.bf16.mxu0 %v2573
        %3801 = vmatpush1.bf16.msra.mxu0 %v2572
        %3802 = vmatprep.subr.bf16.mxu0 %v2581
        %3803 = vmatpush1.bf16.msra.mxu0 %v2580
        %3804 = vmatprep.subr.bf16.mxu0 %v2589
        %3805 = vmatpush1.bf16.msra.mxu0 %v2588
        %3806 = vmatprep.subr.bf16.mxu0 %v2597
        %3807 = vmatpush1.bf16.msra.mxu0 %v2596
        %3808 = vmatprep.subr.bf16.mxu0 %v2605
        %3809 = vmatpush1.bf16.msra.mxu0 %v2604
        %3810 = vmatprep.subr.bf16.mxu0 %v2613
        %3811 = vmatpush1.bf16.msra.mxu0 %v2612
        %3812 = vmatprep.subr.bf16.mxu0 %v2621
        %3813 = vmatpush1.bf16.msra.mxu0 %v2620
        %3814 = vmatprep.subr.bf16.mxu0 %v2629
        %3815 = vmatpush1.bf16.msra.mxu0 %v2628
        %3816 = vmatprep.subr.bf16.mxu0 %v2637
        %3817 = vmatpush1.bf16.msra.mxu0 %v2636
        %3818 = vmatprep.subr.bf16.mxu0 %v2645
        %3819 = vmatpush1.bf16.msra.mxu0 %v2644
        %3820 = vmatprep.subr.bf16.mxu0 %v2653
        %3821 = vmatpush1.bf16.msra.mxu0 %v2652
        %3822 = vmatprep.mubr.bf16.mxu0 %v3787
        %3823 = vmatmul.mubr.bf16.gmra.mrb[0].mxu0 %v3783
        %v3824 = vpop.f32.mrb[0].mxu0
        %v3825 = vadd.f32 0.0, %v3824
        %v3826 = vpop.f32.mrb[0].mxu0
        %v3827 = vadd.f32 0.0, %v3826
        %v3828 = vpop.f32.mrb[0].mxu0
        %v3829 = vpop.f32.mrb[0].mxu0
        %3830 = vdwg.mxu0
        %3831 = vmatprep.subr.bf16.mxu0 %v2535
        %3832 = vmatpush1.bf16.msra.mxu0 %v2534
        %3833 = vmatprep.subr.bf16.mxu0 %v2543
        %3834 = vmatpush1.bf16.msra.mxu0 %v2542
        %3835 = vmatprep.subr.bf16.mxu0 %v2551
        %3836 = vmatpush1.bf16.msra.mxu0 %v2550
        %3837 = vmatprep.subr.bf16.mxu0 %v2559
        %3838 = vmatpush1.bf16.msra.mxu0 %v2558
        %3839 = vmatprep.subr.bf16.mxu0 %v2567
        %3840 = vmatpush1.bf16.msra.mxu0 %v2566
        %3841 = vmatprep.subr.bf16.mxu0 %v2575
        %3842 = vmatpush1.bf16.msra.mxu0 %v2574
        %3843 = vmatprep.subr.bf16.mxu0 %v2583
        %3844 = vmatpush1.bf16.msra.mxu0 %v2582
        %3845 = vmatprep.subr.bf16.mxu0 %v2591
        %3846 = vmatpush1.bf16.msra.mxu0 %v2590
        %3847 = vmatprep.subr.bf16.mxu0 %v2599
        %3848 = vmatpush1.bf16.msra.mxu0 %v2598
        %3849 = vmatprep.subr.bf16.mxu0 %v2607
        %3850 = vmatpush1.bf16.msra.mxu0 %v2606
        %3851 = vmatprep.subr.bf16.mxu0 %v2615
        %3852 = vmatpush1.bf16.msra.mxu0 %v2614
        %3853 = vmatprep.subr.bf16.mxu0 %v2623
        %3854 = vmatpush1.bf16.msra.mxu0 %v2622
        %3855 = vmatprep.subr.bf16.mxu0 %v2631
        %3856 = vmatpush1.bf16.msra.mxu0 %v2630
        %3857 = vmatprep.subr.bf16.mxu0 %v2639
        %3858 = vmatpush1.bf16.msra.mxu0 %v2638
        %3859 = vmatprep.subr.bf16.mxu0 %v2647
        %3860 = vmatpush1.bf16.msra.mxu0 %v2646
        %3861 = vmatprep.subr.bf16.mxu0 %v2655
        %3862 = vmatpush1.bf16.msra.mxu0 %v2654
        %3863 = vmatprep.mubr.bf16.mxu0 %v3787
        %3864 = vmatmul.mubr.bf16.gmra.mrb[0].mxu0 %v3783
        %v3865 = vpop.f32.mrb[0].mxu0
        %v3866 = vadd.f32 0.0, %v3865
        %v3867 = vpop.f32.mrb[0].mxu0
        %v3868 = vadd.f32 0.0, %v3867
        %v3869 = vpop.f32.mrb[0].mxu0
        %v3870 = vpop.f32.mrb[0].mxu0
        %3871 = vdwg.mxu0
        %3872 = vmatprep.subr.bf16.mxu0 %v2537
        %3873 = vmatpush1.bf16.msra.mxu0 %v2536
        %3874 = vmatprep.subr.bf16.mxu0 %v2545
        %3875 = vmatpush1.bf16.msra.mxu0 %v2544
        %3876 = vmatprep.subr.bf16.mxu0 %v2553
        %3877 = vmatpush1.bf16.msra.mxu0 %v2552
        %3878 = vmatprep.subr.bf16.mxu0 %v2561
        %3879 = vmatpush1.bf16.msra.mxu0 %v2560
        %3880 = vmatprep.subr.bf16.mxu0 %v2569
        %3881 = vmatpush1.bf16.msra.mxu0 %v2568
        %3882 = vmatprep.subr.bf16.mxu0 %v2577
        %3883 = vmatpush1.bf16.msra.mxu0 %v2576
        %3884 = vmatprep.subr.bf16.mxu0 %v2585
        %3885 = vmatpush1.bf16.msra.mxu0 %v2584
        %3886 = vmatprep.subr.bf16.mxu0 %v2593
        %3887 = vmatpush1.bf16.msra.mxu0 %v2592
        %3888 = vmatprep.subr.bf16.mxu0 %v2601
        %3889 = vmatpush1.bf16.msra.mxu0 %v2600
        %3890 = vmatprep.subr.bf16.mxu0 %v2609
        %3891 = vmatpush1.bf16.msra.mxu0 %v2608
        %3892 = vmatprep.subr.bf16.mxu0 %v2617
        %3893 = vmatpush1.bf16.msra.mxu0 %v2616
        %3894 = vmatprep.subr.bf16.mxu0 %v2625
        %3895 = vmatpush1.bf16.msra.mxu0 %v2624
        %3896 = vmatprep.subr.bf16.mxu0 %v2633
        %3897 = vmatpush1.bf16.msra.mxu0 %v2632
        %3898 = vmatprep.subr.bf16.mxu0 %v2641
        %3899 = vmatpush1.bf16.msra.mxu0 %v2640
        %3900 = vmatprep.subr.bf16.mxu0 %v2649
        %3901 = vmatpush1.bf16.msra.mxu0 %v2648
        %3902 = vmatprep.subr.bf16.mxu0 %v2657
        %3903 = vmatpush1.bf16.msra.mxu0 %v2656
        %3904 = vmatprep.mubr.bf16.mxu0 %v3787
        %3905 = vmatmul.mubr.bf16.gmra.mrb[0].mxu0 %v3783
        %v3906 = vpop.f32.mrb[0].mxu0
        %v3907 = vadd.f32 0.0, %v3906
        %v3908 = vpop.f32.mrb[0].mxu0
        %v3909 = vadd.f32 0.0, %v3908
        %v3910 = vpop.f32.mrb[0].mxu0
        %v3911 = vpop.f32.mrb[0].mxu0
        %3912 = vdwg.mxu0
        %3913 = vmatprep.subr.bf16.mxu0 %v2539
        %3914 = vmatpush1.bf16.msra.mxu0 %v2538
        %3915 = vmatprep.subr.bf16.mxu0 %v2547
        %3916 = vmatpush1.bf16.msra.mxu0 %v2546
        %3917 = vmatprep.subr.bf16.mxu0 %v2555
        %3918 = vmatpush1.bf16.msra.mxu0 %v2554
        %3919 = vmatprep.subr.bf16.mxu0 %v2563
        %3920 = vmatpush1.bf16.msra.mxu0 %v2562
        %3921 = vmatprep.subr.bf16.mxu0 %v2571
        %3922 = vmatpush1.bf16.msra.mxu0 %v2570
        %3923 = vmatprep.subr.bf16.mxu0 %v2579
        %3924 = vmatpush1.bf16.msra.mxu0 %v2578
        %3925 = vmatprep.subr.bf16.mxu0 %v2587
        %3926 = vmatpush1.bf16.msra.mxu0 %v2586
        %3927 = vmatprep.subr.bf16.mxu0 %v2595
        %3928 = vmatpush1.bf16.msra.mxu0 %v2594
        %3929 = vmatprep.subr.bf16.mxu0 %v2603
        %3930 = vmatpush1.bf16.msra.mxu0 %v2602
        %3931 = vmatprep.subr.bf16.mxu0 %v2611
        %3932 = vmatpush1.bf16.msra.mxu0 %v2610
        %3933 = vmatprep.subr.bf16.mxu0 %v2619
        %3934 = vmatpush1.bf16.msra.mxu0 %v2618
        %3935 = vmatprep.subr.bf16.mxu0 %v2627
        %3936 = vmatpush1.bf16.msra.mxu0 %v2626
        %3937 = vmatprep.subr.bf16.mxu0 %v2635
        %3938 = vmatpush1.bf16.msra.mxu0 %v2634
        %3939 = vmatprep.subr.bf16.mxu0 %v2643
        %3940 = vmatpush1.bf16.msra.mxu0 %v2642
        %3941 = vmatprep.subr.bf16.mxu0 %v2651
        %3942 = vmatpush1.bf16.msra.mxu0 %v2650
        %3943 = vmatprep.subr.bf16.mxu0 %v2659
        %3944 = vmatpush1.bf16.msra.mxu0 %v2658
        %3945 = vmatprep.mubr.bf16.mxu0 %v3787
        %3946 = vmatmul.mubr.bf16.gmra.mrb[0].mxu0 %v3783
        %v3947 = vpop.f32.mrb[0].mxu0
        %v3948 = vadd.f32 0.0, %v3947
        %v3949 = vpop.f32.mrb[0].mxu0
        %v3950 = vadd.f32 0.0, %v3949
        %v3951 = vpop.f32.mrb[0].mxu0
        %v3952 = vpop.f32.mrb[0].mxu0
        %3953 = vdwg.mxu0
        %v3962 = vrot.slane %v3825, 4
        %v3963 = vrot.slane %v3827, 4
        %v3964 = vrot.slane %v3866, 4
        %v3965 = vrot.slane %v3868, 4
        %v3966 = vrot.slane %v3907, 4
        %v3967 = vrot.slane %v3909, 4
        %v3968 = vrot.slane %v3948, 4
        %v3969 = vrot.slane %v3950, 4
        %v3978 = vadd.f32 %v1768, %v3962
        %v3979 = vadd.f32 %v1770, %v3963
        %v3980 = vadd.f32 %v1850, %v3964
        %v3981 = vadd.f32 %v1852, %v3965
        %v3982 = vadd.f32 %v1932, %v3966
        %v3983 = vadd.f32 %v1934, %v3967
        %v3984 = vadd.f32 %v2014, %v3968
        %v3985 = vadd.f32 %v2016, %v3969
        %v3986 = vxor.u32 %v3978, 2147483648
        %v3987 = vxor.u32 %v3979, 2147483648
        %v3988 = vmul.f32 %v3986, 1.442695
        %v3989 = vpow.pop %v3988
        %v3990 = vmul.f32 %v3987, 1.442695
        %v3991 = vpow.pop %v3990
        %v3992 = vadd.f32 %v3989, 1.0
        %v3993 = vadd.f32 %v3991, 1.0
        %v3994 = vrcp.pop %v3992
        %v3995 = vmul.f32 1.0, %v3994
        %v3996 = vrcp.pop %v3993
        %v3997 = vmul.f32 1.0, %v3996
        %v3998 = vxor.u32 %v3980, 2147483648
        %v3999 = vxor.u32 %v3981, 2147483648
        %v4000 = vmul.f32 %v3998, 1.442695
        %v4001 = vpow.pop %v4000
        %v4002 = vmul.f32 %v3999, 1.442695
        %v4003 = vpow.pop %v4002
        %v4004 = vadd.f32 %v4001, 1.0
        %v4005 = vadd.f32 %v4003, 1.0
        %v4006 = vrcp.pop %v4004
        %v4007 = vmul.f32 1.0, %v4006
        %v4008 = vrcp.pop %v4005
        %v4009 = vmul.f32 1.0, %v4008
        %v4010 = vtanh.pop %v3982
        %v4011 = vtanh.pop %v3983
        %v4012 = vxor.u32 %v3984, 2147483648
        %v4013 = vxor.u32 %v3985, 2147483648
        %v4014 = vmul.f32 %v4012, 1.442695
        %v4015 = vpow.pop %v4014
        %v4016 = vmul.f32 %v4013, 1.442695
        %v4017 = vpow.pop %v4016
        %v4018 = vadd.f32 %v4015, 1.0
        %v4019 = vadd.f32 %v4017, 1.0
        %v4020 = vrcp.pop %v4018
        %v4021 = vmul.f32 1.0, %v4020
        %v4022 = vrcp.pop %v4019
        %v4023 = vmul.f32 1.0, %v4022
        %v4026 = vrot.slane %v3772, 7
        %v4027 = vrot.slane %v3773, 7
        %v4030 = vmul.f32 %v4007, %v4026
        %v4031 = vmul.f32 %v4009, %v4027
        %v4032 = vmul.f32 %v3995, %v4010
        %v4033 = vmul.f32 %v3997, %v4011
        %v4034 = vadd.f32 %v4030, %v4032
        %v4035 = vadd.f32 %v4031, %v4033
        %v4036 = vtanh.pop %v4034
        %v4037 = vtanh.pop %v4035
        %v4038 = vmul.f32 %v4021, %v4036
        %v4039 = vmul.f32 %v4023, %v4037
        %v4040 = vpack.c.bf16 %v4038, %v4038
        %v4041 = vpack.c.bf16 %v4039, %v4039
        %v4044 = vrot.slane %v4040, 2
        %v4045 = vrot.slane %v4041, 2
        %4048 = vmatprep.subr.bf16.mxu0 %v2533
        %4049 = vmatpush1.bf16.msra.mxu0 %v2532
        %4050 = vmatprep.subr.bf16.mxu0 %v2541
        %4051 = vmatpush1.bf16.msra.mxu0 %v2540
        %4052 = vmatprep.subr.bf16.mxu0 %v2549
        %4053 = vmatpush1.bf16.msra.mxu0 %v2548
        %4054 = vmatprep.subr.bf16.mxu0 %v2557
        %4055 = vmatpush1.bf16.msra.mxu0 %v2556
        %4056 = vmatprep.subr.bf16.mxu0 %v2565
        %4057 = vmatpush1.bf16.msra.mxu0 %v2564
        %4058 = vmatprep.subr.bf16.mxu0 %v2573
        %4059 = vmatpush1.bf16.msra.mxu0 %v2572
        %4060 = vmatprep.subr.bf16.mxu0 %v2581
        %4061 = vmatpush1.bf16.msra.mxu0 %v2580
        %4062 = vmatprep.subr.bf16.mxu0 %v2589
        %4063 = vmatpush1.bf16.msra.mxu0 %v2588
        %4064 = vmatprep.subr.bf16.mxu0 %v2597
        %4065 = vmatpush1.bf16.msra.mxu0 %v2596
        %4066 = vmatprep.subr.bf16.mxu0 %v2605
        %4067 = vmatpush1.bf16.msra.mxu0 %v2604
        %4068 = vmatprep.subr.bf16.mxu0 %v2613
        %4069 = vmatpush1.bf16.msra.mxu0 %v2612
        %4070 = vmatprep.subr.bf16.mxu0 %v2621
        %4071 = vmatpush1.bf16.msra.mxu0 %v2620
        %4072 = vmatprep.subr.bf16.mxu0 %v2629
        %4073 = vmatpush1.bf16.msra.mxu0 %v2628
        %4074 = vmatprep.subr.bf16.mxu0 %v2637
        %4075 = vmatpush1.bf16.msra.mxu0 %v2636
        %4076 = vmatprep.subr.bf16.mxu0 %v2645
        %4077 = vmatpush1.bf16.msra.mxu0 %v2644
        %4078 = vmatprep.subr.bf16.mxu0 %v2653
        %4079 = vmatpush1.bf16.msra.mxu0 %v2652
        %4080 = vmatprep.mubr.bf16.mxu0 %v4045
        %4081 = vmatmul.mubr.bf16.gmra.mrb[0].mxu0 %v4044
        %v4082 = vpop.f32.mrb[0].mxu0
        %v4083 = vadd.f32 0.0, %v4082
        %v4084 = vpop.f32.mrb[0].mxu0
        %v4085 = vadd.f32 0.0, %v4084
        %v4086 = vpop.f32.mrb[0].mxu0
        %v4087 = vpop.f32.mrb[0].mxu0
        %4088 = vdwg.mxu0
        %4089 = vmatprep.subr.bf16.mxu0 %v2535
        %4090 = vmatpush1.bf16.msra.mxu0 %v2534
        %4091 = vmatprep.subr.bf16.mxu0 %v2543
        %4092 = vmatpush1.bf16.msra.mxu0 %v2542
        %4093 = vmatprep.subr.bf16.mxu0 %v2551
        %4094 = vmatpush1.bf16.msra.mxu0 %v2550
        %4095 = vmatprep.subr.bf16.mxu0 %v2559
        %4096 = vmatpush1.bf16.msra.mxu0 %v2558
        %4097 = vmatprep.subr.bf16.mxu0 %v2567
        %4098 = vmatpush1.bf16.msra.mxu0 %v2566
        %4099 = vmatprep.subr.bf16.mxu0 %v2575
        %4100 = vmatpush1.bf16.msra.mxu0 %v2574
        %4101 = vmatprep.subr.bf16.mxu0 %v2583
        %4102 = vmatpush1.bf16.msra.mxu0 %v2582
        %4103 = vmatprep.subr.bf16.mxu0 %v2591
        %4104 = vmatpush1.bf16.msra.mxu0 %v2590
        %4105 = vmatprep.subr.bf16.mxu0 %v2599
        %4106 = vmatpush1.bf16.msra.mxu0 %v2598
        %4107 = vmatprep.subr.bf16.mxu0 %v2607
        %4108 = vmatpush1.bf16.msra.mxu0 %v2606
        %4109 = vmatprep.subr.bf16.mxu0 %v2615
        %4110 = vmatpush1.bf16.msra.mxu0 %v2614
        %4111 = vmatprep.subr.bf16.mxu0 %v2623
        %4112 = vmatpush1.bf16.msra.mxu0 %v2622
        %4113 = vmatprep.subr.bf16.mxu0 %v2631
        %4114 = vmatpush1.bf16.msra.mxu0 %v2630
        %4115 = vmatprep.subr.bf16.mxu0 %v2639
        %4116 = vmatpush1.bf16.msra.mxu0 %v2638
        %4117 = vmatprep.subr.bf16.mxu0 %v2647
        %4118 = vmatpush1.bf16.msra.mxu0 %v2646
        %4119 = vmatprep.subr.bf16.mxu0 %v2655
        %4120 = vmatpush1.bf16.msra.mxu0 %v2654
        %4121 = vmatprep.mubr.bf16.mxu0 %v4045
        %4122 = vmatmul.mubr.bf16.gmra.mrb[0].mxu0 %v4044
        %v4123 = vpop.f32.mrb[0].mxu0
        %v4124 = vadd.f32 0.0, %v4123
        %v4125 = vpop.f32.mrb[0].mxu0
        %v4126 = vadd.f32 0.0, %v4125
        %v4127 = vpop.f32.mrb[0].mxu0
        %v4128 = vpop.f32.mrb[0].mxu0
        %4129 = vdwg.mxu0
        %4130 = vmatprep.subr.bf16.mxu0 %v2537
        %4131 = vmatpush1.bf16.msra.mxu0 %v2536
        %4132 = vmatprep.subr.bf16.mxu0 %v2545
        %4133 = vmatpush1.bf16.msra.mxu0 %v2544
        %4134 = vmatprep.subr.bf16.mxu0 %v2553
        %4135 = vmatpush1.bf16.msra.mxu0 %v2552
        %4136 = vmatprep.subr.bf16.mxu0 %v2561
        %4137 = vmatpush1.bf16.msra.mxu0 %v2560
        %4138 = vmatprep.subr.bf16.mxu0 %v2569
        %4139 = vmatpush1.bf16.msra.mxu0 %v2568
        %4140 = vmatprep.subr.bf16.mxu0 %v2577
        %4141 = vmatpush1.bf16.msra.mxu0 %v2576
        %4142 = vmatprep.subr.bf16.mxu0 %v2585
        %4143 = vmatpush1.bf16.msra.mxu0 %v2584
        %4144 = vmatprep.subr.bf16.mxu0 %v2593
        %4145 = vmatpush1.bf16.msra.mxu0 %v2592
        %4146 = vmatprep.subr.bf16.mxu0 %v2601
        %4147 = vmatpush1.bf16.msra.mxu0 %v2600
        %4148 = vmatprep.subr.bf16.mxu0 %v2609
        %4149 = vmatpush1.bf16.msra.mxu0 %v2608
        %4150 = vmatprep.subr.bf16.mxu0 %v2617
        %4151 = vmatpush1.bf16.msra.mxu0 %v2616
        %4152 = vmatprep.subr.bf16.mxu0 %v2625
        %4153 = vmatpush1.bf16.msra.mxu0 %v2624
        %4154 = vmatprep.subr.bf16.mxu0 %v2633
        %4155 = vmatpush1.bf16.msra.mxu0 %v2632
        %4156 = vmatprep.subr.bf16.mxu0 %v2641
        %4157 = vmatpush1.bf16.msra.mxu0 %v2640
        %4158 = vmatprep.subr.bf16.mxu0 %v2649
        %4159 = vmatpush1.bf16.msra.mxu0 %v2648
        %4160 = vmatprep.subr.bf16.mxu0 %v2657
        %4161 = vmatpush1.bf16.msra.mxu0 %v2656
        %4162 = vmatprep.mubr.bf16.mxu0 %v4045
        %4163 = vmatmul.mubr.bf16.gmra.mrb[0].mxu0 %v4044
        %v4164 = vpop.f32.mrb[0].mxu0
        %v4165 = vadd.f32 0.0, %v4164
        %v4166 = vpop.f32.mrb[0].mxu0
        %v4167 = vadd.f32 0.0, %v4166
        %v4168 = vpop.f32.mrb[0].mxu0
        %v4169 = vpop.f32.mrb[0].mxu0
        %4170 = vdwg.mxu0
        %4171 = vmatprep.subr.bf16.mxu0 %v2539
        %4172 = vmatpush1.bf16.msra.mxu0 %v2538
        %4173 = vmatprep.subr.bf16.mxu0 %v2547
        %4174 = vmatpush1.bf16.msra.mxu0 %v2546
        %4175 = vmatprep.subr.bf16.mxu0 %v2555
        %4176 = vmatpush1.bf16.msra.mxu0 %v2554
        %4177 = vmatprep.subr.bf16.mxu0 %v2563
        %4178 = vmatpush1.bf16.msra.mxu0 %v2562
        %4179 = vmatprep.subr.bf16.mxu0 %v2571
        %4180 = vmatpush1.bf16.msra.mxu0 %v2570
        %4181 = vmatprep.subr.bf16.mxu0 %v2579
        %4182 = vmatpush1.bf16.msra.mxu0 %v2578
        %4183 = vmatprep.subr.bf16.mxu0 %v2587
        %4184 = vmatpush1.bf16.msra.mxu0 %v2586
        %4185 = vmatprep.subr.bf16.mxu0 %v2595
        %4186 = vmatpush1.bf16.msra.mxu0 %v2594
        %4187 = vmatprep.subr.bf16.mxu0 %v2603
        %4188 = vmatpush1.bf16.msra.mxu0 %v2602
        %4189 = vmatprep.subr.bf16.mxu0 %v2611
        %4190 = vmatpush1.bf16.msra.mxu0 %v2610
        %4191 = vmatprep.subr.bf16.mxu0 %v2619
        %4192 = vmatpush1.bf16.msra.mxu0 %v2618
        %4193 = vmatprep.subr.bf16.mxu0 %v2627
        %4194 = vmatpush1.bf16.msra.mxu0 %v2626
        %4195 = vmatprep.subr.bf16.mxu0 %v2635
        %4196 = vmatpush1.bf16.msra.mxu0 %v2634
        %4197 = vmatprep.subr.bf16.mxu0 %v2643
        %4198 = vmatpush1.bf16.msra.mxu0 %v2642
        %4199 = vmatprep.subr.bf16.mxu0 %v2651
        %4200 = vmatpush1.bf16.msra.mxu0 %v2650
        %4201 = vmatprep.subr.bf16.mxu0 %v2659
        %4202 = vmatpush1.bf16.msra.mxu0 %v2658
        %4203 = vmatprep.mubr.bf16.mxu0 %v4045
        %4204 = vmatmul.mubr.bf16.gmra.mrb[0].mxu0 %v4044
        %v4205 = vpop.f32.mrb[0].mxu0
        %v4206 = vadd.f32 0.0, %v4205
        %v4207 = vpop.f32.mrb[0].mxu0
        %v4208 = vadd.f32 0.0, %v4207
        %v4209 = vpop.f32.mrb[0].mxu0
        %v4210 = vpop.f32.mrb[0].mxu0
        %4211 = vdwg.mxu0
        %v4220 = vrot.slane %v4083, 3
        %v4221 = vrot.slane %v4085, 3
        %v4222 = vrot.slane %v4124, 3
        %v4223 = vrot.slane %v4126, 3
        %v4224 = vrot.slane %v4165, 3
        %v4225 = vrot.slane %v4167, 3
        %v4226 = vrot.slane %v4206, 3
        %v4227 = vrot.slane %v4208, 3
        %v4236 = vadd.f32 %v1768, %v4220
        %v4237 = vadd.f32 %v1770, %v4221
        %v4238 = vadd.f32 %v1850, %v4222
        %v4239 = vadd.f32 %v1852, %v4223
        %v4240 = vadd.f32 %v1932, %v4224
        %v4241 = vadd.f32 %v1934, %v4225
        %v4242 = vadd.f32 %v2014, %v4226
        %v4243 = vadd.f32 %v2016, %v4227
        %v4244 = vxor.u32 %v4236, 2147483648
        %v4245 = vxor.u32 %v4237, 2147483648
        %v4246 = vmul.f32 %v4244, 1.442695
        %v4247 = vpow.pop %v4246
        %v4248 = vmul.f32 %v4245, 1.442695
        %v4249 = vpow.pop %v4248
        %v4250 = vadd.f32 %v4247, 1.0
        %v4251 = vadd.f32 %v4249, 1.0
        %v4252 = vrcp.pop %v4250
        %v4253 = vmul.f32 1.0, %v4252
        %v4254 = vrcp.pop %v4251
        %v4255 = vmul.f32 1.0, %v4254
        %v4256 = vxor.u32 %v4238, 2147483648
        %v4257 = vxor.u32 %v4239, 2147483648
        %v4258 = vmul.f32 %v4256, 1.442695
        %v4259 = vpow.pop %v4258
        %v4260 = vmul.f32 %v4257, 1.442695
        %v4261 = vpow.pop %v4260
        %v4262 = vadd.f32 %v4259, 1.0
        %v4263 = vadd.f32 %v4261, 1.0
        %v4264 = vrcp.pop %v4262
        %v4265 = vmul.f32 1.0, %v4264
        %v4266 = vrcp.pop %v4263
        %v4267 = vmul.f32 1.0, %v4266
        %v4268 = vtanh.pop %v4240
        %v4269 = vtanh.pop %v4241
        %v4270 = vxor.u32 %v4242, 2147483648
        %v4271 = vxor.u32 %v4243, 2147483648
        %v4272 = vmul.f32 %v4270, 1.442695
        %v4273 = vpow.pop %v4272
        %v4274 = vmul.f32 %v4271, 1.442695
        %v4275 = vpow.pop %v4274
        %v4276 = vadd.f32 %v4273, 1.0
        %v4277 = vadd.f32 %v4275, 1.0
        %v4278 = vrcp.pop %v4276
        %v4279 = vmul.f32 1.0, %v4278
        %v4280 = vrcp.pop %v4277
        %v4281 = vmul.f32 1.0, %v4280
        %v4284 = vrot.slane %v4034, 7
        %v4285 = vrot.slane %v4035, 7
        %v4288 = vmul.f32 %v4265, %v4284
        %v4289 = vmul.f32 %v4267, %v4285
        %v4290 = vmul.f32 %v4253, %v4268
        %v4291 = vmul.f32 %v4255, %v4269
        %v4292 = vadd.f32 %v4288, %v4290
        %v4293 = vadd.f32 %v4289, %v4291
        %v4294 = vtanh.pop %v4292
        %v4295 = vtanh.pop %v4293
        %v4296 = vmul.f32 %v4279, %v4294
        %v4297 = vmul.f32 %v4281, %v4295
        %v4298 = vpack.c.bf16 %v4296, %v4296
        %v4299 = vpack.c.bf16 %v4297, %v4297
        %v4301 = vshrl.u32 %v4298, 16
        %v4303 = vrot.slane %v4301, 2
        %v4305 = vshrl.u32 %v4299, 16
        %v4307 = vrot.slane %v4305, 2
        %4310 = vmatprep.subr.bf16.mxu0 %v2533
        %4311 = vmatpush1.bf16.msra.mxu0 %v2532
        %4312 = vmatprep.subr.bf16.mxu0 %v2541
        %4313 = vmatpush1.bf16.msra.mxu0 %v2540
        %4314 = vmatprep.subr.bf16.mxu0 %v2549
        %4315 = vmatpush1.bf16.msra.mxu0 %v2548
        %4316 = vmatprep.subr.bf16.mxu0 %v2557
        %4317 = vmatpush1.bf16.msra.mxu0 %v2556
        %4318 = vmatprep.subr.bf16.mxu0 %v2565
        %4319 = vmatpush1.bf16.msra.mxu0 %v2564
        %4320 = vmatprep.subr.bf16.mxu0 %v2573
        %4321 = vmatpush1.bf16.msra.mxu0 %v2572
        %4322 = vmatprep.subr.bf16.mxu0 %v2581
        %4323 = vmatpush1.bf16.msra.mxu0 %v2580
        %4324 = vmatprep.subr.bf16.mxu0 %v2589
        %4325 = vmatpush1.bf16.msra.mxu0 %v2588
        %4326 = vmatprep.subr.bf16.mxu0 %v2597
        %4327 = vmatpush1.bf16.msra.mxu0 %v2596
        %4328 = vmatprep.subr.bf16.mxu0 %v2605
        %4329 = vmatpush1.bf16.msra.mxu0 %v2604
        %4330 = vmatprep.subr.bf16.mxu0 %v2613
        %4331 = vmatpush1.bf16.msra.mxu0 %v2612
        %4332 = vmatprep.subr.bf16.mxu0 %v2621
        %4333 = vmatpush1.bf16.msra.mxu0 %v2620
        %4334 = vmatprep.subr.bf16.mxu0 %v2629
        %4335 = vmatpush1.bf16.msra.mxu0 %v2628
        %4336 = vmatprep.subr.bf16.mxu0 %v2637
        %4337 = vmatpush1.bf16.msra.mxu0 %v2636
        %4338 = vmatprep.subr.bf16.mxu0 %v2645
        %4339 = vmatpush1.bf16.msra.mxu0 %v2644
        %4340 = vmatprep.subr.bf16.mxu0 %v2653
        %4341 = vmatpush1.bf16.msra.mxu0 %v2652
        %4342 = vmatprep.mubr.bf16.mxu0 %v4307
        %4343 = vmatmul.mubr.bf16.gmra.mrb[0].mxu0 %v4303
        %v4344 = vpop.f32.mrb[0].mxu0
        %v4345 = vadd.f32 0.0, %v4344
        %v4346 = vpop.f32.mrb[0].mxu0
        %v4347 = vadd.f32 0.0, %v4346
        %v4348 = vpop.f32.mrb[0].mxu0
        %v4349 = vpop.f32.mrb[0].mxu0
        %4350 = vdwg.mxu0
        %4351 = vmatprep.subr.bf16.mxu0 %v2535
        %4352 = vmatpush1.bf16.msra.mxu0 %v2534
        %4353 = vmatprep.subr.bf16.mxu0 %v2543
        %4354 = vmatpush1.bf16.msra.mxu0 %v2542
        %4355 = vmatprep.subr.bf16.mxu0 %v2551
        %4356 = vmatpush1.bf16.msra.mxu0 %v2550
        %4357 = vmatprep.subr.bf16.mxu0 %v2559
        %4358 = vmatpush1.bf16.msra.mxu0 %v2558
        %4359 = vmatprep.subr.bf16.mxu0 %v2567
        %4360 = vmatpush1.bf16.msra.mxu0 %v2566
        %4361 = vmatprep.subr.bf16.mxu0 %v2575
        %4362 = vmatpush1.bf16.msra.mxu0 %v2574
        %4363 = vmatprep.subr.bf16.mxu0 %v2583
        %4364 = vmatpush1.bf16.msra.mxu0 %v2582
        %4365 = vmatprep.subr.bf16.mxu0 %v2591
        %4366 = vmatpush1.bf16.msra.mxu0 %v2590
        %4367 = vmatprep.subr.bf16.mxu0 %v2599
        %4368 = vmatpush1.bf16.msra.mxu0 %v2598
        %4369 = vmatprep.subr.bf16.mxu0 %v2607
        %4370 = vmatpush1.bf16.msra.mxu0 %v2606
        %4371 = vmatprep.subr.bf16.mxu0 %v2615
        %4372 = vmatpush1.bf16.msra.mxu0 %v2614
        %4373 = vmatprep.subr.bf16.mxu0 %v2623
        %4374 = vmatpush1.bf16.msra.mxu0 %v2622
        %4375 = vmatprep.subr.bf16.mxu0 %v2631
        %4376 = vmatpush1.bf16.msra.mxu0 %v2630
        %4377 = vmatprep.subr.bf16.mxu0 %v2639
        %4378 = vmatpush1.bf16.msra.mxu0 %v2638
        %4379 = vmatprep.subr.bf16.mxu0 %v2647
        %4380 = vmatpush1.bf16.msra.mxu0 %v2646
        %4381 = vmatprep.subr.bf16.mxu0 %v2655
        %4382 = vmatpush1.bf16.msra.mxu0 %v2654
        %4383 = vmatprep.mubr.bf16.mxu0 %v4307
        %4384 = vmatmul.mubr.bf16.gmra.mrb[0].mxu0 %v4303
        %v4385 = vpop.f32.mrb[0].mxu0
        %v4386 = vadd.f32 0.0, %v4385
        %v4387 = vpop.f32.mrb[0].mxu0
        %v4388 = vadd.f32 0.0, %v4387
        %v4389 = vpop.f32.mrb[0].mxu0
        %v4390 = vpop.f32.mrb[0].mxu0
        %4391 = vdwg.mxu0
        %4392 = vmatprep.subr.bf16.mxu0 %v2537
        %4393 = vmatpush1.bf16.msra.mxu0 %v2536
        %4394 = vmatprep.subr.bf16.mxu0 %v2545
        %4395 = vmatpush1.bf16.msra.mxu0 %v2544
        %4396 = vmatprep.subr.bf16.mxu0 %v2553
        %4397 = vmatpush1.bf16.msra.mxu0 %v2552
        %4398 = vmatprep.subr.bf16.mxu0 %v2561
        %4399 = vmatpush1.bf16.msra.mxu0 %v2560
        %4400 = vmatprep.subr.bf16.mxu0 %v2569
        %4401 = vmatpush1.bf16.msra.mxu0 %v2568
        %4402 = vmatprep.subr.bf16.mxu0 %v2577
        %4403 = vmatpush1.bf16.msra.mxu0 %v2576
        %4404 = vmatprep.subr.bf16.mxu0 %v2585
        %4405 = vmatpush1.bf16.msra.mxu0 %v2584
        %4406 = vmatprep.subr.bf16.mxu0 %v2593
        %4407 = vmatpush1.bf16.msra.mxu0 %v2592
        %4408 = vmatprep.subr.bf16.mxu0 %v2601
        %4409 = vmatpush1.bf16.msra.mxu0 %v2600
        %4410 = vmatprep.subr.bf16.mxu0 %v2609
        %4411 = vmatpush1.bf16.msra.mxu0 %v2608
        %4412 = vmatprep.subr.bf16.mxu0 %v2617
        %4413 = vmatpush1.bf16.msra.mxu0 %v2616
        %4414 = vmatprep.subr.bf16.mxu0 %v2625
        %4415 = vmatpush1.bf16.msra.mxu0 %v2624
        %4416 = vmatprep.subr.bf16.mxu0 %v2633
        %4417 = vmatpush1.bf16.msra.mxu0 %v2632
        %4418 = vmatprep.subr.bf16.mxu0 %v2641
        %4419 = vmatpush1.bf16.msra.mxu0 %v2640
        %4420 = vmatprep.subr.bf16.mxu0 %v2649
        %4421 = vmatpush1.bf16.msra.mxu0 %v2648
        %4422 = vmatprep.subr.bf16.mxu0 %v2657
        %4423 = vmatpush1.bf16.msra.mxu0 %v2656
        %4424 = vmatprep.mubr.bf16.mxu0 %v4307
        %4425 = vmatmul.mubr.bf16.gmra.mrb[0].mxu0 %v4303
        %v4426 = vpop.f32.mrb[0].mxu0
        %v4427 = vadd.f32 0.0, %v4426
        %v4428 = vpop.f32.mrb[0].mxu0
        %v4429 = vadd.f32 0.0, %v4428
        %v4430 = vpop.f32.mrb[0].mxu0
        %v4431 = vpop.f32.mrb[0].mxu0
        %4432 = vdwg.mxu0
        %4433 = vmatprep.subr.bf16.mxu0 %v2539
        %4434 = vmatpush1.bf16.msra.mxu0 %v2538
        %4435 = vmatprep.subr.bf16.mxu0 %v2547
        %4436 = vmatpush1.bf16.msra.mxu0 %v2546
        %4437 = vmatprep.subr.bf16.mxu0 %v2555
        %4438 = vmatpush1.bf16.msra.mxu0 %v2554
        %4439 = vmatprep.subr.bf16.mxu0 %v2563
        %4440 = vmatpush1.bf16.msra.mxu0 %v2562
        %4441 = vmatprep.subr.bf16.mxu0 %v2571
        %4442 = vmatpush1.bf16.msra.mxu0 %v2570
        %4443 = vmatprep.subr.bf16.mxu0 %v2579
        %4444 = vmatpush1.bf16.msra.mxu0 %v2578
        %4445 = vmatprep.subr.bf16.mxu0 %v2587
        %4446 = vmatpush1.bf16.msra.mxu0 %v2586
        %4447 = vmatprep.subr.bf16.mxu0 %v2595
        %4448 = vmatpush1.bf16.msra.mxu0 %v2594
        %4449 = vmatprep.subr.bf16.mxu0 %v2603
        %4450 = vmatpush1.bf16.msra.mxu0 %v2602
        %4451 = vmatprep.subr.bf16.mxu0 %v2611
        %4452 = vmatpush1.bf16.msra.mxu0 %v2610
        %4453 = vmatprep.subr.bf16.mxu0 %v2619
        %4454 = vmatpush1.bf16.msra.mxu0 %v2618
        %4455 = vmatprep.subr.bf16.mxu0 %v2627
        %4456 = vmatpush1.bf16.msra.mxu0 %v2626
        %4457 = vmatprep.subr.bf16.mxu0 %v2635
        %4458 = vmatpush1.bf16.msra.mxu0 %v2634
        %4459 = vmatprep.subr.bf16.mxu0 %v2643
        %4460 = vmatpush1.bf16.msra.mxu0 %v2642
        %4461 = vmatprep.subr.bf16.mxu0 %v2651
        %4462 = vmatpush1.bf16.msra.mxu0 %v2650
        %4463 = vmatprep.subr.bf16.mxu0 %v2659
        %4464 = vmatpush1.bf16.msra.mxu0 %v2658
        %4465 = vmatprep.mubr.bf16.mxu0 %v4307
        %4466 = vmatmul.mubr.bf16.gmra.mrb[0].mxu0 %v4303
        %v4467 = vpop.f32.mrb[0].mxu0
        %v4468 = vadd.f32 0.0, %v4467
        %v4469 = vpop.f32.mrb[0].mxu0
        %v4470 = vadd.f32 0.0, %v4469
        %v4471 = vpop.f32.mrb[0].mxu0
        %v4472 = vpop.f32.mrb[0].mxu0
        %4473 = vdwg.mxu0
        %v4482 = vrot.slane %v4345, 2
        %v4483 = vrot.slane %v4347, 2
        %v4484 = vrot.slane %v4386, 2
        %v4485 = vrot.slane %v4388, 2
        %v4486 = vrot.slane %v4427, 2
        %v4487 = vrot.slane %v4429, 2
        %v4488 = vrot.slane %v4468, 2
        %v4489 = vrot.slane %v4470, 2
        %v4498 = vadd.f32 %v1768, %v4482
        %v4499 = vadd.f32 %v1770, %v4483
        %v4500 = vadd.f32 %v1850, %v4484
        %v4501 = vadd.f32 %v1852, %v4485
        %v4502 = vadd.f32 %v1932, %v4486
        %v4503 = vadd.f32 %v1934, %v4487
        %v4504 = vadd.f32 %v2014, %v4488
        %v4505 = vadd.f32 %v2016, %v4489
        %v4506 = vxor.u32 %v4498, 2147483648
        %v4507 = vxor.u32 %v4499, 2147483648
        %v4508 = vmul.f32 %v4506, 1.442695
        %v4509 = vpow.pop %v4508
        %v4510 = vmul.f32 %v4507, 1.442695
        %v4511 = vpow.pop %v4510
        %v4512 = vadd.f32 %v4509, 1.0
        %v4513 = vadd.f32 %v4511, 1.0
        %v4514 = vrcp.pop %v4512
        %v4515 = vmul.f32 1.0, %v4514
        %v4516 = vrcp.pop %v4513
        %v4517 = vmul.f32 1.0, %v4516
        %v4518 = vxor.u32 %v4500, 2147483648
        %v4519 = vxor.u32 %v4501, 2147483648
        %v4520 = vmul.f32 %v4518, 1.442695
        %v4521 = vpow.pop %v4520
        %v4522 = vmul.f32 %v4519, 1.442695
        %v4523 = vpow.pop %v4522
        %v4524 = vadd.f32 %v4521, 1.0
        %v4525 = vadd.f32 %v4523, 1.0
        %v4526 = vrcp.pop %v4524
        %v4527 = vmul.f32 1.0, %v4526
        %v4528 = vrcp.pop %v4525
        %v4529 = vmul.f32 1.0, %v4528
        %v4530 = vtanh.pop %v4502
        %v4531 = vtanh.pop %v4503
        %v4532 = vxor.u32 %v4504, 2147483648
        %v4533 = vxor.u32 %v4505, 2147483648
        %v4534 = vmul.f32 %v4532, 1.442695
        %v4535 = vpow.pop %v4534
        %v4536 = vmul.f32 %v4533, 1.442695
        %v4537 = vpow.pop %v4536
        %v4538 = vadd.f32 %v4535, 1.0
        %v4539 = vadd.f32 %v4537, 1.0
        %v4540 = vrcp.pop %v4538
        %v4541 = vmul.f32 1.0, %v4540
        %v4542 = vrcp.pop %v4539
        %v4543 = vmul.f32 1.0, %v4542
        %v4546 = vrot.slane %v4292, 7
        %v4547 = vrot.slane %v4293, 7
        %v4550 = vmul.f32 %v4527, %v4546
        %v4551 = vmul.f32 %v4529, %v4547
        %v4552 = vmul.f32 %v4515, %v4530
        %v4553 = vmul.f32 %v4517, %v4531
        %v4554 = vadd.f32 %v4550, %v4552
        %v4555 = vadd.f32 %v4551, %v4553
        %v4556 = vtanh.pop %v4554
        %v4557 = vtanh.pop %v4555
        %v4558 = vmul.f32 %v4541, %v4556
        %v4559 = vmul.f32 %v4543, %v4557
        %v4560 = vpack.c.bf16 %v4558, %v4558
        %v4561 = vpack.c.bf16 %v4559, %v4559
        %v4564 = vrot.slane %v4560, 3
        %v4565 = vrot.slane %v4561, 3
        %4568 = vmatprep.subr.bf16.mxu0 %v2533
        %4569 = vmatpush1.bf16.msra.mxu0 %v2532
        %4570 = vmatprep.subr.bf16.mxu0 %v2541
        %4571 = vmatpush1.bf16.msra.mxu0 %v2540
        %4572 = vmatprep.subr.bf16.mxu0 %v2549
        %4573 = vmatpush1.bf16.msra.mxu0 %v2548
        %4574 = vmatprep.subr.bf16.mxu0 %v2557
        %4575 = vmatpush1.bf16.msra.mxu0 %v2556
        %4576 = vmatprep.subr.bf16.mxu0 %v2565
        %4577 = vmatpush1.bf16.msra.mxu0 %v2564
        %4578 = vmatprep.subr.bf16.mxu0 %v2573
        %4579 = vmatpush1.bf16.msra.mxu0 %v2572
        %4580 = vmatprep.subr.bf16.mxu0 %v2581
        %4581 = vmatpush1.bf16.msra.mxu0 %v2580
        %4582 = vmatprep.subr.bf16.mxu0 %v2589
        %4583 = vmatpush1.bf16.msra.mxu0 %v2588
        %4584 = vmatprep.subr.bf16.mxu0 %v2597
        %4585 = vmatpush1.bf16.msra.mxu0 %v2596
        %4586 = vmatprep.subr.bf16.mxu0 %v2605
        %4587 = vmatpush1.bf16.msra.mxu0 %v2604
        %4588 = vmatprep.subr.bf16.mxu0 %v2613
        %4589 = vmatpush1.bf16.msra.mxu0 %v2612
        %4590 = vmatprep.subr.bf16.mxu0 %v2621
        %4591 = vmatpush1.bf16.msra.mxu0 %v2620
        %4592 = vmatprep.subr.bf16.mxu0 %v2629
        %4593 = vmatpush1.bf16.msra.mxu0 %v2628
        %4594 = vmatprep.subr.bf16.mxu0 %v2637
        %4595 = vmatpush1.bf16.msra.mxu0 %v2636
        %4596 = vmatprep.subr.bf16.mxu0 %v2645
        %4597 = vmatpush1.bf16.msra.mxu0 %v2644
        %4598 = vmatprep.subr.bf16.mxu0 %v2653
        %4599 = vmatpush1.bf16.msra.mxu0 %v2652
        %4600 = vmatprep.mubr.bf16.mxu0 %v4565
        %4601 = vmatmul.mubr.bf16.gmra.mrb[0].mxu0 %v4564
        %v4602 = vpop.f32.mrb[0].mxu0
        %v4603 = vadd.f32 0.0, %v4602
        %v4604 = vpop.f32.mrb[0].mxu0
        %v4605 = vadd.f32 0.0, %v4604
        %v4606 = vpop.f32.mrb[0].mxu0
        %v4607 = vpop.f32.mrb[0].mxu0
        %4608 = vdwg.mxu0
        %4609 = vmatprep.subr.bf16.mxu0 %v2535
        %4610 = vmatpush1.bf16.msra.mxu0 %v2534
        %4611 = vmatprep.subr.bf16.mxu0 %v2543
        %4612 = vmatpush1.bf16.msra.mxu0 %v2542
        %4613 = vmatprep.subr.bf16.mxu0 %v2551
        %4614 = vmatpush1.bf16.msra.mxu0 %v2550
        %4615 = vmatprep.subr.bf16.mxu0 %v2559
        %4616 = vmatpush1.bf16.msra.mxu0 %v2558
        %4617 = vmatprep.subr.bf16.mxu0 %v2567
        %4618 = vmatpush1.bf16.msra.mxu0 %v2566
        %4619 = vmatprep.subr.bf16.mxu0 %v2575
        %4620 = vmatpush1.bf16.msra.mxu0 %v2574
        %4621 = vmatprep.subr.bf16.mxu0 %v2583
        %4622 = vmatpush1.bf16.msra.mxu0 %v2582
        %4623 = vmatprep.subr.bf16.mxu0 %v2591
        %4624 = vmatpush1.bf16.msra.mxu0 %v2590
        %4625 = vmatprep.subr.bf16.mxu0 %v2599
        %4626 = vmatpush1.bf16.msra.mxu0 %v2598
        %4627 = vmatprep.subr.bf16.mxu0 %v2607
        %4628 = vmatpush1.bf16.msra.mxu0 %v2606
        %4629 = vmatprep.subr.bf16.mxu0 %v2615
        %4630 = vmatpush1.bf16.msra.mxu0 %v2614
        %4631 = vmatprep.subr.bf16.mxu0 %v2623
        %4632 = vmatpush1.bf16.msra.mxu0 %v2622
        %4633 = vmatprep.subr.bf16.mxu0 %v2631
        %4634 = vmatpush1.bf16.msra.mxu0 %v2630
        %4635 = vmatprep.subr.bf16.mxu0 %v2639
        %4636 = vmatpush1.bf16.msra.mxu0 %v2638
        %4637 = vmatprep.subr.bf16.mxu0 %v2647
        %4638 = vmatpush1.bf16.msra.mxu0 %v2646
        %4639 = vmatprep.subr.bf16.mxu0 %v2655
        %4640 = vmatpush1.bf16.msra.mxu0 %v2654
        %4641 = vmatprep.mubr.bf16.mxu0 %v4565
        %4642 = vmatmul.mubr.bf16.gmra.mrb[0].mxu0 %v4564
        %v4643 = vpop.f32.mrb[0].mxu0
        %v4644 = vadd.f32 0.0, %v4643
        %v4645 = vpop.f32.mrb[0].mxu0
        %v4646 = vadd.f32 0.0, %v4645
        %v4647 = vpop.f32.mrb[0].mxu0
        %v4648 = vpop.f32.mrb[0].mxu0
        %4649 = vdwg.mxu0
        %4650 = vmatprep.subr.bf16.mxu0 %v2537
        %4651 = vmatpush1.bf16.msra.mxu0 %v2536
        %4652 = vmatprep.subr.bf16.mxu0 %v2545
        %4653 = vmatpush1.bf16.msra.mxu0 %v2544
        %4654 = vmatprep.subr.bf16.mxu0 %v2553
        %4655 = vmatpush1.bf16.msra.mxu0 %v2552
        %4656 = vmatprep.subr.bf16.mxu0 %v2561
        %4657 = vmatpush1.bf16.msra.mxu0 %v2560
        %4658 = vmatprep.subr.bf16.mxu0 %v2569
        %4659 = vmatpush1.bf16.msra.mxu0 %v2568
        %4660 = vmatprep.subr.bf16.mxu0 %v2577
        %4661 = vmatpush1.bf16.msra.mxu0 %v2576
        %4662 = vmatprep.subr.bf16.mxu0 %v2585
        %4663 = vmatpush1.bf16.msra.mxu0 %v2584
        %4664 = vmatprep.subr.bf16.mxu0 %v2593
        %4665 = vmatpush1.bf16.msra.mxu0 %v2592
        %4666 = vmatprep.subr.bf16.mxu0 %v2601
        %4667 = vmatpush1.bf16.msra.mxu0 %v2600
        %4668 = vmatprep.subr.bf16.mxu0 %v2609
        %4669 = vmatpush1.bf16.msra.mxu0 %v2608
        %4670 = vmatprep.subr.bf16.mxu0 %v2617
        %4671 = vmatpush1.bf16.msra.mxu0 %v2616
        %4672 = vmatprep.subr.bf16.mxu0 %v2625
        %4673 = vmatpush1.bf16.msra.mxu0 %v2624
        %4674 = vmatprep.subr.bf16.mxu0 %v2633
        %4675 = vmatpush1.bf16.msra.mxu0 %v2632
        %4676 = vmatprep.subr.bf16.mxu0 %v2641
        %4677 = vmatpush1.bf16.msra.mxu0 %v2640
        %4678 = vmatprep.subr.bf16.mxu0 %v2649
        %4679 = vmatpush1.bf16.msra.mxu0 %v2648
        %4680 = vmatprep.subr.bf16.mxu0 %v2657
        %4681 = vmatpush1.bf16.msra.mxu0 %v2656
        %4682 = vmatprep.mubr.bf16.mxu0 %v4565
        %4683 = vmatmul.mubr.bf16.gmra.mrb[0].mxu0 %v4564
        %v4684 = vpop.f32.mrb[0].mxu0
        %v4685 = vadd.f32 0.0, %v4684
        %v4686 = vpop.f32.mrb[0].mxu0
        %v4687 = vadd.f32 0.0, %v4686
        %v4688 = vpop.f32.mrb[0].mxu0
        %v4689 = vpop.f32.mrb[0].mxu0
        %4690 = vdwg.mxu0
        %4691 = vmatprep.subr.bf16.mxu0 %v2539
        %4692 = vmatpush1.bf16.msra.mxu0 %v2538
        %4693 = vmatprep.subr.bf16.mxu0 %v2547
        %4694 = vmatpush1.bf16.msra.mxu0 %v2546
        %4695 = vmatprep.subr.bf16.mxu0 %v2555
        %4696 = vmatpush1.bf16.msra.mxu0 %v2554
        %4697 = vmatprep.subr.bf16.mxu0 %v2563
        %4698 = vmatpush1.bf16.msra.mxu0 %v2562
        %4699 = vmatprep.subr.bf16.mxu0 %v2571
        %4700 = vmatpush1.bf16.msra.mxu0 %v2570
        %4701 = vmatprep.subr.bf16.mxu0 %v2579
        %4702 = vmatpush1.bf16.msra.mxu0 %v2578
        %4703 = vmatprep.subr.bf16.mxu0 %v2587
        %4704 = vmatpush1.bf16.msra.mxu0 %v2586
        %4705 = vmatprep.subr.bf16.mxu0 %v2595
        %4706 = vmatpush1.bf16.msra.mxu0 %v2594
        %4707 = vmatprep.subr.bf16.mxu0 %v2603
        %4708 = vmatpush1.bf16.msra.mxu0 %v2602
        %4709 = vmatprep.subr.bf16.mxu0 %v2611
        %4710 = vmatpush1.bf16.msra.mxu0 %v2610
        %4711 = vmatprep.subr.bf16.mxu0 %v2619
        %4712 = vmatpush1.bf16.msra.mxu0 %v2618
        %4713 = vmatprep.subr.bf16.mxu0 %v2627
        %4714 = vmatpush1.bf16.msra.mxu0 %v2626
        %4715 = vmatprep.subr.bf16.mxu0 %v2635
        %4716 = vmatpush1.bf16.msra.mxu0 %v2634
        %4717 = vmatprep.subr.bf16.mxu0 %v2643
        %4718 = vmatpush1.bf16.msra.mxu0 %v2642
        %4719 = vmatprep.subr.bf16.mxu0 %v2651
        %4720 = vmatpush1.bf16.msra.mxu0 %v2650
        %4721 = vmatprep.subr.bf16.mxu0 %v2659
        %4722 = vmatpush1.bf16.msra.mxu0 %v2658
        %4723 = vmatprep.mubr.bf16.mxu0 %v4565
        %4724 = vmatmul.mubr.bf16.gmra.mrb[0].mxu0 %v4564
        %v4725 = vpop.f32.mrb[0].mxu0
        %v4726 = vadd.f32 0.0, %v4725
        %v4727 = vpop.f32.mrb[0].mxu0
        %v4728 = vadd.f32 0.0, %v4727
        %v4729 = vpop.f32.mrb[0].mxu0
        %v4730 = vpop.f32.mrb[0].mxu0
        %4731 = vdwg.mxu0
        %v4740 = vrot.slane %v4603, 1
        %v4741 = vrot.slane %v4605, 1
        %v4742 = vrot.slane %v4644, 1
        %v4743 = vrot.slane %v4646, 1
        %v4744 = vrot.slane %v4685, 1
        %v4745 = vrot.slane %v4687, 1
        %v4746 = vrot.slane %v4726, 1
        %v4747 = vrot.slane %v4728, 1
        %v4756 = vadd.f32 %v1768, %v4740
        %v4757 = vadd.f32 %v1770, %v4741
        %v4758 = vadd.f32 %v1850, %v4742
        %v4759 = vadd.f32 %v1852, %v4743
        %v4760 = vadd.f32 %v1932, %v4744
        %v4761 = vadd.f32 %v1934, %v4745
        %v4762 = vadd.f32 %v2014, %v4746
        %v4763 = vadd.f32 %v2016, %v4747
        %v4764 = vxor.u32 %v4756, 2147483648
        %v4765 = vxor.u32 %v4757, 2147483648
        %v4766 = vmul.f32 %v4764, 1.442695
        %v4767 = vpow.pop %v4766
        %v4768 = vmul.f32 %v4765, 1.442695
        %v4769 = vpow.pop %v4768
        %v4770 = vadd.f32 %v4767, 1.0
        %v4771 = vadd.f32 %v4769, 1.0
        %v4772 = vrcp.pop %v4770
        %v4773 = vmul.f32 1.0, %v4772
        %v4774 = vrcp.pop %v4771
        %v4775 = vmul.f32 1.0, %v4774
        %v4776 = vxor.u32 %v4758, 2147483648
        %v4777 = vxor.u32 %v4759, 2147483648
        %v4778 = vmul.f32 %v4776, 1.442695
        %v4779 = vpow.pop %v4778
        %v4780 = vmul.f32 %v4777, 1.442695
        %v4781 = vpow.pop %v4780
        %v4782 = vadd.f32 %v4779, 1.0
        %v4783 = vadd.f32 %v4781, 1.0
        %v4784 = vrcp.pop %v4782
        %v4785 = vmul.f32 1.0, %v4784
        %v4786 = vrcp.pop %v4783
        %v4787 = vmul.f32 1.0, %v4786
        %v4788 = vtanh.pop %v4760
        %v4789 = vtanh.pop %v4761
        %v4790 = vxor.u32 %v4762, 2147483648
        %v4791 = vxor.u32 %v4763, 2147483648
        %v4792 = vmul.f32 %v4790, 1.442695
        %v4793 = vpow.pop %v4792
        %v4794 = vmul.f32 %v4791, 1.442695
        %v4795 = vpow.pop %v4794
        %v4796 = vadd.f32 %v4793, 1.0
        %v4797 = vadd.f32 %v4795, 1.0
        %v4798 = vrcp.pop %v4796
        %v4799 = vmul.f32 1.0, %v4798
        %v4800 = vrcp.pop %v4797
        %v4801 = vmul.f32 1.0, %v4800
        %v4804 = vrot.slane %v4554, 7
        %v4805 = vrot.slane %v4555, 7
        %v4808 = vmul.f32 %v4785, %v4804
        %v4809 = vmul.f32 %v4787, %v4805
        %v4810 = vmul.f32 %v4773, %v4788
        %v4811 = vmul.f32 %v4775, %v4789
        %v4812 = vadd.f32 %v4808, %v4810
        %v4813 = vadd.f32 %v4809, %v4811
        %v4814 = vtanh.pop %v4812
        %v4815 = vtanh.pop %v4813
        %v4816 = vmul.f32 %v4799, %v4814
        %v4817 = vmul.f32 %v4801, %v4815
        %v4818 = vld [vmem:[%s706] sm:$0xff]
        %v4819 = vld [vmem:[#allocation8] sm:$0x7f]
        %v4820 = vld [vmem:[#allocation8 + $0x8] sm:$0x7f]
        %v4821 = vld [vmem:[#allocation8 + $0x10] sm:$0x7f]
        %v4822 = vld [vmem:[#allocation8 + $0x18] sm:$0x7f]
        %v4823 = vld [vmem:[#allocation8 + $0x20] sm:$0x7f]
        %v4824 = vld [vmem:[#allocation8 + $0x28] sm:$0x7f]
        %v4825 = vld [vmem:[#allocation8 + $0x30] sm:$0x7f]
        %v4826 = vld [vmem:[#allocation8 + $0x38] sm:$0x7f]
        %vm4827 = vcmask 56320
        %v4829 = vsel %vm4827, %v4818, 0
        %vm4831 = vcmask 1046528
        %v4833 = vsel %vm4831, %v4819, 0
        %v4836 = vsel %vm4831, %v4820, 0
        %v4839 = vsel %vm4831, %v4821, 0
        %v4842 = vsel %vm4831, %v4822, 0
        %v4845 = vsel %vm4831, %v4823, 0
        %v4848 = vsel %vm4831, %v4824, 0
        %v4851 = vsel %vm4831, %v4825, 0
        %v4854 = vsel %vm4831, %v4826, 0
        %4856 = vmatprep.subr.mxu0 %v4836
        %4857 = vmatpush1.msra.mxu0 %v4833
        %4858 = vmatprep.subr.mxu0 0.0
        %4859 = vmatpush1.msra.mxu0 0.0
        %4860 = vmatprep.subr.mxu0 0.0
        %4861 = vmatpush1.msra.mxu0 0.0
        %4862 = vmatprep.subr.mxu0 0.0
        %4863 = vmatpush1.msra.mxu0 0.0
        %4864 = vmatprep.subr.mxu0 0.0
        %4865 = vmatpush1.msra.mxu0 0.0
        %4866 = vmatprep.subr.mxu0 0.0
        %4867 = vmatpush1.msra.mxu0 0.0
        %4868 = vmatprep.subr.mxu0 0.0
        %4869 = vmatpush1.msra.mxu0 0.0
        %4870 = vmatprep.subr.mxu0 0.0
        %4871 = vmatpush1.msra.mxu0 0.0
        %4872 = vmatprep.subr.mxu0 0.0
        %4873 = vmatpush1.msra.mxu0 0.0
        %4874 = vmatprep.subr.mxu0 0.0
        %4875 = vmatpush1.msra.mxu0 0.0
        %4876 = vmatprep.subr.mxu0 0.0
        %4877 = vmatpush1.msra.mxu0 0.0
        %4878 = vmatprep.subr.mxu0 0.0
        %4879 = vmatpush1.msra.mxu0 0.0
        %4880 = vmatprep.subr.mxu0 0.0
        %4881 = vmatpush1.msra.mxu0 0.0
        %4882 = vmatprep.subr.mxu0 0.0
        %4883 = vmatpush1.msra.mxu0 0.0
        %4884 = vmatprep.subr.mxu0 0.0
        %4885 = vmatpush1.msra.mxu0 0.0
        %4886 = vmatprep.subr.mxu0 0.0
        %4887 = vmatpush1.msra.mxu0 0.0
        %4888 = vmatprep.subr.mxu0 0.0
        %4889 = vmatpush1.msra.mxu0 0.0
        %4890 = vmatprep.subr.mxu0 0.0
        %4891 = vmatpush1.msra.mxu0 0.0
        %4892 = vmatprep.subr.mxu0 0.0
        %4893 = vmatpush1.msra.mxu0 0.0
        %4894 = vmatprep.subr.mxu0 0.0
        %4895 = vmatpush1.msra.mxu0 0.0
        %4896 = vmatprep.subr.mxu0 0.0
        %4897 = vmatpush1.msra.mxu0 0.0
        %4898 = vmatprep.subr.mxu0 0.0
        %4899 = vmatpush1.msra.mxu0 0.0
        %4900 = vmatprep.subr.mxu0 0.0
        %4901 = vmatpush1.msra.mxu0 0.0
        %4902 = vmatprep.subr.mxu0 0.0
        %4903 = vmatpush1.msra.mxu0 0.0
        %4904 = vmatprep.subr.mxu0 0.0
        %4905 = vmatpush1.msra.mxu0 0.0
        %4906 = vmatprep.subr.mxu0 0.0
        %4907 = vmatpush1.msra.mxu0 0.0
        %4908 = vmatprep.subr.mxu0 0.0
        %4909 = vmatpush1.msra.mxu0 0.0
        %4910 = vmatprep.subr.mxu0 0.0
        %4911 = vmatpush1.msra.mxu0 0.0
        %4912 = vmatprep.subr.mxu0 0.0
        %4913 = vmatpush1.msra.mxu0 0.0
        %4914 = vmatprep.subr.mxu0 0.0
        %4915 = vmatpush1.msra.mxu0 0.0
        %4916 = vmatprep.subr.mxu0 0.0
        %4917 = vmatpush1.msra.mxu0 0.0
        %4918 = vmatprep.subr.mxu0 0.0
        %4919 = vmatpush1.msra.mxu0 0.0
        %4920 = vmatprep.mubr.f32.mxu0 0.0
        %4921 = vmatmul.mubr.f32.gmra.mrb[0].mxu0 %v4829
        %v4922 = vpop.f32.mrb[0].mxu0
        %v4923 = vadd.f32 0.0, %v4922
        %v4924 = vpop.f32.mrb[0].mxu0
        %v4925 = vadd.f32 0.0, %v4924
        %4926 = vdwg.mxu0
        %4927 = vmatprep.subr.mxu0 %v4842
        %4928 = vmatpush1.msra.mxu0 %v4839
        %4929 = vmatprep.subr.mxu0 0.0
        %4930 = vmatpush1.msra.mxu0 0.0
        %4931 = vmatprep.subr.mxu0 0.0
        %4932 = vmatpush1.msra.mxu0 0.0
        %4933 = vmatprep.subr.mxu0 0.0
        %4934 = vmatpush1.msra.mxu0 0.0
        %4935 = vmatprep.subr.mxu0 0.0
        %4936 = vmatpush1.msra.mxu0 0.0
        %4937 = vmatprep.subr.mxu0 0.0
        %4938 = vmatpush1.msra.mxu0 0.0
        %4939 = vmatprep.subr.mxu0 0.0
        %4940 = vmatpush1.msra.mxu0 0.0
        %4941 = vmatprep.subr.mxu0 0.0
        %4942 = vmatpush1.msra.mxu0 0.0
        %4943 = vmatprep.subr.mxu0 0.0
        %4944 = vmatpush1.msra.mxu0 0.0
        %4945 = vmatprep.subr.mxu0 0.0
        %4946 = vmatpush1.msra.mxu0 0.0
        %4947 = vmatprep.subr.mxu0 0.0
        %4948 = vmatpush1.msra.mxu0 0.0
        %4949 = vmatprep.subr.mxu0 0.0
        %4950 = vmatpush1.msra.mxu0 0.0
        %4951 = vmatprep.subr.mxu0 0.0
        %4952 = vmatpush1.msra.mxu0 0.0
        %4953 = vmatprep.subr.mxu0 0.0
        %4954 = vmatpush1.msra.mxu0 0.0
        %4955 = vmatprep.subr.mxu0 0.0
        %4956 = vmatpush1.msra.mxu0 0.0
        %4957 = vmatprep.subr.mxu0 0.0
        %4958 = vmatpush1.msra.mxu0 0.0
        %4959 = vmatprep.subr.mxu0 0.0
        %4960 = vmatpush1.msra.mxu0 0.0
        %4961 = vmatprep.subr.mxu0 0.0
        %4962 = vmatpush1.msra.mxu0 0.0
        %4963 = vmatprep.subr.mxu0 0.0
        %4964 = vmatpush1.msra.mxu0 0.0
        %4965 = vmatprep.subr.mxu0 0.0
        %4966 = vmatpush1.msra.mxu0 0.0
        %4967 = vmatprep.subr.mxu0 0.0
        %4968 = vmatpush1.msra.mxu0 0.0
        %4969 = vmatprep.subr.mxu0 0.0
        %4970 = vmatpush1.msra.mxu0 0.0
        %4971 = vmatprep.subr.mxu0 0.0
        %4972 = vmatpush1.msra.mxu0 0.0
        %4973 = vmatprep.subr.mxu0 0.0
        %4974 = vmatpush1.msra.mxu0 0.0
        %4975 = vmatprep.subr.mxu0 0.0
        %4976 = vmatpush1.msra.mxu0 0.0
        %4977 = vmatprep.subr.mxu0 0.0
        %4978 = vmatpush1.msra.mxu0 0.0
        %4979 = vmatprep.subr.mxu0 0.0
        %4980 = vmatpush1.msra.mxu0 0.0
        %4981 = vmatprep.subr.mxu0 0.0
        %4982 = vmatpush1.msra.mxu0 0.0
        %4983 = vmatprep.subr.mxu0 0.0
        %4984 = vmatpush1.msra.mxu0 0.0
        %4985 = vmatprep.subr.mxu0 0.0
        %4986 = vmatpush1.msra.mxu0 0.0
        %4987 = vmatprep.subr.mxu0 0.0
        %4988 = vmatpush1.msra.mxu0 0.0
        %4989 = vmatprep.subr.mxu0 0.0
        %4990 = vmatpush1.msra.mxu0 0.0
        %4991 = vmatprep.mubr.f32.mxu0 0.0
        %4992 = vmatmul.mubr.f32.gmra.mrb[0].mxu0 %v4829
        %v4993 = vpop.f32.mrb[0].mxu0
        %v4994 = vadd.f32 0.0, %v4993
        %v4995 = vpop.f32.mrb[0].mxu0
        %v4996 = vadd.f32 0.0, %v4995
        %4997 = vdwg.mxu0
        %4998 = vmatprep.subr.mxu0 %v4848
        %4999 = vmatpush1.msra.mxu0 %v4845
        %5000 = vmatprep.subr.mxu0 0.0
        %5001 = vmatpush1.msra.mxu0 0.0
        %5002 = vmatprep.subr.mxu0 0.0
        %5003 = vmatpush1.msra.mxu0 0.0
        %5004 = vmatprep.subr.mxu0 0.0
        %5005 = vmatpush1.msra.mxu0 0.0
        %5006 = vmatprep.subr.mxu0 0.0
        %5007 = vmatpush1.msra.mxu0 0.0
        %5008 = vmatprep.subr.mxu0 0.0
        %5009 = vmatpush1.msra.mxu0 0.0
        %5010 = vmatprep.subr.mxu0 0.0
        %5011 = vmatpush1.msra.mxu0 0.0
        %5012 = vmatprep.subr.mxu0 0.0
        %5013 = vmatpush1.msra.mxu0 0.0
        %5014 = vmatprep.subr.mxu0 0.0
        %5015 = vmatpush1.msra.mxu0 0.0
        %5016 = vmatprep.subr.mxu0 0.0
        %5017 = vmatpush1.msra.mxu0 0.0
        %5018 = vmatprep.subr.mxu0 0.0
        %5019 = vmatpush1.msra.mxu0 0.0
        %5020 = vmatprep.subr.mxu0 0.0
        %5021 = vmatpush1.msra.mxu0 0.0
        %5022 = vmatprep.subr.mxu0 0.0
        %5023 = vmatpush1.msra.mxu0 0.0
        %5024 = vmatprep.subr.mxu0 0.0
        %5025 = vmatpush1.msra.mxu0 0.0
        %5026 = vmatprep.subr.mxu0 0.0
        %5027 = vmatpush1.msra.mxu0 0.0
        %5028 = vmatprep.subr.mxu0 0.0
        %5029 = vmatpush1.msra.mxu0 0.0
        %5030 = vmatprep.subr.mxu0 0.0
        %5031 = vmatpush1.msra.mxu0 0.0
        %5032 = vmatprep.subr.mxu0 0.0
        %5033 = vmatpush1.msra.mxu0 0.0
        %5034 = vmatprep.subr.mxu0 0.0
        %5035 = vmatpush1.msra.mxu0 0.0
        %5036 = vmatprep.subr.mxu0 0.0
        %5037 = vmatpush1.msra.mxu0 0.0
        %5038 = vmatprep.subr.mxu0 0.0
        %5039 = vmatpush1.msra.mxu0 0.0
        %5040 = vmatprep.subr.mxu0 0.0
        %5041 = vmatpush1.msra.mxu0 0.0
        %5042 = vmatprep.subr.mxu0 0.0
        %5043 = vmatpush1.msra.mxu0 0.0
        %5044 = vmatprep.subr.mxu0 0.0
        %5045 = vmatpush1.msra.mxu0 0.0
        %5046 = vmatprep.subr.mxu0 0.0
        %5047 = vmatpush1.msra.mxu0 0.0
        %5048 = vmatprep.subr.mxu0 0.0
        %5049 = vmatpush1.msra.mxu0 0.0
        %5050 = vmatprep.subr.mxu0 0.0
        %5051 = vmatpush1.msra.mxu0 0.0
        %5052 = vmatprep.subr.mxu0 0.0
        %5053 = vmatpush1.msra.mxu0 0.0
        %5054 = vmatprep.subr.mxu0 0.0
        %5055 = vmatpush1.msra.mxu0 0.0
        %5056 = vmatprep.subr.mxu0 0.0
        %5057 = vmatpush1.msra.mxu0 0.0
        %5058 = vmatprep.subr.mxu0 0.0
        %5059 = vmatpush1.msra.mxu0 0.0
        %5060 = vmatprep.subr.mxu0 0.0
        %5061 = vmatpush1.msra.mxu0 0.0
        %5062 = vmatprep.mubr.f32.mxu0 0.0
        %5063 = vmatmul.mubr.f32.gmra.mrb[0].mxu0 %v4829
        %v5064 = vpop.f32.mrb[0].mxu0
        %v5065 = vadd.f32 0.0, %v5064
        %v5066 = vpop.f32.mrb[0].mxu0
        %v5067 = vadd.f32 0.0, %v5066
        %5068 = vdwg.mxu0
        %5069 = vmatprep.subr.mxu0 %v4854
        %5070 = vmatpush1.msra.mxu0 %v4851
        %5071 = vmatprep.subr.mxu0 0.0
        %5072 = vmatpush1.msra.mxu0 0.0
        %5073 = vmatprep.subr.mxu0 0.0
        %5074 = vmatpush1.msra.mxu0 0.0
        %5075 = vmatprep.subr.mxu0 0.0
        %5076 = vmatpush1.msra.mxu0 0.0
        %5077 = vmatprep.subr.mxu0 0.0
        %5078 = vmatpush1.msra.mxu0 0.0
        %5079 = vmatprep.subr.mxu0 0.0
        %5080 = vmatpush1.msra.mxu0 0.0
        %5081 = vmatprep.subr.mxu0 0.0
        %5082 = vmatpush1.msra.mxu0 0.0
        %5083 = vmatprep.subr.mxu0 0.0
        %5084 = vmatpush1.msra.mxu0 0.0
        %5085 = vmatprep.subr.mxu0 0.0
        %5086 = vmatpush1.msra.mxu0 0.0
        %5087 = vmatprep.subr.mxu0 0.0
        %5088 = vmatpush1.msra.mxu0 0.0
        %5089 = vmatprep.subr.mxu0 0.0
        %5090 = vmatpush1.msra.mxu0 0.0
        %5091 = vmatprep.subr.mxu0 0.0
        %5092 = vmatpush1.msra.mxu0 0.0
        %5093 = vmatprep.subr.mxu0 0.0
        %5094 = vmatpush1.msra.mxu0 0.0
        %5095 = vmatprep.subr.mxu0 0.0
        %5096 = vmatpush1.msra.mxu0 0.0
        %5097 = vmatprep.subr.mxu0 0.0
        %5098 = vmatpush1.msra.mxu0 0.0
        %5099 = vmatprep.subr.mxu0 0.0
        %5100 = vmatpush1.msra.mxu0 0.0
        %5101 = vmatprep.subr.mxu0 0.0
        %5102 = vmatpush1.msra.mxu0 0.0
        %5103 = vmatprep.subr.mxu0 0.0
        %5104 = vmatpush1.msra.mxu0 0.0
        %5105 = vmatprep.subr.mxu0 0.0
        %5106 = vmatpush1.msra.mxu0 0.0
        %5107 = vmatprep.subr.mxu0 0.0
        %5108 = vmatpush1.msra.mxu0 0.0
        %5109 = vmatprep.subr.mxu0 0.0
        %5110 = vmatpush1.msra.mxu0 0.0
        %5111 = vmatprep.subr.mxu0 0.0
        %5112 = vmatpush1.msra.mxu0 0.0
        %5113 = vmatprep.subr.mxu0 0.0
        %5114 = vmatpush1.msra.mxu0 0.0
        %5115 = vmatprep.subr.mxu0 0.0
        %5116 = vmatpush1.msra.mxu0 0.0
        %5117 = vmatprep.subr.mxu0 0.0
        %5118 = vmatpush1.msra.mxu0 0.0
        %5119 = vmatprep.subr.mxu0 0.0
        %5120 = vmatpush1.msra.mxu0 0.0
        %5121 = vmatprep.subr.mxu0 0.0
        %5122 = vmatpush1.msra.mxu0 0.0
        %5123 = vmatprep.subr.mxu0 0.0
        %5124 = vmatpush1.msra.mxu0 0.0
        %5125 = vmatprep.subr.mxu0 0.0
        %5126 = vmatpush1.msra.mxu0 0.0
        %5127 = vmatprep.subr.mxu0 0.0
        %5128 = vmatpush1.msra.mxu0 0.0
        %5129 = vmatprep.subr.mxu0 0.0
        %5130 = vmatpush1.msra.mxu0 0.0
        %5131 = vmatprep.subr.mxu0 0.0
        %5132 = vmatpush1.msra.mxu0 0.0
        %5133 = vmatprep.mubr.f32.mxu0 0.0
        %5134 = vmatmul.mubr.f32.gmra.mrb[0].mxu0 %v4829
        %v5135 = vpop.f32.mrb[0].mxu0
        %v5136 = vadd.f32 0.0, %v5135
        %v5137 = vpop.f32.mrb[0].mxu0
        %v5138 = vadd.f32 0.0, %v5137
        %5139 = vdwg.mxu0
        %v5144 = vcombine.low %v5065, %v5067
        %v5145 = vcombine.high %v5065, %v5067
        %v5146 = vcombine.low %v5136, %v5138
        %v5147 = vcombine.high %v5136, %v5138
        %v5149 = vunpack.c.l.s4 1966171168
        %v5150 = vunpack.c.0.s8 %v5149
        %v5151 = vlaneseq
        %v5152 = vshrl.u32 %v5151, 7
        %v5153 = vsub.s32 %v5150, %v5152
        %v5154 = vrot.slane %v5144, %v5153
        %v5156 = vunpack.c.l.s4 1966171168
        %v5157 = vunpack.c.0.s8 %v5156
        %v5158 = vlaneseq
        %v5159 = vshrl.u32 %v5158, 7
        %v5160 = vsub.s32 %v5157, %v5159
        %v5161 = vrot.slane %v5145, %v5160
        %v5163 = vunpack.c.l.s4 1966171168
        %v5164 = vunpack.c.0.s8 %v5163
        %v5165 = vlaneseq
        %v5166 = vshrl.u32 %v5165, 7
        %v5167 = vsub.s32 %v5164, %v5166
        %v5168 = vrot.slane %v5146, %v5167
        %v5170 = vunpack.c.l.s4 1966171168
        %v5171 = vunpack.c.0.s8 %v5170
        %v5172 = vlaneseq
        %v5173 = vshrl.u32 %v5172, 7
        %v5174 = vsub.s32 %v5171, %v5173
        %v5175 = vrot.slane %v5147, %v5174
        %v5176 = vcombine.low %v5154, %v5168
        %v5177 = vcombine.high %v5154, %v5168
        %v5178 = vcombine.low %v5161, %v5175
        %v5179 = vcombine.high %v5161, %v5175
        %v5181 = vunpack.c.l.s4 1966171168
        %v5182 = vunpack.c.0.s8 %v5181
        %v5183 = vlaneseq
        %v5184 = vshrl.u32 %v5183, 7
        %v5185 = vsub.s32 %v5182, %v5184
        %v5186 = vrot.slane %v5176, %v5185
        %v5188 = vunpack.c.l.s4 1966171168
        %v5189 = vunpack.c.0.s8 %v5188
        %v5190 = vlaneseq
        %v5191 = vshrl.u32 %v5190, 7
        %v5192 = vsub.s32 %v5189, %v5191
        %v5193 = vrot.slane %v5178, %v5192
        %v5195 = vunpack.c.l.s4 1966171168
        %v5196 = vunpack.c.0.s8 %v5195
        %v5197 = vlaneseq
        %v5198 = vshrl.u32 %v5197, 7
        %v5199 = vsub.s32 %v5196, %v5198
        %v5200 = vrot.slane %v5177, %v5199
        %v5202 = vunpack.c.l.s4 1966171168
        %v5203 = vunpack.c.0.s8 %v5202
        %v5204 = vlaneseq
        %v5205 = vshrl.u32 %v5204, 7
        %v5206 = vsub.s32 %v5203, %v5205
        %v5207 = vrot.slane %v5179, %v5206
        %v5208 = vcombine.high %v5186, %v5186
        %v5209 = vcombine.high %v5193, %v5193
        %v5210 = vcombine.high %v5200, %v5200
        %v5211 = vcombine.high %v5207, %v5207
        %v5212 = vlaneseq
        %v5213 = vshrl.u32 %v5212, 7
        %v5214 = vsub.s32 0, %v5213
        %v5215 = vrot.slane %v5186, %v5214
        %v5216 = vlaneseq
        %v5217 = vshrl.u32 %v5216, 7
        %v5218 = vsub.s32 1, %v5217
        %v5219 = vrot.slane %v5186, %v5218
        %v5220 = vlaneseq
        %v5221 = vshrl.u32 %v5220, 7
        %v5222 = vsub.s32 2, %v5221
        %v5223 = vrot.slane %v5186, %v5222
        %v5224 = vlaneseq
        %v5225 = vshrl.u32 %v5224, 7
        %v5226 = vsub.s32 3, %v5225
        %v5227 = vrot.slane %v5186, %v5226
        %v5228 = vlaneseq
        %v5229 = vshrl.u32 %v5228, 7
        %v5230 = vsub.s32 0, %v5229
        %v5231 = vrot.slane %v5200, %v5230
        %v5232 = vlaneseq
        %v5233 = vshrl.u32 %v5232, 7
        %v5234 = vsub.s32 1, %v5233
        %v5235 = vrot.slane %v5200, %v5234
        %v5236 = vlaneseq
        %v5237 = vshrl.u32 %v5236, 7
        %v5238 = vsub.s32 2, %v5237
        %v5239 = vrot.slane %v5200, %v5238
        %v5240 = vlaneseq
        %v5241 = vshrl.u32 %v5240, 7
        %v5242 = vsub.s32 3, %v5241
        %v5243 = vrot.slane %v5200, %v5242
        %v5244 = vlaneseq
        %v5245 = vshrl.u32 %v5244, 7
        %v5246 = vsub.s32 0, %v5245
        %v5247 = vrot.slane %v5208, %v5246
        %v5248 = vlaneseq
        %v5249 = vshrl.u32 %v5248, 7
        %v5250 = vsub.s32 1, %v5249
        %v5251 = vrot.slane %v5208, %v5250
        %v5252 = vlaneseq
        %v5253 = vshrl.u32 %v5252, 7
        %v5254 = vsub.s32 2, %v5253
        %v5255 = vrot.slane %v5208, %v5254
        %v5256 = vlaneseq
        %v5257 = vshrl.u32 %v5256, 7
        %v5258 = vsub.s32 3, %v5257
        %v5259 = vrot.slane %v5208, %v5258
        %v5260 = vlaneseq
        %v5261 = vshrl.u32 %v5260, 7
        %v5262 = vsub.s32 0, %v5261
        %v5263 = vrot.slane %v5210, %v5262
        %v5264 = vlaneseq
        %v5265 = vshrl.u32 %v5264, 7
        %v5266 = vsub.s32 1, %v5265
        %v5267 = vrot.slane %v5210, %v5266
        %v5268 = vlaneseq
        %v5269 = vshrl.u32 %v5268, 7
        %v5270 = vsub.s32 2, %v5269
        %v5271 = vrot.slane %v5210, %v5270
        %v5272 = vlaneseq
        %v5273 = vshrl.u32 %v5272, 7
        %v5274 = vsub.s32 3, %v5273
        %v5275 = vrot.slane %v5210, %v5274
        %v5276 = vlaneseq
        %v5277 = vshrl.u32 %v5276, 7
        %v5278 = vsub.s32 0, %v5277
        %v5279 = vrot.slane %v5193, %v5278
        %v5280 = vlaneseq
        %v5281 = vshrl.u32 %v5280, 7
        %v5282 = vsub.s32 1, %v5281
        %v5283 = vrot.slane %v5193, %v5282
        %v5284 = vlaneseq
        %v5285 = vshrl.u32 %v5284, 7
        %v5286 = vsub.s32 2, %v5285
        %v5287 = vrot.slane %v5193, %v5286
        %v5288 = vlaneseq
        %v5289 = vshrl.u32 %v5288, 7
        %v5290 = vsub.s32 3, %v5289
        %v5291 = vrot.slane %v5193, %v5290
        %v5292 = vlaneseq
        %v5293 = vshrl.u32 %v5292, 7
        %v5294 = vsub.s32 0, %v5293
        %v5295 = vrot.slane %v5207, %v5294
        %v5296 = vlaneseq
        %v5297 = vshrl.u32 %v5296, 7
        %v5298 = vsub.s32 1, %v5297
        %v5299 = vrot.slane %v5207, %v5298
        %v5300 = vlaneseq
        %v5301 = vshrl.u32 %v5300, 7
        %v5302 = vsub.s32 2, %v5301
        %v5303 = vrot.slane %v5207, %v5302
        %v5304 = vlaneseq
        %v5305 = vshrl.u32 %v5304, 7
        %v5306 = vsub.s32 3, %v5305
        %v5307 = vrot.slane %v5207, %v5306
        %v5308 = vlaneseq
        %v5309 = vshrl.u32 %v5308, 7
        %v5310 = vsub.s32 0, %v5309
        %v5311 = vrot.slane %v5209, %v5310
        %v5312 = vlaneseq
        %v5313 = vshrl.u32 %v5312, 7
        %v5314 = vsub.s32 1, %v5313
        %v5315 = vrot.slane %v5209, %v5314
        %v5316 = vlaneseq
        %v5317 = vshrl.u32 %v5316, 7
        %v5318 = vsub.s32 2, %v5317
        %v5319 = vrot.slane %v5209, %v5318
        %v5320 = vlaneseq
        %v5321 = vshrl.u32 %v5320, 7
        %v5322 = vsub.s32 3, %v5321
        %v5323 = vrot.slane %v5209, %v5322
        %v5324 = vlaneseq
        %v5325 = vshrl.u32 %v5324, 7
        %v5326 = vsub.s32 0, %v5325
        %v5327 = vrot.slane %v5211, %v5326
        %v5328 = vlaneseq
        %v5329 = vshrl.u32 %v5328, 7
        %v5330 = vsub.s32 1, %v5329
        %v5331 = vrot.slane %v5211, %v5330
        %v5332 = vlaneseq
        %v5333 = vshrl.u32 %v5332, 7
        %v5334 = vsub.s32 2, %v5333
        %v5335 = vrot.slane %v5211, %v5334
        %v5336 = vlaneseq
        %v5337 = vshrl.u32 %v5336, 7
        %v5338 = vsub.s32 3, %v5337
        %v5339 = vrot.slane %v5211, %v5338
        %v5372 = vadd.f32 %v4923, %v5215
        %v5373 = vadd.f32 %v4925, %v5219
        %v5374 = vadd.f32 %v4994, %v5223
        %v5375 = vadd.f32 %v4996, %v5227
        %v5376 = vadd.f32 %v4923, %v5231
        %v5377 = vadd.f32 %v4925, %v5235
        %v5378 = vadd.f32 %v4994, %v5239
        %v5379 = vadd.f32 %v4996, %v5243
        %v5380 = vadd.f32 %v4923, %v5247
        %v5381 = vadd.f32 %v4925, %v5251
        %v5382 = vadd.f32 %v4994, %v5255
        %v5383 = vadd.f32 %v4996, %v5259
        %v5384 = vadd.f32 %v4923, %v5263
        %v5385 = vadd.f32 %v4925, %v5267
        %v5386 = vadd.f32 %v4994, %v5271
        %v5387 = vadd.f32 %v4996, %v5275
        %v5388 = vadd.f32 %v4923, %v5279
        %v5389 = vadd.f32 %v4925, %v5283
        %v5390 = vadd.f32 %v4994, %v5287
        %v5391 = vadd.f32 %v4996, %v5291
        %v5392 = vadd.f32 %v4923, %v5295
        %v5393 = vadd.f32 %v4925, %v5299
        %v5394 = vadd.f32 %v4994, %v5303
        %v5395 = vadd.f32 %v4996, %v5307
        %v5396 = vadd.f32 %v4923, %v5311
        %v5397 = vadd.f32 %v4925, %v5315
        %v5398 = vadd.f32 %v4994, %v5319
        %v5399 = vadd.f32 %v4996, %v5323
        %v5400 = vadd.f32 %v4923, %v5327
        %v5401 = vadd.f32 %v4925, %v5331
        %v5402 = vadd.f32 %v4994, %v5335
        %v5403 = vadd.f32 %v4996, %v5339
        %v5404 = vld [vmem:[%s6] sm:$0xf]
        %v5406 = vlaneseq
        %v5407 = vshrl.u32 %v5406, 7
        %v5408 = vsub.s32 0, %v5407
        %v5409 = vrot.slane %v5404, %v5408
        %v5410 = vlaneseq
        %v5411 = vshrl.u32 %v5410, 7
        %v5412 = vsub.s32 1, %v5411
        %v5413 = vrot.slane %v5404, %v5412
        %v5414 = vlaneseq
        %v5415 = vshrl.u32 %v5414, 7
        %v5416 = vsub.s32 2, %v5415
        %v5417 = vrot.slane %v5404, %v5416
        %v5418 = vlaneseq
        %v5419 = vshrl.u32 %v5418, 7
        %v5420 = vsub.s32 3, %v5419
        %v5421 = vrot.slane %v5404, %v5420
        %v5426 = vadd.f32 %v5372, %v5409
        %v5427 = vadd.f32 %v5373, %v5413
        %v5428 = vadd.f32 %v5374, %v5417
        %v5429 = vadd.f32 %v5375, %v5421
        %v5430 = vadd.f32 %v5376, %v5409
        %v5431 = vadd.f32 %v5377, %v5413
        %v5432 = vadd.f32 %v5378, %v5417
        %v5433 = vadd.f32 %v5379, %v5421
        %v5434 = vadd.f32 %v5380, %v5409
        %v5435 = vadd.f32 %v5381, %v5413
        %v5436 = vadd.f32 %v5382, %v5417
        %v5437 = vadd.f32 %v5383, %v5421
        %v5438 = vadd.f32 %v5384, %v5409
        %v5439 = vadd.f32 %v5385, %v5413
        %v5440 = vadd.f32 %v5386, %v5417
        %v5441 = vadd.f32 %v5387, %v5421
        %v5442 = vadd.f32 %v5388, %v5409
        %v5443 = vadd.f32 %v5389, %v5413
        %v5444 = vadd.f32 %v5390, %v5417
        %v5445 = vadd.f32 %v5391, %v5421
        %v5446 = vadd.f32 %v5392, %v5409
        %v5447 = vadd.f32 %v5393, %v5413
        %v5448 = vadd.f32 %v5394, %v5417
        %v5449 = vadd.f32 %v5395, %v5421
        %v5450 = vadd.f32 %v5396, %v5409
        %v5451 = vadd.f32 %v5397, %v5413
        %v5452 = vadd.f32 %v5398, %v5417
        %v5453 = vadd.f32 %v5399, %v5421
        %v5454 = vadd.f32 %v5400, %v5409
        %v5455 = vadd.f32 %v5401, %v5413
        %v5456 = vadd.f32 %v5402, %v5417
        %v5457 = vadd.f32 %v5403, %v5421
        %v5458 = vmax.f32 %v5426, 0.0
        %v5459 = vmax.f32 %v5427, 0.0
        %v5460 = vmax.f32 %v5428, 0.0
        %v5461 = vmax.f32 %v5429, 0.0
        %v5462 = vmax.f32 %v5430, 0.0
        %v5463 = vmax.f32 %v5431, 0.0
        %v5464 = vmax.f32 %v5432, 0.0
        %v5465 = vmax.f32 %v5433, 0.0
        %v5466 = vmax.f32 %v5434, 0.0
        %v5467 = vmax.f32 %v5435, 0.0
        %v5468 = vmax.f32 %v5436, 0.0
        %v5469 = vmax.f32 %v5437, 0.0
        %v5470 = vmax.f32 %v5438, 0.0
        %v5471 = vmax.f32 %v5439, 0.0
        %v5472 = vmax.f32 %v5440, 0.0
        %v5473 = vmax.f32 %v5441, 0.0
        %v5474 = vmax.f32 %v5442, 0.0
        %v5475 = vmax.f32 %v5443, 0.0
        %v5476 = vmax.f32 %v5444, 0.0
        %v5477 = vmax.f32 %v5445, 0.0
        %v5478 = vmax.f32 %v5446, 0.0
        %v5479 = vmax.f32 %v5447, 0.0
        %v5480 = vmax.f32 %v5448, 0.0
        %v5481 = vmax.f32 %v5449, 0.0
        %v5482 = vmax.f32 %v5450, 0.0
        %v5483 = vmax.f32 %v5451, 0.0
        %v5484 = vmax.f32 %v5452, 0.0
        %v5485 = vmax.f32 %v5453, 0.0
        %v5486 = vmax.f32 %v5454, 0.0
        %v5487 = vmax.f32 %v5455, 0.0
        %v5488 = vmax.f32 %v5456, 0.0
        %v5489 = vmax.f32 %v5457, 0.0
        %v5490 = vpack.c.bf16 %v4816, %v4816
        %v5491 = vpack.c.bf16 %v4817, %v4817
        %v5492 = vld [vmem:[#allocation11] sm:$0xff]
        %v5493 = vld [vmem:[#allocation11 + $0x8] sm:$0xff]
        %v5494 = vld [vmem:[#allocation11 + $0x10] sm:$0xff]
        %v5495 = vld [vmem:[#allocation11 + $0x18] sm:$0xff]
        %v5496 = vld [vmem:[#allocation11 + $0x20] sm:$0xff]
        %v5497 = vld [vmem:[#allocation11 + $0x28] sm:$0xff]
        %v5498 = vld [vmem:[#allocation11 + $0x30] sm:$0xff]
        %v5499 = vld [vmem:[#allocation11 + $0x38] sm:$0xff]
        %v5500 = vld [vmem:[#allocation11 + $0x40] sm:$0xff]
        %v5501 = vld [vmem:[#allocation11 + $0x48] sm:$0xff]
        %v5502 = vld [vmem:[#allocation11 + $0x50] sm:$0xff]
        %v5503 = vld [vmem:[#allocation11 + $0x58] sm:$0xff]
        %v5504 = vld [vmem:[#allocation11 + $0x60] sm:$0xff]
        %v5505 = vld [vmem:[#allocation11 + $0x68] sm:$0xff]
        %v5506 = vld [vmem:[#allocation11 + $0x70] sm:$0xff]
        %v5507 = vld [vmem:[#allocation11 + $0x78] sm:$0xff]
        %v5508 = vld [vmem:[#allocation11 + $0x80] sm:$0xff]
        %v5509 = vld [vmem:[#allocation11 + $0x88] sm:$0xff]
        %v5510 = vld [vmem:[#allocation11 + $0x90] sm:$0xff]
        %v5511 = vld [vmem:[#allocation11 + $0x98] sm:$0xff]
        %v5512 = vld [vmem:[#allocation11 + $0xa0] sm:$0xff]
        %v5513 = vld [vmem:[#allocation11 + $0xa8] sm:$0xff]
        %v5514 = vld [vmem:[#allocation11 + $0xb0] sm:$0xff]
        %v5515 = vld [vmem:[#allocation11 + $0xb8] sm:$0xff]
        %v5516 = vld [vmem:[#allocation11 + $0xc0] sm:$0xff]
        %v5517 = vld [vmem:[#allocation11 + $0xc8] sm:$0xff]
        %v5518 = vld [vmem:[#allocation11 + $0xd0] sm:$0xff]
        %v5519 = vld [vmem:[#allocation11 + $0xd8] sm:$0xff]
        %v5520 = vld [vmem:[#allocation11 + $0xe0] sm:$0xff]
        %v5521 = vld [vmem:[#allocation11 + $0xe8] sm:$0xff]
        %v5522 = vld [vmem:[#allocation11 + $0xf0] sm:$0xff]
        %v5523 = vld [vmem:[#allocation11 + $0xf8] sm:$0xff]
        %v5524 = vld [vmem:[#allocation11 + $0x100] sm:$0xff]
        %v5525 = vld [vmem:[#allocation11 + $0x108] sm:$0xff]
        %v5526 = vld [vmem:[#allocation11 + $0x110] sm:$0xff]
        %v5527 = vld [vmem:[#allocation11 + $0x118] sm:$0xff]
        %v5528 = vld [vmem:[#allocation11 + $0x120] sm:$0xff]
        %v5529 = vld [vmem:[#allocation11 + $0x128] sm:$0xff]
        %v5530 = vld [vmem:[#allocation11 + $0x130] sm:$0xff]
        %v5531 = vld [vmem:[#allocation11 + $0x138] sm:$0xff]
        %v5532 = vld [vmem:[#allocation11 + $0x140] sm:$0xff]
        %v5533 = vld [vmem:[#allocation11 + $0x148] sm:$0xff]
        %v5534 = vld [vmem:[#allocation11 + $0x150] sm:$0xff]
        %v5535 = vld [vmem:[#allocation11 + $0x158] sm:$0xff]
        %v5536 = vld [vmem:[#allocation11 + $0x160] sm:$0xff]
        %v5537 = vld [vmem:[#allocation11 + $0x168] sm:$0xff]
        %v5538 = vld [vmem:[#allocation11 + $0x170] sm:$0xff]
        %v5539 = vld [vmem:[#allocation11 + $0x178] sm:$0xff]
        %v5540 = vld [vmem:[#allocation11 + $0x180] sm:$0xff]
        %v5541 = vld [vmem:[#allocation11 + $0x188] sm:$0xff]
        %v5542 = vld [vmem:[#allocation11 + $0x190] sm:$0xff]
        %v5543 = vld [vmem:[#allocation11 + $0x198] sm:$0xff]
        %v5544 = vld [vmem:[#allocation11 + $0x1a0] sm:$0xff]
        %v5545 = vld [vmem:[#allocation11 + $0x1a8] sm:$0xff]
        %v5546 = vld [vmem:[#allocation11 + $0x1b0] sm:$0xff]
        %v5547 = vld [vmem:[#allocation11 + $0x1b8] sm:$0xff]
        %v5548 = vld [vmem:[#allocation11 + $0x1c0] sm:$0xff]
        %v5549 = vld [vmem:[#allocation11 + $0x1c8] sm:$0xff]
        %v5550 = vld [vmem:[#allocation11 + $0x1d0] sm:$0xff]
        %v5551 = vld [vmem:[#allocation11 + $0x1d8] sm:$0xff]
        %v5552 = vld [vmem:[#allocation11 + $0x1e0] sm:$0xff]
        %v5553 = vld [vmem:[#allocation11 + $0x1e8] sm:$0xff]
        %v5554 = vld [vmem:[#allocation11 + $0x1f0] sm:$0xff]
        %v5555 = vld [vmem:[#allocation11 + $0x1f8] sm:$0xff]
        %v5556 = vld [vmem:[%s9] sm:$0xf]
        %v5558 = vshrl.u32 %v5490, 16
        %v5560 = vrot.slane %v5558, 3
        %v5562 = vshrl.u32 %v5491, 16
        %v5564 = vrot.slane %v5562, 3
        %v5631 = vunpack.c.l.b16 %v5492
        %v5632 = vunpack.c.h.b16 %v5492
        %v5633 = vunpack.c.l.b16 %v5493
        %v5634 = vunpack.c.h.b16 %v5493
        %v5635 = vunpack.c.l.b16 %v5494
        %v5636 = vunpack.c.h.b16 %v5494
        %v5637 = vunpack.c.l.b16 %v5495
        %v5638 = vunpack.c.h.b16 %v5495
        %v5639 = vunpack.c.l.b16 %v5496
        %v5640 = vunpack.c.h.b16 %v5496
        %v5641 = vunpack.c.l.b16 %v5497
        %v5642 = vunpack.c.h.b16 %v5497
        %v5643 = vunpack.c.l.b16 %v5498
        %v5644 = vunpack.c.h.b16 %v5498
        %v5645 = vunpack.c.l.b16 %v5499
        %v5646 = vunpack.c.h.b16 %v5499
        %v5647 = vunpack.c.l.b16 %v5500
        %v5648 = vunpack.c.h.b16 %v5500
        %v5649 = vunpack.c.l.b16 %v5501
        %v5650 = vunpack.c.h.b16 %v5501
        %v5651 = vunpack.c.l.b16 %v5502
        %v5652 = vunpack.c.h.b16 %v5502
        %v5653 = vunpack.c.l.b16 %v5503
        %v5654 = vunpack.c.h.b16 %v5503
        %v5655 = vunpack.c.l.b16 %v5504
        %v5656 = vunpack.c.h.b16 %v5504
        %v5657 = vunpack.c.l.b16 %v5505
        %v5658 = vunpack.c.h.b16 %v5505
        %v5659 = vunpack.c.l.b16 %v5506
        %v5660 = vunpack.c.h.b16 %v5506
        %v5661 = vunpack.c.l.b16 %v5507
        %v5662 = vunpack.c.h.b16 %v5507
        %v5663 = vunpack.c.l.b16 %v5508
        %v5664 = vunpack.c.h.b16 %v5508
        %v5665 = vunpack.c.l.b16 %v5509
        %v5666 = vunpack.c.h.b16 %v5509
        %v5667 = vunpack.c.l.b16 %v5510
        %v5668 = vunpack.c.h.b16 %v5510
        %v5669 = vunpack.c.l.b16 %v5511
        %v5670 = vunpack.c.h.b16 %v5511
        %v5671 = vunpack.c.l.b16 %v5512
        %v5672 = vunpack.c.h.b16 %v5512
        %v5673 = vunpack.c.l.b16 %v5513
        %v5674 = vunpack.c.h.b16 %v5513
        %v5675 = vunpack.c.l.b16 %v5514
        %v5676 = vunpack.c.h.b16 %v5514
        %v5677 = vunpack.c.l.b16 %v5515
        %v5678 = vunpack.c.h.b16 %v5515
        %v5679 = vunpack.c.l.b16 %v5516
        %v5680 = vunpack.c.h.b16 %v5516
        %v5681 = vunpack.c.l.b16 %v5517
        %v5682 = vunpack.c.h.b16 %v5517
        %v5683 = vunpack.c.l.b16 %v5518
        %v5684 = vunpack.c.h.b16 %v5518
        %v5685 = vunpack.c.l.b16 %v5519
        %v5686 = vunpack.c.h.b16 %v5519
        %v5687 = vunpack.c.l.b16 %v5520
        %v5688 = vunpack.c.h.b16 %v5520
        %v5689 = vunpack.c.l.b16 %v5521
        %v5690 = vunpack.c.h.b16 %v5521
        %v5691 = vunpack.c.l.b16 %v5522
        %v5692 = vunpack.c.h.b16 %v5522
        %v5693 = vunpack.c.l.b16 %v5523
        %v5694 = vunpack.c.h.b16 %v5523
        %v5695 = vunpack.c.l.b16 %v5524
        %v5696 = vunpack.c.h.b16 %v5524
        %v5697 = vunpack.c.l.b16 %v5525
        %v5698 = vunpack.c.h.b16 %v5525
        %v5699 = vunpack.c.l.b16 %v5526
        %v5700 = vunpack.c.h.b16 %v5526
        %v5701 = vunpack.c.l.b16 %v5527
        %v5702 = vunpack.c.h.b16 %v5527
        %v5703 = vunpack.c.l.b16 %v5528
        %v5704 = vunpack.c.h.b16 %v5528
        %v5705 = vunpack.c.l.b16 %v5529
        %v5706 = vunpack.c.h.b16 %v5529
        %v5707 = vunpack.c.l.b16 %v5530
        %v5708 = vunpack.c.h.b16 %v5530
        %v5709 = vunpack.c.l.b16 %v5531
        %v5710 = vunpack.c.h.b16 %v5531
        %v5711 = vunpack.c.l.b16 %v5532
        %v5712 = vunpack.c.h.b16 %v5532
        %v5713 = vunpack.c.l.b16 %v5533
        %v5714 = vunpack.c.h.b16 %v5533
        %v5715 = vunpack.c.l.b16 %v5534
        %v5716 = vunpack.c.h.b16 %v5534
        %v5717 = vunpack.c.l.b16 %v5535
        %v5718 = vunpack.c.h.b16 %v5535
        %v5719 = vunpack.c.l.b16 %v5536
        %v5720 = vunpack.c.h.b16 %v5536
        %v5721 = vunpack.c.l.b16 %v5537
        %v5722 = vunpack.c.h.b16 %v5537
        %v5723 = vunpack.c.l.b16 %v5538
        %v5724 = vunpack.c.h.b16 %v5538
        %v5725 = vunpack.c.l.b16 %v5539
        %v5726 = vunpack.c.h.b16 %v5539
        %v5727 = vunpack.c.l.b16 %v5540
        %v5728 = vunpack.c.h.b16 %v5540
        %v5729 = vunpack.c.l.b16 %v5541
        %v5730 = vunpack.c.h.b16 %v5541
        %v5731 = vunpack.c.l.b16 %v5542
        %v5732 = vunpack.c.h.b16 %v5542
        %v5733 = vunpack.c.l.b16 %v5543
        %v5734 = vunpack.c.h.b16 %v5543
        %v5735 = vunpack.c.l.b16 %v5544
        %v5736 = vunpack.c.h.b16 %v5544
        %v5737 = vunpack.c.l.b16 %v5545
        %v5738 = vunpack.c.h.b16 %v5545
        %v5739 = vunpack.c.l.b16 %v5546
        %v5740 = vunpack.c.h.b16 %v5546
        %v5741 = vunpack.c.l.b16 %v5547
        %v5742 = vunpack.c.h.b16 %v5547
        %v5743 = vunpack.c.l.b16 %v5548
        %v5744 = vunpack.c.h.b16 %v5548
        %v5745 = vunpack.c.l.b16 %v5549
        %v5746 = vunpack.c.h.b16 %v5549
        %v5747 = vunpack.c.l.b16 %v5550
        %v5748 = vunpack.c.h.b16 %v5550
        %v5749 = vunpack.c.l.b16 %v5551
        %v5750 = vunpack.c.h.b16 %v5551
        %v5751 = vunpack.c.l.b16 %v5552
        %v5752 = vunpack.c.h.b16 %v5552
        %v5753 = vunpack.c.l.b16 %v5553
        %v5754 = vunpack.c.h.b16 %v5553
        %v5755 = vunpack.c.l.b16 %v5554
        %v5756 = vunpack.c.h.b16 %v5554
        %v5757 = vunpack.c.l.b16 %v5555
        %v5758 = vunpack.c.h.b16 %v5555
        %v5759 = vpack.c.b16 %v5635, %v5631
        %v5760 = vpack.c.b16 %v5636, %v5632
        %v5761 = vpack.c.b16 %v5637, %v5633
        %v5762 = vpack.c.b16 %v5638, %v5634
        %v5763 = vpack.c.b16 %v5643, %v5639
        %v5764 = vpack.c.b16 %v5644, %v5640
        %v5765 = vpack.c.b16 %v5645, %v5641
        %v5766 = vpack.c.b16 %v5646, %v5642
        %v5767 = vpack.c.b16 %v5651, %v5647
        %v5768 = vpack.c.b16 %v5652, %v5648
        %v5769 = vpack.c.b16 %v5653, %v5649
        %v5770 = vpack.c.b16 %v5654, %v5650
        %v5771 = vpack.c.b16 %v5659, %v5655
        %v5772 = vpack.c.b16 %v5660, %v5656
        %v5773 = vpack.c.b16 %v5661, %v5657
        %v5774 = vpack.c.b16 %v5662, %v5658
        %v5775 = vpack.c.b16 %v5667, %v5663
        %v5776 = vpack.c.b16 %v5668, %v5664
        %v5777 = vpack.c.b16 %v5669, %v5665
        %v5778 = vpack.c.b16 %v5670, %v5666
        %v5779 = vpack.c.b16 %v5675, %v5671
        %v5780 = vpack.c.b16 %v5676, %v5672
        %v5781 = vpack.c.b16 %v5677, %v5673
        %v5782 = vpack.c.b16 %v5678, %v5674
        %v5783 = vpack.c.b16 %v5683, %v5679
        %v5784 = vpack.c.b16 %v5684, %v5680
        %v5785 = vpack.c.b16 %v5685, %v5681
        %v5786 = vpack.c.b16 %v5686, %v5682
        %v5787 = vpack.c.b16 %v5691, %v5687
        %v5788 = vpack.c.b16 %v5692, %v5688
        %v5789 = vpack.c.b16 %v5693, %v5689
        %v5790 = vpack.c.b16 %v5694, %v5690
        %v5791 = vpack.c.b16 %v5699, %v5695
        %v5792 = vpack.c.b16 %v5700, %v5696
        %v5793 = vpack.c.b16 %v5701, %v5697
        %v5794 = vpack.c.b16 %v5702, %v5698
        %v5795 = vpack.c.b16 %v5707, %v5703
        %v5796 = vpack.c.b16 %v5708, %v5704
        %v5797 = vpack.c.b16 %v5709, %v5705
        %v5798 = vpack.c.b16 %v5710, %v5706
        %v5799 = vpack.c.b16 %v5715, %v5711
        %v5800 = vpack.c.b16 %v5716, %v5712
        %v5801 = vpack.c.b16 %v5717, %v5713
        %v5802 = vpack.c.b16 %v5718, %v5714
        %v5803 = vpack.c.b16 %v5723, %v5719
        %v5804 = vpack.c.b16 %v5724, %v5720
        %v5805 = vpack.c.b16 %v5725, %v5721
        %v5806 = vpack.c.b16 %v5726, %v5722
        %v5807 = vpack.c.b16 %v5731, %v5727
        %v5808 = vpack.c.b16 %v5732, %v5728
        %v5809 = vpack.c.b16 %v5733, %v5729
        %v5810 = vpack.c.b16 %v5734, %v5730
        %v5811 = vpack.c.b16 %v5739, %v5735
        %v5812 = vpack.c.b16 %v5740, %v5736
        %v5813 = vpack.c.b16 %v5741, %v5737
        %v5814 = vpack.c.b16 %v5742, %v5738
        %v5815 = vpack.c.b16 %v5747, %v5743
        %v5816 = vpack.c.b16 %v5748, %v5744
        %v5817 = vpack.c.b16 %v5749, %v5745
        %v5818 = vpack.c.b16 %v5750, %v5746
        %v5819 = vpack.c.b16 %v5755, %v5751
        %v5820 = vpack.c.b16 %v5756, %v5752
        %v5821 = vpack.c.b16 %v5757, %v5753
        %v5822 = vpack.c.b16 %v5758, %v5754
        %v5888 = vlaneseq
        %v5889 = vshrl.u32 %v5888, 7
        %v5890 = vsub.s32 0, %v5889
        %v5891 = vrot.slane %v5556, %v5890
        %v5892 = vlaneseq
        %v5893 = vshrl.u32 %v5892, 7
        %v5894 = vsub.s32 1, %v5893
        %v5895 = vrot.slane %v5556, %v5894
        %v5896 = vlaneseq
        %v5897 = vshrl.u32 %v5896, 7
        %v5898 = vsub.s32 2, %v5897
        %v5899 = vrot.slane %v5556, %v5898
        %v5900 = vlaneseq
        %v5901 = vshrl.u32 %v5900, 7
        %v5902 = vsub.s32 3, %v5901
        %v5903 = vrot.slane %v5556, %v5902
        %5908 = vmatprep.subr.bf16.mxu0 %v5760
        %5909 = vmatpush1.bf16.msra.mxu0 %v5759
        %5910 = vmatprep.subr.bf16.mxu0 %v5764
        %5911 = vmatpush1.bf16.msra.mxu0 %v5763
        %5912 = vmatprep.subr.bf16.mxu0 %v5768
        %5913 = vmatpush1.bf16.msra.mxu0 %v5767
        %5914 = vmatprep.subr.bf16.mxu0 %v5772
        %5915 = vmatpush1.bf16.msra.mxu0 %v5771
        %5916 = vmatprep.subr.bf16.mxu0 %v5776
        %5917 = vmatpush1.bf16.msra.mxu0 %v5775
        %5918 = vmatprep.subr.bf16.mxu0 %v5780
        %5919 = vmatpush1.bf16.msra.mxu0 %v5779
        %5920 = vmatprep.subr.bf16.mxu0 %v5784
        %5921 = vmatpush1.bf16.msra.mxu0 %v5783
        %5922 = vmatprep.subr.bf16.mxu0 %v5788
        %5923 = vmatpush1.bf16.msra.mxu0 %v5787
        %5924 = vmatprep.subr.bf16.mxu0 %v5792
        %5925 = vmatpush1.bf16.msra.mxu0 %v5791
        %5926 = vmatprep.subr.bf16.mxu0 %v5796
        %5927 = vmatpush1.bf16.msra.mxu0 %v5795
        %5928 = vmatprep.subr.bf16.mxu0 %v5800
        %5929 = vmatpush1.bf16.msra.mxu0 %v5799
        %5930 = vmatprep.subr.bf16.mxu0 %v5804
        %5931 = vmatpush1.bf16.msra.mxu0 %v5803
        %5932 = vmatprep.subr.bf16.mxu0 %v5808
        %5933 = vmatpush1.bf16.msra.mxu0 %v5807
        %5934 = vmatprep.subr.bf16.mxu0 %v5812
        %5935 = vmatpush1.bf16.msra.mxu0 %v5811
        %5936 = vmatprep.subr.bf16.mxu0 %v5816
        %5937 = vmatpush1.bf16.msra.mxu0 %v5815
        %5938 = vmatprep.subr.bf16.mxu0 %v5820
        %5939 = vmatpush1.bf16.msra.mxu0 %v5819
        %5940 = vmatprep.mubr.bf16.mxu0 %v5564
        %5941 = vmatmul.mubr.bf16.gmra.mrb[0].mxu0 %v5560
        %v5942 = vpop.f32.mrb[0].mxu0
        %v5943 = vadd.f32 %v5891, %v5942
        %v5944 = vpop.f32.mrb[0].mxu0
        %v5945 = vadd.f32 %v5895, %v5944
        %v5946 = vpop.f32.mrb[0].mxu0
        %v5947 = vpop.f32.mrb[0].mxu0
        %5948 = vdwg.mxu0
        %5949 = vmatprep.subr.bf16.mxu0 %v5762
        %5950 = vmatpush1.bf16.msra.mxu0 %v5761
        %5951 = vmatprep.subr.bf16.mxu0 %v5766
        %5952 = vmatpush1.bf16.msra.mxu0 %v5765
        %5953 = vmatprep.subr.bf16.mxu0 %v5770
        %5954 = vmatpush1.bf16.msra.mxu0 %v5769
        %5955 = vmatprep.subr.bf16.mxu0 %v5774
        %5956 = vmatpush1.bf16.msra.mxu0 %v5773
        %5957 = vmatprep.subr.bf16.mxu0 %v5778
        %5958 = vmatpush1.bf16.msra.mxu0 %v5777
        %5959 = vmatprep.subr.bf16.mxu0 %v5782
        %5960 = vmatpush1.bf16.msra.mxu0 %v5781
        %5961 = vmatprep.subr.bf16.mxu0 %v5786
        %5962 = vmatpush1.bf16.msra.mxu0 %v5785
        %5963 = vmatprep.subr.bf16.mxu0 %v5790
        %5964 = vmatpush1.bf16.msra.mxu0 %v5789
        %5965 = vmatprep.subr.bf16.mxu0 %v5794
        %5966 = vmatpush1.bf16.msra.mxu0 %v5793
        %5967 = vmatprep.subr.bf16.mxu0 %v5798
        %5968 = vmatpush1.bf16.msra.mxu0 %v5797
        %5969 = vmatprep.subr.bf16.mxu0 %v5802
        %5970 = vmatpush1.bf16.msra.mxu0 %v5801
        %5971 = vmatprep.subr.bf16.mxu0 %v5806
        %5972 = vmatpush1.bf16.msra.mxu0 %v5805
        %5973 = vmatprep.subr.bf16.mxu0 %v5810
        %5974 = vmatpush1.bf16.msra.mxu0 %v5809
        %5975 = vmatprep.subr.bf16.mxu0 %v5814
        %5976 = vmatpush1.bf16.msra.mxu0 %v5813
        %5977 = vmatprep.subr.bf16.mxu0 %v5818
        %5978 = vmatpush1.bf16.msra.mxu0 %v5817
        %5979 = vmatprep.subr.bf16.mxu0 %v5822
        %5980 = vmatpush1.bf16.msra.mxu0 %v5821
        %5981 = vmatprep.mubr.bf16.mxu0 %v5564
        %5982 = vmatmul.mubr.bf16.gmra.mrb[0].mxu0 %v5560
        %v5983 = vpop.f32.mrb[0].mxu0
        %v5984 = vadd.f32 %v5899, %v5983
        %v5985 = vpop.f32.mrb[0].mxu0
        %v5986 = vadd.f32 %v5903, %v5985
        %v5987 = vpop.f32.mrb[0].mxu0
        %v5988 = vpop.f32.mrb[0].mxu0
        %5989 = vdwg.mxu0
        %v5990 = vpack.c.bf16 %v5462, %v5458
        %v5991 = vpack.c.bf16 %v5463, %v5459
        %v5992 = vpack.c.bf16 %v5464, %v5460
        %v5993 = vpack.c.bf16 %v5465, %v5461
        %v5994 = vpack.c.bf16 %v5470, %v5466
        %v5995 = vpack.c.bf16 %v5471, %v5467
        %v5996 = vpack.c.bf16 %v5472, %v5468
        %v5997 = vpack.c.bf16 %v5473, %v5469
        %v5998 = vpack.c.bf16 %v5478, %v5474
        %v5999 = vpack.c.bf16 %v5479, %v5475
        %v6000 = vpack.c.bf16 %v5480, %v5476
        %v6001 = vpack.c.bf16 %v5481, %v5477
        %v6002 = vpack.c.bf16 %v5486, %v5482
        %v6003 = vpack.c.bf16 %v5487, %v5483
        %v6004 = vpack.c.bf16 %v5488, %v5484
        %v6005 = vpack.c.bf16 %v5489, %v5485
        %v6006 = vld [vmem:[#allocation9] sm:$0xff]
        %v6007 = vld [vmem:[#allocation9 + $0x8] sm:$0xff]
        %v6008 = vld [vmem:[#allocation9 + $0x10] sm:$0xff]
        %v6009 = vld [vmem:[#allocation9 + $0x18] sm:$0xff]
        %v6010 = vld [vmem:[#allocation9 + $0x20] sm:$0xff]
        %v6011 = vld [vmem:[#allocation9 + $0x28] sm:$0xff]
        %v6012 = vld [vmem:[#allocation9 + $0x30] sm:$0xff]
        %v6013 = vld [vmem:[#allocation9 + $0x38] sm:$0xff]
        %v6014 = vld [vmem:[#allocation9 + $0x40] sm:$0xff]
        %v6015 = vld [vmem:[#allocation9 + $0x48] sm:$0xff]
        %v6016 = vld [vmem:[#allocation9 + $0x50] sm:$0xff]
        %v6017 = vld [vmem:[#allocation9 + $0x58] sm:$0xff]
        %v6018 = vld [vmem:[#allocation9 + $0x60] sm:$0xff]
        %v6019 = vld [vmem:[#allocation9 + $0x68] sm:$0xff]
        %v6020 = vld [vmem:[#allocation9 + $0x70] sm:$0xff]
        %v6021 = vld [vmem:[#allocation9 + $0x78] sm:$0xff]
        %v6022 = vld [vmem:[#allocation9 + $0x80] sm:$0xff]
        %v6023 = vld [vmem:[#allocation9 + $0x88] sm:$0xff]
        %v6024 = vld [vmem:[#allocation9 + $0x90] sm:$0xff]
        %v6025 = vld [vmem:[#allocation9 + $0x98] sm:$0xff]
        %v6026 = vld [vmem:[#allocation9 + $0xa0] sm:$0xff]
        %v6027 = vld [vmem:[#allocation9 + $0xa8] sm:$0xff]
        %v6028 = vld [vmem:[#allocation9 + $0xb0] sm:$0xff]
        %v6029 = vld [vmem:[#allocation9 + $0xb8] sm:$0xff]
        %v6030 = vld [vmem:[#allocation9 + $0xc0] sm:$0xff]
        %v6031 = vld [vmem:[#allocation9 + $0xc8] sm:$0xff]
        %v6032 = vld [vmem:[#allocation9 + $0xd0] sm:$0xff]
        %v6033 = vld [vmem:[#allocation9 + $0xd8] sm:$0xff]
        %v6034 = vld [vmem:[#allocation9 + $0xe0] sm:$0xff]
        %v6035 = vld [vmem:[#allocation9 + $0xe8] sm:$0xff]
        %v6036 = vld [vmem:[#allocation9 + $0xf0] sm:$0xff]
        %v6037 = vld [vmem:[#allocation9 + $0xf8] sm:$0xff]
        %v6038 = vld [vmem:[#allocation9 + $0x100] sm:$0xff]
        %v6039 = vld [vmem:[#allocation9 + $0x108] sm:$0xff]
        %v6040 = vld [vmem:[#allocation9 + $0x110] sm:$0xff]
        %v6041 = vld [vmem:[#allocation9 + $0x118] sm:$0xff]
        %v6042 = vld [vmem:[#allocation9 + $0x120] sm:$0xff]
        %v6043 = vld [vmem:[#allocation9 + $0x128] sm:$0xff]
        %v6044 = vld [vmem:[#allocation9 + $0x130] sm:$0xff]
        %v6045 = vld [vmem:[#allocation9 + $0x138] sm:$0xff]
        %v6046 = vld [vmem:[#allocation9 + $0x140] sm:$0xff]
        %v6047 = vld [vmem:[#allocation9 + $0x148] sm:$0xff]
        %v6048 = vld [vmem:[#allocation9 + $0x150] sm:$0xff]
        %v6049 = vld [vmem:[#allocation9 + $0x158] sm:$0xff]
        %v6050 = vld [vmem:[#allocation9 + $0x160] sm:$0xff]
        %v6051 = vld [vmem:[#allocation9 + $0x168] sm:$0xff]
        %v6052 = vld [vmem:[#allocation9 + $0x170] sm:$0xff]
        %v6053 = vld [vmem:[#allocation9 + $0x178] sm:$0xff]
        %v6054 = vld [vmem:[#allocation9 + $0x180] sm:$0xff]
        %v6055 = vld [vmem:[#allocation9 + $0x188] sm:$0xff]
        %v6056 = vld [vmem:[#allocation9 + $0x190] sm:$0xff]
        %v6057 = vld [vmem:[#allocation9 + $0x198] sm:$0xff]
        %v6058 = vld [vmem:[#allocation9 + $0x1a0] sm:$0xff]
        %v6059 = vld [vmem:[#allocation9 + $0x1a8] sm:$0xff]
        %v6060 = vld [vmem:[#allocation9 + $0x1b0] sm:$0xff]
        %v6061 = vld [vmem:[#allocation9 + $0x1b8] sm:$0xff]
        %v6062 = vld [vmem:[#allocation9 + $0x1c0] sm:$0xff]
        %v6063 = vld [vmem:[#allocation9 + $0x1c8] sm:$0xff]
        %v6064 = vld [vmem:[#allocation9 + $0x1d0] sm:$0xff]
        %v6065 = vld [vmem:[#allocation9 + $0x1d8] sm:$0xff]
        %v6066 = vld [vmem:[#allocation9 + $0x1e0] sm:$0xff]
        %v6067 = vld [vmem:[#allocation9 + $0x1e8] sm:$0xff]
        %v6068 = vld [vmem:[#allocation9 + $0x1f0] sm:$0xff]
        %v6069 = vld [vmem:[#allocation9 + $0x1f8] sm:$0xff]
        %v6070 = vld [vmem:[#allocation9 + $0x200] sm:$0xff]
        %v6071 = vld [vmem:[#allocation9 + $0x208] sm:$0xff]
        %v6072 = vld [vmem:[#allocation9 + $0x210] sm:$0xff]
        %v6073 = vld [vmem:[#allocation9 + $0x218] sm:$0xff]
        %v6074 = vld [vmem:[#allocation9 + $0x220] sm:$0xff]
        %v6075 = vld [vmem:[#allocation9 + $0x228] sm:$0xff]
        %v6076 = vld [vmem:[#allocation9 + $0x230] sm:$0xff]
        %v6077 = vld [vmem:[#allocation9 + $0x238] sm:$0xff]
        %v6078 = vld [vmem:[#allocation9 + $0x240] sm:$0xff]
        %v6079 = vld [vmem:[#allocation9 + $0x248] sm:$0xff]
        %v6080 = vld [vmem:[#allocation9 + $0x250] sm:$0xff]
        %v6081 = vld [vmem:[#allocation9 + $0x258] sm:$0xff]
        %v6082 = vld [vmem:[#allocation9 + $0x260] sm:$0xff]
        %v6083 = vld [vmem:[#allocation9 + $0x268] sm:$0xff]
        %v6084 = vld [vmem:[#allocation9 + $0x270] sm:$0xff]
        %v6085 = vld [vmem:[#allocation9 + $0x278] sm:$0xff]
        %v6086 = vld [vmem:[#allocation9 + $0x280] sm:$0xff]
        %v6087 = vld [vmem:[#allocation9 + $0x288] sm:$0xff]
        %v6088 = vld [vmem:[#allocation9 + $0x290] sm:$0xff]
        %v6089 = vld [vmem:[#allocation9 + $0x298] sm:$0xff]
        %v6090 = vld [vmem:[#allocation9 + $0x2a0] sm:$0xff]
        %v6091 = vld [vmem:[#allocation9 + $0x2a8] sm:$0xff]
        %v6092 = vld [vmem:[#allocation9 + $0x2b0] sm:$0xff]
        %v6093 = vld [vmem:[#allocation9 + $0x2b8] sm:$0xff]
        %v6094 = vld [vmem:[#allocation9 + $0x2c0] sm:$0xff]
        %v6095 = vld [vmem:[#allocation9 + $0x2c8] sm:$0xff]
        %v6096 = vld [vmem:[#allocation9 + $0x2d0] sm:$0xff]
        %v6097 = vld [vmem:[#allocation9 + $0x2d8] sm:$0xff]
        %v6098 = vld [vmem:[#allocation9 + $0x2e0] sm:$0xff]
        %v6099 = vld [vmem:[#allocation9 + $0x2e8] sm:$0xff]
        %v6100 = vld [vmem:[#allocation9 + $0x2f0] sm:$0xff]
        %v6101 = vld [vmem:[#allocation9 + $0x2f8] sm:$0xff]
        %v6102 = vld [vmem:[#allocation9 + $0x300] sm:$0xff]
        %v6103 = vld [vmem:[#allocation9 + $0x308] sm:$0xff]
        %v6104 = vld [vmem:[#allocation9 + $0x310] sm:$0xff]
        %v6105 = vld [vmem:[#allocation9 + $0x318] sm:$0xff]
        %v6106 = vld [vmem:[#allocation9 + $0x320] sm:$0xff]
        %v6107 = vld [vmem:[#allocation9 + $0x328] sm:$0xff]
        %v6108 = vld [vmem:[#allocation9 + $0x330] sm:$0xff]
        %v6109 = vld [vmem:[#allocation9 + $0x338] sm:$0xff]
        %v6110 = vld [vmem:[#allocation9 + $0x340] sm:$0xff]
        %v6111 = vld [vmem:[#allocation9 + $0x348] sm:$0xff]
        %v6112 = vld [vmem:[#allocation9 + $0x350] sm:$0xff]
        %v6113 = vld [vmem:[#allocation9 + $0x358] sm:$0xff]
        %v6114 = vld [vmem:[#allocation9 + $0x360] sm:$0xff]
        %v6115 = vld [vmem:[#allocation9 + $0x368] sm:$0xff]
        %v6116 = vld [vmem:[#allocation9 + $0x370] sm:$0xff]
        %v6117 = vld [vmem:[#allocation9 + $0x378] sm:$0xff]
        %v6118 = vld [vmem:[#allocation9 + $0x380] sm:$0xff]
        %v6119 = vld [vmem:[#allocation9 + $0x388] sm:$0xff]
        %v6120 = vld [vmem:[#allocation9 + $0x390] sm:$0xff]
        %v6121 = vld [vmem:[#allocation9 + $0x398] sm:$0xff]
        %v6122 = vld [vmem:[#allocation9 + $0x3a0] sm:$0xff]
        %v6123 = vld [vmem:[#allocation9 + $0x3a8] sm:$0xff]
        %v6124 = vld [vmem:[#allocation9 + $0x3b0] sm:$0xff]
        %v6125 = vld [vmem:[#allocation9 + $0x3b8] sm:$0xff]
        %v6126 = vld [vmem:[#allocation9 + $0x3c0] sm:$0xff]
        %v6127 = vld [vmem:[#allocation9 + $0x3c8] sm:$0xff]
        %v6128 = vld [vmem:[#allocation9 + $0x3d0] sm:$0xff]
        %v6129 = vld [vmem:[#allocation9 + $0x3d8] sm:$0xff]
        %v6130 = vld [vmem:[#allocation9 + $0x3e0] sm:$0xff]
        %v6131 = vld [vmem:[#allocation9 + $0x3e8] sm:$0xff]
        %v6132 = vld [vmem:[#allocation9 + $0x3f0] sm:$0xff]
        %v6133 = vld [vmem:[#allocation9 + $0x3f8] sm:$0xff]
        %v6134 = vlaneseq
        %v6135 = vshrl.u32 %v6134, 7
        %v6136 = vsub.s32 0, %v6135
        %v6137 = vrot.slane %v5943, %v6136
        %v6138 = vlaneseq
        %v6139 = vshrl.u32 %v6138, 7
        %v6140 = vsub.s32 0, %v6139
        %v6141 = vrot.slane %v5945, %v6140
        %v6142 = vlaneseq
        %v6143 = vshrl.u32 %v6142, 7
        %v6144 = vsub.s32 0, %v6143
        %v6145 = vrot.slane %v5984, %v6144
        %v6146 = vlaneseq
        %v6147 = vshrl.u32 %v6146, 7
        %v6148 = vsub.s32 0, %v6147
        %v6149 = vrot.slane %v5986, %v6148
        %v6278 = vunpack.c.l.b16 %v6006
        %v6279 = vunpack.c.h.b16 %v6006
        %v6280 = vunpack.c.l.b16 %v6007
        %v6281 = vunpack.c.h.b16 %v6007
        %v6282 = vunpack.c.l.b16 %v6008
        %v6283 = vunpack.c.h.b16 %v6008
        %v6284 = vunpack.c.l.b16 %v6009
        %v6285 = vunpack.c.h.b16 %v6009
        %v6286 = vunpack.c.l.b16 %v6010
        %v6287 = vunpack.c.h.b16 %v6010
        %v6288 = vunpack.c.l.b16 %v6011
        %v6289 = vunpack.c.h.b16 %v6011
        %v6290 = vunpack.c.l.b16 %v6012
        %v6291 = vunpack.c.h.b16 %v6012
        %v6292 = vunpack.c.l.b16 %v6013
        %v6293 = vunpack.c.h.b16 %v6013
        %v6294 = vunpack.c.l.b16 %v6014
        %v6295 = vunpack.c.h.b16 %v6014
        %v6296 = vunpack.c.l.b16 %v6015
        %v6297 = vunpack.c.h.b16 %v6015
        %v6298 = vunpack.c.l.b16 %v6016
        %v6299 = vunpack.c.h.b16 %v6016
        %v6300 = vunpack.c.l.b16 %v6017
        %v6301 = vunpack.c.h.b16 %v6017
        %v6302 = vunpack.c.l.b16 %v6018
        %v6303 = vunpack.c.h.b16 %v6018
        %v6304 = vunpack.c.l.b16 %v6019
        %v6305 = vunpack.c.h.b16 %v6019
        %v6306 = vunpack.c.l.b16 %v6020
        %v6307 = vunpack.c.h.b16 %v6020
        %v6308 = vunpack.c.l.b16 %v6021
        %v6309 = vunpack.c.h.b16 %v6021
        %v6310 = vunpack.c.l.b16 %v6022
        %v6311 = vunpack.c.h.b16 %v6022
        %v6312 = vunpack.c.l.b16 %v6023
        %v6313 = vunpack.c.h.b16 %v6023
        %v6314 = vunpack.c.l.b16 %v6024
        %v6315 = vunpack.c.h.b16 %v6024
        %v6316 = vunpack.c.l.b16 %v6025
        %v6317 = vunpack.c.h.b16 %v6025
        %v6318 = vunpack.c.l.b16 %v6026
        %v6319 = vunpack.c.h.b16 %v6026
        %v6320 = vunpack.c.l.b16 %v6027
        %v6321 = vunpack.c.h.b16 %v6027
        %v6322 = vunpack.c.l.b16 %v6028
        %v6323 = vunpack.c.h.b16 %v6028
        %v6324 = vunpack.c.l.b16 %v6029
        %v6325 = vunpack.c.h.b16 %v6029
        %v6326 = vunpack.c.l.b16 %v6030
        %v6327 = vunpack.c.h.b16 %v6030
        %v6328 = vunpack.c.l.b16 %v6031
        %v6329 = vunpack.c.h.b16 %v6031
        %v6330 = vunpack.c.l.b16 %v6032
        %v6331 = vunpack.c.h.b16 %v6032
        %v6332 = vunpack.c.l.b16 %v6033
        %v6333 = vunpack.c.h.b16 %v6033
        %v6334 = vunpack.c.l.b16 %v6034
        %v6335 = vunpack.c.h.b16 %v6034
        %v6336 = vunpack.c.l.b16 %v6035
        %v6337 = vunpack.c.h.b16 %v6035
        %v6338 = vunpack.c.l.b16 %v6036
        %v6339 = vunpack.c.h.b16 %v6036
        %v6340 = vunpack.c.l.b16 %v6037
        %v6341 = vunpack.c.h.b16 %v6037
        %v6342 = vunpack.c.l.b16 %v6038
        %v6343 = vunpack.c.h.b16 %v6038
        %v6344 = vunpack.c.l.b16 %v6039
        %v6345 = vunpack.c.h.b16 %v6039
        %v6346 = vunpack.c.l.b16 %v6040
        %v6347 = vunpack.c.h.b16 %v6040
        %v6348 = vunpack.c.l.b16 %v6041
        %v6349 = vunpack.c.h.b16 %v6041
        %v6350 = vunpack.c.l.b16 %v6042
        %v6351 = vunpack.c.h.b16 %v6042
        %v6352 = vunpack.c.l.b16 %v6043
        %v6353 = vunpack.c.h.b16 %v6043
        %v6354 = vunpack.c.l.b16 %v6044
        %v6355 = vunpack.c.h.b16 %v6044
        %v6356 = vunpack.c.l.b16 %v6045
        %v6357 = vunpack.c.h.b16 %v6045
        %v6358 = vunpack.c.l.b16 %v6046
        %v6359 = vunpack.c.h.b16 %v6046
        %v6360 = vunpack.c.l.b16 %v6047
        %v6361 = vunpack.c.h.b16 %v6047
        %v6362 = vunpack.c.l.b16 %v6048
        %v6363 = vunpack.c.h.b16 %v6048
        %v6364 = vunpack.c.l.b16 %v6049
        %v6365 = vunpack.c.h.b16 %v6049
        %v6366 = vunpack.c.l.b16 %v6050
        %v6367 = vunpack.c.h.b16 %v6050
        %v6368 = vunpack.c.l.b16 %v6051
        %v6369 = vunpack.c.h.b16 %v6051
        %v6370 = vunpack.c.l.b16 %v6052
        %v6371 = vunpack.c.h.b16 %v6052
        %v6372 = vunpack.c.l.b16 %v6053
        %v6373 = vunpack.c.h.b16 %v6053
        %v6374 = vunpack.c.l.b16 %v6054
        %v6375 = vunpack.c.h.b16 %v6054
        %v6376 = vunpack.c.l.b16 %v6055
        %v6377 = vunpack.c.h.b16 %v6055
        %v6378 = vunpack.c.l.b16 %v6056
        %v6379 = vunpack.c.h.b16 %v6056
        %v6380 = vunpack.c.l.b16 %v6057
        %v6381 = vunpack.c.h.b16 %v6057
        %v6382 = vunpack.c.l.b16 %v6058
        %v6383 = vunpack.c.h.b16 %v6058
        %v6384 = vunpack.c.l.b16 %v6059
        %v6385 = vunpack.c.h.b16 %v6059
        %v6386 = vunpack.c.l.b16 %v6060
        %v6387 = vunpack.c.h.b16 %v6060
        %v6388 = vunpack.c.l.b16 %v6061
        %v6389 = vunpack.c.h.b16 %v6061
        %v6390 = vunpack.c.l.b16 %v6062
        %v6391 = vunpack.c.h.b16 %v6062
        %v6392 = vunpack.c.l.b16 %v6063
        %v6393 = vunpack.c.h.b16 %v6063
        %v6394 = vunpack.c.l.b16 %v6064
        %v6395 = vunpack.c.h.b16 %v6064
        %v6396 = vunpack.c.l.b16 %v6065
        %v6397 = vunpack.c.h.b16 %v6065
        %v6398 = vunpack.c.l.b16 %v6066
        %v6399 = vunpack.c.h.b16 %v6066
        %v6400 = vunpack.c.l.b16 %v6067
        %v6401 = vunpack.c.h.b16 %v6067
        %v6402 = vunpack.c.l.b16 %v6068
        %v6403 = vunpack.c.h.b16 %v6068
        %v6404 = vunpack.c.l.b16 %v6069
        %v6405 = vunpack.c.h.b16 %v6069
        %v6406 = vunpack.c.l.b16 %v6070
        %v6407 = vunpack.c.h.b16 %v6070
        %v6408 = vunpack.c.l.b16 %v6071
        %v6409 = vunpack.c.h.b16 %v6071
        %v6410 = vunpack.c.l.b16 %v6072
        %v6411 = vunpack.c.h.b16 %v6072
        %v6412 = vunpack.c.l.b16 %v6073
        %v6413 = vunpack.c.h.b16 %v6073
        %v6414 = vunpack.c.l.b16 %v6074
        %v6415 = vunpack.c.h.b16 %v6074
        %v6416 = vunpack.c.l.b16 %v6075
        %v6417 = vunpack.c.h.b16 %v6075
        %v6418 = vunpack.c.l.b16 %v6076
        %v6419 = vunpack.c.h.b16 %v6076
        %v6420 = vunpack.c.l.b16 %v6077
        %v6421 = vunpack.c.h.b16 %v6077
        %v6422 = vunpack.c.l.b16 %v6078
        %v6423 = vunpack.c.h.b16 %v6078
        %v6424 = vunpack.c.l.b16 %v6079
        %v6425 = vunpack.c.h.b16 %v6079
        %v6426 = vunpack.c.l.b16 %v6080
        %v6427 = vunpack.c.h.b16 %v6080
        %v6428 = vunpack.c.l.b16 %v6081
        %v6429 = vunpack.c.h.b16 %v6081
        %v6430 = vunpack.c.l.b16 %v6082
        %v6431 = vunpack.c.h.b16 %v6082
        %v6432 = vunpack.c.l.b16 %v6083
        %v6433 = vunpack.c.h.b16 %v6083
        %v6434 = vunpack.c.l.b16 %v6084
        %v6435 = vunpack.c.h.b16 %v6084
        %v6436 = vunpack.c.l.b16 %v6085
        %v6437 = vunpack.c.h.b16 %v6085
        %v6438 = vunpack.c.l.b16 %v6086
        %v6439 = vunpack.c.h.b16 %v6086
        %v6440 = vunpack.c.l.b16 %v6087
        %v6441 = vunpack.c.h.b16 %v6087
        %v6442 = vunpack.c.l.b16 %v6088
        %v6443 = vunpack.c.h.b16 %v6088
        %v6444 = vunpack.c.l.b16 %v6089
        %v6445 = vunpack.c.h.b16 %v6089
        %v6446 = vunpack.c.l.b16 %v6090
        %v6447 = vunpack.c.h.b16 %v6090
        %v6448 = vunpack.c.l.b16 %v6091
        %v6449 = vunpack.c.h.b16 %v6091
        %v6450 = vunpack.c.l.b16 %v6092
        %v6451 = vunpack.c.h.b16 %v6092
        %v6452 = vunpack.c.l.b16 %v6093
        %v6453 = vunpack.c.h.b16 %v6093
        %v6454 = vunpack.c.l.b16 %v6094
        %v6455 = vunpack.c.h.b16 %v6094
        %v6456 = vunpack.c.l.b16 %v6095
        %v6457 = vunpack.c.h.b16 %v6095
        %v6458 = vunpack.c.l.b16 %v6096
        %v6459 = vunpack.c.h.b16 %v6096
        %v6460 = vunpack.c.l.b16 %v6097
        %v6461 = vunpack.c.h.b16 %v6097
        %v6462 = vunpack.c.l.b16 %v6098
        %v6463 = vunpack.c.h.b16 %v6098
        %v6464 = vunpack.c.l.b16 %v6099
        %v6465 = vunpack.c.h.b16 %v6099
        %v6466 = vunpack.c.l.b16 %v6100
        %v6467 = vunpack.c.h.b16 %v6100
        %v6468 = vunpack.c.l.b16 %v6101
        %v6469 = vunpack.c.h.b16 %v6101
        %v6470 = vunpack.c.l.b16 %v6102
        %v6471 = vunpack.c.h.b16 %v6102
        %v6472 = vunpack.c.l.b16 %v6103
        %v6473 = vunpack.c.h.b16 %v6103
        %v6474 = vunpack.c.l.b16 %v6104
        %v6475 = vunpack.c.h.b16 %v6104
        %v6476 = vunpack.c.l.b16 %v6105
        %v6477 = vunpack.c.h.b16 %v6105
        %v6478 = vunpack.c.l.b16 %v6106
        %v6479 = vunpack.c.h.b16 %v6106
        %v6480 = vunpack.c.l.b16 %v6107
        %v6481 = vunpack.c.h.b16 %v6107
        %v6482 = vunpack.c.l.b16 %v6108
        %v6483 = vunpack.c.h.b16 %v6108
        %v6484 = vunpack.c.l.b16 %v6109
        %v6485 = vunpack.c.h.b16 %v6109
        %v6486 = vunpack.c.l.b16 %v6110
        %v6487 = vunpack.c.h.b16 %v6110
        %v6488 = vunpack.c.l.b16 %v6111
        %v6489 = vunpack.c.h.b16 %v6111
        %v6490 = vunpack.c.l.b16 %v6112
        %v6491 = vunpack.c.h.b16 %v6112
        %v6492 = vunpack.c.l.b16 %v6113
        %v6493 = vunpack.c.h.b16 %v6113
        %v6494 = vunpack.c.l.b16 %v6114
        %v6495 = vunpack.c.h.b16 %v6114
        %v6496 = vunpack.c.l.b16 %v6115
        %v6497 = vunpack.c.h.b16 %v6115
        %v6498 = vunpack.c.l.b16 %v6116
        %v6499 = vunpack.c.h.b16 %v6116
        %v6500 = vunpack.c.l.b16 %v6117
        %v6501 = vunpack.c.h.b16 %v6117
        %v6502 = vunpack.c.l.b16 %v6118
        %v6503 = vunpack.c.h.b16 %v6118
        %v6504 = vunpack.c.l.b16 %v6119
        %v6505 = vunpack.c.h.b16 %v6119
        %v6506 = vunpack.c.l.b16 %v6120
        %v6507 = vunpack.c.h.b16 %v6120
        %v6508 = vunpack.c.l.b16 %v6121
        %v6509 = vunpack.c.h.b16 %v6121
        %v6510 = vunpack.c.l.b16 %v6122
        %v6511 = vunpack.c.h.b16 %v6122
        %v6512 = vunpack.c.l.b16 %v6123
        %v6513 = vunpack.c.h.b16 %v6123
        %v6514 = vunpack.c.l.b16 %v6124
        %v6515 = vunpack.c.h.b16 %v6124
        %v6516 = vunpack.c.l.b16 %v6125
        %v6517 = vunpack.c.h.b16 %v6125
        %v6518 = vunpack.c.l.b16 %v6126
        %v6519 = vunpack.c.h.b16 %v6126
        %v6520 = vunpack.c.l.b16 %v6127
        %v6521 = vunpack.c.h.b16 %v6127
        %v6522 = vunpack.c.l.b16 %v6128
        %v6523 = vunpack.c.h.b16 %v6128
        %v6524 = vunpack.c.l.b16 %v6129
        %v6525 = vunpack.c.h.b16 %v6129
        %v6526 = vunpack.c.l.b16 %v6130
        %v6527 = vunpack.c.h.b16 %v6130
        %v6528 = vunpack.c.l.b16 %v6131
        %v6529 = vunpack.c.h.b16 %v6131
        %v6530 = vunpack.c.l.b16 %v6132
        %v6531 = vunpack.c.h.b16 %v6132
        %v6532 = vunpack.c.l.b16 %v6133
        %v6533 = vunpack.c.h.b16 %v6133
        %v6534 = vpack.c.b16 %v6282, %v6278
        %v6535 = vpack.c.b16 %v6283, %v6279
        %v6536 = vpack.c.b16 %v6284, %v6280
        %v6537 = vpack.c.b16 %v6285, %v6281
        %v6538 = vpack.c.b16 %v6290, %v6286
        %v6539 = vpack.c.b16 %v6291, %v6287
        %v6540 = vpack.c.b16 %v6292, %v6288
        %v6541 = vpack.c.b16 %v6293, %v6289
        %v6542 = vpack.c.b16 %v6298, %v6294
        %v6543 = vpack.c.b16 %v6299, %v6295
        %v6544 = vpack.c.b16 %v6300, %v6296
        %v6545 = vpack.c.b16 %v6301, %v6297
        %v6546 = vpack.c.b16 %v6306, %v6302
        %v6547 = vpack.c.b16 %v6307, %v6303
        %v6548 = vpack.c.b16 %v6308, %v6304
        %v6549 = vpack.c.b16 %v6309, %v6305
        %v6550 = vpack.c.b16 %v6314, %v6310
        %v6551 = vpack.c.b16 %v6315, %v6311
        %v6552 = vpack.c.b16 %v6316, %v6312
        %v6553 = vpack.c.b16 %v6317, %v6313
        %v6554 = vpack.c.b16 %v6322, %v6318
        %v6555 = vpack.c.b16 %v6323, %v6319
        %v6556 = vpack.c.b16 %v6324, %v6320
        %v6557 = vpack.c.b16 %v6325, %v6321
        %v6558 = vpack.c.b16 %v6330, %v6326
        %v6559 = vpack.c.b16 %v6331, %v6327
        %v6560 = vpack.c.b16 %v6332, %v6328
        %v6561 = vpack.c.b16 %v6333, %v6329
        %v6562 = vpack.c.b16 %v6338, %v6334
        %v6563 = vpack.c.b16 %v6339, %v6335
        %v6564 = vpack.c.b16 %v6340, %v6336
        %v6565 = vpack.c.b16 %v6341, %v6337
        %v6566 = vpack.c.b16 %v6346, %v6342
        %v6567 = vpack.c.b16 %v6347, %v6343
        %v6568 = vpack.c.b16 %v6348, %v6344
        %v6569 = vpack.c.b16 %v6349, %v6345
        %v6570 = vpack.c.b16 %v6354, %v6350
        %v6571 = vpack.c.b16 %v6355, %v6351
        %v6572 = vpack.c.b16 %v6356, %v6352
        %v6573 = vpack.c.b16 %v6357, %v6353
        %v6574 = vpack.c.b16 %v6362, %v6358
        %v6575 = vpack.c.b16 %v6363, %v6359
        %v6576 = vpack.c.b16 %v6364, %v6360
        %v6577 = vpack.c.b16 %v6365, %v6361
        %v6578 = vpack.c.b16 %v6370, %v6366
        %v6579 = vpack.c.b16 %v6371, %v6367
        %v6580 = vpack.c.b16 %v6372, %v6368
        %v6581 = vpack.c.b16 %v6373, %v6369
        %v6582 = vpack.c.b16 %v6378, %v6374
        %v6583 = vpack.c.b16 %v6379, %v6375
        %v6584 = vpack.c.b16 %v6380, %v6376
        %v6585 = vpack.c.b16 %v6381, %v6377
        %v6586 = vpack.c.b16 %v6386, %v6382
        %v6587 = vpack.c.b16 %v6387, %v6383
        %v6588 = vpack.c.b16 %v6388, %v6384
        %v6589 = vpack.c.b16 %v6389, %v6385
        %v6590 = vpack.c.b16 %v6394, %v6390
        %v6591 = vpack.c.b16 %v6395, %v6391
        %v6592 = vpack.c.b16 %v6396, %v6392
        %v6593 = vpack.c.b16 %v6397, %v6393
        %v6594 = vpack.c.b16 %v6402, %v6398
        %v6595 = vpack.c.b16 %v6403, %v6399
        %v6596 = vpack.c.b16 %v6404, %v6400
        %v6597 = vpack.c.b16 %v6405, %v6401
        %v6598 = vpack.c.b16 %v6410, %v6406
        %v6599 = vpack.c.b16 %v6411, %v6407
        %v6600 = vpack.c.b16 %v6412, %v6408
        %v6601 = vpack.c.b16 %v6413, %v6409
        %v6602 = vpack.c.b16 %v6418, %v6414
        %v6603 = vpack.c.b16 %v6419, %v6415
        %v6604 = vpack.c.b16 %v6420, %v6416
        %v6605 = vpack.c.b16 %v6421, %v6417
        %v6606 = vpack.c.b16 %v6426, %v6422
        %v6607 = vpack.c.b16 %v6427, %v6423
        %v6608 = vpack.c.b16 %v6428, %v6424
        %v6609 = vpack.c.b16 %v6429, %v6425
        %v6610 = vpack.c.b16 %v6434, %v6430
        %v6611 = vpack.c.b16 %v6435, %v6431
        %v6612 = vpack.c.b16 %v6436, %v6432
        %v6613 = vpack.c.b16 %v6437, %v6433
        %v6614 = vpack.c.b16 %v6442, %v6438
        %v6615 = vpack.c.b16 %v6443, %v6439
        %v6616 = vpack.c.b16 %v6444, %v6440
        %v6617 = vpack.c.b16 %v6445, %v6441
        %v6618 = vpack.c.b16 %v6450, %v6446
        %v6619 = vpack.c.b16 %v6451, %v6447
        %v6620 = vpack.c.b16 %v6452, %v6448
        %v6621 = vpack.c.b16 %v6453, %v6449
        %v6622 = vpack.c.b16 %v6458, %v6454
        %v6623 = vpack.c.b16 %v6459, %v6455
        %v6624 = vpack.c.b16 %v6460, %v6456
        %v6625 = vpack.c.b16 %v6461, %v6457
        %v6626 = vpack.c.b16 %v6466, %v6462
        %v6627 = vpack.c.b16 %v6467, %v6463
        %v6628 = vpack.c.b16 %v6468, %v6464
        %v6629 = vpack.c.b16 %v6469, %v6465
        %v6630 = vpack.c.b16 %v6474, %v6470
        %v6631 = vpack.c.b16 %v6475, %v6471
        %v6632 = vpack.c.b16 %v6476, %v6472
        %v6633 = vpack.c.b16 %v6477, %v6473
        %v6634 = vpack.c.b16 %v6482, %v6478
        %v6635 = vpack.c.b16 %v6483, %v6479
        %v6636 = vpack.c.b16 %v6484, %v6480
        %v6637 = vpack.c.b16 %v6485, %v6481
        %v6638 = vpack.c.b16 %v6490, %v6486
        %v6639 = vpack.c.b16 %v6491, %v6487
        %v6640 = vpack.c.b16 %v6492, %v6488
        %v6641 = vpack.c.b16 %v6493, %v6489
        %v6642 = vpack.c.b16 %v6498, %v6494
        %v6643 = vpack.c.b16 %v6499, %v6495
        %v6644 = vpack.c.b16 %v6500, %v6496
        %v6645 = vpack.c.b16 %v6501, %v6497
        %v6646 = vpack.c.b16 %v6506, %v6502
        %v6647 = vpack.c.b16 %v6507, %v6503
        %v6648 = vpack.c.b16 %v6508, %v6504
        %v6649 = vpack.c.b16 %v6509, %v6505
        %v6650 = vpack.c.b16 %v6514, %v6510
        %v6651 = vpack.c.b16 %v6515, %v6511
        %v6652 = vpack.c.b16 %v6516, %v6512
        %v6653 = vpack.c.b16 %v6517, %v6513
        %v6654 = vpack.c.b16 %v6522, %v6518
        %v6655 = vpack.c.b16 %v6523, %v6519
        %v6656 = vpack.c.b16 %v6524, %v6520
        %v6657 = vpack.c.b16 %v6525, %v6521
        %v6658 = vpack.c.b16 %v6530, %v6526
        %v6659 = vpack.c.b16 %v6531, %v6527
        %v6660 = vpack.c.b16 %v6532, %v6528
        %v6661 = vpack.c.b16 %v6533, %v6529
        %6790 = vmatprep.subr.bf16.mxu0 %v6535
        %6791 = vmatpush1.bf16.msra.mxu0 %v6534
        %6792 = vmatprep.subr.bf16.mxu0 %v6539
        %6793 = vmatpush1.bf16.msra.mxu0 %v6538
        %6794 = vmatprep.subr.bf16.mxu0 %v6543
        %6795 = vmatpush1.bf16.msra.mxu0 %v6542
        %6796 = vmatprep.subr.bf16.mxu0 %v6547
        %6797 = vmatpush1.bf16.msra.mxu0 %v6546
        %6798 = vmatprep.subr.bf16.mxu0 %v6551
        %6799 = vmatpush1.bf16.msra.mxu0 %v6550
        %6800 = vmatprep.subr.bf16.mxu0 %v6555
        %6801 = vmatpush1.bf16.msra.mxu0 %v6554
        %6802 = vmatprep.subr.bf16.mxu0 %v6559
        %6803 = vmatpush1.bf16.msra.mxu0 %v6558
        %6804 = vmatprep.subr.bf16.mxu0 %v6563
        %6805 = vmatpush1.bf16.msra.mxu0 %v6562
        %6806 = vmatprep.subr.bf16.mxu0 %v6567
        %6807 = vmatpush1.bf16.msra.mxu0 %v6566
        %6808 = vmatprep.subr.bf16.mxu0 %v6571
        %6809 = vmatpush1.bf16.msra.mxu0 %v6570
        %6810 = vmatprep.subr.bf16.mxu0 %v6575
        %6811 = vmatpush1.bf16.msra.mxu0 %v6574
        %6812 = vmatprep.subr.bf16.mxu0 %v6579
        %6813 = vmatpush1.bf16.msra.mxu0 %v6578
        %6814 = vmatprep.subr.bf16.mxu0 %v6583
        %6815 = vmatpush1.bf16.msra.mxu0 %v6582
        %6816 = vmatprep.subr.bf16.mxu0 %v6587
        %6817 = vmatpush1.bf16.msra.mxu0 %v6586
        %6818 = vmatprep.subr.bf16.mxu0 %v6591
        %6819 = vmatpush1.bf16.msra.mxu0 %v6590
        %6820 = vmatprep.subr.bf16.mxu0 %v6595
        %6821 = vmatpush1.bf16.msra.mxu0 %v6594
        %6822 = vmatprep.mubr.bf16.mxu0 %v5991
        %6823 = vmatmul.mubr.bf16.gmra.mrb[0].mxu0 %v5990
        %v6824 = vpop.f32.mrb[0].mxu0
        %v6825 = vadd.f32 %v6137, %v6824
        %v6826 = vpop.f32.mrb[0].mxu0
        %v6827 = vadd.f32 %v6141, %v6826
        %v6828 = vpop.f32.mrb[0].mxu0
        %v6829 = vadd.f32 %v6137, %v6828
        %v6830 = vpop.f32.mrb[0].mxu0
        %v6831 = vadd.f32 %v6141, %v6830
        %6832 = vmatprep.mubr.bf16.mxu0 %v5995
        %6833 = vmatmul.mubr.bf16.gmra.mrb[0].mxu0 %v5994
        %v6834 = vpop.f32.mrb[0].mxu0
        %v6835 = vadd.f32 %v6137, %v6834
        %v6836 = vpop.f32.mrb[0].mxu0
        %v6837 = vadd.f32 %v6141, %v6836
        %v6838 = vpop.f32.mrb[0].mxu0
        %v6839 = vadd.f32 %v6137, %v6838
        %v6840 = vpop.f32.mrb[0].mxu0
        %v6841 = vadd.f32 %v6141, %v6840
        %6842 = vmatprep.mubr.bf16.mxu0 %v5999
        %6843 = vmatmul.mubr.bf16.gmra.mrb[0].mxu0 %v5998
        %v6844 = vpop.f32.mrb[0].mxu0
        %v6845 = vadd.f32 %v6137, %v6844
        %v6846 = vpop.f32.mrb[0].mxu0
        %v6847 = vadd.f32 %v6141, %v6846
        %v6848 = vpop.f32.mrb[0].mxu0
        %v6849 = vadd.f32 %v6137, %v6848
        %v6850 = vpop.f32.mrb[0].mxu0
        %v6851 = vadd.f32 %v6141, %v6850
        %6852 = vmatprep.mubr.bf16.mxu0 %v6003
        %6853 = vmatmul.mubr.bf16.gmra.mrb[0].mxu0 %v6002
        %v6854 = vpop.f32.mrb[0].mxu0
        %v6855 = vadd.f32 %v6137, %v6854
        %v6856 = vpop.f32.mrb[0].mxu0
        %v6857 = vadd.f32 %v6141, %v6856
        %v6858 = vpop.f32.mrb[0].mxu0
        %v6859 = vadd.f32 %v6137, %v6858
        %v6860 = vpop.f32.mrb[0].mxu0
        %v6861 = vadd.f32 %v6141, %v6860
        %6862 = vdwg.mxu0
        %6863 = vmatprep.subr.bf16.mxu0 %v6599
        %6864 = vmatpush1.bf16.msra.mxu0 %v6598
        %6865 = vmatprep.subr.bf16.mxu0 %v6603
        %6866 = vmatpush1.bf16.msra.mxu0 %v6602
        %6867 = vmatprep.subr.bf16.mxu0 %v6607
        %6868 = vmatpush1.bf16.msra.mxu0 %v6606
        %6869 = vmatprep.subr.bf16.mxu0 %v6611
        %6870 = vmatpush1.bf16.msra.mxu0 %v6610
        %6871 = vmatprep.subr.bf16.mxu0 %v6615
        %6872 = vmatpush1.bf16.msra.mxu0 %v6614
        %6873 = vmatprep.subr.bf16.mxu0 %v6619
        %6874 = vmatpush1.bf16.msra.mxu0 %v6618
        %6875 = vmatprep.subr.bf16.mxu0 %v6623
        %6876 = vmatpush1.bf16.msra.mxu0 %v6622
        %6877 = vmatprep.subr.bf16.mxu0 %v6627
        %6878 = vmatpush1.bf16.msra.mxu0 %v6626
        %6879 = vmatprep.subr.bf16.mxu0 %v6631
        %6880 = vmatpush1.bf16.msra.mxu0 %v6630
        %6881 = vmatprep.subr.bf16.mxu0 %v6635
        %6882 = vmatpush1.bf16.msra.mxu0 %v6634
        %6883 = vmatprep.subr.bf16.mxu0 %v6639
        %6884 = vmatpush1.bf16.msra.mxu0 %v6638
        %6885 = vmatprep.subr.bf16.mxu0 %v6643
        %6886 = vmatpush1.bf16.msra.mxu0 %v6642
        %6887 = vmatprep.subr.bf16.mxu0 %v6647
        %6888 = vmatpush1.bf16.msra.mxu0 %v6646
        %6889 = vmatprep.subr.bf16.mxu0 %v6651
        %6890 = vmatpush1.bf16.msra.mxu0 %v6650
        %6891 = vmatprep.subr.bf16.mxu0 %v6655
        %6892 = vmatpush1.bf16.msra.mxu0 %v6654
        %6893 = vmatprep.subr.bf16.mxu0 %v6659
        %6894 = vmatpush1.bf16.msra.mxu0 %v6658
        %6895 = vmatprep.mubr.bf16.mxu0 %v5993
        %6896 = vmatmul.mubr.bf16.gmra.mrb[0].mxu0 %v5992
        %v6897 = vpop.f32.mrb[0].mxu0
        %v6898 = vadd.f32 %v6825, %v6897
        %v6899 = vpop.f32.mrb[0].mxu0
        %v6900 = vadd.f32 %v6827, %v6899
        %v6901 = vpop.f32.mrb[0].mxu0
        %v6902 = vadd.f32 %v6829, %v6901
        %v6903 = vpop.f32.mrb[0].mxu0
        %v6904 = vadd.f32 %v6831, %v6903
        %6905 = vmatprep.mubr.bf16.mxu0 %v5997
        %6906 = vmatmul.mubr.bf16.gmra.mrb[0].mxu0 %v5996
        %v6907 = vpop.f32.mrb[0].mxu0
        %v6908 = vadd.f32 %v6835, %v6907
        %v6909 = vpop.f32.mrb[0].mxu0
        %v6910 = vadd.f32 %v6837, %v6909
        %v6911 = vpop.f32.mrb[0].mxu0
        %v6912 = vadd.f32 %v6839, %v6911
        %v6913 = vpop.f32.mrb[0].mxu0
        %v6914 = vadd.f32 %v6841, %v6913
        %6915 = vmatprep.mubr.bf16.mxu0 %v6001
        %6916 = vmatmul.mubr.bf16.gmra.mrb[0].mxu0 %v6000
        %v6917 = vpop.f32.mrb[0].mxu0
        %v6918 = vadd.f32 %v6845, %v6917
        %v6919 = vpop.f32.mrb[0].mxu0
        %v6920 = vadd.f32 %v6847, %v6919
        %v6921 = vpop.f32.mrb[0].mxu0
        %v6922 = vadd.f32 %v6849, %v6921
        %v6923 = vpop.f32.mrb[0].mxu0
        %v6924 = vadd.f32 %v6851, %v6923
        %6925 = vmatprep.mubr.bf16.mxu0 %v6005
        %6926 = vmatmul.mubr.bf16.gmra.mrb[0].mxu0 %v6004
        %v6927 = vpop.f32.mrb[0].mxu0
        %v6928 = vadd.f32 %v6855, %v6927
        %v6929 = vpop.f32.mrb[0].mxu0
        %v6930 = vadd.f32 %v6857, %v6929
        %v6931 = vpop.f32.mrb[0].mxu0
        %v6932 = vadd.f32 %v6859, %v6931
        %v6933 = vpop.f32.mrb[0].mxu0
        %v6934 = vadd.f32 %v6861, %v6933
        %6935 = vdwg.mxu0
        %6936 = vmatprep.subr.bf16.mxu0 %v6537
        %6937 = vmatpush1.bf16.msra.mxu0 %v6536
        %6938 = vmatprep.subr.bf16.mxu0 %v6541
        %6939 = vmatpush1.bf16.msra.mxu0 %v6540
        %6940 = vmatprep.subr.bf16.mxu0 %v6545
        %6941 = vmatpush1.bf16.msra.mxu0 %v6544
        %6942 = vmatprep.subr.bf16.mxu0 %v6549
        %6943 = vmatpush1.bf16.msra.mxu0 %v6548
        %6944 = vmatprep.subr.bf16.mxu0 %v6553
        %6945 = vmatpush1.bf16.msra.mxu0 %v6552
        %6946 = vmatprep.subr.bf16.mxu0 %v6557
        %6947 = vmatpush1.bf16.msra.mxu0 %v6556
        %6948 = vmatprep.subr.bf16.mxu0 %v6561
        %6949 = vmatpush1.bf16.msra.mxu0 %v6560
        %6950 = vmatprep.subr.bf16.mxu0 %v6565
        %6951 = vmatpush1.bf16.msra.mxu0 %v6564
        %6952 = vmatprep.subr.bf16.mxu0 %v6569
        %6953 = vmatpush1.bf16.msra.mxu0 %v6568
        %6954 = vmatprep.subr.bf16.mxu0 %v6573
        %6955 = vmatpush1.bf16.msra.mxu0 %v6572
        %6956 = vmatprep.subr.bf16.mxu0 %v6577
        %6957 = vmatpush1.bf16.msra.mxu0 %v6576
        %6958 = vmatprep.subr.bf16.mxu0 %v6581
        %6959 = vmatpush1.bf16.msra.mxu0 %v6580
        %6960 = vmatprep.subr.bf16.mxu0 %v6585
        %6961 = vmatpush1.bf16.msra.mxu0 %v6584
        %6962 = vmatprep.subr.bf16.mxu0 %v6589
        %6963 = vmatpush1.bf16.msra.mxu0 %v6588
        %6964 = vmatprep.subr.bf16.mxu0 %v6593
        %6965 = vmatpush1.bf16.msra.mxu0 %v6592
        %6966 = vmatprep.subr.bf16.mxu0 %v6597
        %6967 = vmatpush1.bf16.msra.mxu0 %v6596
        %6968 = vmatprep.mubr.bf16.mxu0 %v5991
        %6969 = vmatmul.mubr.bf16.gmra.mrb[0].mxu0 %v5990
        %v6970 = vpop.f32.mrb[0].mxu0
        %v6971 = vadd.f32 %v6145, %v6970
        %v6972 = vpop.f32.mrb[0].mxu0
        %v6973 = vadd.f32 %v6149, %v6972
        %v6974 = vpop.f32.mrb[0].mxu0
        %v6975 = vadd.f32 %v6145, %v6974
        %v6976 = vpop.f32.mrb[0].mxu0
        %v6977 = vadd.f32 %v6149, %v6976
        %6978 = vmatprep.mubr.bf16.mxu0 %v5995
        %6979 = vmatmul.mubr.bf16.gmra.mrb[0].mxu0 %v5994
        %v6980 = vpop.f32.mrb[0].mxu0
        %v6981 = vadd.f32 %v6145, %v6980
        %v6982 = vpop.f32.mrb[0].mxu0
        %v6983 = vadd.f32 %v6149, %v6982
        %v6984 = vpop.f32.mrb[0].mxu0
        %v6985 = vadd.f32 %v6145, %v6984
        %v6986 = vpop.f32.mrb[0].mxu0
        %v6987 = vadd.f32 %v6149, %v6986
        %6988 = vmatprep.mubr.bf16.mxu0 %v5999
        %6989 = vmatmul.mubr.bf16.gmra.mrb[0].mxu0 %v5998
        %v6990 = vpop.f32.mrb[0].mxu0
        %v6991 = vadd.f32 %v6145, %v6990
        %v6992 = vpop.f32.mrb[0].mxu0
        %v6993 = vadd.f32 %v6149, %v6992
        %v6994 = vpop.f32.mrb[0].mxu0
        %v6995 = vadd.f32 %v6145, %v6994
        %v6996 = vpop.f32.mrb[0].mxu0
        %v6997 = vadd.f32 %v6149, %v6996
        %6998 = vmatprep.mubr.bf16.mxu0 %v6003
        %6999 = vmatmul.mubr.bf16.gmra.mrb[0].mxu0 %v6002
        %v7000 = vpop.f32.mrb[0].mxu0
        %v7001 = vadd.f32 %v6145, %v7000
        %v7002 = vpop.f32.mrb[0].mxu0
        %v7003 = vadd.f32 %v6149, %v7002
        %v7004 = vpop.f32.mrb[0].mxu0
        %v7005 = vadd.f32 %v6145, %v7004
        %v7006 = vpop.f32.mrb[0].mxu0
        %v7007 = vadd.f32 %v6149, %v7006
        %7008 = vdwg.mxu0
        %7009 = vmatprep.subr.bf16.mxu0 %v6601
        %7010 = vmatpush1.bf16.msra.mxu0 %v6600
        %7011 = vmatprep.subr.bf16.mxu0 %v6605
        %7012 = vmatpush1.bf16.msra.mxu0 %v6604
        %7013 = vmatprep.subr.bf16.mxu0 %v6609
        %7014 = vmatpush1.bf16.msra.mxu0 %v6608
        %7015 = vmatprep.subr.bf16.mxu0 %v6613
        %7016 = vmatpush1.bf16.msra.mxu0 %v6612
        %7017 = vmatprep.subr.bf16.mxu0 %v6617
        %7018 = vmatpush1.bf16.msra.mxu0 %v6616
        %7019 = vmatprep.subr.bf16.mxu0 %v6621
        %7020 = vmatpush1.bf16.msra.mxu0 %v6620
        %7021 = vmatprep.subr.bf16.mxu0 %v6625
        %7022 = vmatpush1.bf16.msra.mxu0 %v6624
        %7023 = vmatprep.subr.bf16.mxu0 %v6629
        %7024 = vmatpush1.bf16.msra.mxu0 %v6628
        %7025 = vmatprep.subr.bf16.mxu0 %v6633
        %7026 = vmatpush1.bf16.msra.mxu0 %v6632
        %7027 = vmatprep.subr.bf16.mxu0 %v6637
        %7028 = vmatpush1.bf16.msra.mxu0 %v6636
        %7029 = vmatprep.subr.bf16.mxu0 %v6641
        %7030 = vmatpush1.bf16.msra.mxu0 %v6640
        %7031 = vmatprep.subr.bf16.mxu0 %v6645
        %7032 = vmatpush1.bf16.msra.mxu0 %v6644
        %7033 = vmatprep.subr.bf16.mxu0 %v6649
        %7034 = vmatpush1.bf16.msra.mxu0 %v6648
        %7035 = vmatprep.subr.bf16.mxu0 %v6653
        %7036 = vmatpush1.bf16.msra.mxu0 %v6652
        %7037 = vmatprep.subr.bf16.mxu0 %v6657
        %7038 = vmatpush1.bf16.msra.mxu0 %v6656
        %7039 = vmatprep.subr.bf16.mxu0 %v6661
        %7040 = vmatpush1.bf16.msra.mxu0 %v6660
        %7041 = vmatprep.mubr.bf16.mxu0 %v5993
        %7042 = vmatmul.mubr.bf16.gmra.mrb[0].mxu0 %v5992
        %v7043 = vpop.f32.mrb[0].mxu0
        %v7044 = vadd.f32 %v6971, %v7043
        %v7045 = vpop.f32.mrb[0].mxu0
        %v7046 = vadd.f32 %v6973, %v7045
        %v7047 = vpop.f32.mrb[0].mxu0
        %v7048 = vadd.f32 %v6975, %v7047
        %v7049 = vpop.f32.mrb[0].mxu0
        %v7050 = vadd.f32 %v6977, %v7049
        %7051 = vmatprep.mubr.bf16.mxu0 %v5997
        %7052 = vmatmul.mubr.bf16.gmra.mrb[0].mxu0 %v5996
        %v7053 = vpop.f32.mrb[0].mxu0
        %v7054 = vadd.f32 %v6981, %v7053
        %v7055 = vpop.f32.mrb[0].mxu0
        %v7056 = vadd.f32 %v6983, %v7055
        %v7057 = vpop.f32.mrb[0].mxu0
        %v7058 = vadd.f32 %v6985, %v7057
        %v7059 = vpop.f32.mrb[0].mxu0
        %v7060 = vadd.f32 %v6987, %v7059
        %7061 = vmatprep.mubr.bf16.mxu0 %v6001
        %7062 = vmatmul.mubr.bf16.gmra.mrb[0].mxu0 %v6000
        %v7063 = vpop.f32.mrb[0].mxu0
        %v7064 = vadd.f32 %v6991, %v7063
        %v7065 = vpop.f32.mrb[0].mxu0
        %v7066 = vadd.f32 %v6993, %v7065
        %v7067 = vpop.f32.mrb[0].mxu0
        %v7068 = vadd.f32 %v6995, %v7067
        %v7069 = vpop.f32.mrb[0].mxu0
        %v7070 = vadd.f32 %v6997, %v7069
        %7071 = vmatprep.mubr.bf16.mxu0 %v6005
        %7072 = vmatmul.mubr.bf16.gmra.mrb[0].mxu0 %v6004
        %v7073 = vpop.f32.mrb[0].mxu0
        %v7074 = vadd.f32 %v7001, %v7073
        %v7075 = vpop.f32.mrb[0].mxu0
        %v7076 = vadd.f32 %v7003, %v7075
        %v7077 = vpop.f32.mrb[0].mxu0
        %v7078 = vadd.f32 %v7005, %v7077
        %v7079 = vpop.f32.mrb[0].mxu0
        %v7080 = vadd.f32 %v7007, %v7079
        %7081 = vdwg.mxu0
        %v7082 = vmax.f32 %v6898, 0.0
        %v7083 = vmax.f32 %v6900, 0.0
        %v7084 = vmax.f32 %v7044, 0.0
        %v7085 = vmax.f32 %v7046, 0.0
        %v7086 = vmax.f32 %v6902, 0.0
        %v7087 = vmax.f32 %v6904, 0.0
        %v7088 = vmax.f32 %v7048, 0.0
        %v7089 = vmax.f32 %v7050, 0.0
        %v7090 = vmax.f32 %v6908, 0.0
        %v7091 = vmax.f32 %v6910, 0.0
        %v7092 = vmax.f32 %v7054, 0.0
        %v7093 = vmax.f32 %v7056, 0.0
        %v7094 = vmax.f32 %v6912, 0.0
        %v7095 = vmax.f32 %v6914, 0.0
        %v7096 = vmax.f32 %v7058, 0.0
        %v7097 = vmax.f32 %v7060, 0.0
        %v7098 = vmax.f32 %v6918, 0.0
        %v7099 = vmax.f32 %v6920, 0.0
        %v7100 = vmax.f32 %v7064, 0.0
        %v7101 = vmax.f32 %v7066, 0.0
        %v7102 = vmax.f32 %v6922, 0.0
        %v7103 = vmax.f32 %v6924, 0.0
        %v7104 = vmax.f32 %v7068, 0.0
        %v7105 = vmax.f32 %v7070, 0.0
        %v7106 = vmax.f32 %v6928, 0.0
        %v7107 = vmax.f32 %v6930, 0.0
        %v7108 = vmax.f32 %v7074, 0.0
        %v7109 = vmax.f32 %v7076, 0.0
        %v7110 = vmax.f32 %v6932, 0.0
        %v7111 = vmax.f32 %v6934, 0.0
        %v7112 = vmax.f32 %v7078, 0.0
        %v7113 = vmax.f32 %v7080, 0.0
        %v7114 = vadd.f32 %v7082, %v7086
        %v7115 = vadd.f32 %v7114, %v7090
        %v7116 = vadd.f32 %v7115, %v7094
        %v7117 = vadd.f32 %v7116, %v7098
        %v7118 = vadd.f32 %v7117, %v7102
        %v7119 = vadd.f32 %v7118, %v7106
        %v7120 = vadd.f32 %v7119, %v7110
        %v7121 = vrot.slane %v7120, 4
        %v7122 = vadd.f32 %v7120, %v7121
        %v7123 = vrot.slane %v7122, 2
        %v7124 = vadd.f32 %v7122, %v7123
        %v7125 = vrot.slane %v7124, 1
        %v7126 = vadd.f32 %v7124, %v7125
        %v7127 = vadd.f32 %v7083, %v7087
        %v7128 = vadd.f32 %v7127, %v7091
        %v7129 = vadd.f32 %v7128, %v7095
        %v7130 = vadd.f32 %v7129, %v7099
        %v7131 = vadd.f32 %v7130, %v7103
        %v7132 = vadd.f32 %v7131, %v7107
        %v7133 = vadd.f32 %v7132, %v7111
        %v7134 = vrot.slane %v7133, 4
        %v7135 = vadd.f32 %v7133, %v7134
        %v7136 = vrot.slane %v7135, 2
        %v7137 = vadd.f32 %v7135, %v7136
        %v7138 = vrot.slane %v7137, 1
        %v7139 = vadd.f32 %v7137, %v7138
        %v7140 = vadd.f32 %v7084, %v7088
        %v7141 = vadd.f32 %v7140, %v7092
        %v7142 = vadd.f32 %v7141, %v7096
        %v7143 = vadd.f32 %v7142, %v7100
        %v7144 = vadd.f32 %v7143, %v7104
        %v7145 = vadd.f32 %v7144, %v7108
        %v7146 = vadd.f32 %v7145, %v7112
        %v7147 = vrot.slane %v7146, 4
        %v7148 = vadd.f32 %v7146, %v7147
        %v7149 = vrot.slane %v7148, 2
        %v7150 = vadd.f32 %v7148, %v7149
        %v7151 = vrot.slane %v7150, 1
        %v7152 = vadd.f32 %v7150, %v7151
        %v7153 = vadd.f32 %v7085, %v7089
        %v7154 = vadd.f32 %v7153, %v7093
        %v7155 = vadd.f32 %v7154, %v7097
        %v7156 = vadd.f32 %v7155, %v7101
        %v7157 = vadd.f32 %v7156, %v7105
        %v7158 = vadd.f32 %v7157, %v7109
        %v7159 = vadd.f32 %v7158, %v7113
        %v7160 = vrot.slane %v7159, 4
        %v7161 = vadd.f32 %v7159, %v7160
        %v7162 = vrot.slane %v7161, 2
        %v7163 = vadd.f32 %v7161, %v7162
        %v7164 = vrot.slane %v7163, 1
        %v7165 = vadd.f32 %v7163, %v7164
        %v7166 = vpack.c.bf16 %v7126, %v7126
        %v7167 = vpack.c.bf16 %v7139, %v7139
        %v7168 = vpack.c.bf16 %v7152, %v7152
        %v7169 = vpack.c.bf16 %v7165, %v7165
        %v7170 = vld [vmem:[#allocation12] sm:$0xff]
        %v7171 = vld [vmem:[#allocation12 + $0x8] sm:$0xff]
        %v7172 = vld [vmem:[#allocation12 + $0x10] sm:$0xff]
        %v7173 = vld [vmem:[#allocation12 + $0x18] sm:$0xff]
        %v7174 = vld [vmem:[#allocation12 + $0x20] sm:$0xff]
        %v7175 = vld [vmem:[#allocation12 + $0x28] sm:$0xff]
        %v7176 = vld [vmem:[#allocation12 + $0x30] sm:$0xff]
        %v7177 = vld [vmem:[#allocation12 + $0x38] sm:$0xff]
        %v7178 = vld [vmem:[#allocation12 + $0x40] sm:$0xff]
        %v7179 = vld [vmem:[#allocation12 + $0x48] sm:$0xff]
        %v7180 = vld [vmem:[#allocation12 + $0x50] sm:$0xff]
        %v7181 = vld [vmem:[#allocation12 + $0x58] sm:$0xff]
        %v7182 = vld [vmem:[#allocation12 + $0x60] sm:$0xff]
        %v7183 = vld [vmem:[#allocation12 + $0x68] sm:$0xff]
        %v7184 = vld [vmem:[#allocation12 + $0x70] sm:$0xff]
        %v7185 = vld [vmem:[#allocation12 + $0x78] sm:$0xff]
        %v7186 = vld [vmem:[#allocation12 + $0x80] sm:$0xff]
        %v7187 = vld [vmem:[#allocation12 + $0x88] sm:$0xff]
        %v7188 = vld [vmem:[#allocation12 + $0x90] sm:$0xff]
        %v7189 = vld [vmem:[#allocation12 + $0x98] sm:$0xff]
        %v7190 = vld [vmem:[#allocation12 + $0xa0] sm:$0xff]
        %v7191 = vld [vmem:[#allocation12 + $0xa8] sm:$0xff]
        %v7192 = vld [vmem:[#allocation12 + $0xb0] sm:$0xff]
        %v7193 = vld [vmem:[#allocation12 + $0xb8] sm:$0xff]
        %v7194 = vld [vmem:[#allocation12 + $0xc0] sm:$0xff]
        %v7195 = vld [vmem:[#allocation12 + $0xc8] sm:$0xff]
        %v7196 = vld [vmem:[#allocation12 + $0xd0] sm:$0xff]
        %v7197 = vld [vmem:[#allocation12 + $0xd8] sm:$0xff]
        %v7198 = vld [vmem:[#allocation12 + $0xe0] sm:$0xff]
        %v7199 = vld [vmem:[#allocation12 + $0xe8] sm:$0xff]
        %v7200 = vld [vmem:[#allocation12 + $0xf0] sm:$0xff]
        %v7201 = vld [vmem:[#allocation12 + $0xf8] sm:$0xff]
        %v7202 = vld [vmem:[#allocation12 + $0x100] sm:$0xff]
        %v7203 = vld [vmem:[#allocation12 + $0x108] sm:$0xff]
        %v7204 = vld [vmem:[#allocation12 + $0x110] sm:$0xff]
        %v7205 = vld [vmem:[#allocation12 + $0x118] sm:$0xff]
        %v7206 = vld [vmem:[#allocation12 + $0x120] sm:$0xff]
        %v7207 = vld [vmem:[#allocation12 + $0x128] sm:$0xff]
        %v7208 = vld [vmem:[#allocation12 + $0x130] sm:$0xff]
        %v7209 = vld [vmem:[#allocation12 + $0x138] sm:$0xff]
        %v7210 = vld [vmem:[#allocation12 + $0x140] sm:$0xff]
        %v7211 = vld [vmem:[#allocation12 + $0x148] sm:$0xff]
        %v7212 = vld [vmem:[#allocation12 + $0x150] sm:$0xff]
        %v7213 = vld [vmem:[#allocation12 + $0x158] sm:$0xff]
        %v7214 = vld [vmem:[#allocation12 + $0x160] sm:$0xff]
        %v7215 = vld [vmem:[#allocation12 + $0x168] sm:$0xff]
        %v7216 = vld [vmem:[#allocation12 + $0x170] sm:$0xff]
        %v7217 = vld [vmem:[#allocation12 + $0x178] sm:$0xff]
        %v7218 = vld [vmem:[#allocation12 + $0x180] sm:$0xff]
        %v7219 = vld [vmem:[#allocation12 + $0x188] sm:$0xff]
        %v7220 = vld [vmem:[#allocation12 + $0x190] sm:$0xff]
        %v7221 = vld [vmem:[#allocation12 + $0x198] sm:$0xff]
        %v7222 = vld [vmem:[#allocation12 + $0x1a0] sm:$0xff]
        %v7223 = vld [vmem:[#allocation12 + $0x1a8] sm:$0xff]
        %v7224 = vld [vmem:[#allocation12 + $0x1b0] sm:$0xff]
        %v7225 = vld [vmem:[#allocation12 + $0x1b8] sm:$0xff]
        %v7226 = vld [vmem:[#allocation12 + $0x1c0] sm:$0xff]
        %v7227 = vld [vmem:[#allocation12 + $0x1c8] sm:$0xff]
        %v7228 = vld [vmem:[#allocation12 + $0x1d0] sm:$0xff]
        %v7229 = vld [vmem:[#allocation12 + $0x1d8] sm:$0xff]
        %v7230 = vld [vmem:[#allocation12 + $0x1e0] sm:$0xff]
        %v7231 = vld [vmem:[#allocation12 + $0x1e8] sm:$0xff]
        %v7232 = vld [vmem:[#allocation12 + $0x1f0] sm:$0xff]
        %v7233 = vld [vmem:[#allocation12 + $0x1f8] sm:$0xff]
        %v7234 = vld [vmem:[#allocation12 + $0x200] sm:$0xff]
        %v7235 = vld [vmem:[#allocation12 + $0x208] sm:$0xff]
        %v7236 = vld [vmem:[#allocation12 + $0x210] sm:$0xff]
        %v7237 = vld [vmem:[#allocation12 + $0x218] sm:$0xff]
        %v7238 = vld [vmem:[#allocation12 + $0x220] sm:$0xff]
        %v7239 = vld [vmem:[#allocation12 + $0x228] sm:$0xff]
        %v7240 = vld [vmem:[#allocation12 + $0x230] sm:$0xff]
        %v7241 = vld [vmem:[#allocation12 + $0x238] sm:$0xff]
        %v7242 = vld [vmem:[#allocation12 + $0x240] sm:$0xff]
        %v7243 = vld [vmem:[#allocation12 + $0x248] sm:$0xff]
        %v7244 = vld [vmem:[#allocation12 + $0x250] sm:$0xff]
        %v7245 = vld [vmem:[#allocation12 + $0x258] sm:$0xff]
        %v7246 = vld [vmem:[#allocation12 + $0x260] sm:$0xff]
        %v7247 = vld [vmem:[#allocation12 + $0x268] sm:$0xff]
        %v7248 = vld [vmem:[#allocation12 + $0x270] sm:$0xff]
        %v7249 = vld [vmem:[#allocation12 + $0x278] sm:$0xff]
        %v7250 = vld [vmem:[#allocation12 + $0x280] sm:$0xff]
        %v7251 = vld [vmem:[#allocation12 + $0x288] sm:$0xff]
        %v7252 = vld [vmem:[#allocation12 + $0x290] sm:$0xff]
        %v7253 = vld [vmem:[#allocation12 + $0x298] sm:$0xff]
        %v7254 = vld [vmem:[#allocation12 + $0x2a0] sm:$0xff]
        %v7255 = vld [vmem:[#allocation12 + $0x2a8] sm:$0xff]
        %v7256 = vld [vmem:[#allocation12 + $0x2b0] sm:$0xff]
        %v7257 = vld [vmem:[#allocation12 + $0x2b8] sm:$0xff]
        %v7258 = vld [vmem:[#allocation12 + $0x2c0] sm:$0xff]
        %v7259 = vld [vmem:[#allocation12 + $0x2c8] sm:$0xff]
        %v7260 = vld [vmem:[#allocation12 + $0x2d0] sm:$0xff]
        %v7261 = vld [vmem:[#allocation12 + $0x2d8] sm:$0xff]
        %v7262 = vld [vmem:[#allocation12 + $0x2e0] sm:$0xff]
        %v7263 = vld [vmem:[#allocation12 + $0x2e8] sm:$0xff]
        %v7264 = vld [vmem:[#allocation12 + $0x2f0] sm:$0xff]
        %v7265 = vld [vmem:[#allocation12 + $0x2f8] sm:$0xff]
        %v7266 = vld [vmem:[#allocation12 + $0x300] sm:$0xff]
        %v7267 = vld [vmem:[#allocation12 + $0x308] sm:$0xff]
        %v7268 = vld [vmem:[#allocation12 + $0x310] sm:$0xff]
        %v7269 = vld [vmem:[#allocation12 + $0x318] sm:$0xff]
        %v7270 = vld [vmem:[#allocation12 + $0x320] sm:$0xff]
        %v7271 = vld [vmem:[#allocation12 + $0x328] sm:$0xff]
        %v7272 = vld [vmem:[#allocation12 + $0x330] sm:$0xff]
        %v7273 = vld [vmem:[#allocation12 + $0x338] sm:$0xff]
        %v7274 = vld [vmem:[#allocation12 + $0x340] sm:$0xff]
        %v7275 = vld [vmem:[#allocation12 + $0x348] sm:$0xff]
        %v7276 = vld [vmem:[#allocation12 + $0x350] sm:$0xff]
        %v7277 = vld [vmem:[#allocation12 + $0x358] sm:$0xff]
        %v7278 = vld [vmem:[#allocation12 + $0x360] sm:$0xff]
        %v7279 = vld [vmem:[#allocation12 + $0x368] sm:$0xff]
        %v7280 = vld [vmem:[#allocation12 + $0x370] sm:$0xff]
        %v7281 = vld [vmem:[#allocation12 + $0x378] sm:$0xff]
        %v7282 = vld [vmem:[#allocation12 + $0x380] sm:$0xff]
        %v7283 = vld [vmem:[#allocation12 + $0x388] sm:$0xff]
        %v7284 = vld [vmem:[#allocation12 + $0x390] sm:$0xff]
        %v7285 = vld [vmem:[#allocation12 + $0x398] sm:$0xff]
        %v7286 = vld [vmem:[#allocation12 + $0x3a0] sm:$0xff]
        %v7287 = vld [vmem:[#allocation12 + $0x3a8] sm:$0xff]
        %v7288 = vld [vmem:[#allocation12 + $0x3b0] sm:$0xff]
        %v7289 = vld [vmem:[#allocation12 + $0x3b8] sm:$0xff]
        %v7290 = vld [vmem:[#allocation12 + $0x3c0] sm:$0xff]
        %v7291 = vld [vmem:[#allocation12 + $0x3c8] sm:$0xff]
        %v7292 = vld [vmem:[#allocation12 + $0x3d0] sm:$0xff]
        %v7293 = vld [vmem:[#allocation12 + $0x3d8] sm:$0xff]
        %v7294 = vld [vmem:[#allocation12 + $0x3e0] sm:$0xff]
        %v7295 = vld [vmem:[#allocation12 + $0x3e8] sm:$0xff]
        %v7296 = vld [vmem:[#allocation12 + $0x3f0] sm:$0xff]
        %v7297 = vld [vmem:[#allocation12 + $0x3f8] sm:$0xff]
        %v7298 = vld [vmem:[%s11] sm:$0xf]
        %v7427 = vunpack.c.l.b16 %v7170
        %v7428 = vunpack.c.h.b16 %v7170
        %v7429 = vunpack.c.l.b16 %v7171
        %v7430 = vunpack.c.h.b16 %v7171
        %v7431 = vunpack.c.l.b16 %v7172
        %v7432 = vunpack.c.h.b16 %v7172
        %v7433 = vunpack.c.l.b16 %v7173
        %v7434 = vunpack.c.h.b16 %v7173
        %v7435 = vunpack.c.l.b16 %v7174
        %v7436 = vunpack.c.h.b16 %v7174
        %v7437 = vunpack.c.l.b16 %v7175
        %v7438 = vunpack.c.h.b16 %v7175
        %v7439 = vunpack.c.l.b16 %v7176
        %v7440 = vunpack.c.h.b16 %v7176
        %v7441 = vunpack.c.l.b16 %v7177
        %v7442 = vunpack.c.h.b16 %v7177
        %v7443 = vunpack.c.l.b16 %v7178
        %v7444 = vunpack.c.h.b16 %v7178
        %v7445 = vunpack.c.l.b16 %v7179
        %v7446 = vunpack.c.h.b16 %v7179
        %v7447 = vunpack.c.l.b16 %v7180
        %v7448 = vunpack.c.h.b16 %v7180
        %v7449 = vunpack.c.l.b16 %v7181
        %v7450 = vunpack.c.h.b16 %v7181
        %v7451 = vunpack.c.l.b16 %v7182
        %v7452 = vunpack.c.h.b16 %v7182
        %v7453 = vunpack.c.l.b16 %v7183
        %v7454 = vunpack.c.h.b16 %v7183
        %v7455 = vunpack.c.l.b16 %v7184
        %v7456 = vunpack.c.h.b16 %v7184
        %v7457 = vunpack.c.l.b16 %v7185
        %v7458 = vunpack.c.h.b16 %v7185
        %v7459 = vunpack.c.l.b16 %v7186
        %v7460 = vunpack.c.h.b16 %v7186
        %v7461 = vunpack.c.l.b16 %v7187
        %v7462 = vunpack.c.h.b16 %v7187
        %v7463 = vunpack.c.l.b16 %v7188
        %v7464 = vunpack.c.h.b16 %v7188
        %v7465 = vunpack.c.l.b16 %v7189
        %v7466 = vunpack.c.h.b16 %v7189
        %v7467 = vunpack.c.l.b16 %v7190
        %v7468 = vunpack.c.h.b16 %v7190
        %v7469 = vunpack.c.l.b16 %v7191
        %v7470 = vunpack.c.h.b16 %v7191
        %v7471 = vunpack.c.l.b16 %v7192
        %v7472 = vunpack.c.h.b16 %v7192
        %v7473 = vunpack.c.l.b16 %v7193
        %v7474 = vunpack.c.h.b16 %v7193
        %v7475 = vunpack.c.l.b16 %v7194
        %v7476 = vunpack.c.h.b16 %v7194
        %v7477 = vunpack.c.l.b16 %v7195
        %v7478 = vunpack.c.h.b16 %v7195
        %v7479 = vunpack.c.l.b16 %v7196
        %v7480 = vunpack.c.h.b16 %v7196
        %v7481 = vunpack.c.l.b16 %v7197
        %v7482 = vunpack.c.h.b16 %v7197
        %v7483 = vunpack.c.l.b16 %v7198
        %v7484 = vunpack.c.h.b16 %v7198
        %v7485 = vunpack.c.l.b16 %v7199
        %v7486 = vunpack.c.h.b16 %v7199
        %v7487 = vunpack.c.l.b16 %v7200
        %v7488 = vunpack.c.h.b16 %v7200
        %v7489 = vunpack.c.l.b16 %v7201
        %v7490 = vunpack.c.h.b16 %v7201
        %v7491 = vunpack.c.l.b16 %v7202
        %v7492 = vunpack.c.h.b16 %v7202
        %v7493 = vunpack.c.l.b16 %v7203
        %v7494 = vunpack.c.h.b16 %v7203
        %v7495 = vunpack.c.l.b16 %v7204
        %v7496 = vunpack.c.h.b16 %v7204
        %v7497 = vunpack.c.l.b16 %v7205
        %v7498 = vunpack.c.h.b16 %v7205
        %v7499 = vunpack.c.l.b16 %v7206
        %v7500 = vunpack.c.h.b16 %v7206
        %v7501 = vunpack.c.l.b16 %v7207
        %v7502 = vunpack.c.h.b16 %v7207
        %v7503 = vunpack.c.l.b16 %v7208
        %v7504 = vunpack.c.h.b16 %v7208
        %v7505 = vunpack.c.l.b16 %v7209
        %v7506 = vunpack.c.h.b16 %v7209
        %v7507 = vunpack.c.l.b16 %v7210
        %v7508 = vunpack.c.h.b16 %v7210
        %v7509 = vunpack.c.l.b16 %v7211
        %v7510 = vunpack.c.h.b16 %v7211
        %v7511 = vunpack.c.l.b16 %v7212
        %v7512 = vunpack.c.h.b16 %v7212
        %v7513 = vunpack.c.l.b16 %v7213
        %v7514 = vunpack.c.h.b16 %v7213
        %v7515 = vunpack.c.l.b16 %v7214
        %v7516 = vunpack.c.h.b16 %v7214
        %v7517 = vunpack.c.l.b16 %v7215
        %v7518 = vunpack.c.h.b16 %v7215
        %v7519 = vunpack.c.l.b16 %v7216
        %v7520 = vunpack.c.h.b16 %v7216
        %v7521 = vunpack.c.l.b16 %v7217
        %v7522 = vunpack.c.h.b16 %v7217
        %v7523 = vunpack.c.l.b16 %v7218
        %v7524 = vunpack.c.h.b16 %v7218
        %v7525 = vunpack.c.l.b16 %v7219
        %v7526 = vunpack.c.h.b16 %v7219
        %v7527 = vunpack.c.l.b16 %v7220
        %v7528 = vunpack.c.h.b16 %v7220
        %v7529 = vunpack.c.l.b16 %v7221
        %v7530 = vunpack.c.h.b16 %v7221
        %v7531 = vunpack.c.l.b16 %v7222
        %v7532 = vunpack.c.h.b16 %v7222
        %v7533 = vunpack.c.l.b16 %v7223
        %v7534 = vunpack.c.h.b16 %v7223
        %v7535 = vunpack.c.l.b16 %v7224
        %v7536 = vunpack.c.h.b16 %v7224
        %v7537 = vunpack.c.l.b16 %v7225
        %v7538 = vunpack.c.h.b16 %v7225
        %v7539 = vunpack.c.l.b16 %v7226
        %v7540 = vunpack.c.h.b16 %v7226
        %v7541 = vunpack.c.l.b16 %v7227
        %v7542 = vunpack.c.h.b16 %v7227
        %v7543 = vunpack.c.l.b16 %v7228
        %v7544 = vunpack.c.h.b16 %v7228
        %v7545 = vunpack.c.l.b16 %v7229
        %v7546 = vunpack.c.h.b16 %v7229
        %v7547 = vunpack.c.l.b16 %v7230
        %v7548 = vunpack.c.h.b16 %v7230
        %v7549 = vunpack.c.l.b16 %v7231
        %v7550 = vunpack.c.h.b16 %v7231
        %v7551 = vunpack.c.l.b16 %v7232
        %v7552 = vunpack.c.h.b16 %v7232
        %v7553 = vunpack.c.l.b16 %v7233
        %v7554 = vunpack.c.h.b16 %v7233
        %v7555 = vunpack.c.l.b16 %v7234
        %v7556 = vunpack.c.h.b16 %v7234
        %v7557 = vunpack.c.l.b16 %v7235
        %v7558 = vunpack.c.h.b16 %v7235
        %v7559 = vunpack.c.l.b16 %v7236
        %v7560 = vunpack.c.h.b16 %v7236
        %v7561 = vunpack.c.l.b16 %v7237
        %v7562 = vunpack.c.h.b16 %v7237
        %v7563 = vunpack.c.l.b16 %v7238
        %v7564 = vunpack.c.h.b16 %v7238
        %v7565 = vunpack.c.l.b16 %v7239
        %v7566 = vunpack.c.h.b16 %v7239
        %v7567 = vunpack.c.l.b16 %v7240
        %v7568 = vunpack.c.h.b16 %v7240
        %v7569 = vunpack.c.l.b16 %v7241
        %v7570 = vunpack.c.h.b16 %v7241
        %v7571 = vunpack.c.l.b16 %v7242
        %v7572 = vunpack.c.h.b16 %v7242
        %v7573 = vunpack.c.l.b16 %v7243
        %v7574 = vunpack.c.h.b16 %v7243
        %v7575 = vunpack.c.l.b16 %v7244
        %v7576 = vunpack.c.h.b16 %v7244
        %v7577 = vunpack.c.l.b16 %v7245
        %v7578 = vunpack.c.h.b16 %v7245
        %v7579 = vunpack.c.l.b16 %v7246
        %v7580 = vunpack.c.h.b16 %v7246
        %v7581 = vunpack.c.l.b16 %v7247
        %v7582 = vunpack.c.h.b16 %v7247
        %v7583 = vunpack.c.l.b16 %v7248
        %v7584 = vunpack.c.h.b16 %v7248
        %v7585 = vunpack.c.l.b16 %v7249
        %v7586 = vunpack.c.h.b16 %v7249
        %v7587 = vunpack.c.l.b16 %v7250
        %v7588 = vunpack.c.h.b16 %v7250
        %v7589 = vunpack.c.l.b16 %v7251
        %v7590 = vunpack.c.h.b16 %v7251
        %v7591 = vunpack.c.l.b16 %v7252
        %v7592 = vunpack.c.h.b16 %v7252
        %v7593 = vunpack.c.l.b16 %v7253
        %v7594 = vunpack.c.h.b16 %v7253
        %v7595 = vunpack.c.l.b16 %v7254
        %v7596 = vunpack.c.h.b16 %v7254
        %v7597 = vunpack.c.l.b16 %v7255
        %v7598 = vunpack.c.h.b16 %v7255
        %v7599 = vunpack.c.l.b16 %v7256
        %v7600 = vunpack.c.h.b16 %v7256
        %v7601 = vunpack.c.l.b16 %v7257
        %v7602 = vunpack.c.h.b16 %v7257
        %v7603 = vunpack.c.l.b16 %v7258
        %v7604 = vunpack.c.h.b16 %v7258
        %v7605 = vunpack.c.l.b16 %v7259
        %v7606 = vunpack.c.h.b16 %v7259
        %v7607 = vunpack.c.l.b16 %v7260
        %v7608 = vunpack.c.h.b16 %v7260
        %v7609 = vunpack.c.l.b16 %v7261
        %v7610 = vunpack.c.h.b16 %v7261
        %v7611 = vunpack.c.l.b16 %v7262
        %v7612 = vunpack.c.h.b16 %v7262
        %v7613 = vunpack.c.l.b16 %v7263
        %v7614 = vunpack.c.h.b16 %v7263
        %v7615 = vunpack.c.l.b16 %v7264
        %v7616 = vunpack.c.h.b16 %v7264
        %v7617 = vunpack.c.l.b16 %v7265
        %v7618 = vunpack.c.h.b16 %v7265
        %v7619 = vunpack.c.l.b16 %v7266
        %v7620 = vunpack.c.h.b16 %v7266
        %v7621 = vunpack.c.l.b16 %v7267
        %v7622 = vunpack.c.h.b16 %v7267
        %v7623 = vunpack.c.l.b16 %v7268
        %v7624 = vunpack.c.h.b16 %v7268
        %v7625 = vunpack.c.l.b16 %v7269
        %v7626 = vunpack.c.h.b16 %v7269
        %v7627 = vunpack.c.l.b16 %v7270
        %v7628 = vunpack.c.h.b16 %v7270
        %v7629 = vunpack.c.l.b16 %v7271
        %v7630 = vunpack.c.h.b16 %v7271
        %v7631 = vunpack.c.l.b16 %v7272
        %v7632 = vunpack.c.h.b16 %v7272
        %v7633 = vunpack.c.l.b16 %v7273
        %v7634 = vunpack.c.h.b16 %v7273
        %v7635 = vunpack.c.l.b16 %v7274
        %v7636 = vunpack.c.h.b16 %v7274
        %v7637 = vunpack.c.l.b16 %v7275
        %v7638 = vunpack.c.h.b16 %v7275
        %v7639 = vunpack.c.l.b16 %v7276
        %v7640 = vunpack.c.h.b16 %v7276
        %v7641 = vunpack.c.l.b16 %v7277
        %v7642 = vunpack.c.h.b16 %v7277
        %v7643 = vunpack.c.l.b16 %v7278
        %v7644 = vunpack.c.h.b16 %v7278
        %v7645 = vunpack.c.l.b16 %v7279
        %v7646 = vunpack.c.h.b16 %v7279
        %v7647 = vunpack.c.l.b16 %v7280
        %v7648 = vunpack.c.h.b16 %v7280
        %v7649 = vunpack.c.l.b16 %v7281
        %v7650 = vunpack.c.h.b16 %v7281
        %v7651 = vunpack.c.l.b16 %v7282
        %v7652 = vunpack.c.h.b16 %v7282
        %v7653 = vunpack.c.l.b16 %v7283
        %v7654 = vunpack.c.h.b16 %v7283
        %v7655 = vunpack.c.l.b16 %v7284
        %v7656 = vunpack.c.h.b16 %v7284
        %v7657 = vunpack.c.l.b16 %v7285
        %v7658 = vunpack.c.h.b16 %v7285
        %v7659 = vunpack.c.l.b16 %v7286
        %v7660 = vunpack.c.h.b16 %v7286
        %v7661 = vunpack.c.l.b16 %v7287
        %v7662 = vunpack.c.h.b16 %v7287
        %v7663 = vunpack.c.l.b16 %v7288
        %v7664 = vunpack.c.h.b16 %v7288
        %v7665 = vunpack.c.l.b16 %v7289
        %v7666 = vunpack.c.h.b16 %v7289
        %v7667 = vunpack.c.l.b16 %v7290
        %v7668 = vunpack.c.h.b16 %v7290
        %v7669 = vunpack.c.l.b16 %v7291
        %v7670 = vunpack.c.h.b16 %v7291
        %v7671 = vunpack.c.l.b16 %v7292
        %v7672 = vunpack.c.h.b16 %v7292
        %v7673 = vunpack.c.l.b16 %v7293
        %v7674 = vunpack.c.h.b16 %v7293
        %v7675 = vunpack.c.l.b16 %v7294
        %v7676 = vunpack.c.h.b16 %v7294
        %v7677 = vunpack.c.l.b16 %v7295
        %v7678 = vunpack.c.h.b16 %v7295
        %v7679 = vunpack.c.l.b16 %v7296
        %v7680 = vunpack.c.h.b16 %v7296
        %v7681 = vunpack.c.l.b16 %v7297
        %v7682 = vunpack.c.h.b16 %v7297
        %v7683 = vpack.c.b16 %v7431, %v7427
        %v7684 = vpack.c.b16 %v7432, %v7428
        %v7685 = vpack.c.b16 %v7433, %v7429
        %v7686 = vpack.c.b16 %v7434, %v7430
        %v7687 = vpack.c.b16 %v7439, %v7435
        %v7688 = vpack.c.b16 %v7440, %v7436
        %v7689 = vpack.c.b16 %v7441, %v7437
        %v7690 = vpack.c.b16 %v7442, %v7438
        %v7691 = vpack.c.b16 %v7447, %v7443
        %v7692 = vpack.c.b16 %v7448, %v7444
        %v7693 = vpack.c.b16 %v7449, %v7445
        %v7694 = vpack.c.b16 %v7450, %v7446
        %v7695 = vpack.c.b16 %v7455, %v7451
        %v7696 = vpack.c.b16 %v7456, %v7452
        %v7697 = vpack.c.b16 %v7457, %v7453
        %v7698 = vpack.c.b16 %v7458, %v7454
        %v7699 = vpack.c.b16 %v7463, %v7459
        %v7700 = vpack.c.b16 %v7464, %v7460
        %v7701 = vpack.c.b16 %v7465, %v7461
        %v7702 = vpack.c.b16 %v7466, %v7462
        %v7703 = vpack.c.b16 %v7471, %v7467
        %v7704 = vpack.c.b16 %v7472, %v7468
        %v7705 = vpack.c.b16 %v7473, %v7469
        %v7706 = vpack.c.b16 %v7474, %v7470
        %v7707 = vpack.c.b16 %v7479, %v7475
        %v7708 = vpack.c.b16 %v7480, %v7476
        %v7709 = vpack.c.b16 %v7481, %v7477
        %v7710 = vpack.c.b16 %v7482, %v7478
        %v7711 = vpack.c.b16 %v7487, %v7483
        %v7712 = vpack.c.b16 %v7488, %v7484
        %v7713 = vpack.c.b16 %v7489, %v7485
        %v7714 = vpack.c.b16 %v7490, %v7486
        %v7715 = vpack.c.b16 %v7495, %v7491
        %v7716 = vpack.c.b16 %v7496, %v7492
        %v7717 = vpack.c.b16 %v7497, %v7493
        %v7718 = vpack.c.b16 %v7498, %v7494
        %v7719 = vpack.c.b16 %v7503, %v7499
        %v7720 = vpack.c.b16 %v7504, %v7500
        %v7721 = vpack.c.b16 %v7505, %v7501
        %v7722 = vpack.c.b16 %v7506, %v7502
        %v7723 = vpack.c.b16 %v7511, %v7507
        %v7724 = vpack.c.b16 %v7512, %v7508
        %v7725 = vpack.c.b16 %v7513, %v7509
        %v7726 = vpack.c.b16 %v7514, %v7510
        %v7727 = vpack.c.b16 %v7519, %v7515
        %v7728 = vpack.c.b16 %v7520, %v7516
        %v7729 = vpack.c.b16 %v7521, %v7517
        %v7730 = vpack.c.b16 %v7522, %v7518
        %v7731 = vpack.c.b16 %v7527, %v7523
        %v7732 = vpack.c.b16 %v7528, %v7524
        %v7733 = vpack.c.b16 %v7529, %v7525
        %v7734 = vpack.c.b16 %v7530, %v7526
        %v7735 = vpack.c.b16 %v7535, %v7531
        %v7736 = vpack.c.b16 %v7536, %v7532
        %v7737 = vpack.c.b16 %v7537, %v7533
        %v7738 = vpack.c.b16 %v7538, %v7534
        %v7739 = vpack.c.b16 %v7543, %v7539
        %v7740 = vpack.c.b16 %v7544, %v7540
        %v7741 = vpack.c.b16 %v7545, %v7541
        %v7742 = vpack.c.b16 %v7546, %v7542
        %v7743 = vpack.c.b16 %v7551, %v7547
        %v7744 = vpack.c.b16 %v7552, %v7548
        %v7745 = vpack.c.b16 %v7553, %v7549
        %v7746 = vpack.c.b16 %v7554, %v7550
        %v7747 = vpack.c.b16 %v7559, %v7555
        %v7748 = vpack.c.b16 %v7560, %v7556
        %v7749 = vpack.c.b16 %v7561, %v7557
        %v7750 = vpack.c.b16 %v7562, %v7558
        %v7751 = vpack.c.b16 %v7567, %v7563
        %v7752 = vpack.c.b16 %v7568, %v7564
        %v7753 = vpack.c.b16 %v7569, %v7565
        %v7754 = vpack.c.b16 %v7570, %v7566
        %v7755 = vpack.c.b16 %v7575, %v7571
        %v7756 = vpack.c.b16 %v7576, %v7572
        %v7757 = vpack.c.b16 %v7577, %v7573
        %v7758 = vpack.c.b16 %v7578, %v7574
        %v7759 = vpack.c.b16 %v7583, %v7579
        %v7760 = vpack.c.b16 %v7584, %v7580
        %v7761 = vpack.c.b16 %v7585, %v7581
        %v7762 = vpack.c.b16 %v7586, %v7582
        %v7763 = vpack.c.b16 %v7591, %v7587
        %v7764 = vpack.c.b16 %v7592, %v7588
        %v7765 = vpack.c.b16 %v7593, %v7589
        %v7766 = vpack.c.b16 %v7594, %v7590
        %v7767 = vpack.c.b16 %v7599, %v7595
        %v7768 = vpack.c.b16 %v7600, %v7596
        %v7769 = vpack.c.b16 %v7601, %v7597
        %v7770 = vpack.c.b16 %v7602, %v7598
        %v7771 = vpack.c.b16 %v7607, %v7603
        %v7772 = vpack.c.b16 %v7608, %v7604
        %v7773 = vpack.c.b16 %v7609, %v7605
        %v7774 = vpack.c.b16 %v7610, %v7606
        %v7775 = vpack.c.b16 %v7615, %v7611
        %v7776 = vpack.c.b16 %v7616, %v7612
        %v7777 = vpack.c.b16 %v7617, %v7613
        %v7778 = vpack.c.b16 %v7618, %v7614
        %v7779 = vpack.c.b16 %v7623, %v7619
        %v7780 = vpack.c.b16 %v7624, %v7620
        %v7781 = vpack.c.b16 %v7625, %v7621
        %v7782 = vpack.c.b16 %v7626, %v7622
        %v7783 = vpack.c.b16 %v7631, %v7627
        %v7784 = vpack.c.b16 %v7632, %v7628
        %v7785 = vpack.c.b16 %v7633, %v7629
        %v7786 = vpack.c.b16 %v7634, %v7630
        %v7787 = vpack.c.b16 %v7639, %v7635
        %v7788 = vpack.c.b16 %v7640, %v7636
        %v7789 = vpack.c.b16 %v7641, %v7637
        %v7790 = vpack.c.b16 %v7642, %v7638
        %v7791 = vpack.c.b16 %v7647, %v7643
        %v7792 = vpack.c.b16 %v7648, %v7644
        %v7793 = vpack.c.b16 %v7649, %v7645
        %v7794 = vpack.c.b16 %v7650, %v7646
        %v7795 = vpack.c.b16 %v7655, %v7651
        %v7796 = vpack.c.b16 %v7656, %v7652
        %v7797 = vpack.c.b16 %v7657, %v7653
        %v7798 = vpack.c.b16 %v7658, %v7654
        %v7799 = vpack.c.b16 %v7663, %v7659
        %v7800 = vpack.c.b16 %v7664, %v7660
        %v7801 = vpack.c.b16 %v7665, %v7661
        %v7802 = vpack.c.b16 %v7666, %v7662
        %v7803 = vpack.c.b16 %v7671, %v7667
        %v7804 = vpack.c.b16 %v7672, %v7668
        %v7805 = vpack.c.b16 %v7673, %v7669
        %v7806 = vpack.c.b16 %v7674, %v7670
        %v7807 = vpack.c.b16 %v7679, %v7675
        %v7808 = vpack.c.b16 %v7680, %v7676
        %v7809 = vpack.c.b16 %v7681, %v7677
        %v7810 = vpack.c.b16 %v7682, %v7678
        %v7940 = vlaneseq
        %v7941 = vshrl.u32 %v7940, 7
        %v7942 = vsub.s32 0, %v7941
        %v7943 = vrot.slane %v7298, %v7942
        %v7944 = vlaneseq
        %v7945 = vshrl.u32 %v7944, 7
        %v7946 = vsub.s32 1, %v7945
        %v7947 = vrot.slane %v7298, %v7946
        %v7948 = vlaneseq
        %v7949 = vshrl.u32 %v7948, 7
        %v7950 = vsub.s32 2, %v7949
        %v7951 = vrot.slane %v7298, %v7950
        %v7952 = vlaneseq
        %v7953 = vshrl.u32 %v7952, 7
        %v7954 = vsub.s32 3, %v7953
        %v7955 = vrot.slane %v7298, %v7954
        %7960 = vmatprep.subr.bf16.mxu0 %v7684
        %7961 = vmatpush1.bf16.msra.mxu0 %v7683
        %7962 = vmatprep.subr.bf16.mxu0 %v7688
        %7963 = vmatpush1.bf16.msra.mxu0 %v7687
        %7964 = vmatprep.subr.bf16.mxu0 %v7692
        %7965 = vmatpush1.bf16.msra.mxu0 %v7691
        %7966 = vmatprep.subr.bf16.mxu0 %v7696
        %7967 = vmatpush1.bf16.msra.mxu0 %v7695
        %7968 = vmatprep.subr.bf16.mxu0 %v7700
        %7969 = vmatpush1.bf16.msra.mxu0 %v7699
        %7970 = vmatprep.subr.bf16.mxu0 %v7704
        %7971 = vmatpush1.bf16.msra.mxu0 %v7703
        %7972 = vmatprep.subr.bf16.mxu0 %v7708
        %7973 = vmatpush1.bf16.msra.mxu0 %v7707
        %7974 = vmatprep.subr.bf16.mxu0 %v7712
        %7975 = vmatpush1.bf16.msra.mxu0 %v7711
        %7976 = vmatprep.subr.bf16.mxu0 %v7716
        %7977 = vmatpush1.bf16.msra.mxu0 %v7715
        %7978 = vmatprep.subr.bf16.mxu0 %v7720
        %7979 = vmatpush1.bf16.msra.mxu0 %v7719
        %7980 = vmatprep.subr.bf16.mxu0 %v7724
        %7981 = vmatpush1.bf16.msra.mxu0 %v7723
        %7982 = vmatprep.subr.bf16.mxu0 %v7728
        %7983 = vmatpush1.bf16.msra.mxu0 %v7727
        %7984 = vmatprep.subr.bf16.mxu0 %v7732
        %7985 = vmatpush1.bf16.msra.mxu0 %v7731
        %7986 = vmatprep.subr.bf16.mxu0 %v7736
        %7987 = vmatpush1.bf16.msra.mxu0 %v7735
        %7988 = vmatprep.subr.bf16.mxu0 %v7740
        %7989 = vmatpush1.bf16.msra.mxu0 %v7739
        %7990 = vmatprep.subr.bf16.mxu0 %v7744
        %7991 = vmatpush1.bf16.msra.mxu0 %v7743
        %7992 = vmatprep.mubr.bf16.mxu0 %v7167
        %7993 = vmatmul.mubr.bf16.gmra.mrb[0].mxu0 %v7166
        %v7994 = vpop.f32.mrb[0].mxu0
        %v7995 = vadd.f32 %v7943, %v7994
        %v7996 = vpop.f32.mrb[0].mxu0
        %v7997 = vadd.f32 %v7947, %v7996
        %v7998 = vpop.f32.mrb[0].mxu0
        %v7999 = vpop.f32.mrb[0].mxu0
        %8000 = vdwg.mxu0
        %8001 = vmatprep.subr.bf16.mxu0 %v7748
        %8002 = vmatpush1.bf16.msra.mxu0 %v7747
        %8003 = vmatprep.subr.bf16.mxu0 %v7752
        %8004 = vmatpush1.bf16.msra.mxu0 %v7751
        %8005 = vmatprep.subr.bf16.mxu0 %v7756
        %8006 = vmatpush1.bf16.msra.mxu0 %v7755
        %8007 = vmatprep.subr.bf16.mxu0 %v7760
        %8008 = vmatpush1.bf16.msra.mxu0 %v7759
        %8009 = vmatprep.subr.bf16.mxu0 %v7764
        %8010 = vmatpush1.bf16.msra.mxu0 %v7763
        %8011 = vmatprep.subr.bf16.mxu0 %v7768
        %8012 = vmatpush1.bf16.msra.mxu0 %v7767
        %8013 = vmatprep.subr.bf16.mxu0 %v7772
        %8014 = vmatpush1.bf16.msra.mxu0 %v7771
        %8015 = vmatprep.subr.bf16.mxu0 %v7776
        %8016 = vmatpush1.bf16.msra.mxu0 %v7775
        %8017 = vmatprep.subr.bf16.mxu0 %v7780
        %8018 = vmatpush1.bf16.msra.mxu0 %v7779
        %8019 = vmatprep.subr.bf16.mxu0 %v7784
        %8020 = vmatpush1.bf16.msra.mxu0 %v7783
        %8021 = vmatprep.subr.bf16.mxu0 %v7788
        %8022 = vmatpush1.bf16.msra.mxu0 %v7787
        %8023 = vmatprep.subr.bf16.mxu0 %v7792
        %8024 = vmatpush1.bf16.msra.mxu0 %v7791
        %8025 = vmatprep.subr.bf16.mxu0 %v7796
        %8026 = vmatpush1.bf16.msra.mxu0 %v7795
        %8027 = vmatprep.subr.bf16.mxu0 %v7800
        %8028 = vmatpush1.bf16.msra.mxu0 %v7799
        %8029 = vmatprep.subr.bf16.mxu0 %v7804
        %8030 = vmatpush1.bf16.msra.mxu0 %v7803
        %8031 = vmatprep.subr.bf16.mxu0 %v7808
        %8032 = vmatpush1.bf16.msra.mxu0 %v7807
        %8033 = vmatprep.mubr.bf16.mxu0 %v7169
        %8034 = vmatmul.mubr.bf16.gmra.mrb[0].mxu0 %v7168
        %v8035 = vpop.f32.mrb[0].mxu0
        %v8036 = vadd.f32 %v7995, %v8035
        %v8037 = vpop.f32.mrb[0].mxu0
        %v8038 = vadd.f32 %v7997, %v8037
        %v8039 = vpop.f32.mrb[0].mxu0
        %v8040 = vpop.f32.mrb[0].mxu0
        %8041 = vdwg.mxu0
        %8042 = vmatprep.subr.bf16.mxu0 %v7686
        %8043 = vmatpush1.bf16.msra.mxu0 %v7685
        %8044 = vmatprep.subr.bf16.mxu0 %v7690
        %8045 = vmatpush1.bf16.msra.mxu0 %v7689
        %8046 = vmatprep.subr.bf16.mxu0 %v7694
        %8047 = vmatpush1.bf16.msra.mxu0 %v7693
        %8048 = vmatprep.subr.bf16.mxu0 %v7698
        %8049 = vmatpush1.bf16.msra.mxu0 %v7697
        %8050 = vmatprep.subr.bf16.mxu0 %v7702
        %8051 = vmatpush1.bf16.msra.mxu0 %v7701
        %8052 = vmatprep.subr.bf16.mxu0 %v7706
        %8053 = vmatpush1.bf16.msra.mxu0 %v7705
        %8054 = vmatprep.subr.bf16.mxu0 %v7710
        %8055 = vmatpush1.bf16.msra.mxu0 %v7709
        %8056 = vmatprep.subr.bf16.mxu0 %v7714
        %8057 = vmatpush1.bf16.msra.mxu0 %v7713
        %8058 = vmatprep.subr.bf16.mxu0 %v7718
        %8059 = vmatpush1.bf16.msra.mxu0 %v7717
        %8060 = vmatprep.subr.bf16.mxu0 %v7722
        %8061 = vmatpush1.bf16.msra.mxu0 %v7721
        %8062 = vmatprep.subr.bf16.mxu0 %v7726
        %8063 = vmatpush1.bf16.msra.mxu0 %v7725
        %8064 = vmatprep.subr.bf16.mxu0 %v7730
        %8065 = vmatpush1.bf16.msra.mxu0 %v7729
        %8066 = vmatprep.subr.bf16.mxu0 %v7734
        %8067 = vmatpush1.bf16.msra.mxu0 %v7733
        %8068 = vmatprep.subr.bf16.mxu0 %v7738
        %8069 = vmatpush1.bf16.msra.mxu0 %v7737
        %8070 = vmatprep.subr.bf16.mxu0 %v7742
        %8071 = vmatpush1.bf16.msra.mxu0 %v7741
        %8072 = vmatprep.subr.bf16.mxu0 %v7746
        %8073 = vmatpush1.bf16.msra.mxu0 %v7745
        %8074 = vmatprep.mubr.bf16.mxu0 %v7167
        %8075 = vmatmul.mubr.bf16.gmra.mrb[0].mxu0 %v7166
        %v8076 = vpop.f32.mrb[0].mxu0
        %v8077 = vadd.f32 %v7951, %v8076
        %v8078 = vpop.f32.mrb[0].mxu0
        %v8079 = vadd.f32 %v7955, %v8078
        %v8080 = vpop.f32.mrb[0].mxu0
        %v8081 = vpop.f32.mrb[0].mxu0
        %8082 = vdwg.mxu0
        %8083 = vmatprep.subr.bf16.mxu0 %v7750
        %8084 = vmatpush1.bf16.msra.mxu0 %v7749
        %8085 = vmatprep.subr.bf16.mxu0 %v7754
        %8086 = vmatpush1.bf16.msra.mxu0 %v7753
        %8087 = vmatprep.subr.bf16.mxu0 %v7758
        %8088 = vmatpush1.bf16.msra.mxu0 %v7757
        %8089 = vmatprep.subr.bf16.mxu0 %v7762
        %8090 = vmatpush1.bf16.msra.mxu0 %v7761
        %8091 = vmatprep.subr.bf16.mxu0 %v7766
        %8092 = vmatpush1.bf16.msra.mxu0 %v7765
        %8093 = vmatprep.subr.bf16.mxu0 %v7770
        %8094 = vmatpush1.bf16.msra.mxu0 %v7769
        %8095 = vmatprep.subr.bf16.mxu0 %v7774
        %8096 = vmatpush1.bf16.msra.mxu0 %v7773
        %8097 = vmatprep.subr.bf16.mxu0 %v7778
        %8098 = vmatpush1.bf16.msra.mxu0 %v7777
        %8099 = vmatprep.subr.bf16.mxu0 %v7782
        %8100 = vmatpush1.bf16.msra.mxu0 %v7781
        %8101 = vmatprep.subr.bf16.mxu0 %v7786
        %8102 = vmatpush1.bf16.msra.mxu0 %v7785
        %8103 = vmatprep.subr.bf16.mxu0 %v7790
        %8104 = vmatpush1.bf16.msra.mxu0 %v7789
        %8105 = vmatprep.subr.bf16.mxu0 %v7794
        %8106 = vmatpush1.bf16.msra.mxu0 %v7793
        %8107 = vmatprep.subr.bf16.mxu0 %v7798
        %8108 = vmatpush1.bf16.msra.mxu0 %v7797
        %8109 = vmatprep.subr.bf16.mxu0 %v7802
        %8110 = vmatpush1.bf16.msra.mxu0 %v7801
        %8111 = vmatprep.subr.bf16.mxu0 %v7806
        %8112 = vmatpush1.bf16.msra.mxu0 %v7805
        %8113 = vmatprep.subr.bf16.mxu0 %v7810
        %8114 = vmatpush1.bf16.msra.mxu0 %v7809
        %8115 = vmatprep.mubr.bf16.mxu0 %v7169
        %8116 = vmatmul.mubr.bf16.gmra.mrb[0].mxu0 %v7168
        %v8117 = vpop.f32.mrb[0].mxu0
        %v8118 = vadd.f32 %v8077, %v8117
        %v8119 = vpop.f32.mrb[0].mxu0
        %v8120 = vadd.f32 %v8079, %v8119
        %v8121 = vpop.f32.mrb[0].mxu0
        %v8122 = vpop.f32.mrb[0].mxu0
        %8123 = vdwg.mxu0
        %v8124 = vmax.f32 %v8036, 0.0
        %v8125 = vmax.f32 %v8038, 0.0
        %v8126 = vmax.f32 %v8118, 0.0
        %v8127 = vmax.f32 %v8120, 0.0
        %v8128 = vpack.c.bf16 %v8124, %v8124
        %v8129 = vpack.c.bf16 %v8125, %v8125
        %v8130 = vpack.c.bf16 %v8126, %v8126
        %v8131 = vpack.c.bf16 %v8127, %v8127
        %v8132 = vld [vmem:[#allocation14] sm:$0xff]
        %v8133 = vld [vmem:[#allocation14 + $0x8] sm:$0xff]
        %v8134 = vld [vmem:[#allocation14 + $0x10] sm:$0xff]
        %v8135 = vld [vmem:[#allocation14 + $0x18] sm:$0xff]
        %v8136 = vld [vmem:[#allocation14 + $0x20] sm:$0xff]
        %v8137 = vld [vmem:[#allocation14 + $0x28] sm:$0xff]
        %v8138 = vld [vmem:[#allocation14 + $0x30] sm:$0xff]
        %v8139 = vld [vmem:[#allocation14 + $0x38] sm:$0xff]
        %v8140 = vld [vmem:[#allocation14 + $0x40] sm:$0xff]
        %v8141 = vld [vmem:[#allocation14 + $0x48] sm:$0xff]
        %v8142 = vld [vmem:[#allocation14 + $0x50] sm:$0xff]
        %v8143 = vld [vmem:[#allocation14 + $0x58] sm:$0xff]
        %v8144 = vld [vmem:[#allocation14 + $0x60] sm:$0xff]
        %v8145 = vld [vmem:[#allocation14 + $0x68] sm:$0xff]
        %v8146 = vld [vmem:[#allocation14 + $0x70] sm:$0xff]
        %v8147 = vld [vmem:[#allocation14 + $0x78] sm:$0xff]
        %v8148 = vld [vmem:[#allocation14 + $0x80] sm:$0xff]
        %v8149 = vld [vmem:[#allocation14 + $0x88] sm:$0xff]
        %v8150 = vld [vmem:[#allocation14 + $0x90] sm:$0xff]
        %v8151 = vld [vmem:[#allocation14 + $0x98] sm:$0xff]
        %v8152 = vld [vmem:[#allocation14 + $0xa0] sm:$0xff]
        %v8153 = vld [vmem:[#allocation14 + $0xa8] sm:$0xff]
        %v8154 = vld [vmem:[#allocation14 + $0xb0] sm:$0xff]
        %v8155 = vld [vmem:[#allocation14 + $0xb8] sm:$0xff]
        %v8156 = vld [vmem:[#allocation14 + $0xc0] sm:$0xff]
        %v8157 = vld [vmem:[#allocation14 + $0xc8] sm:$0xff]
        %v8158 = vld [vmem:[#allocation14 + $0xd0] sm:$0xff]
        %v8159 = vld [vmem:[#allocation14 + $0xd8] sm:$0xff]
        %v8160 = vld [vmem:[#allocation14 + $0xe0] sm:$0xff]
        %v8161 = vld [vmem:[#allocation14 + $0xe8] sm:$0xff]
        %v8162 = vld [vmem:[#allocation14 + $0xf0] sm:$0xff]
        %v8163 = vld [vmem:[#allocation14 + $0xf8] sm:$0xff]
        %v8164 = vld [vmem:[#allocation14 + $0x100] sm:$0xff]
        %v8165 = vld [vmem:[#allocation14 + $0x108] sm:$0xff]
        %v8166 = vld [vmem:[#allocation14 + $0x110] sm:$0xff]
        %v8167 = vld [vmem:[#allocation14 + $0x118] sm:$0xff]
        %v8168 = vld [vmem:[#allocation14 + $0x120] sm:$0xff]
        %v8169 = vld [vmem:[#allocation14 + $0x128] sm:$0xff]
        %v8170 = vld [vmem:[#allocation14 + $0x130] sm:$0xff]
        %v8171 = vld [vmem:[#allocation14 + $0x138] sm:$0xff]
        %v8172 = vld [vmem:[#allocation14 + $0x140] sm:$0xff]
        %v8173 = vld [vmem:[#allocation14 + $0x148] sm:$0xff]
        %v8174 = vld [vmem:[#allocation14 + $0x150] sm:$0xff]
        %v8175 = vld [vmem:[#allocation14 + $0x158] sm:$0xff]
        %v8176 = vld [vmem:[#allocation14 + $0x160] sm:$0xff]
        %v8177 = vld [vmem:[#allocation14 + $0x168] sm:$0xff]
        %v8178 = vld [vmem:[#allocation14 + $0x170] sm:$0xff]
        %v8179 = vld [vmem:[#allocation14 + $0x178] sm:$0xff]
        %v8180 = vld [vmem:[#allocation14 + $0x180] sm:$0xff]
        %v8181 = vld [vmem:[#allocation14 + $0x188] sm:$0xff]
        %v8182 = vld [vmem:[#allocation14 + $0x190] sm:$0xff]
        %v8183 = vld [vmem:[#allocation14 + $0x198] sm:$0xff]
        %v8184 = vld [vmem:[#allocation14 + $0x1a0] sm:$0xff]
        %v8185 = vld [vmem:[#allocation14 + $0x1a8] sm:$0xff]
        %v8186 = vld [vmem:[#allocation14 + $0x1b0] sm:$0xff]
        %v8187 = vld [vmem:[#allocation14 + $0x1b8] sm:$0xff]
        %v8188 = vld [vmem:[#allocation14 + $0x1c0] sm:$0xff]
        %v8189 = vld [vmem:[#allocation14 + $0x1c8] sm:$0xff]
        %v8190 = vld [vmem:[#allocation14 + $0x1d0] sm:$0xff]
        %v8191 = vld [vmem:[#allocation14 + $0x1d8] sm:$0xff]
        %v8192 = vld [vmem:[#allocation14 + $0x1e0] sm:$0xff]
        %v8193 = vld [vmem:[#allocation14 + $0x1e8] sm:$0xff]
        %v8194 = vld [vmem:[#allocation14 + $0x1f0] sm:$0xff]
        %v8195 = vld [vmem:[#allocation14 + $0x1f8] sm:$0xff]
        %v8196 = vld [vmem:[#allocation14 + $0x200] sm:$0xff]
        %v8197 = vld [vmem:[#allocation14 + $0x208] sm:$0xff]
        %v8198 = vld [vmem:[#allocation14 + $0x210] sm:$0xff]
        %v8199 = vld [vmem:[#allocation14 + $0x218] sm:$0xff]
        %v8200 = vld [vmem:[#allocation14 + $0x220] sm:$0xff]
        %v8201 = vld [vmem:[#allocation14 + $0x228] sm:$0xff]
        %v8202 = vld [vmem:[#allocation14 + $0x230] sm:$0xff]
        %v8203 = vld [vmem:[#allocation14 + $0x238] sm:$0xff]
        %v8204 = vld [vmem:[#allocation14 + $0x240] sm:$0xff]
        %v8205 = vld [vmem:[#allocation14 + $0x248] sm:$0xff]
        %v8206 = vld [vmem:[#allocation14 + $0x250] sm:$0xff]
        %v8207 = vld [vmem:[#allocation14 + $0x258] sm:$0xff]
        %v8208 = vld [vmem:[#allocation14 + $0x260] sm:$0xff]
        %v8209 = vld [vmem:[#allocation14 + $0x268] sm:$0xff]
        %v8210 = vld [vmem:[#allocation14 + $0x270] sm:$0xff]
        %v8211 = vld [vmem:[#allocation14 + $0x278] sm:$0xff]
        %v8212 = vld [vmem:[#allocation14 + $0x280] sm:$0xff]
        %v8213 = vld [vmem:[#allocation14 + $0x288] sm:$0xff]
        %v8214 = vld [vmem:[#allocation14 + $0x290] sm:$0xff]
        %v8215 = vld [vmem:[#allocation14 + $0x298] sm:$0xff]
        %v8216 = vld [vmem:[#allocation14 + $0x2a0] sm:$0xff]
        %v8217 = vld [vmem:[#allocation14 + $0x2a8] sm:$0xff]
        %v8218 = vld [vmem:[#allocation14 + $0x2b0] sm:$0xff]
        %v8219 = vld [vmem:[#allocation14 + $0x2b8] sm:$0xff]
        %v8220 = vld [vmem:[#allocation14 + $0x2c0] sm:$0xff]
        %v8221 = vld [vmem:[#allocation14 + $0x2c8] sm:$0xff]
        %v8222 = vld [vmem:[#allocation14 + $0x2d0] sm:$0xff]
        %v8223 = vld [vmem:[#allocation14 + $0x2d8] sm:$0xff]
        %v8224 = vld [vmem:[#allocation14 + $0x2e0] sm:$0xff]
        %v8225 = vld [vmem:[#allocation14 + $0x2e8] sm:$0xff]
        %v8226 = vld [vmem:[#allocation14 + $0x2f0] sm:$0xff]
        %v8227 = vld [vmem:[#allocation14 + $0x2f8] sm:$0xff]
        %v8228 = vld [vmem:[#allocation14 + $0x300] sm:$0xff]
        %v8229 = vld [vmem:[#allocation14 + $0x308] sm:$0xff]
        %v8230 = vld [vmem:[#allocation14 + $0x310] sm:$0xff]
        %v8231 = vld [vmem:[#allocation14 + $0x318] sm:$0xff]
        %v8232 = vld [vmem:[#allocation14 + $0x320] sm:$0xff]
        %v8233 = vld [vmem:[#allocation14 + $0x328] sm:$0xff]
        %v8234 = vld [vmem:[#allocation14 + $0x330] sm:$0xff]
        %v8235 = vld [vmem:[#allocation14 + $0x338] sm:$0xff]
        %v8236 = vld [vmem:[#allocation14 + $0x340] sm:$0xff]
        %v8237 = vld [vmem:[#allocation14 + $0x348] sm:$0xff]
        %v8238 = vld [vmem:[#allocation14 + $0x350] sm:$0xff]
        %v8239 = vld [vmem:[#allocation14 + $0x358] sm:$0xff]
        %v8240 = vld [vmem:[#allocation14 + $0x360] sm:$0xff]
        %v8241 = vld [vmem:[#allocation14 + $0x368] sm:$0xff]
        %v8242 = vld [vmem:[#allocation14 + $0x370] sm:$0xff]
        %v8243 = vld [vmem:[#allocation14 + $0x378] sm:$0xff]
        %v8244 = vld [vmem:[#allocation14 + $0x380] sm:$0xff]
        %v8245 = vld [vmem:[#allocation14 + $0x388] sm:$0xff]
        %v8246 = vld [vmem:[#allocation14 + $0x390] sm:$0xff]
        %v8247 = vld [vmem:[#allocation14 + $0x398] sm:$0xff]
        %v8248 = vld [vmem:[#allocation14 + $0x3a0] sm:$0xff]
        %v8249 = vld [vmem:[#allocation14 + $0x3a8] sm:$0xff]
        %v8250 = vld [vmem:[#allocation14 + $0x3b0] sm:$0xff]
        %v8251 = vld [vmem:[#allocation14 + $0x3b8] sm:$0xff]
        %v8252 = vld [vmem:[#allocation14 + $0x3c0] sm:$0xff]
        %v8253 = vld [vmem:[#allocation14 + $0x3c8] sm:$0xff]
        %v8254 = vld [vmem:[#allocation14 + $0x3d0] sm:$0xff]
        %v8255 = vld [vmem:[#allocation14 + $0x3d8] sm:$0xff]
        %v8256 = vld [vmem:[#allocation14 + $0x3e0] sm:$0xff]
        %v8257 = vld [vmem:[#allocation14 + $0x3e8] sm:$0xff]
        %v8258 = vld [vmem:[#allocation14 + $0x3f0] sm:$0xff]
        %v8259 = vld [vmem:[#allocation14 + $0x3f8] sm:$0xff]
        %v8260 = vld [vmem:[#allocation14 + $0x400] sm:$0xff]
        %v8261 = vld [vmem:[#allocation14 + $0x408] sm:$0xff]
        %v8262 = vld [vmem:[#allocation14 + $0x410] sm:$0xff]
        %v8263 = vld [vmem:[#allocation14 + $0x418] sm:$0xff]
        %v8264 = vld [vmem:[#allocation14 + $0x420] sm:$0xff]
        %v8265 = vld [vmem:[#allocation14 + $0x428] sm:$0xff]
        %v8266 = vld [vmem:[#allocation14 + $0x430] sm:$0xff]
        %v8267 = vld [vmem:[#allocation14 + $0x438] sm:$0xff]
        %v8268 = vld [vmem:[#allocation14 + $0x440] sm:$0xff]
        %v8269 = vld [vmem:[#allocation14 + $0x448] sm:$0xff]
        %v8270 = vld [vmem:[#allocation14 + $0x450] sm:$0xff]
        %v8271 = vld [vmem:[#allocation14 + $0x458] sm:$0xff]
        %v8272 = vld [vmem:[#allocation14 + $0x460] sm:$0xff]
        %v8273 = vld [vmem:[#allocation14 + $0x468] sm:$0xff]
        %v8274 = vld [vmem:[#allocation14 + $0x470] sm:$0xff]
        %v8275 = vld [vmem:[#allocation14 + $0x478] sm:$0xff]
        %v8276 = vld [vmem:[#allocation14 + $0x480] sm:$0xff]
        %v8277 = vld [vmem:[#allocation14 + $0x488] sm:$0xff]
        %v8278 = vld [vmem:[#allocation14 + $0x490] sm:$0xff]
        %v8279 = vld [vmem:[#allocation14 + $0x498] sm:$0xff]
        %v8280 = vld [vmem:[#allocation14 + $0x4a0] sm:$0xff]
        %v8281 = vld [vmem:[#allocation14 + $0x4a8] sm:$0xff]
        %v8282 = vld [vmem:[#allocation14 + $0x4b0] sm:$0xff]
        %v8283 = vld [vmem:[#allocation14 + $0x4b8] sm:$0xff]
        %v8284 = vld [vmem:[#allocation14 + $0x4c0] sm:$0xff]
        %v8285 = vld [vmem:[#allocation14 + $0x4c8] sm:$0xff]
        %v8286 = vld [vmem:[#allocation14 + $0x4d0] sm:$0xff]
        %v8287 = vld [vmem:[#allocation14 + $0x4d8] sm:$0xff]
        %v8288 = vld [vmem:[#allocation14 + $0x4e0] sm:$0xff]
        %v8289 = vld [vmem:[#allocation14 + $0x4e8] sm:$0xff]
        %v8290 = vld [vmem:[#allocation14 + $0x4f0] sm:$0xff]
        %v8291 = vld [vmem:[#allocation14 + $0x4f8] sm:$0xff]
        %v8292 = vld [vmem:[#allocation14 + $0x500] sm:$0xff]
        %v8293 = vld [vmem:[#allocation14 + $0x508] sm:$0xff]
        %v8294 = vld [vmem:[#allocation14 + $0x510] sm:$0xff]
        %v8295 = vld [vmem:[#allocation14 + $0x518] sm:$0xff]
        %v8296 = vld [vmem:[#allocation14 + $0x520] sm:$0xff]
        %v8297 = vld [vmem:[#allocation14 + $0x528] sm:$0xff]
        %v8298 = vld [vmem:[#allocation14 + $0x530] sm:$0xff]
        %v8299 = vld [vmem:[#allocation14 + $0x538] sm:$0xff]
        %v8300 = vld [vmem:[#allocation14 + $0x540] sm:$0xff]
        %v8301 = vld [vmem:[#allocation14 + $0x548] sm:$0xff]
        %v8302 = vld [vmem:[#allocation14 + $0x550] sm:$0xff]
        %v8303 = vld [vmem:[#allocation14 + $0x558] sm:$0xff]
        %v8304 = vld [vmem:[#allocation14 + $0x560] sm:$0xff]
        %v8305 = vld [vmem:[#allocation14 + $0x568] sm:$0xff]
        %v8306 = vld [vmem:[#allocation14 + $0x570] sm:$0xff]
        %v8307 = vld [vmem:[#allocation14 + $0x578] sm:$0xff]
        %v8308 = vld [vmem:[#allocation14 + $0x580] sm:$0xff]
        %v8309 = vld [vmem:[#allocation14 + $0x588] sm:$0xff]
        %v8310 = vld [vmem:[#allocation14 + $0x590] sm:$0xff]
        %v8311 = vld [vmem:[#allocation14 + $0x598] sm:$0xff]
        %v8312 = vld [vmem:[#allocation14 + $0x5a0] sm:$0xff]
        %v8313 = vld [vmem:[#allocation14 + $0x5a8] sm:$0xff]
        %v8314 = vld [vmem:[#allocation14 + $0x5b0] sm:$0xff]
        %v8315 = vld [vmem:[#allocation14 + $0x5b8] sm:$0xff]
        %v8316 = vld [vmem:[#allocation14 + $0x5c0] sm:$0xff]
        %v8317 = vld [vmem:[#allocation14 + $0x5c8] sm:$0xff]
        %v8318 = vld [vmem:[#allocation14 + $0x5d0] sm:$0xff]
        %v8319 = vld [vmem:[#allocation14 + $0x5d8] sm:$0xff]
        %v8320 = vld [vmem:[#allocation14 + $0x5e0] sm:$0xff]
        %v8321 = vld [vmem:[#allocation14 + $0x5e8] sm:$0xff]
        %v8322 = vld [vmem:[#allocation14 + $0x5f0] sm:$0xff]
        %v8323 = vld [vmem:[#allocation14 + $0x5f8] sm:$0xff]
        %v8324 = vld [vmem:[#allocation14 + $0x600] sm:$0xff]
        %v8325 = vld [vmem:[#allocation14 + $0x608] sm:$0xff]
        %v8326 = vld [vmem:[#allocation14 + $0x610] sm:$0xff]
        %v8327 = vld [vmem:[#allocation14 + $0x618] sm:$0xff]
        %v8328 = vld [vmem:[#allocation14 + $0x620] sm:$0xff]
        %v8329 = vld [vmem:[#allocation14 + $0x628] sm:$0xff]
        %v8330 = vld [vmem:[#allocation14 + $0x630] sm:$0xff]
        %v8331 = vld [vmem:[#allocation14 + $0x638] sm:$0xff]
        %v8332 = vld [vmem:[#allocation14 + $0x640] sm:$0xff]
        %v8333 = vld [vmem:[#allocation14 + $0x648] sm:$0xff]
        %v8334 = vld [vmem:[#allocation14 + $0x650] sm:$0xff]
        %v8335 = vld [vmem:[#allocation14 + $0x658] sm:$0xff]
        %v8336 = vld [vmem:[#allocation14 + $0x660] sm:$0xff]
        %v8337 = vld [vmem:[#allocation14 + $0x668] sm:$0xff]
        %v8338 = vld [vmem:[#allocation14 + $0x670] sm:$0xff]
        %v8339 = vld [vmem:[#allocation14 + $0x678] sm:$0xff]
        %v8340 = vld [vmem:[#allocation14 + $0x680] sm:$0xff]
        %v8341 = vld [vmem:[#allocation14 + $0x688] sm:$0xff]
        %v8342 = vld [vmem:[#allocation14 + $0x690] sm:$0xff]
        %v8343 = vld [vmem:[#allocation14 + $0x698] sm:$0xff]
        %v8344 = vld [vmem:[#allocation14 + $0x6a0] sm:$0xff]
        %v8345 = vld [vmem:[#allocation14 + $0x6a8] sm:$0xff]
        %v8346 = vld [vmem:[#allocation14 + $0x6b0] sm:$0xff]
        %v8347 = vld [vmem:[#allocation14 + $0x6b8] sm:$0xff]
        %v8348 = vld [vmem:[#allocation14 + $0x6c0] sm:$0xff]
        %v8349 = vld [vmem:[#allocation14 + $0x6c8] sm:$0xff]
        %v8350 = vld [vmem:[#allocation14 + $0x6d0] sm:$0xff]
        %v8351 = vld [vmem:[#allocation14 + $0x6d8] sm:$0xff]
        %v8352 = vld [vmem:[#allocation14 + $0x6e0] sm:$0xff]
        %v8353 = vld [vmem:[#allocation14 + $0x6e8] sm:$0xff]
        %v8354 = vld [vmem:[#allocation14 + $0x6f0] sm:$0xff]
        %v8355 = vld [vmem:[#allocation14 + $0x6f8] sm:$0xff]
        %v8356 = vld [vmem:[#allocation14 + $0x700] sm:$0xff]
        %v8357 = vld [vmem:[#allocation14 + $0x708] sm:$0xff]
        %v8358 = vld [vmem:[#allocation14 + $0x710] sm:$0xff]
        %v8359 = vld [vmem:[#allocation14 + $0x718] sm:$0xff]
        %v8360 = vld [vmem:[#allocation14 + $0x720] sm:$0xff]
        %v8361 = vld [vmem:[#allocation14 + $0x728] sm:$0xff]
        %v8362 = vld [vmem:[#allocation14 + $0x730] sm:$0xff]
        %v8363 = vld [vmem:[#allocation14 + $0x738] sm:$0xff]
        %v8364 = vld [vmem:[#allocation14 + $0x740] sm:$0xff]
        %v8365 = vld [vmem:[#allocation14 + $0x748] sm:$0xff]
        %v8366 = vld [vmem:[#allocation14 + $0x750] sm:$0xff]
        %v8367 = vld [vmem:[#allocation14 + $0x758] sm:$0xff]
        %v8368 = vld [vmem:[#allocation14 + $0x760] sm:$0xff]
        %v8369 = vld [vmem:[#allocation14 + $0x768] sm:$0xff]
        %v8370 = vld [vmem:[#allocation14 + $0x770] sm:$0xff]
        %v8371 = vld [vmem:[#allocation14 + $0x778] sm:$0xff]
        %v8372 = vld [vmem:[#allocation14 + $0x780] sm:$0xff]
        %v8373 = vld [vmem:[#allocation14 + $0x788] sm:$0xff]
        %v8374 = vld [vmem:[#allocation14 + $0x790] sm:$0xff]
        %v8375 = vld [vmem:[#allocation14 + $0x798] sm:$0xff]
        %v8376 = vld [vmem:[#allocation14 + $0x7a0] sm:$0xff]
        %v8377 = vld [vmem:[#allocation14 + $0x7a8] sm:$0xff]
        %v8378 = vld [vmem:[#allocation14 + $0x7b0] sm:$0xff]
        %v8379 = vld [vmem:[#allocation14 + $0x7b8] sm:$0xff]
        %v8380 = vld [vmem:[#allocation14 + $0x7c0] sm:$0xff]
        %v8381 = vld [vmem:[#allocation14 + $0x7c8] sm:$0xff]
        %v8382 = vld [vmem:[#allocation14 + $0x7d0] sm:$0xff]
        %v8383 = vld [vmem:[#allocation14 + $0x7d8] sm:$0xff]
        %v8384 = vld [vmem:[#allocation14 + $0x7e0] sm:$0xff]
        %v8385 = vld [vmem:[#allocation14 + $0x7e8] sm:$0xff]
        %v8386 = vld [vmem:[#allocation14 + $0x7f0] sm:$0xff]
        %v8387 = vld [vmem:[#allocation14 + $0x7f8] sm:$0xff]
        %v8388 = vld [vmem:[%s13] sm:$0xff]
        %v8645 = vunpack.c.l.b16 %v8132
        %v8646 = vunpack.c.h.b16 %v8132
        %v8647 = vunpack.c.l.b16 %v8133
        %v8648 = vunpack.c.h.b16 %v8133
        %v8649 = vunpack.c.l.b16 %v8134
        %v8650 = vunpack.c.h.b16 %v8134
        %v8651 = vunpack.c.l.b16 %v8135
        %v8652 = vunpack.c.h.b16 %v8135
        %v8653 = vunpack.c.l.b16 %v8136
        %v8654 = vunpack.c.h.b16 %v8136
        %v8655 = vunpack.c.l.b16 %v8137
        %v8656 = vunpack.c.h.b16 %v8137
        %v8657 = vunpack.c.l.b16 %v8138
        %v8658 = vunpack.c.h.b16 %v8138
        %v8659 = vunpack.c.l.b16 %v8139
        %v8660 = vunpack.c.h.b16 %v8139
        %v8661 = vunpack.c.l.b16 %v8140
        %v8662 = vunpack.c.h.b16 %v8140
        %v8663 = vunpack.c.l.b16 %v8141
        %v8664 = vunpack.c.h.b16 %v8141
        %v8665 = vunpack.c.l.b16 %v8142
        %v8666 = vunpack.c.h.b16 %v8142
        %v8667 = vunpack.c.l.b16 %v8143
        %v8668 = vunpack.c.h.b16 %v8143
        %v8669 = vunpack.c.l.b16 %v8144
        %v8670 = vunpack.c.h.b16 %v8144
        %v8671 = vunpack.c.l.b16 %v8145
        %v8672 = vunpack.c.h.b16 %v8145
        %v8673 = vunpack.c.l.b16 %v8146
        %v8674 = vunpack.c.h.b16 %v8146
        %v8675 = vunpack.c.l.b16 %v8147
        %v8676 = vunpack.c.h.b16 %v8147
        %v8677 = vunpack.c.l.b16 %v8148
        %v8678 = vunpack.c.h.b16 %v8148
        %v8679 = vunpack.c.l.b16 %v8149
        %v8680 = vunpack.c.h.b16 %v8149
        %v8681 = vunpack.c.l.b16 %v8150
        %v8682 = vunpack.c.h.b16 %v8150
        %v8683 = vunpack.c.l.b16 %v8151
        %v8684 = vunpack.c.h.b16 %v8151
        %v8685 = vunpack.c.l.b16 %v8152
        %v8686 = vunpack.c.h.b16 %v8152
        %v8687 = vunpack.c.l.b16 %v8153
        %v8688 = vunpack.c.h.b16 %v8153
        %v8689 = vunpack.c.l.b16 %v8154
        %v8690 = vunpack.c.h.b16 %v8154
        %v8691 = vunpack.c.l.b16 %v8155
        %v8692 = vunpack.c.h.b16 %v8155
        %v8693 = vunpack.c.l.b16 %v8156
        %v8694 = vunpack.c.h.b16 %v8156
        %v8695 = vunpack.c.l.b16 %v8157
        %v8696 = vunpack.c.h.b16 %v8157
        %v8697 = vunpack.c.l.b16 %v8158
        %v8698 = vunpack.c.h.b16 %v8158
        %v8699 = vunpack.c.l.b16 %v8159
        %v8700 = vunpack.c.h.b16 %v8159
        %v8701 = vunpack.c.l.b16 %v8160
        %v8702 = vunpack.c.h.b16 %v8160
        %v8703 = vunpack.c.l.b16 %v8161
        %v8704 = vunpack.c.h.b16 %v8161
        %v8705 = vunpack.c.l.b16 %v8162
        %v8706 = vunpack.c.h.b16 %v8162
        %v8707 = vunpack.c.l.b16 %v8163
        %v8708 = vunpack.c.h.b16 %v8163
        %v8709 = vunpack.c.l.b16 %v8164
        %v8710 = vunpack.c.h.b16 %v8164
        %v8711 = vunpack.c.l.b16 %v8165
        %v8712 = vunpack.c.h.b16 %v8165
        %v8713 = vunpack.c.l.b16 %v8166
        %v8714 = vunpack.c.h.b16 %v8166
        %v8715 = vunpack.c.l.b16 %v8167
        %v8716 = vunpack.c.h.b16 %v8167
        %v8717 = vunpack.c.l.b16 %v8168
        %v8718 = vunpack.c.h.b16 %v8168
        %v8719 = vunpack.c.l.b16 %v8169
        %v8720 = vunpack.c.h.b16 %v8169
        %v8721 = vunpack.c.l.b16 %v8170
        %v8722 = vunpack.c.h.b16 %v8170
        %v8723 = vunpack.c.l.b16 %v8171
        %v8724 = vunpack.c.h.b16 %v8171
        %v8725 = vunpack.c.l.b16 %v8172
        %v8726 = vunpack.c.h.b16 %v8172
        %v8727 = vunpack.c.l.b16 %v8173
        %v8728 = vunpack.c.h.b16 %v8173
        %v8729 = vunpack.c.l.b16 %v8174
        %v8730 = vunpack.c.h.b16 %v8174
        %v8731 = vunpack.c.l.b16 %v8175
        %v8732 = vunpack.c.h.b16 %v8175
        %v8733 = vunpack.c.l.b16 %v8176
        %v8734 = vunpack.c.h.b16 %v8176
        %v8735 = vunpack.c.l.b16 %v8177
        %v8736 = vunpack.c.h.b16 %v8177
        %v8737 = vunpack.c.l.b16 %v8178
        %v8738 = vunpack.c.h.b16 %v8178
        %v8739 = vunpack.c.l.b16 %v8179
        %v8740 = vunpack.c.h.b16 %v8179
        %v8741 = vunpack.c.l.b16 %v8180
        %v8742 = vunpack.c.h.b16 %v8180
        %v8743 = vunpack.c.l.b16 %v8181
        %v8744 = vunpack.c.h.b16 %v8181
        %v8745 = vunpack.c.l.b16 %v8182
        %v8746 = vunpack.c.h.b16 %v8182
        %v8747 = vunpack.c.l.b16 %v8183
        %v8748 = vunpack.c.h.b16 %v8183
        %v8749 = vunpack.c.l.b16 %v8184
        %v8750 = vunpack.c.h.b16 %v8184
        %v8751 = vunpack.c.l.b16 %v8185
        %v8752 = vunpack.c.h.b16 %v8185
        %v8753 = vunpack.c.l.b16 %v8186
        %v8754 = vunpack.c.h.b16 %v8186
        %v8755 = vunpack.c.l.b16 %v8187
        %v8756 = vunpack.c.h.b16 %v8187
        %v8757 = vunpack.c.l.b16 %v8188
        %v8758 = vunpack.c.h.b16 %v8188
        %v8759 = vunpack.c.l.b16 %v8189
        %v8760 = vunpack.c.h.b16 %v8189
        %v8761 = vunpack.c.l.b16 %v8190
        %v8762 = vunpack.c.h.b16 %v8190
        %v8763 = vunpack.c.l.b16 %v8191
        %v8764 = vunpack.c.h.b16 %v8191
        %v8765 = vunpack.c.l.b16 %v8192
        %v8766 = vunpack.c.h.b16 %v8192
        %v8767 = vunpack.c.l.b16 %v8193
        %v8768 = vunpack.c.h.b16 %v8193
        %v8769 = vunpack.c.l.b16 %v8194
        %v8770 = vunpack.c.h.b16 %v8194
        %v8771 = vunpack.c.l.b16 %v8195
        %v8772 = vunpack.c.h.b16 %v8195
        %v8773 = vunpack.c.l.b16 %v8196
        %v8774 = vunpack.c.h.b16 %v8196
        %v8775 = vunpack.c.l.b16 %v8197
        %v8776 = vunpack.c.h.b16 %v8197
        %v8777 = vunpack.c.l.b16 %v8198
        %v8778 = vunpack.c.h.b16 %v8198
        %v8779 = vunpack.c.l.b16 %v8199
        %v8780 = vunpack.c.h.b16 %v8199
        %v8781 = vunpack.c.l.b16 %v8200
        %v8782 = vunpack.c.h.b16 %v8200
        %v8783 = vunpack.c.l.b16 %v8201
        %v8784 = vunpack.c.h.b16 %v8201
        %v8785 = vunpack.c.l.b16 %v8202
        %v8786 = vunpack.c.h.b16 %v8202
        %v8787 = vunpack.c.l.b16 %v8203
        %v8788 = vunpack.c.h.b16 %v8203
        %v8789 = vunpack.c.l.b16 %v8204
        %v8790 = vunpack.c.h.b16 %v8204
        %v8791 = vunpack.c.l.b16 %v8205
        %v8792 = vunpack.c.h.b16 %v8205
        %v8793 = vunpack.c.l.b16 %v8206
        %v8794 = vunpack.c.h.b16 %v8206
        %v8795 = vunpack.c.l.b16 %v8207
        %v8796 = vunpack.c.h.b16 %v8207
        %v8797 = vunpack.c.l.b16 %v8208
        %v8798 = vunpack.c.h.b16 %v8208
        %v8799 = vunpack.c.l.b16 %v8209
        %v8800 = vunpack.c.h.b16 %v8209
        %v8801 = vunpack.c.l.b16 %v8210
        %v8802 = vunpack.c.h.b16 %v8210
        %v8803 = vunpack.c.l.b16 %v8211
        %v8804 = vunpack.c.h.b16 %v8211
        %v8805 = vunpack.c.l.b16 %v8212
        %v8806 = vunpack.c.h.b16 %v8212
        %v8807 = vunpack.c.l.b16 %v8213
        %v8808 = vunpack.c.h.b16 %v8213
        %v8809 = vunpack.c.l.b16 %v8214
        %v8810 = vunpack.c.h.b16 %v8214
        %v8811 = vunpack.c.l.b16 %v8215
        %v8812 = vunpack.c.h.b16 %v8215
        %v8813 = vunpack.c.l.b16 %v8216
        %v8814 = vunpack.c.h.b16 %v8216
        %v8815 = vunpack.c.l.b16 %v8217
        %v8816 = vunpack.c.h.b16 %v8217
        %v8817 = vunpack.c.l.b16 %v8218
        %v8818 = vunpack.c.h.b16 %v8218
        %v8819 = vunpack.c.l.b16 %v8219
        %v8820 = vunpack.c.h.b16 %v8219
        %v8821 = vunpack.c.l.b16 %v8220
        %v8822 = vunpack.c.h.b16 %v8220
        %v8823 = vunpack.c.l.b16 %v8221
        %v8824 = vunpack.c.h.b16 %v8221
        %v8825 = vunpack.c.l.b16 %v8222
        %v8826 = vunpack.c.h.b16 %v8222
        %v8827 = vunpack.c.l.b16 %v8223
        %v8828 = vunpack.c.h.b16 %v8223
        %v8829 = vunpack.c.l.b16 %v8224
        %v8830 = vunpack.c.h.b16 %v8224
        %v8831 = vunpack.c.l.b16 %v8225
        %v8832 = vunpack.c.h.b16 %v8225
        %v8833 = vunpack.c.l.b16 %v8226
        %v8834 = vunpack.c.h.b16 %v8226
        %v8835 = vunpack.c.l.b16 %v8227
        %v8836 = vunpack.c.h.b16 %v8227
        %v8837 = vunpack.c.l.b16 %v8228
        %v8838 = vunpack.c.h.b16 %v8228
        %v8839 = vunpack.c.l.b16 %v8229
        %v8840 = vunpack.c.h.b16 %v8229
        %v8841 = vunpack.c.l.b16 %v8230
        %v8842 = vunpack.c.h.b16 %v8230
        %v8843 = vunpack.c.l.b16 %v8231
        %v8844 = vunpack.c.h.b16 %v8231
        %v8845 = vunpack.c.l.b16 %v8232
        %v8846 = vunpack.c.h.b16 %v8232
        %v8847 = vunpack.c.l.b16 %v8233
        %v8848 = vunpack.c.h.b16 %v8233
        %v8849 = vunpack.c.l.b16 %v8234
        %v8850 = vunpack.c.h.b16 %v8234
        %v8851 = vunpack.c.l.b16 %v8235
        %v8852 = vunpack.c.h.b16 %v8235
        %v8853 = vunpack.c.l.b16 %v8236
        %v8854 = vunpack.c.h.b16 %v8236
        %v8855 = vunpack.c.l.b16 %v8237
        %v8856 = vunpack.c.h.b16 %v8237
        %v8857 = vunpack.c.l.b16 %v8238
        %v8858 = vunpack.c.h.b16 %v8238
        %v8859 = vunpack.c.l.b16 %v8239
        %v8860 = vunpack.c.h.b16 %v8239
        %v8861 = vunpack.c.l.b16 %v8240
        %v8862 = vunpack.c.h.b16 %v8240
        %v8863 = vunpack.c.l.b16 %v8241
        %v8864 = vunpack.c.h.b16 %v8241
        %v8865 = vunpack.c.l.b16 %v8242
        %v8866 = vunpack.c.h.b16 %v8242
        %v8867 = vunpack.c.l.b16 %v8243
        %v8868 = vunpack.c.h.b16 %v8243
        %v8869 = vunpack.c.l.b16 %v8244
        %v8870 = vunpack.c.h.b16 %v8244
        %v8871 = vunpack.c.l.b16 %v8245
        %v8872 = vunpack.c.h.b16 %v8245
        %v8873 = vunpack.c.l.b16 %v8246
        %v8874 = vunpack.c.h.b16 %v8246
        %v8875 = vunpack.c.l.b16 %v8247
        %v8876 = vunpack.c.h.b16 %v8247
        %v8877 = vunpack.c.l.b16 %v8248
        %v8878 = vunpack.c.h.b16 %v8248
        %v8879 = vunpack.c.l.b16 %v8249
        %v8880 = vunpack.c.h.b16 %v8249
        %v8881 = vunpack.c.l.b16 %v8250
        %v8882 = vunpack.c.h.b16 %v8250
        %v8883 = vunpack.c.l.b16 %v8251
        %v8884 = vunpack.c.h.b16 %v8251
        %v8885 = vunpack.c.l.b16 %v8252
        %v8886 = vunpack.c.h.b16 %v8252
        %v8887 = vunpack.c.l.b16 %v8253
        %v8888 = vunpack.c.h.b16 %v8253
        %v8889 = vunpack.c.l.b16 %v8254
        %v8890 = vunpack.c.h.b16 %v8254
        %v8891 = vunpack.c.l.b16 %v8255
        %v8892 = vunpack.c.h.b16 %v8255
        %v8893 = vunpack.c.l.b16 %v8256
        %v8894 = vunpack.c.h.b16 %v8256
        %v8895 = vunpack.c.l.b16 %v8257
        %v8896 = vunpack.c.h.b16 %v8257
        %v8897 = vunpack.c.l.b16 %v8258
        %v8898 = vunpack.c.h.b16 %v8258
        %v8899 = vunpack.c.l.b16 %v8259
        %v8900 = vunpack.c.h.b16 %v8259
        %v8901 = vunpack.c.l.b16 %v8260
        %v8902 = vunpack.c.h.b16 %v8260
        %v8903 = vunpack.c.l.b16 %v8261
        %v8904 = vunpack.c.h.b16 %v8261
        %v8905 = vunpack.c.l.b16 %v8262
        %v8906 = vunpack.c.h.b16 %v8262
        %v8907 = vunpack.c.l.b16 %v8263
        %v8908 = vunpack.c.h.b16 %v8263
        %v8909 = vunpack.c.l.b16 %v8264
        %v8910 = vunpack.c.h.b16 %v8264
        %v8911 = vunpack.c.l.b16 %v8265
        %v8912 = vunpack.c.h.b16 %v8265
        %v8913 = vunpack.c.l.b16 %v8266
        %v8914 = vunpack.c.h.b16 %v8266
        %v8915 = vunpack.c.l.b16 %v8267
        %v8916 = vunpack.c.h.b16 %v8267
        %v8917 = vunpack.c.l.b16 %v8268
        %v8918 = vunpack.c.h.b16 %v8268
        %v8919 = vunpack.c.l.b16 %v8269
        %v8920 = vunpack.c.h.b16 %v8269
        %v8921 = vunpack.c.l.b16 %v8270
        %v8922 = vunpack.c.h.b16 %v8270
        %v8923 = vunpack.c.l.b16 %v8271
        %v8924 = vunpack.c.h.b16 %v8271
        %v8925 = vunpack.c.l.b16 %v8272
        %v8926 = vunpack.c.h.b16 %v8272
        %v8927 = vunpack.c.l.b16 %v8273
        %v8928 = vunpack.c.h.b16 %v8273
        %v8929 = vunpack.c.l.b16 %v8274
        %v8930 = vunpack.c.h.b16 %v8274
        %v8931 = vunpack.c.l.b16 %v8275
        %v8932 = vunpack.c.h.b16 %v8275
        %v8933 = vunpack.c.l.b16 %v8276
        %v8934 = vunpack.c.h.b16 %v8276
        %v8935 = vunpack.c.l.b16 %v8277
        %v8936 = vunpack.c.h.b16 %v8277
        %v8937 = vunpack.c.l.b16 %v8278
        %v8938 = vunpack.c.h.b16 %v8278
        %v8939 = vunpack.c.l.b16 %v8279
        %v8940 = vunpack.c.h.b16 %v8279
        %v8941 = vunpack.c.l.b16 %v8280
        %v8942 = vunpack.c.h.b16 %v8280
        %v8943 = vunpack.c.l.b16 %v8281
        %v8944 = vunpack.c.h.b16 %v8281
        %v8945 = vunpack.c.l.b16 %v8282
        %v8946 = vunpack.c.h.b16 %v8282
        %v8947 = vunpack.c.l.b16 %v8283
        %v8948 = vunpack.c.h.b16 %v8283
        %v8949 = vunpack.c.l.b16 %v8284
        %v8950 = vunpack.c.h.b16 %v8284
        %v8951 = vunpack.c.l.b16 %v8285
        %v8952 = vunpack.c.h.b16 %v8285
        %v8953 = vunpack.c.l.b16 %v8286
        %v8954 = vunpack.c.h.b16 %v8286
        %v8955 = vunpack.c.l.b16 %v8287
        %v8956 = vunpack.c.h.b16 %v8287
        %v8957 = vunpack.c.l.b16 %v8288
        %v8958 = vunpack.c.h.b16 %v8288
        %v8959 = vunpack.c.l.b16 %v8289
        %v8960 = vunpack.c.h.b16 %v8289
        %v8961 = vunpack.c.l.b16 %v8290
        %v8962 = vunpack.c.h.b16 %v8290
        %v8963 = vunpack.c.l.b16 %v8291
        %v8964 = vunpack.c.h.b16 %v8291
        %v8965 = vunpack.c.l.b16 %v8292
        %v8966 = vunpack.c.h.b16 %v8292
        %v8967 = vunpack.c.l.b16 %v8293
        %v8968 = vunpack.c.h.b16 %v8293
        %v8969 = vunpack.c.l.b16 %v8294
        %v8970 = vunpack.c.h.b16 %v8294
        %v8971 = vunpack.c.l.b16 %v8295
        %v8972 = vunpack.c.h.b16 %v8295
        %v8973 = vunpack.c.l.b16 %v8296
        %v8974 = vunpack.c.h.b16 %v8296
        %v8975 = vunpack.c.l.b16 %v8297
        %v8976 = vunpack.c.h.b16 %v8297
        %v8977 = vunpack.c.l.b16 %v8298
        %v8978 = vunpack.c.h.b16 %v8298
        %v8979 = vunpack.c.l.b16 %v8299
        %v8980 = vunpack.c.h.b16 %v8299
        %v8981 = vunpack.c.l.b16 %v8300
        %v8982 = vunpack.c.h.b16 %v8300
        %v8983 = vunpack.c.l.b16 %v8301
        %v8984 = vunpack.c.h.b16 %v8301
        %v8985 = vunpack.c.l.b16 %v8302
        %v8986 = vunpack.c.h.b16 %v8302
        %v8987 = vunpack.c.l.b16 %v8303
        %v8988 = vunpack.c.h.b16 %v8303
        %v8989 = vunpack.c.l.b16 %v8304
        %v8990 = vunpack.c.h.b16 %v8304
        %v8991 = vunpack.c.l.b16 %v8305
        %v8992 = vunpack.c.h.b16 %v8305
        %v8993 = vunpack.c.l.b16 %v8306
        %v8994 = vunpack.c.h.b16 %v8306
        %v8995 = vunpack.c.l.b16 %v8307
        %v8996 = vunpack.c.h.b16 %v8307
        %v8997 = vunpack.c.l.b16 %v8308
        %v8998 = vunpack.c.h.b16 %v8308
        %v8999 = vunpack.c.l.b16 %v8309
        %v9000 = vunpack.c.h.b16 %v8309
        %v9001 = vunpack.c.l.b16 %v8310
        %v9002 = vunpack.c.h.b16 %v8310
        %v9003 = vunpack.c.l.b16 %v8311
        %v9004 = vunpack.c.h.b16 %v8311
        %v9005 = vunpack.c.l.b16 %v8312
        %v9006 = vunpack.c.h.b16 %v8312
        %v9007 = vunpack.c.l.b16 %v8313
        %v9008 = vunpack.c.h.b16 %v8313
        %v9009 = vunpack.c.l.b16 %v8314
        %v9010 = vunpack.c.h.b16 %v8314
        %v9011 = vunpack.c.l.b16 %v8315
        %v9012 = vunpack.c.h.b16 %v8315
        %v9013 = vunpack.c.l.b16 %v8316
        %v9014 = vunpack.c.h.b16 %v8316
        %v9015 = vunpack.c.l.b16 %v8317
        %v9016 = vunpack.c.h.b16 %v8317
        %v9017 = vunpack.c.l.b16 %v8318
        %v9018 = vunpack.c.h.b16 %v8318
        %v9019 = vunpack.c.l.b16 %v8319
        %v9020 = vunpack.c.h.b16 %v8319
        %v9021 = vunpack.c.l.b16 %v8320
        %v9022 = vunpack.c.h.b16 %v8320
        %v9023 = vunpack.c.l.b16 %v8321
        %v9024 = vunpack.c.h.b16 %v8321
        %v9025 = vunpack.c.l.b16 %v8322
        %v9026 = vunpack.c.h.b16 %v8322
        %v9027 = vunpack.c.l.b16 %v8323
        %v9028 = vunpack.c.h.b16 %v8323
        %v9029 = vunpack.c.l.b16 %v8324
        %v9030 = vunpack.c.h.b16 %v8324
        %v9031 = vunpack.c.l.b16 %v8325
        %v9032 = vunpack.c.h.b16 %v8325
        %v9033 = vunpack.c.l.b16 %v8326
        %v9034 = vunpack.c.h.b16 %v8326
        %v9035 = vunpack.c.l.b16 %v8327
        %v9036 = vunpack.c.h.b16 %v8327
        %v9037 = vunpack.c.l.b16 %v8328
        %v9038 = vunpack.c.h.b16 %v8328
        %v9039 = vunpack.c.l.b16 %v8329
        %v9040 = vunpack.c.h.b16 %v8329
        %v9041 = vunpack.c.l.b16 %v8330
        %v9042 = vunpack.c.h.b16 %v8330
        %v9043 = vunpack.c.l.b16 %v8331
        %v9044 = vunpack.c.h.b16 %v8331
        %v9045 = vunpack.c.l.b16 %v8332
        %v9046 = vunpack.c.h.b16 %v8332
        %v9047 = vunpack.c.l.b16 %v8333
        %v9048 = vunpack.c.h.b16 %v8333
        %v9049 = vunpack.c.l.b16 %v8334
        %v9050 = vunpack.c.h.b16 %v8334
        %v9051 = vunpack.c.l.b16 %v8335
        %v9052 = vunpack.c.h.b16 %v8335
        %v9053 = vunpack.c.l.b16 %v8336
        %v9054 = vunpack.c.h.b16 %v8336
        %v9055 = vunpack.c.l.b16 %v8337
        %v9056 = vunpack.c.h.b16 %v8337
        %v9057 = vunpack.c.l.b16 %v8338
        %v9058 = vunpack.c.h.b16 %v8338
        %v9059 = vunpack.c.l.b16 %v8339
        %v9060 = vunpack.c.h.b16 %v8339
        %v9061 = vunpack.c.l.b16 %v8340
        %v9062 = vunpack.c.h.b16 %v8340
        %v9063 = vunpack.c.l.b16 %v8341
        %v9064 = vunpack.c.h.b16 %v8341
        %v9065 = vunpack.c.l.b16 %v8342
        %v9066 = vunpack.c.h.b16 %v8342
        %v9067 = vunpack.c.l.b16 %v8343
        %v9068 = vunpack.c.h.b16 %v8343
        %v9069 = vunpack.c.l.b16 %v8344
        %v9070 = vunpack.c.h.b16 %v8344
        %v9071 = vunpack.c.l.b16 %v8345
        %v9072 = vunpack.c.h.b16 %v8345
        %v9073 = vunpack.c.l.b16 %v8346
        %v9074 = vunpack.c.h.b16 %v8346
        %v9075 = vunpack.c.l.b16 %v8347
        %v9076 = vunpack.c.h.b16 %v8347
        %v9077 = vunpack.c.l.b16 %v8348
        %v9078 = vunpack.c.h.b16 %v8348
        %v9079 = vunpack.c.l.b16 %v8349
        %v9080 = vunpack.c.h.b16 %v8349
        %v9081 = vunpack.c.l.b16 %v8350
        %v9082 = vunpack.c.h.b16 %v8350
        %v9083 = vunpack.c.l.b16 %v8351
        %v9084 = vunpack.c.h.b16 %v8351
        %v9085 = vunpack.c.l.b16 %v8352
        %v9086 = vunpack.c.h.b16 %v8352
        %v9087 = vunpack.c.l.b16 %v8353
        %v9088 = vunpack.c.h.b16 %v8353
        %v9089 = vunpack.c.l.b16 %v8354
        %v9090 = vunpack.c.h.b16 %v8354
        %v9091 = vunpack.c.l.b16 %v8355
        %v9092 = vunpack.c.h.b16 %v8355
        %v9093 = vunpack.c.l.b16 %v8356
        %v9094 = vunpack.c.h.b16 %v8356
        %v9095 = vunpack.c.l.b16 %v8357
        %v9096 = vunpack.c.h.b16 %v8357
        %v9097 = vunpack.c.l.b16 %v8358
        %v9098 = vunpack.c.h.b16 %v8358
        %v9099 = vunpack.c.l.b16 %v8359
        %v9100 = vunpack.c.h.b16 %v8359
        %v9101 = vunpack.c.l.b16 %v8360
        %v9102 = vunpack.c.h.b16 %v8360
        %v9103 = vunpack.c.l.b16 %v8361
        %v9104 = vunpack.c.h.b16 %v8361
        %v9105 = vunpack.c.l.b16 %v8362
        %v9106 = vunpack.c.h.b16 %v8362
        %v9107 = vunpack.c.l.b16 %v8363
        %v9108 = vunpack.c.h.b16 %v8363
        %v9109 = vunpack.c.l.b16 %v8364
        %v9110 = vunpack.c.h.b16 %v8364
        %v9111 = vunpack.c.l.b16 %v8365
        %v9112 = vunpack.c.h.b16 %v8365
        %v9113 = vunpack.c.l.b16 %v8366
        %v9114 = vunpack.c.h.b16 %v8366
        %v9115 = vunpack.c.l.b16 %v8367
        %v9116 = vunpack.c.h.b16 %v8367
        %v9117 = vunpack.c.l.b16 %v8368
        %v9118 = vunpack.c.h.b16 %v8368
        %v9119 = vunpack.c.l.b16 %v8369
        %v9120 = vunpack.c.h.b16 %v8369
        %v9121 = vunpack.c.l.b16 %v8370
        %v9122 = vunpack.c.h.b16 %v8370
        %v9123 = vunpack.c.l.b16 %v8371
        %v9124 = vunpack.c.h.b16 %v8371
        %v9125 = vunpack.c.l.b16 %v8372
        %v9126 = vunpack.c.h.b16 %v8372
        %v9127 = vunpack.c.l.b16 %v8373
        %v9128 = vunpack.c.h.b16 %v8373
        %v9129 = vunpack.c.l.b16 %v8374
        %v9130 = vunpack.c.h.b16 %v8374
        %v9131 = vunpack.c.l.b16 %v8375
        %v9132 = vunpack.c.h.b16 %v8375
        %v9133 = vunpack.c.l.b16 %v8376
        %v9134 = vunpack.c.h.b16 %v8376
        %v9135 = vunpack.c.l.b16 %v8377
        %v9136 = vunpack.c.h.b16 %v8377
        %v9137 = vunpack.c.l.b16 %v8378
        %v9138 = vunpack.c.h.b16 %v8378
        %v9139 = vunpack.c.l.b16 %v8379
        %v9140 = vunpack.c.h.b16 %v8379
        %v9141 = vunpack.c.l.b16 %v8380
        %v9142 = vunpack.c.h.b16 %v8380
        %v9143 = vunpack.c.l.b16 %v8381
        %v9144 = vunpack.c.h.b16 %v8381
        %v9145 = vunpack.c.l.b16 %v8382
        %v9146 = vunpack.c.h.b16 %v8382
        %v9147 = vunpack.c.l.b16 %v8383
        %v9148 = vunpack.c.h.b16 %v8383
        %v9149 = vunpack.c.l.b16 %v8384
        %v9150 = vunpack.c.h.b16 %v8384
        %v9151 = vunpack.c.l.b16 %v8385
        %v9152 = vunpack.c.h.b16 %v8385
        %v9153 = vunpack.c.l.b16 %v8386
        %v9154 = vunpack.c.h.b16 %v8386
        %v9155 = vunpack.c.l.b16 %v8387
        %v9156 = vunpack.c.h.b16 %v8387
        %v9157 = vpack.c.b16 %v8653, %v8645
        %v9158 = vpack.c.b16 %v8654, %v8646
        %v9159 = vpack.c.b16 %v8655, %v8647
        %v9160 = vpack.c.b16 %v8656, %v8648
        %v9161 = vpack.c.b16 %v8657, %v8649
        %v9162 = vpack.c.b16 %v8658, %v8650
        %v9163 = vpack.c.b16 %v8659, %v8651
        %v9164 = vpack.c.b16 %v8660, %v8652
        %v9165 = vpack.c.b16 %v8669, %v8661
        %v9166 = vpack.c.b16 %v8670, %v8662
        %v9167 = vpack.c.b16 %v8671, %v8663
        %v9168 = vpack.c.b16 %v8672, %v8664
        %v9169 = vpack.c.b16 %v8673, %v8665
        %v9170 = vpack.c.b16 %v8674, %v8666
        %v9171 = vpack.c.b16 %v8675, %v8667
        %v9172 = vpack.c.b16 %v8676, %v8668
        %v9173 = vpack.c.b16 %v8685, %v8677
        %v9174 = vpack.c.b16 %v8686, %v8678
        %v9175 = vpack.c.b16 %v8687, %v8679
        %v9176 = vpack.c.b16 %v8688, %v8680
        %v9177 = vpack.c.b16 %v8689, %v8681
        %v9178 = vpack.c.b16 %v8690, %v8682
        %v9179 = vpack.c.b16 %v8691, %v8683
        %v9180 = vpack.c.b16 %v8692, %v8684
        %v9181 = vpack.c.b16 %v8701, %v8693
        %v9182 = vpack.c.b16 %v8702, %v8694
        %v9183 = vpack.c.b16 %v8703, %v8695
        %v9184 = vpack.c.b16 %v8704, %v8696
        %v9185 = vpack.c.b16 %v8705, %v8697
        %v9186 = vpack.c.b16 %v8706, %v8698
        %v9187 = vpack.c.b16 %v8707, %v8699
        %v9188 = vpack.c.b16 %v8708, %v8700
        %v9189 = vpack.c.b16 %v8717, %v8709
        %v9190 = vpack.c.b16 %v8718, %v8710
        %v9191 = vpack.c.b16 %v8719, %v8711
        %v9192 = vpack.c.b16 %v8720, %v8712
        %v9193 = vpack.c.b16 %v8721, %v8713
        %v9194 = vpack.c.b16 %v8722, %v8714
        %v9195 = vpack.c.b16 %v8723, %v8715
        %v9196 = vpack.c.b16 %v8724, %v8716
        %v9197 = vpack.c.b16 %v8733, %v8725
        %v9198 = vpack.c.b16 %v8734, %v8726
        %v9199 = vpack.c.b16 %v8735, %v8727
        %v9200 = vpack.c.b16 %v8736, %v8728
        %v9201 = vpack.c.b16 %v8737, %v8729
        %v9202 = vpack.c.b16 %v8738, %v8730
        %v9203 = vpack.c.b16 %v8739, %v8731
        %v9204 = vpack.c.b16 %v8740, %v8732
        %v9205 = vpack.c.b16 %v8749, %v8741
        %v9206 = vpack.c.b16 %v8750, %v8742
        %v9207 = vpack.c.b16 %v8751, %v8743
        %v9208 = vpack.c.b16 %v8752, %v8744
        %v9209 = vpack.c.b16 %v8753, %v8745
        %v9210 = vpack.c.b16 %v8754, %v8746
        %v9211 = vpack.c.b16 %v8755, %v8747
        %v9212 = vpack.c.b16 %v8756, %v8748
        %v9213 = vpack.c.b16 %v8765, %v8757
        %v9214 = vpack.c.b16 %v8766, %v8758
        %v9215 = vpack.c.b16 %v8767, %v8759
        %v9216 = vpack.c.b16 %v8768, %v8760
        %v9217 = vpack.c.b16 %v8769, %v8761
        %v9218 = vpack.c.b16 %v8770, %v8762
        %v9219 = vpack.c.b16 %v8771, %v8763
        %v9220 = vpack.c.b16 %v8772, %v8764
        %v9221 = vpack.c.b16 %v8781, %v8773
        %v9222 = vpack.c.b16 %v8782, %v8774
        %v9223 = vpack.c.b16 %v8783, %v8775
        %v9224 = vpack.c.b16 %v8784, %v8776
        %v9225 = vpack.c.b16 %v8785, %v8777
        %v9226 = vpack.c.b16 %v8786, %v8778
        %v9227 = vpack.c.b16 %v8787, %v8779
        %v9228 = vpack.c.b16 %v8788, %v8780
        %v9229 = vpack.c.b16 %v8797, %v8789
        %v9230 = vpack.c.b16 %v8798, %v8790
        %v9231 = vpack.c.b16 %v8799, %v8791
        %v9232 = vpack.c.b16 %v8800, %v8792
        %v9233 = vpack.c.b16 %v8801, %v8793
        %v9234 = vpack.c.b16 %v8802, %v8794
        %v9235 = vpack.c.b16 %v8803, %v8795
        %v9236 = vpack.c.b16 %v8804, %v8796
        %v9237 = vpack.c.b16 %v8813, %v8805
        %v9238 = vpack.c.b16 %v8814, %v8806
        %v9239 = vpack.c.b16 %v8815, %v8807
        %v9240 = vpack.c.b16 %v8816, %v8808
        %v9241 = vpack.c.b16 %v8817, %v8809
        %v9242 = vpack.c.b16 %v8818, %v8810
        %v9243 = vpack.c.b16 %v8819, %v8811
        %v9244 = vpack.c.b16 %v8820, %v8812
        %v9245 = vpack.c.b16 %v8829, %v8821
        %v9246 = vpack.c.b16 %v8830, %v8822
        %v9247 = vpack.c.b16 %v8831, %v8823
        %v9248 = vpack.c.b16 %v8832, %v8824
        %v9249 = vpack.c.b16 %v8833, %v8825
        %v9250 = vpack.c.b16 %v8834, %v8826
        %v9251 = vpack.c.b16 %v8835, %v8827
        %v9252 = vpack.c.b16 %v8836, %v8828
        %v9253 = vpack.c.b16 %v8845, %v8837
        %v9254 = vpack.c.b16 %v8846, %v8838
        %v9255 = vpack.c.b16 %v8847, %v8839
        %v9256 = vpack.c.b16 %v8848, %v8840
        %v9257 = vpack.c.b16 %v8849, %v8841
        %v9258 = vpack.c.b16 %v8850, %v8842
        %v9259 = vpack.c.b16 %v8851, %v8843
        %v9260 = vpack.c.b16 %v8852, %v8844
        %v9261 = vpack.c.b16 %v8861, %v8853
        %v9262 = vpack.c.b16 %v8862, %v8854
        %v9263 = vpack.c.b16 %v8863, %v8855
        %v9264 = vpack.c.b16 %v8864, %v8856
        %v9265 = vpack.c.b16 %v8865, %v8857
        %v9266 = vpack.c.b16 %v8866, %v8858
        %v9267 = vpack.c.b16 %v8867, %v8859
        %v9268 = vpack.c.b16 %v8868, %v8860
        %v9269 = vpack.c.b16 %v8877, %v8869
        %v9270 = vpack.c.b16 %v8878, %v8870
        %v9271 = vpack.c.b16 %v8879, %v8871
        %v9272 = vpack.c.b16 %v8880, %v8872
        %v9273 = vpack.c.b16 %v8881, %v8873
        %v9274 = vpack.c.b16 %v8882, %v8874
        %v9275 = vpack.c.b16 %v8883, %v8875
        %v9276 = vpack.c.b16 %v8884, %v8876
        %v9277 = vpack.c.b16 %v8893, %v8885
        %v9278 = vpack.c.b16 %v8894, %v8886
        %v9279 = vpack.c.b16 %v8895, %v8887
        %v9280 = vpack.c.b16 %v8896, %v8888
        %v9281 = vpack.c.b16 %v8897, %v8889
        %v9282 = vpack.c.b16 %v8898, %v8890
        %v9283 = vpack.c.b16 %v8899, %v8891
        %v9284 = vpack.c.b16 %v8900, %v8892
        %v9285 = vpack.c.b16 %v8909, %v8901
        %v9286 = vpack.c.b16 %v8910, %v8902
        %v9287 = vpack.c.b16 %v8911, %v8903
        %v9288 = vpack.c.b16 %v8912, %v8904
        %v9289 = vpack.c.b16 %v8913, %v8905
        %v9290 = vpack.c.b16 %v8914, %v8906
        %v9291 = vpack.c.b16 %v8915, %v8907
        %v9292 = vpack.c.b16 %v8916, %v8908
        %v9293 = vpack.c.b16 %v8925, %v8917
        %v9294 = vpack.c.b16 %v8926, %v8918
        %v9295 = vpack.c.b16 %v8927, %v8919
        %v9296 = vpack.c.b16 %v8928, %v8920
        %v9297 = vpack.c.b16 %v8929, %v8921
        %v9298 = vpack.c.b16 %v8930, %v8922
        %v9299 = vpack.c.b16 %v8931, %v8923
        %v9300 = vpack.c.b16 %v8932, %v8924
        %v9301 = vpack.c.b16 %v8941, %v8933
        %v9302 = vpack.c.b16 %v8942, %v8934
        %v9303 = vpack.c.b16 %v8943, %v8935
        %v9304 = vpack.c.b16 %v8944, %v8936
        %v9305 = vpack.c.b16 %v8945, %v8937
        %v9306 = vpack.c.b16 %v8946, %v8938
        %v9307 = vpack.c.b16 %v8947, %v8939
        %v9308 = vpack.c.b16 %v8948, %v8940
        %v9309 = vpack.c.b16 %v8957, %v8949
        %v9310 = vpack.c.b16 %v8958, %v8950
        %v9311 = vpack.c.b16 %v8959, %v8951
        %v9312 = vpack.c.b16 %v8960, %v8952
        %v9313 = vpack.c.b16 %v8961, %v8953
        %v9314 = vpack.c.b16 %v8962, %v8954
        %v9315 = vpack.c.b16 %v8963, %v8955
        %v9316 = vpack.c.b16 %v8964, %v8956
        %v9317 = vpack.c.b16 %v8973, %v8965
        %v9318 = vpack.c.b16 %v8974, %v8966
        %v9319 = vpack.c.b16 %v8975, %v8967
        %v9320 = vpack.c.b16 %v8976, %v8968
        %v9321 = vpack.c.b16 %v8977, %v8969
        %v9322 = vpack.c.b16 %v8978, %v8970
        %v9323 = vpack.c.b16 %v8979, %v8971
        %v9324 = vpack.c.b16 %v8980, %v8972
        %v9325 = vpack.c.b16 %v8989, %v8981
        %v9326 = vpack.c.b16 %v8990, %v8982
        %v9327 = vpack.c.b16 %v8991, %v8983
        %v9328 = vpack.c.b16 %v8992, %v8984
        %v9329 = vpack.c.b16 %v8993, %v8985
        %v9330 = vpack.c.b16 %v8994, %v8986
        %v9331 = vpack.c.b16 %v8995, %v8987
        %v9332 = vpack.c.b16 %v8996, %v8988
        %v9333 = vpack.c.b16 %v9005, %v8997
        %v9334 = vpack.c.b16 %v9006, %v8998
        %v9335 = vpack.c.b16 %v9007, %v8999
        %v9336 = vpack.c.b16 %v9008, %v9000
        %v9337 = vpack.c.b16 %v9009, %v9001
        %v9338 = vpack.c.b16 %v9010, %v9002
        %v9339 = vpack.c.b16 %v9011, %v9003
        %v9340 = vpack.c.b16 %v9012, %v9004
        %v9341 = vpack.c.b16 %v9021, %v9013
        %v9342 = vpack.c.b16 %v9022, %v9014
        %v9343 = vpack.c.b16 %v9023, %v9015
        %v9344 = vpack.c.b16 %v9024, %v9016
        %v9345 = vpack.c.b16 %v9025, %v9017
        %v9346 = vpack.c.b16 %v9026, %v9018
        %v9347 = vpack.c.b16 %v9027, %v9019
        %v9348 = vpack.c.b16 %v9028, %v9020
        %v9349 = vpack.c.b16 %v9037, %v9029
        %v9350 = vpack.c.b16 %v9038, %v9030
        %v9351 = vpack.c.b16 %v9039, %v9031
        %v9352 = vpack.c.b16 %v9040, %v9032
        %v9353 = vpack.c.b16 %v9041, %v9033
        %v9354 = vpack.c.b16 %v9042, %v9034
        %v9355 = vpack.c.b16 %v9043, %v9035
        %v9356 = vpack.c.b16 %v9044, %v9036
        %v9357 = vpack.c.b16 %v9053, %v9045
        %v9358 = vpack.c.b16 %v9054, %v9046
        %v9359 = vpack.c.b16 %v9055, %v9047
        %v9360 = vpack.c.b16 %v9056, %v9048
        %v9361 = vpack.c.b16 %v9057, %v9049
        %v9362 = vpack.c.b16 %v9058, %v9050
        %v9363 = vpack.c.b16 %v9059, %v9051
        %v9364 = vpack.c.b16 %v9060, %v9052
        %v9365 = vpack.c.b16 %v9069, %v9061
        %v9366 = vpack.c.b16 %v9070, %v9062
        %v9367 = vpack.c.b16 %v9071, %v9063
        %v9368 = vpack.c.b16 %v9072, %v9064
        %v9369 = vpack.c.b16 %v9073, %v9065
        %v9370 = vpack.c.b16 %v9074, %v9066
        %v9371 = vpack.c.b16 %v9075, %v9067
        %v9372 = vpack.c.b16 %v9076, %v9068
        %v9373 = vpack.c.b16 %v9085, %v9077
        %v9374 = vpack.c.b16 %v9086, %v9078
        %v9375 = vpack.c.b16 %v9087, %v9079
        %v9376 = vpack.c.b16 %v9088, %v9080
        %v9377 = vpack.c.b16 %v9089, %v9081
        %v9378 = vpack.c.b16 %v9090, %v9082
        %v9379 = vpack.c.b16 %v9091, %v9083
        %v9380 = vpack.c.b16 %v9092, %v9084
        %v9381 = vpack.c.b16 %v9101, %v9093
        %v9382 = vpack.c.b16 %v9102, %v9094
        %v9383 = vpack.c.b16 %v9103, %v9095
        %v9384 = vpack.c.b16 %v9104, %v9096
        %v9385 = vpack.c.b16 %v9105, %v9097
        %v9386 = vpack.c.b16 %v9106, %v9098
        %v9387 = vpack.c.b16 %v9107, %v9099
        %v9388 = vpack.c.b16 %v9108, %v9100
        %v9389 = vpack.c.b16 %v9117, %v9109
        %v9390 = vpack.c.b16 %v9118, %v9110
        %v9391 = vpack.c.b16 %v9119, %v9111
        %v9392 = vpack.c.b16 %v9120, %v9112
        %v9393 = vpack.c.b16 %v9121, %v9113
        %v9394 = vpack.c.b16 %v9122, %v9114
        %v9395 = vpack.c.b16 %v9123, %v9115
        %v9396 = vpack.c.b16 %v9124, %v9116
        %v9397 = vpack.c.b16 %v9133, %v9125
        %v9398 = vpack.c.b16 %v9134, %v9126
        %v9399 = vpack.c.b16 %v9135, %v9127
        %v9400 = vpack.c.b16 %v9136, %v9128
        %v9401 = vpack.c.b16 %v9137, %v9129
        %v9402 = vpack.c.b16 %v9138, %v9130
        %v9403 = vpack.c.b16 %v9139, %v9131
        %v9404 = vpack.c.b16 %v9140, %v9132
        %v9405 = vpack.c.b16 %v9149, %v9141
        %v9406 = vpack.c.b16 %v9150, %v9142
        %v9407 = vpack.c.b16 %v9151, %v9143
        %v9408 = vpack.c.b16 %v9152, %v9144
        %v9409 = vpack.c.b16 %v9153, %v9145
        %v9410 = vpack.c.b16 %v9154, %v9146
        %v9411 = vpack.c.b16 %v9155, %v9147
        %v9412 = vpack.c.b16 %v9156, %v9148
        %v9670 = vlaneseq
        %v9671 = vshrl.u32 %v9670, 7
        %v9672 = vsub.s32 0, %v9671
        %v9673 = vrot.slane %v8388, %v9672
        %v9674 = vlaneseq
        %v9675 = vshrl.u32 %v9674, 7
        %v9676 = vsub.s32 1, %v9675
        %v9677 = vrot.slane %v8388, %v9676
        %v9678 = vlaneseq
        %v9679 = vshrl.u32 %v9678, 7
        %v9680 = vsub.s32 2, %v9679
        %v9681 = vrot.slane %v8388, %v9680
        %v9682 = vlaneseq
        %v9683 = vshrl.u32 %v9682, 7
        %v9684 = vsub.s32 3, %v9683
        %v9685 = vrot.slane %v8388, %v9684
        %v9686 = vlaneseq
        %v9687 = vshrl.u32 %v9686, 7
        %v9688 = vsub.s32 4, %v9687
        %v9689 = vrot.slane %v8388, %v9688
        %v9690 = vlaneseq
        %v9691 = vshrl.u32 %v9690, 7
        %v9692 = vsub.s32 5, %v9691
        %v9693 = vrot.slane %v8388, %v9692
        %v9694 = vlaneseq
        %v9695 = vshrl.u32 %v9694, 7
        %v9696 = vsub.s32 6, %v9695
        %v9697 = vrot.slane %v8388, %v9696
        %v9698 = vlaneseq
        %v9699 = vshrl.u32 %v9698, 7
        %v9700 = vsub.s32 7, %v9699
        %v9701 = vrot.slane %v8388, %v9700
        %9710 = vmatprep.subr.bf16.mxu0 %v9158
        %9711 = vmatpush1.bf16.msra.mxu0 %v9157
        %9712 = vmatprep.subr.bf16.mxu0 %v9166
        %9713 = vmatpush1.bf16.msra.mxu0 %v9165
        %9714 = vmatprep.subr.bf16.mxu0 %v9174
        %9715 = vmatpush1.bf16.msra.mxu0 %v9173
        %9716 = vmatprep.subr.bf16.mxu0 %v9182
        %9717 = vmatpush1.bf16.msra.mxu0 %v9181
        %9718 = vmatprep.subr.bf16.mxu0 %v9190
        %9719 = vmatpush1.bf16.msra.mxu0 %v9189
        %9720 = vmatprep.subr.bf16.mxu0 %v9198
        %9721 = vmatpush1.bf16.msra.mxu0 %v9197
        %9722 = vmatprep.subr.bf16.mxu0 %v9206
        %9723 = vmatpush1.bf16.msra.mxu0 %v9205
        %9724 = vmatprep.subr.bf16.mxu0 %v9214
        %9725 = vmatpush1.bf16.msra.mxu0 %v9213
        %9726 = vmatprep.subr.bf16.mxu0 %v9222
        %9727 = vmatpush1.bf16.msra.mxu0 %v9221
        %9728 = vmatprep.subr.bf16.mxu0 %v9230
        %9729 = vmatpush1.bf16.msra.mxu0 %v9229
        %9730 = vmatprep.subr.bf16.mxu0 %v9238
        %9731 = vmatpush1.bf16.msra.mxu0 %v9237
        %9732 = vmatprep.subr.bf16.mxu0 %v9246
        %9733 = vmatpush1.bf16.msra.mxu0 %v9245
        %9734 = vmatprep.subr.bf16.mxu0 %v9254
        %9735 = vmatpush1.bf16.msra.mxu0 %v9253
        %9736 = vmatprep.subr.bf16.mxu0 %v9262
        %9737 = vmatpush1.bf16.msra.mxu0 %v9261
        %9738 = vmatprep.subr.bf16.mxu0 %v9270
        %9739 = vmatpush1.bf16.msra.mxu0 %v9269
        %9740 = vmatprep.subr.bf16.mxu0 %v9278
        %9741 = vmatpush1.bf16.msra.mxu0 %v9277
        %9742 = vmatprep.mubr.bf16.mxu0 %v8129
        %9743 = vmatmul.mubr.bf16.gmra.mrb[0].mxu0 %v8128
        %v9744 = vpop.f32.mrb[0].mxu0
        %v9745 = vadd.f32 %v9673, %v9744
        %v9746 = vpop.f32.mrb[0].mxu0
        %v9747 = vadd.f32 %v9677, %v9746
        %v9748 = vpop.f32.mrb[0].mxu0
        %v9749 = vpop.f32.mrb[0].mxu0
        %9750 = vdwg.mxu0
        %9751 = vmatprep.subr.bf16.mxu0 %v9286
        %9752 = vmatpush1.bf16.msra.mxu0 %v9285
        %9753 = vmatprep.subr.bf16.mxu0 %v9294
        %9754 = vmatpush1.bf16.msra.mxu0 %v9293
        %9755 = vmatprep.subr.bf16.mxu0 %v9302
        %9756 = vmatpush1.bf16.msra.mxu0 %v9301
        %9757 = vmatprep.subr.bf16.mxu0 %v9310
        %9758 = vmatpush1.bf16.msra.mxu0 %v9309
        %9759 = vmatprep.subr.bf16.mxu0 %v9318
        %9760 = vmatpush1.bf16.msra.mxu0 %v9317
        %9761 = vmatprep.subr.bf16.mxu0 %v9326
        %9762 = vmatpush1.bf16.msra.mxu0 %v9325
        %9763 = vmatprep.subr.bf16.mxu0 %v9334
        %9764 = vmatpush1.bf16.msra.mxu0 %v9333
        %9765 = vmatprep.subr.bf16.mxu0 %v9342
        %9766 = vmatpush1.bf16.msra.mxu0 %v9341
        %9767 = vmatprep.subr.bf16.mxu0 %v9350
        %9768 = vmatpush1.bf16.msra.mxu0 %v9349
        %9769 = vmatprep.subr.bf16.mxu0 %v9358
        %9770 = vmatpush1.bf16.msra.mxu0 %v9357
        %9771 = vmatprep.subr.bf16.mxu0 %v9366
        %9772 = vmatpush1.bf16.msra.mxu0 %v9365
        %9773 = vmatprep.subr.bf16.mxu0 %v9374
        %9774 = vmatpush1.bf16.msra.mxu0 %v9373
        %9775 = vmatprep.subr.bf16.mxu0 %v9382
        %9776 = vmatpush1.bf16.msra.mxu0 %v9381
        %9777 = vmatprep.subr.bf16.mxu0 %v9390
        %9778 = vmatpush1.bf16.msra.mxu0 %v9389
        %9779 = vmatprep.subr.bf16.mxu0 %v9398
        %9780 = vmatpush1.bf16.msra.mxu0 %v9397
        %9781 = vmatprep.subr.bf16.mxu0 %v9406
        %9782 = vmatpush1.bf16.msra.mxu0 %v9405
        %9783 = vmatprep.mubr.bf16.mxu0 %v8131
        %9784 = vmatmul.mubr.bf16.gmra.mrb[0].mxu0 %v8130
        %v9785 = vpop.f32.mrb[0].mxu0
        %v9786 = vadd.f32 %v9745, %v9785
        %v9787 = vpop.f32.mrb[0].mxu0
        %v9788 = vadd.f32 %v9747, %v9787
        %v9789 = vpop.f32.mrb[0].mxu0
        %v9790 = vpop.f32.mrb[0].mxu0
        %9791 = vdwg.mxu0
        %9792 = vmatprep.subr.bf16.mxu0 %v9160
        %9793 = vmatpush1.bf16.msra.mxu0 %v9159
        %9794 = vmatprep.subr.bf16.mxu0 %v9168
        %9795 = vmatpush1.bf16.msra.mxu0 %v9167
        %9796 = vmatprep.subr.bf16.mxu0 %v9176
        %9797 = vmatpush1.bf16.msra.mxu0 %v9175
        %9798 = vmatprep.subr.bf16.mxu0 %v9184
        %9799 = vmatpush1.bf16.msra.mxu0 %v9183
        %9800 = vmatprep.subr.bf16.mxu0 %v9192
        %9801 = vmatpush1.bf16.msra.mxu0 %v9191
        %9802 = vmatprep.subr.bf16.mxu0 %v9200
        %9803 = vmatpush1.bf16.msra.mxu0 %v9199
        %9804 = vmatprep.subr.bf16.mxu0 %v9208
        %9805 = vmatpush1.bf16.msra.mxu0 %v9207
        %9806 = vmatprep.subr.bf16.mxu0 %v9216
        %9807 = vmatpush1.bf16.msra.mxu0 %v9215
        %9808 = vmatprep.subr.bf16.mxu0 %v9224
        %9809 = vmatpush1.bf16.msra.mxu0 %v9223
        %9810 = vmatprep.subr.bf16.mxu0 %v9232
        %9811 = vmatpush1.bf16.msra.mxu0 %v9231
        %9812 = vmatprep.subr.bf16.mxu0 %v9240
        %9813 = vmatpush1.bf16.msra.mxu0 %v9239
        %9814 = vmatprep.subr.bf16.mxu0 %v9248
        %9815 = vmatpush1.bf16.msra.mxu0 %v9247
        %9816 = vmatprep.subr.bf16.mxu0 %v9256
        %9817 = vmatpush1.bf16.msra.mxu0 %v9255
        %9818 = vmatprep.subr.bf16.mxu0 %v9264
        %9819 = vmatpush1.bf16.msra.mxu0 %v9263
        %9820 = vmatprep.subr.bf16.mxu0 %v9272
        %9821 = vmatpush1.bf16.msra.mxu0 %v9271
        %9822 = vmatprep.subr.bf16.mxu0 %v9280
        %9823 = vmatpush1.bf16.msra.mxu0 %v9279
        %9824 = vmatprep.mubr.bf16.mxu0 %v8129
        %9825 = vmatmul.mubr.bf16.gmra.mrb[0].mxu0 %v8128
        %v9826 = vpop.f32.mrb[0].mxu0
        %v9827 = vadd.f32 %v9681, %v9826
        %v9828 = vpop.f32.mrb[0].mxu0
        %v9829 = vadd.f32 %v9685, %v9828
        %v9830 = vpop.f32.mrb[0].mxu0
        %v9831 = vpop.f32.mrb[0].mxu0
        %9832 = vdwg.mxu0
        %9833 = vmatprep.subr.bf16.mxu0 %v9288
        %9834 = vmatpush1.bf16.msra.mxu0 %v9287
        %9835 = vmatprep.subr.bf16.mxu0 %v9296
        %9836 = vmatpush1.bf16.msra.mxu0 %v9295
        %9837 = vmatprep.subr.bf16.mxu0 %v9304
        %9838 = vmatpush1.bf16.msra.mxu0 %v9303
        %9839 = vmatprep.subr.bf16.mxu0 %v9312
        %9840 = vmatpush1.bf16.msra.mxu0 %v9311
        %9841 = vmatprep.subr.bf16.mxu0 %v9320
        %9842 = vmatpush1.bf16.msra.mxu0 %v9319
        %9843 = vmatprep.subr.bf16.mxu0 %v9328
        %9844 = vmatpush1.bf16.msra.mxu0 %v9327
        %9845 = vmatprep.subr.bf16.mxu0 %v9336
        %9846 = vmatpush1.bf16.msra.mxu0 %v9335
        %9847 = vmatprep.subr.bf16.mxu0 %v9344
        %9848 = vmatpush1.bf16.msra.mxu0 %v9343
        %9849 = vmatprep.subr.bf16.mxu0 %v9352
        %9850 = vmatpush1.bf16.msra.mxu0 %v9351
        %9851 = vmatprep.subr.bf16.mxu0 %v9360
        %9852 = vmatpush1.bf16.msra.mxu0 %v9359
        %9853 = vmatprep.subr.bf16.mxu0 %v9368
        %9854 = vmatpush1.bf16.msra.mxu0 %v9367
        %9855 = vmatprep.subr.bf16.mxu0 %v9376
        %9856 = vmatpush1.bf16.msra.mxu0 %v9375
        %9857 = vmatprep.subr.bf16.mxu0 %v9384
        %9858 = vmatpush1.bf16.msra.mxu0 %v9383
        %9859 = vmatprep.subr.bf16.mxu0 %v9392
        %9860 = vmatpush1.bf16.msra.mxu0 %v9391
        %9861 = vmatprep.subr.bf16.mxu0 %v9400
        %9862 = vmatpush1.bf16.msra.mxu0 %v9399
        %9863 = vmatprep.subr.bf16.mxu0 %v9408
        %9864 = vmatpush1.bf16.msra.mxu0 %v9407
        %9865 = vmatprep.mubr.bf16.mxu0 %v8131
        %9866 = vmatmul.mubr.bf16.gmra.mrb[0].mxu0 %v8130
        %v9867 = vpop.f32.mrb[0].mxu0
        %v9868 = vadd.f32 %v9827, %v9867
        %v9869 = vpop.f32.mrb[0].mxu0
        %v9870 = vadd.f32 %v9829, %v9869
        %v9871 = vpop.f32.mrb[0].mxu0
        %v9872 = vpop.f32.mrb[0].mxu0
        %9873 = vdwg.mxu0
        %9874 = vmatprep.subr.bf16.mxu0 %v9162
        %9875 = vmatpush1.bf16.msra.mxu0 %v9161
        %9876 = vmatprep.subr.bf16.mxu0 %v9170
        %9877 = vmatpush1.bf16.msra.mxu0 %v9169
        %9878 = vmatprep.subr.bf16.mxu0 %v9178
        %9879 = vmatpush1.bf16.msra.mxu0 %v9177
        %9880 = vmatprep.subr.bf16.mxu0 %v9186
        %9881 = vmatpush1.bf16.msra.mxu0 %v9185
        %9882 = vmatprep.subr.bf16.mxu0 %v9194
        %9883 = vmatpush1.bf16.msra.mxu0 %v9193
        %9884 = vmatprep.subr.bf16.mxu0 %v9202
        %9885 = vmatpush1.bf16.msra.mxu0 %v9201
        %9886 = vmatprep.subr.bf16.mxu0 %v9210
        %9887 = vmatpush1.bf16.msra.mxu0 %v9209
        %9888 = vmatprep.subr.bf16.mxu0 %v9218
        %9889 = vmatpush1.bf16.msra.mxu0 %v9217
        %9890 = vmatprep.subr.bf16.mxu0 %v9226
        %9891 = vmatpush1.bf16.msra.mxu0 %v9225
        %9892 = vmatprep.subr.bf16.mxu0 %v9234
        %9893 = vmatpush1.bf16.msra.mxu0 %v9233
        %9894 = vmatprep.subr.bf16.mxu0 %v9242
        %9895 = vmatpush1.bf16.msra.mxu0 %v9241
        %9896 = vmatprep.subr.bf16.mxu0 %v9250
        %9897 = vmatpush1.bf16.msra.mxu0 %v9249
        %9898 = vmatprep.subr.bf16.mxu0 %v9258
        %9899 = vmatpush1.bf16.msra.mxu0 %v9257
        %9900 = vmatprep.subr.bf16.mxu0 %v9266
        %9901 = vmatpush1.bf16.msra.mxu0 %v9265
        %9902 = vmatprep.subr.bf16.mxu0 %v9274
        %9903 = vmatpush1.bf16.msra.mxu0 %v9273
        %9904 = vmatprep.subr.bf16.mxu0 %v9282
        %9905 = vmatpush1.bf16.msra.mxu0 %v9281
        %9906 = vmatprep.mubr.bf16.mxu0 %v8129
        %9907 = vmatmul.mubr.bf16.gmra.mrb[0].mxu0 %v8128
        %v9908 = vpop.f32.mrb[0].mxu0
        %v9909 = vadd.f32 %v9689, %v9908
        %v9910 = vpop.f32.mrb[0].mxu0
        %v9911 = vadd.f32 %v9693, %v9910
        %v9912 = vpop.f32.mrb[0].mxu0
        %v9913 = vpop.f32.mrb[0].mxu0
        %9914 = vdwg.mxu0
        %9915 = vmatprep.subr.bf16.mxu0 %v9290
        %9916 = vmatpush1.bf16.msra.mxu0 %v9289
        %9917 = vmatprep.subr.bf16.mxu0 %v9298
        %9918 = vmatpush1.bf16.msra.mxu0 %v9297
        %9919 = vmatprep.subr.bf16.mxu0 %v9306
        %9920 = vmatpush1.bf16.msra.mxu0 %v9305
        %9921 = vmatprep.subr.bf16.mxu0 %v9314
        %9922 = vmatpush1.bf16.msra.mxu0 %v9313
        %9923 = vmatprep.subr.bf16.mxu0 %v9322
        %9924 = vmatpush1.bf16.msra.mxu0 %v9321
        %9925 = vmatprep.subr.bf16.mxu0 %v9330
        %9926 = vmatpush1.bf16.msra.mxu0 %v9329
        %9927 = vmatprep.subr.bf16.mxu0 %v9338
        %9928 = vmatpush1.bf16.msra.mxu0 %v9337
        %9929 = vmatprep.subr.bf16.mxu0 %v9346
        %9930 = vmatpush1.bf16.msra.mxu0 %v9345
        %9931 = vmatprep.subr.bf16.mxu0 %v9354
        %9932 = vmatpush1.bf16.msra.mxu0 %v9353
        %9933 = vmatprep.subr.bf16.mxu0 %v9362
        %9934 = vmatpush1.bf16.msra.mxu0 %v9361
        %9935 = vmatprep.subr.bf16.mxu0 %v9370
        %9936 = vmatpush1.bf16.msra.mxu0 %v9369
        %9937 = vmatprep.subr.bf16.mxu0 %v9378
        %9938 = vmatpush1.bf16.msra.mxu0 %v9377
        %9939 = vmatprep.subr.bf16.mxu0 %v9386
        %9940 = vmatpush1.bf16.msra.mxu0 %v9385
        %9941 = vmatprep.subr.bf16.mxu0 %v9394
        %9942 = vmatpush1.bf16.msra.mxu0 %v9393
        %9943 = vmatprep.subr.bf16.mxu0 %v9402
        %9944 = vmatpush1.bf16.msra.mxu0 %v9401
        %9945 = vmatprep.subr.bf16.mxu0 %v9410
        %9946 = vmatpush1.bf16.msra.mxu0 %v9409
        %9947 = vmatprep.mubr.bf16.mxu0 %v8131
        %9948 = vmatmul.mubr.bf16.gmra.mrb[0].mxu0 %v8130
        %v9949 = vpop.f32.mrb[0].mxu0
        %v9950 = vadd.f32 %v9909, %v9949
        %v9951 = vpop.f32.mrb[0].mxu0
        %v9952 = vadd.f32 %v9911, %v9951
        %v9953 = vpop.f32.mrb[0].mxu0
        %v9954 = vpop.f32.mrb[0].mxu0
        %9955 = vdwg.mxu0
        %9956 = vmatprep.subr.bf16.mxu0 %v9164
        %9957 = vmatpush1.bf16.msra.mxu0 %v9163
        %9958 = vmatprep.subr.bf16.mxu0 %v9172
        %9959 = vmatpush1.bf16.msra.mxu0 %v9171
        %9960 = vmatprep.subr.bf16.mxu0 %v9180
        %9961 = vmatpush1.bf16.msra.mxu0 %v9179
        %9962 = vmatprep.subr.bf16.mxu0 %v9188
        %9963 = vmatpush1.bf16.msra.mxu0 %v9187
        %9964 = vmatprep.subr.bf16.mxu0 %v9196
        %9965 = vmatpush1.bf16.msra.mxu0 %v9195
        %9966 = vmatprep.subr.bf16.mxu0 %v9204
        %9967 = vmatpush1.bf16.msra.mxu0 %v9203
        %9968 = vmatprep.subr.bf16.mxu0 %v9212
        %9969 = vmatpush1.bf16.msra.mxu0 %v9211
        %9970 = vmatprep.subr.bf16.mxu0 %v9220
        %9971 = vmatpush1.bf16.msra.mxu0 %v9219
        %9972 = vmatprep.subr.bf16.mxu0 %v9228
        %9973 = vmatpush1.bf16.msra.mxu0 %v9227
        %9974 = vmatprep.subr.bf16.mxu0 %v9236
        %9975 = vmatpush1.bf16.msra.mxu0 %v9235
        %9976 = vmatprep.subr.bf16.mxu0 %v9244
        %9977 = vmatpush1.bf16.msra.mxu0 %v9243
        %9978 = vmatprep.subr.bf16.mxu0 %v9252
        %9979 = vmatpush1.bf16.msra.mxu0 %v9251
        %9980 = vmatprep.subr.bf16.mxu0 %v9260
        %9981 = vmatpush1.bf16.msra.mxu0 %v9259
        %9982 = vmatprep.subr.bf16.mxu0 %v9268
        %9983 = vmatpush1.bf16.msra.mxu0 %v9267
        %9984 = vmatprep.subr.bf16.mxu0 %v9276
        %9985 = vmatpush1.bf16.msra.mxu0 %v9275
        %9986 = vmatprep.subr.bf16.mxu0 %v9284
        %9987 = vmatpush1.bf16.msra.mxu0 %v9283
        %9988 = vmatprep.mubr.bf16.mxu0 %v8129
        %9989 = vmatmul.mubr.bf16.gmra.mrb[0].mxu0 %v8128
        %v9990 = vpop.f32.mrb[0].mxu0
        %v9991 = vadd.f32 %v9697, %v9990
        %v9992 = vpop.f32.mrb[0].mxu0
        %v9993 = vadd.f32 %v9701, %v9992
        %v9994 = vpop.f32.mrb[0].mxu0
        %v9995 = vpop.f32.mrb[0].mxu0
        %9996 = vdwg.mxu0
        %9997 = vmatprep.subr.bf16.mxu0 %v9292
        %9998 = vmatpush1.bf16.msra.mxu0 %v9291
        %9999 = vmatprep.subr.bf16.mxu0 %v9300
        %10000 = vmatpush1.bf16.msra.mxu0 %v9299
        %10001 = vmatprep.subr.bf16.mxu0 %v9308
        %10002 = vmatpush1.bf16.msra.mxu0 %v9307
        %10003 = vmatprep.subr.bf16.mxu0 %v9316
        %10004 = vmatpush1.bf16.msra.mxu0 %v9315
        %10005 = vmatprep.subr.bf16.mxu0 %v9324
        %10006 = vmatpush1.bf16.msra.mxu0 %v9323
        %10007 = vmatprep.subr.bf16.mxu0 %v9332
        %10008 = vmatpush1.bf16.msra.mxu0 %v9331
        %10009 = vmatprep.subr.bf16.mxu0 %v9340
        %10010 = vmatpush1.bf16.msra.mxu0 %v9339
        %10011 = vmatprep.subr.bf16.mxu0 %v9348
        %10012 = vmatpush1.bf16.msra.mxu0 %v9347
        %10013 = vmatprep.subr.bf16.mxu0 %v9356
        %10014 = vmatpush1.bf16.msra.mxu0 %v9355
        %10015 = vmatprep.subr.bf16.mxu0 %v9364
        %10016 = vmatpush1.bf16.msra.mxu0 %v9363
        %10017 = vmatprep.subr.bf16.mxu0 %v9372
        %10018 = vmatpush1.bf16.msra.mxu0 %v9371
        %10019 = vmatprep.subr.bf16.mxu0 %v9380
        %10020 = vmatpush1.bf16.msra.mxu0 %v9379
        %10021 = vmatprep.subr.bf16.mxu0 %v9388
        %10022 = vmatpush1.bf16.msra.mxu0 %v9387
        %10023 = vmatprep.subr.bf16.mxu0 %v9396
        %10024 = vmatpush1.bf16.msra.mxu0 %v9395
        %10025 = vmatprep.subr.bf16.mxu0 %v9404
        %10026 = vmatpush1.bf16.msra.mxu0 %v9403
        %10027 = vmatprep.subr.bf16.mxu0 %v9412
        %10028 = vmatpush1.bf16.msra.mxu0 %v9411
        %10029 = vmatprep.mubr.bf16.mxu0 %v8131
        %10030 = vmatmul.mubr.bf16.gmra.mrb[0].mxu0 %v8130
        %v10031 = vpop.f32.mrb[0].mxu0
        %v10032 = vadd.f32 %v9991, %v10031
        %v10033 = vpop.f32.mrb[0].mxu0
        %v10034 = vadd.f32 %v9993, %v10033
        %v10035 = vpop.f32.mrb[0].mxu0
        %v10036 = vpop.f32.mrb[0].mxu0
        %10037 = vdwg.mxu0
        %v10038 = vmax.f32 %v9786, 0.0
        %v10039 = vmax.f32 %v9788, 0.0
        %v10040 = vmax.f32 %v9868, 0.0
        %v10041 = vmax.f32 %v9870, 0.0
        %v10042 = vmax.f32 %v9950, 0.0
        %v10043 = vmax.f32 %v9952, 0.0
        %v10044 = vmax.f32 %v10032, 0.0
        %v10045 = vmax.f32 %v10034, 0.0
        %v10046 = vld [vmem:[%s14] sm:$0xff]
        %v10047 = vld [vmem:[%s14 + $0x8] sm:$0xff]
        %v10048 = vld [vmem:[%s14 + $0x10] sm:$0xff]
        %v10049 = vld [vmem:[%s14 + $0x18] sm:$0xff]
        %v10050 = vld [vmem:[%s14 + $0x20] sm:$0xff]
        %v10051 = vld [vmem:[%s14 + $0x28] sm:$0xff]
        %v10052 = vld [vmem:[%s14 + $0x30] sm:$0xff]
        %v10053 = vld [vmem:[%s14 + $0x38] sm:$0xff]
        %v10054 = vld [vmem:[%s14 + $0x40] sm:$0xff]
        %v10055 = vld [vmem:[%s14 + $0x48] sm:$0xff]
        %v10056 = vld [vmem:[%s14 + $0x50] sm:$0xff]
        %v10057 = vld [vmem:[%s14 + $0x58] sm:$0xff]
        %v10058 = vld [vmem:[%s14 + $0x60] sm:$0xff]
        %v10059 = vld [vmem:[%s14 + $0x68] sm:$0xff]
        %v10060 = vld [vmem:[%s14 + $0x70] sm:$0xff]
        %v10061 = vld [vmem:[%s14 + $0x78] sm:$0xff]
        %v10062 = vld [vmem:[%s14 + $0x80] sm:$0xff]
        %v10063 = vld [vmem:[%s14 + $0x88] sm:$0xff]
        %v10064 = vld [vmem:[%s14 + $0x90] sm:$0xff]
        %v10065 = vld [vmem:[%s14 + $0x98] sm:$0xff]
        %v10066 = vld [vmem:[%s14 + $0xa0] sm:$0xff]
        %v10067 = vld [vmem:[%s14 + $0xa8] sm:$0xff]
        %v10068 = vld [vmem:[%s14 + $0xb0] sm:$0xff]
        %v10069 = vld [vmem:[%s14 + $0xb8] sm:$0xff]
        %v10070 = vld [vmem:[%s14 + $0xc0] sm:$0xff]
        %v10071 = vld [vmem:[%s14 + $0xc8] sm:$0xff]
        %v10072 = vld [vmem:[%s14 + $0xd0] sm:$0xff]
        %v10073 = vld [vmem:[%s14 + $0xd8] sm:$0xff]
        %v10074 = vld [vmem:[%s14 + $0xe0] sm:$0xff]
        %v10075 = vld [vmem:[%s14 + $0xe8] sm:$0xff]
        %v10076 = vld [vmem:[%s14 + $0xf0] sm:$0xff]
        %v10077 = vld [vmem:[%s14 + $0xf8] sm:$0xff]
        %v10078 = vld [vmem:[%s14 + $0x100] sm:$0xff]
        %v10079 = vld [vmem:[%s14 + $0x108] sm:$0xff]
        %v10080 = vld [vmem:[%s14 + $0x110] sm:$0xff]
        %v10081 = vld [vmem:[%s14 + $0x118] sm:$0xff]
        %v10082 = vld [vmem:[%s14 + $0x120] sm:$0xff]
        %v10083 = vld [vmem:[%s14 + $0x128] sm:$0xff]
        %v10084 = vld [vmem:[%s14 + $0x130] sm:$0xff]
        %v10085 = vld [vmem:[%s14 + $0x138] sm:$0xff]
        %v10086 = vld [vmem:[%s14 + $0x140] sm:$0xff]
        %v10087 = vld [vmem:[%s14 + $0x148] sm:$0xff]
        %v10088 = vld [vmem:[%s14 + $0x150] sm:$0xff]
        %v10089 = vld [vmem:[%s14 + $0x158] sm:$0xff]
        %v10090 = vld [vmem:[%s14 + $0x160] sm:$0xff]
        %v10091 = vld [vmem:[%s14 + $0x168] sm:$0xff]
        %v10092 = vld [vmem:[%s14 + $0x170] sm:$0xff]
        %v10093 = vld [vmem:[%s14 + $0x178] sm:$0xff]
        %v10094 = vld [vmem:[%s14 + $0x180] sm:$0xff]
        %v10095 = vld [vmem:[%s14 + $0x188] sm:$0xff]
        %v10096 = vld [vmem:[%s14 + $0x190] sm:$0xff]
        %v10097 = vld [vmem:[%s14 + $0x198] sm:$0xff]
        %v10098 = vld [vmem:[%s14 + $0x1a0] sm:$0xff]
        %v10099 = vld [vmem:[%s14 + $0x1a8] sm:$0xff]
        %v10100 = vld [vmem:[%s14 + $0x1b0] sm:$0xff]
        %v10101 = vld [vmem:[%s14 + $0x1b8] sm:$0xff]
        %v10102 = vld [vmem:[%s14 + $0x1c0] sm:$0xff]
        %v10103 = vld [vmem:[%s14 + $0x1c8] sm:$0xff]
        %v10104 = vld [vmem:[%s14 + $0x1d0] sm:$0xff]
        %v10105 = vld [vmem:[%s14 + $0x1d8] sm:$0xff]
        %v10106 = vld [vmem:[%s14 + $0x1e0] sm:$0xff]
        %v10107 = vld [vmem:[%s14 + $0x1e8] sm:$0xff]
        %v10108 = vld [vmem:[%s14 + $0x1f0] sm:$0xff]
        %v10109 = vld [vmem:[%s14 + $0x1f8] sm:$0xff]
        %v10110 = vld [vmem:[%s14 + $0x200] sm:$0xff]
        %v10111 = vld [vmem:[%s14 + $0x208] sm:$0xff]
        %v10112 = vld [vmem:[%s14 + $0x210] sm:$0xff]
        %v10113 = vld [vmem:[%s14 + $0x218] sm:$0xff]
        %v10114 = vld [vmem:[%s14 + $0x220] sm:$0xff]
        %v10115 = vld [vmem:[%s14 + $0x228] sm:$0xff]
        %v10116 = vld [vmem:[%s14 + $0x230] sm:$0xff]
        %v10117 = vld [vmem:[%s14 + $0x238] sm:$0xff]
        %v10118 = vld [vmem:[%s14 + $0x240] sm:$0xff]
        %v10119 = vld [vmem:[%s14 + $0x248] sm:$0xff]
        %v10120 = vld [vmem:[%s14 + $0x250] sm:$0xff]
        %v10121 = vld [vmem:[%s14 + $0x258] sm:$0xff]
        %v10122 = vld [vmem:[%s14 + $0x260] sm:$0xff]
        %v10123 = vld [vmem:[%s14 + $0x268] sm:$0xff]
        %v10124 = vld [vmem:[%s14 + $0x270] sm:$0xff]
        %v10125 = vld [vmem:[%s14 + $0x278] sm:$0xff]
        %v10126 = vld [vmem:[%s14 + $0x280] sm:$0xff]
        %v10127 = vld [vmem:[%s14 + $0x288] sm:$0xff]
        %v10128 = vld [vmem:[%s14 + $0x290] sm:$0xff]
        %v10129 = vld [vmem:[%s14 + $0x298] sm:$0xff]
        %v10130 = vld [vmem:[%s14 + $0x2a0] sm:$0xff]
        %v10131 = vld [vmem:[%s14 + $0x2a8] sm:$0xff]
        %v10132 = vld [vmem:[%s14 + $0x2b0] sm:$0xff]
        %v10133 = vld [vmem:[%s14 + $0x2b8] sm:$0xff]
        %v10134 = vld [vmem:[%s14 + $0x2c0] sm:$0xff]
        %v10135 = vld [vmem:[%s14 + $0x2c8] sm:$0xff]
        %v10136 = vld [vmem:[%s14 + $0x2d0] sm:$0xff]
        %v10137 = vld [vmem:[%s14 + $0x2d8] sm:$0xff]
        %v10138 = vld [vmem:[%s14 + $0x2e0] sm:$0xff]
        %v10139 = vld [vmem:[%s14 + $0x2e8] sm:$0xff]
        %v10140 = vld [vmem:[%s14 + $0x2f0] sm:$0xff]
        %v10141 = vld [vmem:[%s14 + $0x2f8] sm:$0xff]
        %v10142 = vld [vmem:[%s14 + $0x300] sm:$0xff]
        %v10143 = vld [vmem:[%s14 + $0x308] sm:$0xff]
        %v10144 = vld [vmem:[%s14 + $0x310] sm:$0xff]
        %v10145 = vld [vmem:[%s14 + $0x318] sm:$0xff]
        %v10146 = vld [vmem:[%s14 + $0x320] sm:$0xff]
        %v10147 = vld [vmem:[%s14 + $0x328] sm:$0xff]
        %v10148 = vld [vmem:[%s14 + $0x330] sm:$0xff]
        %v10149 = vld [vmem:[%s14 + $0x338] sm:$0xff]
        %v10150 = vld [vmem:[%s14 + $0x340] sm:$0xff]
        %v10151 = vld [vmem:[%s14 + $0x348] sm:$0xff]
        %v10152 = vld [vmem:[%s14 + $0x350] sm:$0xff]
        %v10153 = vld [vmem:[%s14 + $0x358] sm:$0xff]
        %v10154 = vld [vmem:[%s14 + $0x360] sm:$0xff]
        %v10155 = vld [vmem:[%s14 + $0x368] sm:$0xff]
        %v10156 = vld [vmem:[%s14 + $0x370] sm:$0xff]
        %v10157 = vld [vmem:[%s14 + $0x378] sm:$0xff]
        %v10158 = vld [vmem:[%s14 + $0x380] sm:$0xff]
        %v10159 = vld [vmem:[%s14 + $0x388] sm:$0xff]
        %v10160 = vld [vmem:[%s14 + $0x390] sm:$0xff]
        %v10161 = vld [vmem:[%s14 + $0x398] sm:$0xff]
        %v10162 = vld [vmem:[%s14 + $0x3a0] sm:$0xff]
        %v10163 = vld [vmem:[%s14 + $0x3a8] sm:$0xff]
        %v10164 = vld [vmem:[%s14 + $0x3b0] sm:$0xff]
        %v10165 = vld [vmem:[%s14 + $0x3b8] sm:$0xff]
        %v10166 = vld [vmem:[%s14 + $0x3c0] sm:$0xff]
        %v10167 = vld [vmem:[%s14 + $0x3c8] sm:$0xff]
        %v10168 = vld [vmem:[%s14 + $0x3d0] sm:$0xff]
        %v10169 = vld [vmem:[%s14 + $0x3d8] sm:$0xff]
        %v10170 = vld [vmem:[%s14 + $0x3e0] sm:$0xff]
        %v10171 = vld [vmem:[%s14 + $0x3e8] sm:$0xff]
        %v10172 = vld [vmem:[%s14 + $0x3f0] sm:$0xff]
        %v10173 = vld [vmem:[%s14 + $0x3f8] sm:$0xff]
        %v10174 = vld [vmem:[#allocation2] sm:$0x1]
        %10175 = vmatprep.subr.mxu0 0.0
        %10176 = vmatpush1.msra.mxu0 %v10046
        %10177 = vmatprep.subr.mxu0 0.0
        %10178 = vmatpush1.msra.mxu0 %v10047
        %10179 = vmatprep.subr.mxu0 0.0
        %10180 = vmatpush1.msra.mxu0 %v10048
        %10181 = vmatprep.subr.mxu0 0.0
        %10182 = vmatpush1.msra.mxu0 %v10049
        %10183 = vmatprep.subr.mxu0 0.0
        %10184 = vmatpush1.msra.mxu0 %v10050
        %10185 = vmatprep.subr.mxu0 0.0
        %10186 = vmatpush1.msra.mxu0 %v10051
        %10187 = vmatprep.subr.mxu0 0.0
        %10188 = vmatpush1.msra.mxu0 %v10052
        %10189 = vmatprep.subr.mxu0 0.0
        %10190 = vmatpush1.msra.mxu0 %v10053
        %10191 = vmatprep.subr.mxu0 0.0
        %10192 = vmatpush1.msra.mxu0 %v10054
        %10193 = vmatprep.subr.mxu0 0.0
        %10194 = vmatpush1.msra.mxu0 %v10055
        %10195 = vmatprep.subr.mxu0 0.0
        %10196 = vmatpush1.msra.mxu0 %v10056
        %10197 = vmatprep.subr.mxu0 0.0
        %10198 = vmatpush1.msra.mxu0 %v10057
        %10199 = vmatprep.subr.mxu0 0.0
        %10200 = vmatpush1.msra.mxu0 %v10058
        %10201 = vmatprep.subr.mxu0 0.0
        %10202 = vmatpush1.msra.mxu0 %v10059
        %10203 = vmatprep.subr.mxu0 0.0
        %10204 = vmatpush1.msra.mxu0 %v10060
        %10205 = vmatprep.subr.mxu0 0.0
        %10206 = vmatpush1.msra.mxu0 %v10061
        %10207 = vmatprep.subr.mxu0 0.0
        %10208 = vmatpush1.msra.mxu0 %v10062
        %10209 = vmatprep.subr.mxu0 0.0
        %10210 = vmatpush1.msra.mxu0 %v10063
        %10211 = vmatprep.subr.mxu0 0.0
        %10212 = vmatpush1.msra.mxu0 %v10064
        %10213 = vmatprep.subr.mxu0 0.0
        %10214 = vmatpush1.msra.mxu0 %v10065
        %10215 = vmatprep.subr.mxu0 0.0
        %10216 = vmatpush1.msra.mxu0 %v10066
        %10217 = vmatprep.subr.mxu0 0.0
        %10218 = vmatpush1.msra.mxu0 %v10067
        %10219 = vmatprep.subr.mxu0 0.0
        %10220 = vmatpush1.msra.mxu0 %v10068
        %10221 = vmatprep.subr.mxu0 0.0
        %10222 = vmatpush1.msra.mxu0 %v10069
        %10223 = vmatprep.subr.mxu0 0.0
        %10224 = vmatpush1.msra.mxu0 %v10070
        %10225 = vmatprep.subr.mxu0 0.0
        %10226 = vmatpush1.msra.mxu0 %v10071
        %10227 = vmatprep.subr.mxu0 0.0
        %10228 = vmatpush1.msra.mxu0 %v10072
        %10229 = vmatprep.subr.mxu0 0.0
        %10230 = vmatpush1.msra.mxu0 %v10073
        %10231 = vmatprep.subr.mxu0 0.0
        %10232 = vmatpush1.msra.mxu0 %v10074
        %10233 = vmatprep.subr.mxu0 0.0
        %10234 = vmatpush1.msra.mxu0 %v10075
        %10235 = vmatprep.subr.mxu0 0.0
        %10236 = vmatpush1.msra.mxu0 %v10076
        %10237 = vmatprep.subr.mxu0 0.0
        %10238 = vmatpush1.msra.mxu0 %v10077
        %10239 = vmatprep.mubr.f32.mxu0 %v10039
        %10240 = vmatmul.mubr.f32.gmra.mrb[0].mxu0 %v10038
        %v10241 = vpop.f32.mrb[0].mxu0
        %v10242 = vadd.f32 %v10174, %v10241
        %v10243 = vpop.f32.mrb[0].mxu0
        %10244 = vdwg.mxu0
        %10245 = vmatprep.subr.mxu0 0.0
        %10246 = vmatpush1.msra.mxu0 %v10078
        %10247 = vmatprep.subr.mxu0 0.0
        %10248 = vmatpush1.msra.mxu0 %v10079
        %10249 = vmatprep.subr.mxu0 0.0
        %10250 = vmatpush1.msra.mxu0 %v10080
        %10251 = vmatprep.subr.mxu0 0.0
        %10252 = vmatpush1.msra.mxu0 %v10081
        %10253 = vmatprep.subr.mxu0 0.0
        %10254 = vmatpush1.msra.mxu0 %v10082
        %10255 = vmatprep.subr.mxu0 0.0
        %10256 = vmatpush1.msra.mxu0 %v10083
        %10257 = vmatprep.subr.mxu0 0.0
        %10258 = vmatpush1.msra.mxu0 %v10084
        %10259 = vmatprep.subr.mxu0 0.0
        %10260 = vmatpush1.msra.mxu0 %v10085
        %10261 = vmatprep.subr.mxu0 0.0
        %10262 = vmatpush1.msra.mxu0 %v10086
        %10263 = vmatprep.subr.mxu0 0.0
        %10264 = vmatpush1.msra.mxu0 %v10087
        %10265 = vmatprep.subr.mxu0 0.0
        %10266 = vmatpush1.msra.mxu0 %v10088
        %10267 = vmatprep.subr.mxu0 0.0
        %10268 = vmatpush1.msra.mxu0 %v10089
        %10269 = vmatprep.subr.mxu0 0.0
        %10270 = vmatpush1.msra.mxu0 %v10090
        %10271 = vmatprep.subr.mxu0 0.0
        %10272 = vmatpush1.msra.mxu0 %v10091
        %10273 = vmatprep.subr.mxu0 0.0
        %10274 = vmatpush1.msra.mxu0 %v10092
        %10275 = vmatprep.subr.mxu0 0.0
        %10276 = vmatpush1.msra.mxu0 %v10093
        %10277 = vmatprep.subr.mxu0 0.0
        %10278 = vmatpush1.msra.mxu0 %v10094
        %10279 = vmatprep.subr.mxu0 0.0
        %10280 = vmatpush1.msra.mxu0 %v10095
        %10281 = vmatprep.subr.mxu0 0.0
        %10282 = vmatpush1.msra.mxu0 %v10096
        %10283 = vmatprep.subr.mxu0 0.0
        %10284 = vmatpush1.msra.mxu0 %v10097
        %10285 = vmatprep.subr.mxu0 0.0
        %10286 = vmatpush1.msra.mxu0 %v10098
        %10287 = vmatprep.subr.mxu0 0.0
        %10288 = vmatpush1.msra.mxu0 %v10099
        %10289 = vmatprep.subr.mxu0 0.0
        %10290 = vmatpush1.msra.mxu0 %v10100
        %10291 = vmatprep.subr.mxu0 0.0
        %10292 = vmatpush1.msra.mxu0 %v10101
        %10293 = vmatprep.subr.mxu0 0.0
        %10294 = vmatpush1.msra.mxu0 %v10102
        %10295 = vmatprep.subr.mxu0 0.0
        %10296 = vmatpush1.msra.mxu0 %v10103
        %10297 = vmatprep.subr.mxu0 0.0
        %10298 = vmatpush1.msra.mxu0 %v10104
        %10299 = vmatprep.subr.mxu0 0.0
        %10300 = vmatpush1.msra.mxu0 %v10105
        %10301 = vmatprep.subr.mxu0 0.0
        %10302 = vmatpush1.msra.mxu0 %v10106
        %10303 = vmatprep.subr.mxu0 0.0
        %10304 = vmatpush1.msra.mxu0 %v10107
        %10305 = vmatprep.subr.mxu0 0.0
        %10306 = vmatpush1.msra.mxu0 %v10108
        %10307 = vmatprep.subr.mxu0 0.0
        %10308 = vmatpush1.msra.mxu0 %v10109
        %10309 = vmatprep.mubr.f32.mxu0 %v10041
        %10310 = vmatmul.mubr.f32.gmra.mrb[0].mxu0 %v10040
        %v10311 = vpop.f32.mrb[0].mxu0
        %v10312 = vadd.f32 %v10242, %v10311
        %v10313 = vpop.f32.mrb[0].mxu0
        %10314 = vdwg.mxu0
        %10315 = vmatprep.subr.mxu0 0.0
        %10316 = vmatpush1.msra.mxu0 %v10110
        %10317 = vmatprep.subr.mxu0 0.0
        %10318 = vmatpush1.msra.mxu0 %v10111
        %10319 = vmatprep.subr.mxu0 0.0
        %10320 = vmatpush1.msra.mxu0 %v10112
        %10321 = vmatprep.subr.mxu0 0.0
        %10322 = vmatpush1.msra.mxu0 %v10113
        %10323 = vmatprep.subr.mxu0 0.0
        %10324 = vmatpush1.msra.mxu0 %v10114
        %10325 = vmatprep.subr.mxu0 0.0
        %10326 = vmatpush1.msra.mxu0 %v10115
        %10327 = vmatprep.subr.mxu0 0.0
        %10328 = vmatpush1.msra.mxu0 %v10116
        %10329 = vmatprep.subr.mxu0 0.0
        %10330 = vmatpush1.msra.mxu0 %v10117
        %10331 = vmatprep.subr.mxu0 0.0
        %10332 = vmatpush1.msra.mxu0 %v10118
        %10333 = vmatprep.subr.mxu0 0.0
        %10334 = vmatpush1.msra.mxu0 %v10119
        %10335 = vmatprep.subr.mxu0 0.0
        %10336 = vmatpush1.msra.mxu0 %v10120
        %10337 = vmatprep.subr.mxu0 0.0
        %10338 = vmatpush1.msra.mxu0 %v10121
        %10339 = vmatprep.subr.mxu0 0.0
        %10340 = vmatpush1.msra.mxu0 %v10122
        %10341 = vmatprep.subr.mxu0 0.0
        %10342 = vmatpush1.msra.mxu0 %v10123
        %10343 = vmatprep.subr.mxu0 0.0
        %10344 = vmatpush1.msra.mxu0 %v10124
        %10345 = vmatprep.subr.mxu0 0.0
        %10346 = vmatpush1.msra.mxu0 %v10125
        %10347 = vmatprep.subr.mxu0 0.0
        %10348 = vmatpush1.msra.mxu0 %v10126
        %10349 = vmatprep.subr.mxu0 0.0
        %10350 = vmatpush1.msra.mxu0 %v10127
        %10351 = vmatprep.subr.mxu0 0.0
        %10352 = vmatpush1.msra.mxu0 %v10128
        %10353 = vmatprep.subr.mxu0 0.0
        %10354 = vmatpush1.msra.mxu0 %v10129
        %10355 = vmatprep.subr.mxu0 0.0
        %10356 = vmatpush1.msra.mxu0 %v10130
        %10357 = vmatprep.subr.mxu0 0.0
        %10358 = vmatpush1.msra.mxu0 %v10131
        %10359 = vmatprep.subr.mxu0 0.0
        %10360 = vmatpush1.msra.mxu0 %v10132
        %10361 = vmatprep.subr.mxu0 0.0
        %10362 = vmatpush1.msra.mxu0 %v10133
        %10363 = vmatprep.subr.mxu0 0.0
        %10364 = vmatpush1.msra.mxu0 %v10134
        %10365 = vmatprep.subr.mxu0 0.0
        %10366 = vmatpush1.msra.mxu0 %v10135
        %10367 = vmatprep.subr.mxu0 0.0
        %10368 = vmatpush1.msra.mxu0 %v10136
        %10369 = vmatprep.subr.mxu0 0.0
        %10370 = vmatpush1.msra.mxu0 %v10137
        %10371 = vmatprep.subr.mxu0 0.0
        %10372 = vmatpush1.msra.mxu0 %v10138
        %10373 = vmatprep.subr.mxu0 0.0
        %10374 = vmatpush1.msra.mxu0 %v10139
        %10375 = vmatprep.subr.mxu0 0.0
        %10376 = vmatpush1.msra.mxu0 %v10140
        %10377 = vmatprep.subr.mxu0 0.0
        %10378 = vmatpush1.msra.mxu0 %v10141
        %10379 = vmatprep.mubr.f32.mxu0 %v10043
        %10380 = vmatmul.mubr.f32.gmra.mrb[0].mxu0 %v10042
        %v10381 = vpop.f32.mrb[0].mxu0
        %v10382 = vadd.f32 %v10312, %v10381
        %v10383 = vpop.f32.mrb[0].mxu0
        %10384 = vdwg.mxu0
        %10385 = vmatprep.subr.mxu0 0.0
        %10386 = vmatpush1.msra.mxu0 %v10142
        %10387 = vmatprep.subr.mxu0 0.0
        %10388 = vmatpush1.msra.mxu0 %v10143
        %10389 = vmatprep.subr.mxu0 0.0
        %10390 = vmatpush1.msra.mxu0 %v10144
        %10391 = vmatprep.subr.mxu0 0.0
        %10392 = vmatpush1.msra.mxu0 %v10145
        %10393 = vmatprep.subr.mxu0 0.0
        %10394 = vmatpush1.msra.mxu0 %v10146
        %10395 = vmatprep.subr.mxu0 0.0
        %10396 = vmatpush1.msra.mxu0 %v10147
        %10397 = vmatprep.subr.mxu0 0.0
        %10398 = vmatpush1.msra.mxu0 %v10148
        %10399 = vmatprep.subr.mxu0 0.0
        %10400 = vmatpush1.msra.mxu0 %v10149
        %10401 = vmatprep.subr.mxu0 0.0
        %10402 = vmatpush1.msra.mxu0 %v10150
        %10403 = vmatprep.subr.mxu0 0.0
        %10404 = vmatpush1.msra.mxu0 %v10151
        %10405 = vmatprep.subr.mxu0 0.0
        %10406 = vmatpush1.msra.mxu0 %v10152
        %10407 = vmatprep.subr.mxu0 0.0
        %10408 = vmatpush1.msra.mxu0 %v10153
        %10409 = vmatprep.subr.mxu0 0.0
        %10410 = vmatpush1.msra.mxu0 %v10154
        %10411 = vmatprep.subr.mxu0 0.0
        %10412 = vmatpush1.msra.mxu0 %v10155
        %10413 = vmatprep.subr.mxu0 0.0
        %10414 = vmatpush1.msra.mxu0 %v10156
        %10415 = vmatprep.subr.mxu0 0.0
        %10416 = vmatpush1.msra.mxu0 %v10157
        %10417 = vmatprep.subr.mxu0 0.0
        %10418 = vmatpush1.msra.mxu0 %v10158
        %10419 = vmatprep.subr.mxu0 0.0
        %10420 = vmatpush1.msra.mxu0 %v10159
        %10421 = vmatprep.subr.mxu0 0.0
        %10422 = vmatpush1.msra.mxu0 %v10160
        %10423 = vmatprep.subr.mxu0 0.0
        %10424 = vmatpush1.msra.mxu0 %v10161
        %10425 = vmatprep.subr.mxu0 0.0
        %10426 = vmatpush1.msra.mxu0 %v10162
        %10427 = vmatprep.subr.mxu0 0.0
        %10428 = vmatpush1.msra.mxu0 %v10163
        %10429 = vmatprep.subr.mxu0 0.0
        %10430 = vmatpush1.msra.mxu0 %v10164
        %10431 = vmatprep.subr.mxu0 0.0
        %10432 = vmatpush1.msra.mxu0 %v10165
        %10433 = vmatprep.subr.mxu0 0.0
        %10434 = vmatpush1.msra.mxu0 %v10166
        %10435 = vmatprep.subr.mxu0 0.0
        %10436 = vmatpush1.msra.mxu0 %v10167
        %10437 = vmatprep.subr.mxu0 0.0
        %10438 = vmatpush1.msra.mxu0 %v10168
        %10439 = vmatprep.subr.mxu0 0.0
        %10440 = vmatpush1.msra.mxu0 %v10169
        %10441 = vmatprep.subr.mxu0 0.0
        %10442 = vmatpush1.msra.mxu0 %v10170
        %10443 = vmatprep.subr.mxu0 0.0
        %10444 = vmatpush1.msra.mxu0 %v10171
        %10445 = vmatprep.subr.mxu0 0.0
        %10446 = vmatpush1.msra.mxu0 %v10172
        %10447 = vmatprep.subr.mxu0 0.0
        %10448 = vmatpush1.msra.mxu0 %v10173
        %10449 = vmatprep.mubr.f32.mxu0 %v10045
        %10450 = vmatmul.mubr.f32.gmra.mrb[0].mxu0 %v10044
        %v10451 = vpop.f32.mrb[0].mxu0
        %v10452 = vadd.f32 %v10382, %v10451
        %v10453 = vpop.f32.mrb[0].mxu0
        %10454 = vdwg.mxu0
        %v10455 = vsub.f32 %v10452, %v10452
        %v10456 = vmul.f32 %v10455, 1.442695
        %v10457 = vpow.pop %v10456
        %v10458 = vadd.f32 %v10457, 0.0
        %v10459 = vlog2.pop %v10458
        %v10460 = vmul.f32 %v10459, 0.6931472
        %v10461 = vadd.f32 %v10460, %v10452
        %v10462 = vsub.f32 %v10452, %v10461
        %vm10463 = vcmask 0
        %10464 = vst.msk [vmem:[%s709] sm:$0x1] %vm10463, %v10462
        %v10469 = vcombine.low %v7126, %v7139
        %v10470 = vcombine.low %v7152, %v7165
        %v10472 = vunpack.c.l.s4 1966171168
        %v10473 = vunpack.c.0.s8 %v10472
        %v10474 = vlaneseq
        %v10475 = vshrl.u32 %v10474, 7
        %v10476 = vsub.s32 %v10473, %v10475
        %v10477 = vrot.slane %v10469, %v10476
        %v10479 = vunpack.c.l.s4 1966171168
        %v10480 = vunpack.c.0.s8 %v10479
        %v10481 = vlaneseq
        %v10482 = vshrl.u32 %v10481, 7
        %v10483 = vsub.s32 %v10480, %v10482
        %v10484 = vrot.slane %v10470, %v10483
        %v10485 = vcombine.low %v10477, %v10484
        %v10487 = vunpack.c.l.s4 1966171168
        %v10488 = vunpack.c.0.s8 %v10487
        %v10489 = vlaneseq
        %v10490 = vshrl.u32 %v10489, 7
        %v10491 = vsub.s32 %v10488, %v10490
        %v10492 = vrot.slane %v10485, %v10491
        %v10494 = vlaneseq
        %vm10495 = vcmp.ge.s32.totalorder %v10494, 0
        %vm10496 = vcmp.lt.s32.totalorder %v10494, 512
        %vm10497 = vmand %vm10495, %vm10496
        %10498 = vst.msk [vmem:[%s690] sm:$0xf] %vm10497, %v10492
        %v10501 = vcombine.high %v4816, %v4817
        %v10503 = vunpack.c.l.s4 1966171168
        %v10504 = vunpack.c.0.s8 %v10503
        %v10505 = vlaneseq
        %v10506 = vshrl.u32 %v10505, 7
        %v10507 = vsub.s32 %v10504, %v10506
        %v10508 = vrot.slane %v10501, %v10507
        %v10509 = vcombine.high %v10508, %v10508
        %v10511 = vunpack.c.l.s4 1966171168
        %v10512 = vunpack.c.0.s8 %v10511
        %v10513 = vlaneseq
        %v10514 = vshrl.u32 %v10513, 7
        %v10515 = vsub.s32 %v10512, %v10514
        %v10516 = vrot.slane %v10509, %v10515
        %v10517 = vcombine.high %v10516, %v10516
        %vm10519 = vcmp.lt.s32.totalorder %v10494, 256
        %vm10520 = vmand %vm10495, %vm10519
        %10521 = vst.msk [vmem:[%s697] sm:$0x3] %vm10520, %v10517
        %p10522 = scmp.lt.s32.totalorder %s42, 1
        %s10523 = scalar_select %p10522, %s42, 1
        %s10524 = scalar_lea.vmem %s16, %s10523
        %s10525 = sand.u32 %s422, 1
        %s10526 = scalar_lea.sflag [#allocation5], %s10525
        %s10527 = sand.u32 %s422, 1
        %s10528 = smul.addr %s10527, 4
        %s10529 = scalar_lea.vmem [#allocation15], %s10528
        %s10530 = sand.u32 %s448, 1
        %s10531 = scalar_lea.sflag [#allocation17], %s10530
        %s10532 = sand.u32 %s448, 1
        %s10533 = smul.addr %s10532, 2
        %s10534 = scalar_lea.vmem [#allocation16], %s10533
        // Predicated region
        $region113: #{tpu_custom_call.1} parent=83 // pred_check
          %p10535 = pneg %p406
        $region114: #{tpu_custom_call.1} parent=83 // pred_check_branch
          %10537 = sbr.rel (%p10535) target = $region116
        $region115: #{tpu_custom_call.1} parent=83 // pred_region
          _
        $region116: #{tpu_custom_call.1} parent=83 // pred_fallthru
          _
        // Predicated region
        $region117: #{tpu_custom_call.1} parent=83 // pred_check
          %p10538 = pneg %p432
        $region118: #{tpu_custom_call.1} parent=83 // pred_check_branch
          %10540 = sbr.rel (%p10538) target = $region120
        $region119: #{tpu_custom_call.1} parent=83 // pred_region
          %s10542 = ssub.s32 64, 64
          %10543 = vsyncadd %s10526, %s10542
          %s10544 = smul.addr %s42, 4
          %s10545 = smul.addr %s10544, 16
          %s10546 = scalar_lea.hbm %s17, %s10545
          %s10548 = sshll.u32 %s10529, 4
          %s10549 = int_to_ptr.vmem [resolvable:$true] %s10548
          %10551 = dma.vmem_to_hbm [thread:$0]  %s10549, 64, %s10546, %s10526
        $region120: #{tpu_custom_call.1} parent=83 // pred_fallthru
          _
        // Predicated region
        $region121: #{tpu_custom_call.1} parent=83 // pred_check
          %p10552 = pneg %p458
        $region122: #{tpu_custom_call.1} parent=83 // pred_check_branch
          %10554 = sbr.rel (%p10552) target = $region124
        $region123: #{tpu_custom_call.1} parent=83 // pred_region
          %s10556 = ssub.s32 32, 32
          %10557 = vsyncadd %s10531, %s10556
          %s10558 = smul.addr %s42, 2
          %s10559 = smul.addr %s10558, 16
          %s10560 = scalar_lea.hbm %s18, %s10559
          %s10562 = sshll.u32 %s10534, 4
          %s10563 = int_to_ptr.vmem [resolvable:$true] %s10562
          %10565 = dma.vmem_to_hbm [thread:$0]  %s10563, 32, %s10560, %s10531
        $region124: #{tpu_custom_call.1} parent=83 // pred_fallthru
          _
      $region84: #{tpu_custom_call.1} parent=5 // pred_fallthru
        _
      %p10566 = scmp.le.s32.totalorder 2, %s37
      // Predicated region
      $region125: #{tpu_custom_call.1} parent=5 // pred_check
        %p10567 = pneg %p10566
      $region126: #{tpu_custom_call.1} parent=5 // pred_check_branch
        %10569 = sbr.rel (%p10567) target = $region128
      $region127: #{tpu_custom_call.1} parent=5 // pred_region
        %s10570 = ssub.s32 %s37, 2
        // Predicated region
        $region129: #{tpu_custom_call.1} parent=127 // pred_check
          %p10571 = pneg %p412
        $region130: #{tpu_custom_call.1} parent=127 // pred_check_branch
          %10573 = sbr.rel (%p10571) target = $region132
        $region131: #{tpu_custom_call.1} parent=127 // pred_region
          %p10574 = scmp.lt.s32.totalorder %s43, 1
          %s10575 = scalar_select %p10574, %s43, 1
          %s10576 = scalar_lea.vmem %s16, %s10575
        $region132: #{tpu_custom_call.1} parent=127 // pred_fallthru
          _
        // Predicated region
        $region133: #{tpu_custom_call.1} parent=127 // pred_check
          %p10577 = pneg %p438
        $region134: #{tpu_custom_call.1} parent=127 // pred_check_branch
          %10579 = sbr.rel (%p10577) target = $region136
        $region135: #{tpu_custom_call.1} parent=127 // pred_region
          %s10580 = sand.u32 %s423, 1
          %s10581 = scalar_lea.sflag [#allocation5], %s10580
          %s10582 = sand.u32 %s423, 1
          %s10583 = smul.addr %s10582, 4
          %s10584 = scalar_lea.vmem [#allocation15], %s10583
          %10585 = dma.done %s10581, 64
        $region136: #{tpu_custom_call.1} parent=127 // pred_fallthru
          _
        // Predicated region
        $region137: #{tpu_custom_call.1} parent=127 // pred_check
          %p10586 = pneg %p464
        $region138: #{tpu_custom_call.1} parent=127 // pred_check_branch
          %10588 = sbr.rel (%p10586) target = $region140
        $region139: #{tpu_custom_call.1} parent=127 // pred_region
          %s10589 = sand.u32 %s449, 1
          %s10590 = scalar_lea.sflag [#allocation17], %s10589
          %s10591 = sand.u32 %s449, 1
          %s10592 = smul.addr %s10591, 2
          %s10593 = scalar_lea.vmem [#allocation16], %s10592
          %10594 = dma.done %s10590, 32
        $region140: #{tpu_custom_call.1} parent=127 // pred_fallthru
          _
      $region128: #{tpu_custom_call.1} parent=5 // pred_fallthru
        _
    $region6: #{tpu_custom_call.1} parent=1 // loop_footer
      %s41 = sadd.s32 1, %s37
    $region7: #{tpu_custom_call.1} parent=1 // loop_footer_branch
      %36 = sbr.rel target = $region3
    $region8: #{tpu_custom_call.1} parent=1 // loop_exit
      _
    %10595 = vsyncpa [#allocation4], 1
    %s10596 = scalar_lea.sflag [#allocation4], 1
    %10597 = vsyncpa %s10596, 1
    %10598 = vsyncpa [#allocation7], 1
    %10599 = vsyncpa [#allocation10], 1
    %10600 = vsyncpa [#allocation13], 1
    %10601 = vsyncpa [#allocation5], 1
    %s10602 = scalar_lea.sflag [#allocation5], 1
    %10603 = vsyncpa %s10602, 1
    %10604 = vsyncpa [#allocation17], 1
    %s10605 = scalar_lea.sflag [#allocation17], 1
    %10606 = vsyncpa %s10605, 1

</llo_original>
